<compile_context>
chip_gen: v6e
topology: v6e:2x2x1
jax: 0.10.0
libtpu: 0.0.40
codegen_flags: <defaults>
</compile_context>

<pallas_src>
import functools
import math

import jax
import jax.numpy as jnp
from jax.experimental import pallas as pl
from jax.experimental.pallas import tpu as pltpu

# ----------------------------- config (small) ------------------------------
B = 2          # batch
S = 8          # src sequence length
T = 8          # tgt sequence length
D = 32         # d_model
H = 4          # attention heads
DK = D // H    # per-head dim
DFF = 64       # feed-forward hidden
NLAYERS = 2    # encoder/decoder depth
VSRC = 11      # src vocab size
VTGT = 13      # tgt vocab size
PAD = 0
EPS = 1e-6
NEG_INF = -1e9

# --------------------------------------------------------------------------
# Shared per-sequence math.  Used both by the fused Pallas kernel (operating
# on values read from VMEM refs) and by the pure-JAX reference.  All
# activations are 2-D (seq_len, d_model); the batch dimension is the Pallas
# grid (one program per batch element) or a python loop in the reference.
# --------------------------------------------------------------------------

def _layernorm(x, g, b):
    # annotated-transformer LayerNorm: (x - mean) / (std + eps), with torch's
    # default *unbiased* std (ddof=1).
    mean = jnp.mean(x, axis=-1, keepdims=True)
    diff = x - mean
    var = jnp.sum(diff * diff, axis=-1, keepdims=True) / (x.shape[-1] - 1)
    return g * diff / (jnp.sqrt(var) + EPS) + b


def _masked_softmax(scores, keep, use_approx):
    scores = jnp.where(keep, scores, NEG_INF)
    m = jnp.max(scores, axis=-1, keepdims=True)
    e = jnp.exp(scores - m)
    s = jnp.sum(e, axis=-1, keepdims=True)
    if use_approx:
        # EUP reciprocal: free slot once the kernel is fused & compute-visible.
        return e * pl.reciprocal(s, approx=True)
    return e / s


def _attention_heads(q_all, k_all, v_all, keep, use_approx):
    # q_all (Lq, D), k_all / v_all (Lk, D); each head is a contiguous DK-lane
    # slice, so the head split/merge never leaves the kernel.
    scale = 1.0 / math.sqrt(DK)
    outs = []
    for h in range(H):
        sl = slice(h * DK, (h + 1) * DK)
        q, k, v = q_all[:, sl], k_all[:, sl], v_all[:, sl]
        s = jax.lax.dot_general(q, k, (((1,), (1,)), ((), ())),
                                preferred_element_type=jnp.float32) * scale
        p = _masked_softmax(s, keep, use_approx)
        outs.append(jnp.dot(p, v, preferred_element_type=jnp.float32))
    return jnp.concatenate(outs, axis=-1)


def _self_attn(x, qkv_w, qkv_b, o_w, o_b, keep, use_approx):
    # single packed (D, 3D) QKV projection
    qkv = jnp.dot(x, qkv_w, preferred_element_type=jnp.float32) + qkv_b
    o = _attention_heads(qkv[:, :D], qkv[:, D:2 * D], qkv[:, 2 * D:3 * D],
                         keep, use_approx)
    return jnp.dot(o, o_w, preferred_element_type=jnp.float32) + o_b


def _cross_attn(x, mem, q_w, q_b, kv_w, kv_b, o_w, o_b, keep, use_approx):
    q = jnp.dot(x, q_w, preferred_element_type=jnp.float32) + q_b
    kv = jnp.dot(mem, kv_w, preferred_element_type=jnp.float32) + kv_b
    o = _attention_heads(q, kv[:, :D], kv[:, D:2 * D], keep, use_approx)
    return jnp.dot(o, o_w, preferred_element_type=jnp.float32) + o_b


def _ffn(x, w1, b1, w2, b2):
    h = jnp.maximum(jnp.dot(x, w1, preferred_element_type=jnp.float32) + b1, 0.0)
    return jnp.dot(h, w2, preferred_element_type=jnp.float32) + b2


def _forward_one(src_x, tgt_x, pe_s, pe_t, src_keep, tgt_keep, w, use_approx):
    # src_x (S, D) / tgt_x (T, D): gathered (unscaled) token embeddings.
    # src_keep (1, S) bool, tgt_keep (1, T) bool padding masks.
    sqrt_d = math.sqrt(D)

    # ------------------------------ encoder ------------------------------
    # Embeddings * sqrt(d_model) + positional encoding (dropout = eval identity)
    x = src_x * sqrt_d + pe_s
    for l in range(NLAYERS):
        xn = _layernorm(x, w["enc_ln1_g"][l], w["enc_ln1_b"][l])
        x = x + _self_attn(xn, w["enc_qkv_w"][l], w["enc_qkv_b"][l],
                           w["enc_o_w"][l], w["enc_o_b"][l],
                           src_keep, use_approx)
        xn = _layernorm(x, w["enc_ln2_g"][l], w["enc_ln2_b"][l])
        x = x + _ffn(xn, w["enc_ff_w1"][l], w["enc_ff_b1"][l],
                     w["enc_ff_w2"][l], w["enc_ff_b2"][l])
    memory = _layernorm(x, w["enc_ln_g"][...], w["enc_ln_b"][...])

    # ------------------------------ decoder ------------------------------
    row = jax.lax.broadcasted_iota(jnp.int32, (T, T), 0)
    col = jax.lax.broadcasted_iota(jnp.int32, (T, T), 1)
    self_keep = jnp.logical_and(tgt_keep, row >= col)      # pad & causal (T,T)

    y = tgt_x * sqrt_d + pe_t
    for l in range(NLAYERS):
        yn = _layernorm(y, w["dec_ln1_g"][l], w["dec_ln1_b"][l])
        y = y + _self_attn(yn, w["dec_sa_qkv_w"][l], w["dec_sa_qkv_b"][l],
                           w["dec_sa_o_w"][l], w["dec_sa_o_b"][l],
                           self_keep, use_approx)
        yn = _layernorm(y, w["dec_ln2_g"][l], w["dec_ln2_b"][l])
        y = y + _cross_attn(yn, memory,
                            w["dec_ca_q_w"][l], w["dec_ca_q_b"][l],
                            w["dec_ca_kv_w"][l], w["dec_ca_kv_b"][l],
                            w["dec_ca_o_w"][l], w["dec_ca_o_b"][l],
                            src_keep, use_approx)
        yn = _layernorm(y, w["dec_ln3_g"][l], w["dec_ln3_b"][l])
        y = y + _ffn(yn, w["dec_ff_w1"][l], w["dec_ff_b1"][l],
                     w["dec_ff_w2"][l], w["dec_ff_b2"][l])
    return _layernorm(y, w["dec_ln_g"][...], w["dec_ln_b"][...])


# ------------------------------ fused kernel -------------------------------

def _fused_kernel(*refs, treedef):
    # refs = (src_emb, tgt_emb, pe_src, pe_tgt, src_mask, tgt_mask,
    #         *flat_weights, out)
    (src_emb_ref, tgt_emb_ref, pe_s_ref, pe_t_ref,
     src_mask_ref, tgt_mask_ref) = refs[:6]
    w = jax.tree_util.tree_unflatten(treedef, refs[6:-1])   # dict of VMEM refs
    out_ref = refs[-1]

    src_keep = src_mask_ref[0] > 0.0          # (1, S) bool
    tgt_keep = tgt_mask_ref[0] > 0.0          # (1, T) bool

    out_ref[0] = _forward_one(
        src_emb_ref[0], tgt_emb_ref[0], pe_s_ref[...], pe_t_ref[...],
        src_keep, tgt_keep, w, use_approx=True)


def _whole_array_spec(a):
    zeros = (0,) * a.ndim
    return pl.BlockSpec(a.shape, lambda b: zeros)


def encoder_decoder_pallas(emb, w, src, tgt, pe):
    # TODO(synk): the nn.Embedding token-id gather stays as XLA glue feeding
    # the kernel; a DMA-gather kernel is not worthwhile at this vocab size.
    src_x = jnp.take(emb["src_emb"], src, axis=0)             # (B, S, D)
    tgt_x = jnp.take(emb["tgt_emb"], tgt, axis=0)             # (B, T, D)
    src_mask = (src != PAD)[:, None, :].astype(jnp.float32)   # (B, 1, S)
    tgt_mask = (tgt != PAD)[:, None, :].astype(jnp.float32)   # (B, 1, T)
    pe_s, pe_t = pe[:S], pe[:T]

    flat_w, treedef = jax.tree_util.tree_flatten(w)

    data_specs = [
        pl.BlockSpec((1, S, D), lambda b: (b, 0, 0)),   # src embeddings
        pl.BlockSpec((1, T, D), lambda b: (b, 0, 0)),   # tgt embeddings
        pl.BlockSpec((S, D), lambda b: (0, 0)),         # positional enc (src)
        pl.BlockSpec((T, D), lambda b: (0, 0)),         # positional enc (tgt)
        pl.BlockSpec((1, 1, S), lambda b: (b, 0, 0)),   # src padding mask
        pl.BlockSpec((1, 1, T), lambda b: (b, 0, 0)),   # tgt padding mask
    ]
    w_specs = [_whole_array_spec(a) for a in flat_w]    # weights resident in VMEM

    return pl.pallas_call(
        functools.partial(_fused_kernel, treedef=treedef),
        out_shape=jax.ShapeDtypeStruct((B, T, D), jnp.float32),
        grid=(B,),   # one program per batch element -> megacore split on v7x
        in_specs=data_specs + w_specs,
        out_specs=pl.BlockSpec((1, T, D), lambda b: (b, 0, 0)),
        compiler_params=pltpu.CompilerParams(
            dimension_semantics=("parallel",),
            vmem_limit_bytes=32 * 1024 * 1024,
        ),
    )(src_x, tgt_x, pe_s, pe_t, src_mask, tgt_mask, *flat_w)


# -------------------------- pure-JAX reference ------------------------------

def encoder_decoder_ref(emb, w, src, tgt, pe):
    src_x = jnp.take(emb["src_emb"], src, axis=0)
    tgt_x = jnp.take(emb["tgt_emb"], tgt, axis=0)
    src_keep = (src != PAD)[:, None, :]
    tgt_keep = (tgt != PAD)[:, None, :]
    pe_s, pe_t = pe[:S], pe[:T]
    outs = [_forward_one(src_x[b], tgt_x[b], pe_s, pe_t,
                         src_keep[b], tgt_keep[b], w, use_approx=False)
            for b in range(B)]
    return jnp.stack(outs, axis=0)


# ------------------------------ parameter init ------------------------------

def positional_encoding(max_len, d):
    pos = jnp.arange(max_len, dtype=jnp.float32)[:, None]
    div = jnp.exp(jnp.arange(0, d, 2, dtype=jnp.float32) * (-math.log(10000.0) / d))
    pe = jnp.zeros((max_len, d), jnp.float32)
    pe = pe.at[:, 0::2].set(jnp.sin(pos * div))
    pe = pe.at[:, 1::2].set(jnp.cos(pos * div))
    return pe


def init_params(key):
    keys = iter(jax.random.split(key, 64))

    def xav(shape):
        fan_in, fan_out = shape[-2], shape[-1]
        limit = math.sqrt(6.0 / (fan_in + fan_out))
        return jax.random.uniform(next(keys), shape, jnp.float32, -limit, limit)

    def z(shape):
        return jnp.zeros(shape, jnp.float32)

    def o(shape):
        return jnp.ones(shape, jnp.float32)

    NL = NLAYERS
    w = {
        # encoder layer stack (leading dim = layer index)
        "enc_ln1_g": o((NL, 1, D)), "enc_ln1_b": z((NL, 1, D)),
        "enc_qkv_w": xav((NL, D, 3 * D)), "enc_qkv_b": z((NL, 1, 3 * D)),
        "enc_o_w": xav((NL, D, D)), "enc_o_b": z((NL, 1, D)),
        "enc_ln2_g": o((NL, 1, D)), "enc_ln2_b": z((NL, 1, D)),
        "enc_ff_w1": xav((NL, D, DFF)), "enc_ff_b1": z((NL, 1, DFF)),
        "enc_ff_w2": xav((NL, DFF, D)), "enc_ff_b2": z((NL, 1, D)),
        "enc_ln_g": o((1, D)), "enc_ln_b": z((1, D)),
        # decoder layer stack
        "dec_ln1_g": o((NL, 1, D)), "dec_ln1_b": z((NL, 1, D)),
        "dec_sa_qkv_w": xav((NL, D, 3 * D)), "dec_sa_qkv_b": z((NL, 1, 3 * D)),
        "dec_sa_o_w": xav((NL, D, D)), "dec_sa_o_b": z((NL, 1, D)),
        "dec_ln2_g": o((NL, 1, D)), "dec_ln2_b": z((NL, 1, D)),
        "dec_ca_q_w": xav((NL, D, D)), "dec_ca_q_b": z((NL, 1, D)),
        "dec_ca_kv_w": xav((NL, D, 2 * D)), "dec_ca_kv_b": z((NL, 1, 2 * D)),
        "dec_ca_o_w": xav((NL, D, D)), "dec_ca_o_b": z((NL, 1, D)),
        "dec_ln3_g": o((NL, 1, D)), "dec_ln3_b": z((NL, 1, D)),
        "dec_ff_w1": xav((NL, D, DFF)), "dec_ff_b1": z((NL, 1, DFF)),
        "dec_ff_w2": xav((NL, DFF, D)), "dec_ff_b2": z((NL, 1, D)),
        "dec_ln_g": o((1, D)), "dec_ln_b": z((1, D)),
    }
    emb = {"src_emb": xav((VSRC, D)), "tgt_emb": xav((VTGT, D))}
    # generator (D -> VTGT, log_softmax) exists in the module but is not
    # applied inside EncoderDecoder.forward, so it is intentionally omitted.
    return emb, w


# ----------------------------------- main -----------------------------------

if __name__ == "__main__":
    root = jax.random.PRNGKey(0)
    k_param, k_src, k_tgt = jax.random.split(root, 3)

    emb, w = init_params(k_param)
    pe = positional_encoding(max(S, T) + 4, D)

    src = jax.random.randint(k_src, (B, S), 1, VSRC, dtype=jnp.int32)
    tgt = jax.random.randint(k_tgt, (B, T), 1, VTGT, dtype=jnp.int32)
    # add some padding to exercise the masks
    src = src.at[1, 6:].set(PAD)
    tgt = tgt.at[1, 5:].set(PAD)

    fwd_pallas = jax.jit(encoder_decoder_pallas)
    fwd_ref = jax.jit(encoder_decoder_ref)

    out = jax.block_until_ready(fwd_pallas(emb, w, src, tgt, pe))
    ref = jax.block_until_ready(fwd_ref(emb, w, src, tgt, pe))

    assert out.shape == (B, T, D), out.shape
    max_err = float(jnp.max(jnp.abs(out - ref)))
    # Tolerance covers the EUP approximate reciprocal used for the softmax
    # denominator in the kernel (reference uses an exact divide); genuine
    # bugs show up as O(0.1+) errors.
    assert max_err < 2e-2, f"mismatch vs pure-JAX reference: {max_err}"

    print("KERNEL_OK")
</pallas_src>

<mosaic_0001>
module attributes {stable_mosaic.version = 11 : i64} {
  func.func @_fused_kernel(%arg0: i32, %arg1: memref<1x8x32xf32, #tpu.memory_space<vmem>>, %arg2: memref<1x8x32xf32, #tpu.memory_space<vmem>>, %arg3: memref<8x32xf32, #tpu.memory_space<vmem>>, %arg4: memref<8x32xf32, #tpu.memory_space<vmem>>, %arg5: memref<1x1x8xf32, #tpu.memory_space<vmem>>, %arg6: memref<1x1x8xf32, #tpu.memory_space<vmem>>, %arg7: memref<2x1x64xf32, #tpu.memory_space<vmem>>, %arg8: memref<2x32x64xf32, #tpu.memory_space<vmem>>, %arg9: memref<2x1x32xf32, #tpu.memory_space<vmem>>, %arg10: memref<2x32x32xf32, #tpu.memory_space<vmem>>, %arg11: memref<2x1x32xf32, #tpu.memory_space<vmem>>, %arg12: memref<2x32x32xf32, #tpu.memory_space<vmem>>, %arg13: memref<2x1x64xf32, #tpu.memory_space<vmem>>, %arg14: memref<2x1x32xf32, #tpu.memory_space<vmem>>, %arg15: memref<2x32x64xf32, #tpu.memory_space<vmem>>, %arg16: memref<2x64x32xf32, #tpu.memory_space<vmem>>, %arg17: memref<2x1x32xf32, #tpu.memory_space<vmem>>, %arg18: memref<2x1x32xf32, #tpu.memory_space<vmem>>, %arg19: memref<2x1x32xf32, #tpu.memory_space<vmem>>, %arg20: memref<2x1x32xf32, #tpu.memory_space<vmem>>, %arg21: memref<2x1x32xf32, #tpu.memory_space<vmem>>, %arg22: memref<2x1x32xf32, #tpu.memory_space<vmem>>, %arg23: memref<1x32xf32, #tpu.memory_space<vmem>>, %arg24: memref<1x32xf32, #tpu.memory_space<vmem>>, %arg25: memref<2x1x32xf32, #tpu.memory_space<vmem>>, %arg26: memref<2x32x32xf32, #tpu.memory_space<vmem>>, %arg27: memref<2x1x96xf32, #tpu.memory_space<vmem>>, %arg28: memref<2x32x96xf32, #tpu.memory_space<vmem>>, %arg29: memref<2x1x64xf32, #tpu.memory_space<vmem>>, %arg30: memref<2x1x32xf32, #tpu.memory_space<vmem>>, %arg31: memref<2x32x64xf32, #tpu.memory_space<vmem>>, %arg32: memref<2x64x32xf32, #tpu.memory_space<vmem>>, %arg33: memref<2x1x32xf32, #tpu.memory_space<vmem>>, %arg34: memref<2x1x32xf32, #tpu.memory_space<vmem>>, %arg35: memref<2x1x32xf32, #tpu.memory_space<vmem>>, %arg36: memref<2x1x32xf32, #tpu.memory_space<vmem>>, %arg37: memref<1x32xf32, #tpu.memory_space<vmem>>, %arg38: memref<1x32xf32, #tpu.memory_space<vmem>>, %arg39: memref<2x1x32xf32, #tpu.memory_space<vmem>>, %arg40: memref<2x32x32xf32, #tpu.memory_space<vmem>>, %arg41: memref<2x1x96xf32, #tpu.memory_space<vmem>>, %arg42: memref<2x32x96xf32, #tpu.memory_space<vmem>>, %arg43: memref<1x8x32xf32, #tpu.memory_space<vmem>>) attributes {dimension_semantics = [#tpu.dimension_semantics<parallel>], iteration_bounds = array<i64: 2>, scalar_prefetch = 0 : i64, scratch_operands = 0 : i64, tpu.core_type = #tpu.core_type<tc>, window_params = [{transform_indices = @transform_0, window_bounds = array<i64: 1, 8, 32>}, {transform_indices = @transform_1, window_bounds = array<i64: 1, 8, 32>}, {pipeline_mode = #tpu.pipeline_mode<synchronous>, transform_indices = @transform_2, window_bounds = array<i64: 8, 32>}, {pipeline_mode = #tpu.pipeline_mode<synchronous>, transform_indices = @transform_3, window_bounds = array<i64: 8, 32>}, {transform_indices = @transform_4, window_bounds = array<i64: 1, 1, 8>}, {transform_indices = @transform_5, window_bounds = array<i64: 1, 1, 8>}, {pipeline_mode = #tpu.pipeline_mode<synchronous>, transform_indices = @transform_6, window_bounds = array<i64: 2, 1, 64>}, {pipeline_mode = #tpu.pipeline_mode<synchronous>, transform_indices = @transform_7, window_bounds = array<i64: 2, 32, 64>}, {pipeline_mode = #tpu.pipeline_mode<synchronous>, transform_indices = @transform_8, window_bounds = array<i64: 2, 1, 32>}, {pipeline_mode = #tpu.pipeline_mode<synchronous>, transform_indices = @transform_9, window_bounds = array<i64: 2, 32, 32>}, {pipeline_mode = #tpu.pipeline_mode<synchronous>, transform_indices = @transform_10, window_bounds = array<i64: 2, 1, 32>}, {pipeline_mode = #tpu.pipeline_mode<synchronous>, transform_indices = @transform_11, window_bounds = array<i64: 2, 32, 32>}, {pipeline_mode = #tpu.pipeline_mode<synchronous>, transform_indices = @transform_12, window_bounds = array<i64: 2, 1, 64>}, {pipeline_mode = #tpu.pipeline_mode<synchronous>, transform_indices = @transform_13, window_bounds = array<i64: 2, 1, 32>}, {pipeline_mode = #tpu.pipeline_mode<synchronous>, transform_indices = @transform_14, window_bounds = array<i64: 2, 32, 64>}, {pipeline_mode = #tpu.pipeline_mode<synchronous>, transform_indices = @transform_15, window_bounds = array<i64: 2, 64, 32>}, {pipeline_mode = #tpu.pipeline_mode<synchronous>, transform_indices = @transform_16, window_bounds = array<i64: 2, 1, 32>}, {pipeline_mode = #tpu.pipeline_mode<synchronous>, transform_indices = @transform_17, window_bounds = array<i64: 2, 1, 32>}, {pipeline_mode = #tpu.pipeline_mode<synchronous>, transform_indices = @transform_18, window_bounds = array<i64: 2, 1, 32>}, {pipeline_mode = #tpu.pipeline_mode<synchronous>, transform_indices = @transform_19, window_bounds = array<i64: 2, 1, 32>}, {pipeline_mode = #tpu.pipeline_mode<synchronous>, transform_indices = @transform_20, window_bounds = array<i64: 2, 1, 32>}, {pipeline_mode = #tpu.pipeline_mode<synchronous>, transform_indices = @transform_21, window_bounds = array<i64: 2, 1, 32>}, {pipeline_mode = #tpu.pipeline_mode<synchronous>, transform_indices = @transform_22, window_bounds = array<i64: 1, 32>}, {pipeline_mode = #tpu.pipeline_mode<synchronous>, transform_indices = @transform_23, window_bounds = array<i64: 1, 32>}, {pipeline_mode = #tpu.pipeline_mode<synchronous>, transform_indices = @transform_24, window_bounds = array<i64: 2, 1, 32>}, {pipeline_mode = #tpu.pipeline_mode<synchronous>, transform_indices = @transform_25, window_bounds = array<i64: 2, 32, 32>}, {pipeline_mode = #tpu.pipeline_mode<synchronous>, transform_indices = @transform_26, window_bounds = array<i64: 2, 1, 96>}, {pipeline_mode = #tpu.pipeline_mode<synchronous>, transform_indices = @transform_27, window_bounds = array<i64: 2, 32, 96>}, {pipeline_mode = #tpu.pipeline_mode<synchronous>, transform_indices = @transform_28, window_bounds = array<i64: 2, 1, 64>}, {pipeline_mode = #tpu.pipeline_mode<synchronous>, transform_indices = @transform_29, window_bounds = array<i64: 2, 1, 32>}, {pipeline_mode = #tpu.pipeline_mode<synchronous>, transform_indices = @transform_30, window_bounds = array<i64: 2, 32, 64>}, {pipeline_mode = #tpu.pipeline_mode<synchronous>, transform_indices = @transform_31, window_bounds = array<i64: 2, 64, 32>}, {pipeline_mode = #tpu.pipeline_mode<synchronous>, transform_indices = @transform_32, window_bounds = array<i64: 2, 1, 32>}, {pipeline_mode = #tpu.pipeline_mode<synchronous>, transform_indices = @transform_33, window_bounds = array<i64: 2, 1, 32>}, {pipeline_mode = #tpu.pipeline_mode<synchronous>, transform_indices = @transform_34, window_bounds = array<i64: 2, 1, 32>}, {pipeline_mode = #tpu.pipeline_mode<synchronous>, transform_indices = @transform_35, window_bounds = array<i64: 2, 1, 32>}, {pipeline_mode = #tpu.pipeline_mode<synchronous>, transform_indices = @transform_36, window_bounds = array<i64: 1, 32>}, {pipeline_mode = #tpu.pipeline_mode<synchronous>, transform_indices = @transform_37, window_bounds = array<i64: 1, 32>}, {pipeline_mode = #tpu.pipeline_mode<synchronous>, transform_indices = @transform_38, window_bounds = array<i64: 2, 1, 32>}, {pipeline_mode = #tpu.pipeline_mode<synchronous>, transform_indices = @transform_39, window_bounds = array<i64: 2, 32, 32>}, {pipeline_mode = #tpu.pipeline_mode<synchronous>, transform_indices = @transform_40, window_bounds = array<i64: 2, 1, 96>}, {pipeline_mode = #tpu.pipeline_mode<synchronous>, transform_indices = @transform_41, window_bounds = array<i64: 2, 32, 96>}, {transform_indices = @transform_42, window_bounds = array<i64: 1, 8, 32>}]} {
    %c0 = arith.constant 0 : index
    %c0_0 = arith.constant 0 : index
    %c0_1 = arith.constant 0 : index
    %0 = vector.load %arg5[%c0, %c0_0, %c0_1] : memref<1x1x8xf32, #tpu.memory_space<vmem>>, vector<1x1x8xf32>
    %1 = vector.shape_cast %0 : vector<1x1x8xf32> to vector<1x8xf32>
    %cst = arith.constant 0.000000e+00 : f32
    %2 = vector.broadcast %cst : f32 to vector<1x8xf32>
    %3 = arith.cmpf ogt, %1, %2 : vector<1x8xf32>
    %c0_2 = arith.constant 0 : index
    %c0_3 = arith.constant 0 : index
    %c0_4 = arith.constant 0 : index
    %4 = vector.load %arg6[%c0_2, %c0_3, %c0_4] : memref<1x1x8xf32, #tpu.memory_space<vmem>>, vector<1x1x8xf32>
    %5 = vector.shape_cast %4 : vector<1x1x8xf32> to vector<1x8xf32>
    %cst_5 = arith.constant 0.000000e+00 : f32
    %6 = vector.broadcast %cst_5 : f32 to vector<1x8xf32>
    %7 = arith.cmpf ogt, %5, %6 : vector<1x8xf32>
    %c0_6 = arith.constant 0 : index
    %c0_7 = arith.constant 0 : index
    %c0_8 = arith.constant 0 : index
    %8 = vector.load %arg1[%c0_6, %c0_7, %c0_8] : memref<1x8x32xf32, #tpu.memory_space<vmem>>, vector<1x8x32xf32>
    %9 = vector.shape_cast %8 : vector<1x8x32xf32> to vector<8x32xf32>
    %c0_9 = arith.constant 0 : index
    %c0_10 = arith.constant 0 : index
    %c0_11 = arith.constant 0 : index
    %10 = vector.load %arg2[%c0_9, %c0_10, %c0_11] : memref<1x8x32xf32, #tpu.memory_space<vmem>>, vector<1x8x32xf32>
    %11 = vector.shape_cast %10 : vector<1x8x32xf32> to vector<8x32xf32>
    %c0_12 = arith.constant 0 : index
    %c0_13 = arith.constant 0 : index
    %12 = vector.load %arg3[%c0_12, %c0_13] : memref<8x32xf32, #tpu.memory_space<vmem>>, vector<8x32xf32>
    %c0_14 = arith.constant 0 : index
    %c0_15 = arith.constant 0 : index
    %13 = vector.load %arg4[%c0_14, %c0_15] : memref<8x32xf32, #tpu.memory_space<vmem>>, vector<8x32xf32>
    %cst_16 = arith.constant 5.65685415 : f32
    %14 = vector.broadcast %cst_16 : f32 to vector<8x32xf32>
    %15 = arith.mulf %9, %14 : vector<8x32xf32>
    %16 = arith.addf %15, %12 : vector<8x32xf32>
    %c0_17 = arith.constant 0 : index
    %c0_18 = arith.constant 0 : index
    %c0_19 = arith.constant 0 : index
    %17 = vector.load %arg34[%c0_17, %c0_18, %c0_19] : memref<2x1x32xf32, #tpu.memory_space<vmem>>, vector<1x1x32xf32>
    %18 = vector.shape_cast %17 : vector<1x1x32xf32> to vector<1x32xf32>
    %c0_20 = arith.constant 0 : index
    %c0_21 = arith.constant 0 : index
    %c0_22 = arith.constant 0 : index
    %19 = vector.load %arg33[%c0_20, %c0_21, %c0_22] : memref<2x1x32xf32, #tpu.memory_space<vmem>>, vector<1x1x32xf32>
    %20 = vector.shape_cast %19 : vector<1x1x32xf32> to vector<1x32xf32>
    %cst_23 = arith.constant dense<0.000000e+00> : vector<8xf32>
    %21 = vector.multi_reduction <add>, %16, %cst_23 [1] : vector<8x32xf32> to vector<8xf32>
    %22 = vector.shape_cast %21 : vector<8xf32> to vector<8x1xf32>
    %cst_24 = arith.constant 3.200000e+01 : f32
    %23 = vector.broadcast %cst_24 : f32 to vector<8x1xf32>
    %24 = arith.divf %22, %23 : vector<8x1xf32>
    %25 = vector.broadcast %24 : vector<8x1xf32> to vector<8x32xf32>
    %26 = arith.subf %16, %25 : vector<8x32xf32>
    %27 = arith.mulf %26, %26 : vector<8x32xf32>
    %cst_25 = arith.constant dense<0.000000e+00> : vector<8xf32>
    %28 = vector.multi_reduction <add>, %27, %cst_25 [1] : vector<8x32xf32> to vector<8xf32>
    %29 = vector.shape_cast %28 : vector<8xf32> to vector<8x1xf32>
    %cst_26 = arith.constant 3.100000e+01 : f32
    %30 = vector.broadcast %cst_26 : f32 to vector<8x1xf32>
    %31 = arith.divf %29, %30 : vector<8x1xf32>
    %32 = vector.broadcast %18 : vector<1x32xf32> to vector<8x32xf32>
    %33 = arith.mulf %32, %26 : vector<8x32xf32>
    %34 = math.sqrt %31 : vector<8x1xf32>
    %cst_27 = arith.constant 9.99999997E-7 : f32
    %35 = vector.broadcast %cst_27 : f32 to vector<8x1xf32>
    %36 = arith.addf %34, %35 : vector<8x1xf32>
    %37 = vector.broadcast %36 : vector<8x1xf32> to vector<8x32xf32>
    %38 = arith.divf %33, %37 : vector<8x32xf32>
    %39 = vector.broadcast %20 : vector<1x32xf32> to vector<8x32xf32>
    %40 = arith.addf %38, %39 : vector<8x32xf32>
    %c0_28 = arith.constant 0 : index
    %c0_29 = arith.constant 0 : index
    %c0_30 = arith.constant 0 : index
    %41 = vector.load %arg42[%c0_28, %c0_29, %c0_30] : memref<2x32x96xf32, #tpu.memory_space<vmem>>, vector<1x32x96xf32>
    %42 = vector.shape_cast %41 : vector<1x32x96xf32> to vector<32x96xf32>
    %c0_31 = arith.constant 0 : index
    %c0_32 = arith.constant 0 : index
    %c0_33 = arith.constant 0 : index
    %43 = vector.load %arg41[%c0_31, %c0_32, %c0_33] : memref<2x1x96xf32, #tpu.memory_space<vmem>>, vector<1x1x96xf32>
    %44 = vector.shape_cast %43 : vector<1x1x96xf32> to vector<1x96xf32>
    %c0_34 = arith.constant 0 : index
    %c0_35 = arith.constant 0 : index
    %c0_36 = arith.constant 0 : index
    %45 = vector.load %arg40[%c0_34, %c0_35, %c0_36] : memref<2x32x32xf32, #tpu.memory_space<vmem>>, vector<1x32x32xf32>
    %46 = vector.shape_cast %45 : vector<1x32x32xf32> to vector<32x32xf32>
    %c0_37 = arith.constant 0 : index
    %c0_38 = arith.constant 0 : index
    %c0_39 = arith.constant 0 : index
    %47 = vector.load %arg39[%c0_37, %c0_38, %c0_39] : memref<2x1x32xf32, #tpu.memory_space<vmem>>, vector<1x1x32xf32>
    %48 = vector.shape_cast %47 : vector<1x1x32xf32> to vector<1x32xf32>
    %cst_40 = arith.constant dense<0.000000e+00> : vector<8x96xf32>
    %49 = tpu.matmul %40, %42, %cst_40 {dimension_numbers = #tpu.dot_dimension_numbers<[1], [0], [0], [1], [0, 0, 1, 1], [], []>} : vector<8x32xf32>, vector<32x96xf32>, vector<8x96xf32> -> vector<8x96xf32>
    %50 = vector.broadcast %44 : vector<1x96xf32> to vector<8x96xf32>
    %51 = arith.addf %49, %50 : vector<8x96xf32>
    %52 = vector.extract_strided_slice %51 {offsets = [0, 0], sizes = [8, 32], strides = [1, 1]} : vector<8x96xf32> to vector<8x32xf32>
    %53 = vector.extract_strided_slice %51 {offsets = [0, 32], sizes = [8, 32], strides = [1, 1]} : vector<8x96xf32> to vector<8x32xf32>
    %54 = vector.extract_strided_slice %51 {offsets = [0, 64], sizes = [8, 32], strides = [1, 1]} : vector<8x96xf32> to vector<8x32xf32>
    %55 = vector.extract_strided_slice %52 {offsets = [0, 0], sizes = [8, 8], strides = [1, 1]} : vector<8x32xf32> to vector<8x8xf32>
    %56 = vector.extract_strided_slice %53 {offsets = [0, 0], sizes = [8, 8], strides = [1, 1]} : vector<8x32xf32> to vector<8x8xf32>
    %57 = vector.extract_strided_slice %54 {offsets = [0, 0], sizes = [8, 8], strides = [1, 1]} : vector<8x32xf32> to vector<8x8xf32>
    %cst_41 = arith.constant dense<0.000000e+00> : vector<8x8xf32>
    %58 = tpu.matmul %55, %56, %cst_41 {dimension_numbers = #tpu.dot_dimension_numbers<[1], [1], [0], [0], [0, 0, 1, 0], [], []>} : vector<8x8xf32>, vector<8x8xf32>, vector<8x8xf32> -> vector<8x8xf32>
    %cst_42 = arith.constant 0.353553385 : f32
    %59 = vector.broadcast %cst_42 : f32 to vector<8x8xf32>
    %60 = arith.mulf %58, %59 : vector<8x8xf32>
    %cst_43 = arith.constant -1.000000e+09 : f32
    %61 = vector.shape_cast %3 : vector<1x8xi1> to vector<1x8xi1>
    %62 = vector.broadcast %61 : vector<1x8xi1> to vector<8x8xi1>
    %63 = vector.broadcast %cst_43 : f32 to vector<8x8xf32>
    %64 = arith.select %62, %60, %63 : vector<8x8xi1>, vector<8x8xf32>
    %cst_44 = arith.constant dense<0xFF800000> : vector<8xf32>
    %65 = vector.multi_reduction <maximumf>, %64, %cst_44 [1] : vector<8x8xf32> to vector<8xf32>
    %66 = vector.shape_cast %65 : vector<8xf32> to vector<8x1xf32>
    %67 = vector.broadcast %66 : vector<8x1xf32> to vector<8x8xf32>
    %68 = arith.subf %64, %67 : vector<8x8xf32>
    %69 = math.exp %68 : vector<8x8xf32>
    %cst_45 = arith.constant dense<0.000000e+00> : vector<8xf32>
    %70 = vector.multi_reduction <add>, %69, %cst_45 [1] : vector<8x8xf32> to vector<8xf32>
    %71 = vector.shape_cast %70 : vector<8xf32> to vector<8x1xf32>
    %72 = tpu.reciprocal %71 {approx = true} : vector<8x1xf32> -> vector<8x1xf32>
    %73 = vector.broadcast %72 : vector<8x1xf32> to vector<8x8xf32>
    %74 = arith.mulf %69, %73 : vector<8x8xf32>
    %cst_46 = arith.constant dense<0.000000e+00> : vector<8x8xf32>
    %75 = tpu.matmul %74, %57, %cst_46 {dimension_numbers = #tpu.dot_dimension_numbers<[1], [0], [0], [1], [0, 0, 1, 1], [], []>} : vector<8x8xf32>, vector<8x8xf32>, vector<8x8xf32> -> vector<8x8xf32>
    %76 = vector.extract_strided_slice %52 {offsets = [0, 8], sizes = [8, 8], strides = [1, 1]} : vector<8x32xf32> to vector<8x8xf32>
    %77 = vector.extract_strided_slice %53 {offsets = [0, 8], sizes = [8, 8], strides = [1, 1]} : vector<8x32xf32> to vector<8x8xf32>
    %78 = vector.extract_strided_slice %54 {offsets = [0, 8], sizes = [8, 8], strides = [1, 1]} : vector<8x32xf32> to vector<8x8xf32>
    %cst_47 = arith.constant dense<0.000000e+00> : vector<8x8xf32>
    %79 = tpu.matmul %76, %77, %cst_47 {dimension_numbers = #tpu.dot_dimension_numbers<[1], [1], [0], [0], [0, 0, 1, 0], [], []>} : vector<8x8xf32>, vector<8x8xf32>, vector<8x8xf32> -> vector<8x8xf32>
    %cst_48 = arith.constant 0.353553385 : f32
    %80 = vector.broadcast %cst_48 : f32 to vector<8x8xf32>
    %81 = arith.mulf %79, %80 : vector<8x8xf32>
    %cst_49 = arith.constant -1.000000e+09 : f32
    %82 = vector.shape_cast %3 : vector<1x8xi1> to vector<1x8xi1>
    %83 = vector.broadcast %82 : vector<1x8xi1> to vector<8x8xi1>
    %84 = vector.broadcast %cst_49 : f32 to vector<8x8xf32>
    %85 = arith.select %83, %81, %84 : vector<8x8xi1>, vector<8x8xf32>
    %cst_50 = arith.constant dense<0xFF800000> : vector<8xf32>
    %86 = vector.multi_reduction <maximumf>, %85, %cst_50 [1] : vector<8x8xf32> to vector<8xf32>
    %87 = vector.shape_cast %86 : vector<8xf32> to vector<8x1xf32>
    %88 = vector.broadcast %87 : vector<8x1xf32> to vector<8x8xf32>
    %89 = arith.subf %85, %88 : vector<8x8xf32>
    %90 = math.exp %89 : vector<8x8xf32>
    %cst_51 = arith.constant dense<0.000000e+00> : vector<8xf32>
    %91 = vector.multi_reduction <add>, %90, %cst_51 [1] : vector<8x8xf32> to vector<8xf32>
    %92 = vector.shape_cast %91 : vector<8xf32> to vector<8x1xf32>
    %93 = tpu.reciprocal %92 {approx = true} : vector<8x1xf32> -> vector<8x1xf32>
    %94 = vector.broadcast %93 : vector<8x1xf32> to vector<8x8xf32>
    %95 = arith.mulf %90, %94 : vector<8x8xf32>
    %cst_52 = arith.constant dense<0.000000e+00> : vector<8x8xf32>
    %96 = tpu.matmul %95, %78, %cst_52 {dimension_numbers = #tpu.dot_dimension_numbers<[1], [0], [0], [1], [0, 0, 1, 1], [], []>} : vector<8x8xf32>, vector<8x8xf32>, vector<8x8xf32> -> vector<8x8xf32>
    %97 = vector.extract_strided_slice %52 {offsets = [0, 16], sizes = [8, 8], strides = [1, 1]} : vector<8x32xf32> to vector<8x8xf32>
    %98 = vector.extract_strided_slice %53 {offsets = [0, 16], sizes = [8, 8], strides = [1, 1]} : vector<8x32xf32> to vector<8x8xf32>
    %99 = vector.extract_strided_slice %54 {offsets = [0, 16], sizes = [8, 8], strides = [1, 1]} : vector<8x32xf32> to vector<8x8xf32>
    %cst_53 = arith.constant dense<0.000000e+00> : vector<8x8xf32>
    %100 = tpu.matmul %97, %98, %cst_53 {dimension_numbers = #tpu.dot_dimension_numbers<[1], [1], [0], [0], [0, 0, 1, 0], [], []>} : vector<8x8xf32>, vector<8x8xf32>, vector<8x8xf32> -> vector<8x8xf32>
    %cst_54 = arith.constant 0.353553385 : f32
    %101 = vector.broadcast %cst_54 : f32 to vector<8x8xf32>
    %102 = arith.mulf %100, %101 : vector<8x8xf32>
    %cst_55 = arith.constant -1.000000e+09 : f32
    %103 = vector.shape_cast %3 : vector<1x8xi1> to vector<1x8xi1>
    %104 = vector.broadcast %103 : vector<1x8xi1> to vector<8x8xi1>
    %105 = vector.broadcast %cst_55 : f32 to vector<8x8xf32>
    %106 = arith.select %104, %102, %105 : vector<8x8xi1>, vector<8x8xf32>
    %cst_56 = arith.constant dense<0xFF800000> : vector<8xf32>
    %107 = vector.multi_reduction <maximumf>, %106, %cst_56 [1] : vector<8x8xf32> to vector<8xf32>
    %108 = vector.shape_cast %107 : vector<8xf32> to vector<8x1xf32>
    %109 = vector.broadcast %108 : vector<8x1xf32> to vector<8x8xf32>
    %110 = arith.subf %106, %109 : vector<8x8xf32>
    %111 = math.exp %110 : vector<8x8xf32>
    %cst_57 = arith.constant dense<0.000000e+00> : vector<8xf32>
    %112 = vector.multi_reduction <add>, %111, %cst_57 [1] : vector<8x8xf32> to vector<8xf32>
    %113 = vector.shape_cast %112 : vector<8xf32> to vector<8x1xf32>
    %114 = tpu.reciprocal %113 {approx = true} : vector<8x1xf32> -> vector<8x1xf32>
    %115 = vector.broadcast %114 : vector<8x1xf32> to vector<8x8xf32>
    %116 = arith.mulf %111, %115 : vector<8x8xf32>
    %cst_58 = arith.constant dense<0.000000e+00> : vector<8x8xf32>
    %117 = tpu.matmul %116, %99, %cst_58 {dimension_numbers = #tpu.dot_dimension_numbers<[1], [0], [0], [1], [0, 0, 1, 1], [], []>} : vector<8x8xf32>, vector<8x8xf32>, vector<8x8xf32> -> vector<8x8xf32>
    %118 = vector.extract_strided_slice %52 {offsets = [0, 24], sizes = [8, 8], strides = [1, 1]} : vector<8x32xf32> to vector<8x8xf32>
    %119 = vector.extract_strided_slice %53 {offsets = [0, 24], sizes = [8, 8], strides = [1, 1]} : vector<8x32xf32> to vector<8x8xf32>
    %120 = vector.extract_strided_slice %54 {offsets = [0, 24], sizes = [8, 8], strides = [1, 1]} : vector<8x32xf32> to vector<8x8xf32>
    %cst_59 = arith.constant dense<0.000000e+00> : vector<8x8xf32>
    %121 = tpu.matmul %118, %119, %cst_59 {dimension_numbers = #tpu.dot_dimension_numbers<[1], [1], [0], [0], [0, 0, 1, 0], [], []>} : vector<8x8xf32>, vector<8x8xf32>, vector<8x8xf32> -> vector<8x8xf32>
    %cst_60 = arith.constant 0.353553385 : f32
    %122 = vector.broadcast %cst_60 : f32 to vector<8x8xf32>
    %123 = arith.mulf %121, %122 : vector<8x8xf32>
    %cst_61 = arith.constant -1.000000e+09 : f32
    %124 = vector.shape_cast %3 : vector<1x8xi1> to vector<1x8xi1>
    %125 = vector.broadcast %124 : vector<1x8xi1> to vector<8x8xi1>
    %126 = vector.broadcast %cst_61 : f32 to vector<8x8xf32>
    %127 = arith.select %125, %123, %126 : vector<8x8xi1>, vector<8x8xf32>
    %cst_62 = arith.constant dense<0xFF800000> : vector<8xf32>
    %128 = vector.multi_reduction <maximumf>, %127, %cst_62 [1] : vector<8x8xf32> to vector<8xf32>
    %129 = vector.shape_cast %128 : vector<8xf32> to vector<8x1xf32>
    %130 = vector.broadcast %129 : vector<8x1xf32> to vector<8x8xf32>
    %131 = arith.subf %127, %130 : vector<8x8xf32>
    %132 = math.exp %131 : vector<8x8xf32>
    %cst_63 = arith.constant dense<0.000000e+00> : vector<8xf32>
    %133 = vector.multi_reduction <add>, %132, %cst_63 [1] : vector<8x8xf32> to vector<8xf32>
    %134 = vector.shape_cast %133 : vector<8xf32> to vector<8x1xf32>
    %135 = tpu.reciprocal %134 {approx = true} : vector<8x1xf32> -> vector<8x1xf32>
    %136 = vector.broadcast %135 : vector<8x1xf32> to vector<8x8xf32>
    %137 = arith.mulf %132, %136 : vector<8x8xf32>
    %cst_64 = arith.constant dense<0.000000e+00> : vector<8x8xf32>
    %138 = tpu.matmul %137, %120, %cst_64 {dimension_numbers = #tpu.dot_dimension_numbers<[1], [0], [0], [1], [0, 0, 1, 1], [], []>} : vector<8x8xf32>, vector<8x8xf32>, vector<8x8xf32> -> vector<8x8xf32>
    %139 = tpu.concatenate %75, %96, %117, %138 in 1 : vector<8x8xf32>, vector<8x8xf32>, vector<8x8xf32>, vector<8x8xf32> -> vector<8x32xf32>
    %cst_65 = arith.constant dense<0.000000e+00> : vector<8x32xf32>
    %140 = tpu.matmul %139, %46, %cst_65 {dimension_numbers = #tpu.dot_dimension_numbers<[1], [0], [0], [1], [0, 0, 1, 1], [], []>} : vector<8x32xf32>, vector<32x32xf32>, vector<8x32xf32> -> vector<8x32xf32>
    %141 = vector.broadcast %48 : vector<1x32xf32> to vector<8x32xf32>
    %142 = arith.addf %140, %141 : vector<8x32xf32>
    %143 = arith.addf %16, %142 : vector<8x32xf32>
    %c0_66 = arith.constant 0 : index
    %c0_67 = arith.constant 0 : index
    %c0_68 = arith.constant 0 : index
    %144 = vector.load %arg36[%c0_66, %c0_67, %c0_68] : memref<2x1x32xf32, #tpu.memory_space<vmem>>, vector<1x1x32xf32>
    %145 = vector.shape_cast %144 : vector<1x1x32xf32> to vector<1x32xf32>
    %c0_69 = arith.constant 0 : index
    %c0_70 = arith.constant 0 : index
    %c0_71 = arith.constant 0 : index
    %146 = vector.load %arg35[%c0_69, %c0_70, %c0_71] : memref<2x1x32xf32, #tpu.memory_space<vmem>>, vector<1x1x32xf32>
    %147 = vector.shape_cast %146 : vector<1x1x32xf32> to vector<1x32xf32>
    %cst_72 = arith.constant dense<0.000000e+00> : vector<8xf32>
    %148 = vector.multi_reduction <add>, %143, %cst_72 [1] : vector<8x32xf32> to vector<8xf32>
    %149 = vector.shape_cast %148 : vector<8xf32> to vector<8x1xf32>
    %cst_73 = arith.constant 3.200000e+01 : f32
    %150 = vector.broadcast %cst_73 : f32 to vector<8x1xf32>
    %151 = arith.divf %149, %150 : vector<8x1xf32>
    %152 = vector.broadcast %151 : vector<8x1xf32> to vector<8x32xf32>
    %153 = arith.subf %143, %152 : vector<8x32xf32>
    %154 = arith.mulf %153, %153 : vector<8x32xf32>
    %cst_74 = arith.constant dense<0.000000e+00> : vector<8xf32>
    %155 = vector.multi_reduction <add>, %154, %cst_74 [1] : vector<8x32xf32> to vector<8xf32>
    %156 = vector.shape_cast %155 : vector<8xf32> to vector<8x1xf32>
    %cst_75 = arith.constant 3.100000e+01 : f32
    %157 = vector.broadcast %cst_75 : f32 to vector<8x1xf32>
    %158 = arith.divf %156, %157 : vector<8x1xf32>
    %159 = vector.broadcast %145 : vector<1x32xf32> to vector<8x32xf32>
    %160 = arith.mulf %159, %153 : vector<8x32xf32>
    %161 = math.sqrt %158 : vector<8x1xf32>
    %cst_76 = arith.constant 9.99999997E-7 : f32
    %162 = vector.broadcast %cst_76 : f32 to vector<8x1xf32>
    %163 = arith.addf %161, %162 : vector<8x1xf32>
    %164 = vector.broadcast %163 : vector<8x1xf32> to vector<8x32xf32>
    %165 = arith.divf %160, %164 : vector<8x32xf32>
    %166 = vector.broadcast %147 : vector<1x32xf32> to vector<8x32xf32>
    %167 = arith.addf %165, %166 : vector<8x32xf32>
    %c0_77 = arith.constant 0 : index
    %c0_78 = arith.constant 0 : index
    %c0_79 = arith.constant 0 : index
    %168 = vector.load %arg31[%c0_77, %c0_78, %c0_79] : memref<2x32x64xf32, #tpu.memory_space<vmem>>, vector<1x32x64xf32>
    %169 = vector.shape_cast %168 : vector<1x32x64xf32> to vector<32x64xf32>
    %c0_80 = arith.constant 0 : index
    %c0_81 = arith.constant 0 : index
    %c0_82 = arith.constant 0 : index
    %170 = vector.load %arg29[%c0_80, %c0_81, %c0_82] : memref<2x1x64xf32, #tpu.memory_space<vmem>>, vector<1x1x64xf32>
    %171 = vector.shape_cast %170 : vector<1x1x64xf32> to vector<1x64xf32>
    %c0_83 = arith.constant 0 : index
    %c0_84 = arith.constant 0 : index
    %c0_85 = arith.constant 0 : index
    %172 = vector.load %arg32[%c0_83, %c0_84, %c0_85] : memref<2x64x32xf32, #tpu.memory_space<vmem>>, vector<1x64x32xf32>
    %173 = vector.shape_cast %172 : vector<1x64x32xf32> to vector<64x32xf32>
    %c0_86 = arith.constant 0 : index
    %c0_87 = arith.constant 0 : index
    %c0_88 = arith.constant 0 : index
    %174 = vector.load %arg30[%c0_86, %c0_87, %c0_88] : memref<2x1x32xf32, #tpu.memory_space<vmem>>, vector<1x1x32xf32>
    %175 = vector.shape_cast %174 : vector<1x1x32xf32> to vector<1x32xf32>
    %cst_89 = arith.constant dense<0.000000e+00> : vector<8x64xf32>
    %176 = tpu.matmul %167, %169, %cst_89 {dimension_numbers = #tpu.dot_dimension_numbers<[1], [0], [0], [1], [0, 0, 1, 1], [], []>} : vector<8x32xf32>, vector<32x64xf32>, vector<8x64xf32> -> vector<8x64xf32>
    %177 = vector.broadcast %171 : vector<1x64xf32> to vector<8x64xf32>
    %178 = arith.addf %176, %177 : vector<8x64xf32>
    %cst_90 = arith.constant 0.000000e+00 : f32
    %179 = vector.broadcast %cst_90 : f32 to vector<8x64xf32>
    %180 = arith.maximumf %178, %179 : vector<8x64xf32>
    %cst_91 = arith.constant dense<0.000000e+00> : vector<8x32xf32>
    %181 = tpu.matmul %180, %173, %cst_91 {dimension_numbers = #tpu.dot_dimension_numbers<[1], [0], [0], [1], [0, 0, 1, 1], [], []>} : vector<8x64xf32>, vector<64x32xf32>, vector<8x32xf32> -> vector<8x32xf32>
    %182 = vector.broadcast %175 : vector<1x32xf32> to vector<8x32xf32>
    %183 = arith.addf %181, %182 : vector<8x32xf32>
    %184 = arith.addf %143, %183 : vector<8x32xf32>
    %c1 = arith.constant 1 : index
    %c0_92 = arith.constant 0 : index
    %c0_93 = arith.constant 0 : index
    %185 = vector.load %arg34[%c1, %c0_92, %c0_93] : memref<2x1x32xf32, #tpu.memory_space<vmem>>, vector<1x1x32xf32>
    %186 = vector.shape_cast %185 : vector<1x1x32xf32> to vector<1x32xf32>
    %c1_94 = arith.constant 1 : index
    %c0_95 = arith.constant 0 : index
    %c0_96 = arith.constant 0 : index
    %187 = vector.load %arg33[%c1_94, %c0_95, %c0_96] : memref<2x1x32xf32, #tpu.memory_space<vmem>>, vector<1x1x32xf32>
    %188 = vector.shape_cast %187 : vector<1x1x32xf32> to vector<1x32xf32>
    %cst_97 = arith.constant dense<0.000000e+00> : vector<8xf32>
    %189 = vector.multi_reduction <add>, %184, %cst_97 [1] : vector<8x32xf32> to vector<8xf32>
    %190 = vector.shape_cast %189 : vector<8xf32> to vector<8x1xf32>
    %cst_98 = arith.constant 3.200000e+01 : f32
    %191 = vector.broadcast %cst_98 : f32 to vector<8x1xf32>
    %192 = arith.divf %190, %191 : vector<8x1xf32>
    %193 = vector.broadcast %192 : vector<8x1xf32> to vector<8x32xf32>
    %194 = arith.subf %184, %193 : vector<8x32xf32>
    %195 = arith.mulf %194, %194 : vector<8x32xf32>
    %cst_99 = arith.constant dense<0.000000e+00> : vector<8xf32>
    %196 = vector.multi_reduction <add>, %195, %cst_99 [1] : vector<8x32xf32> to vector<8xf32>
    %197 = vector.shape_cast %196 : vector<8xf32> to vector<8x1xf32>
    %cst_100 = arith.constant 3.100000e+01 : f32
    %198 = vector.broadcast %cst_100 : f32 to vector<8x1xf32>
    %199 = arith.divf %197, %198 : vector<8x1xf32>
    %200 = vector.broadcast %186 : vector<1x32xf32> to vector<8x32xf32>
    %201 = arith.mulf %200, %194 : vector<8x32xf32>
    %202 = math.sqrt %199 : vector<8x1xf32>
    %cst_101 = arith.constant 9.99999997E-7 : f32
    %203 = vector.broadcast %cst_101 : f32 to vector<8x1xf32>
    %204 = arith.addf %202, %203 : vector<8x1xf32>
    %205 = vector.broadcast %204 : vector<8x1xf32> to vector<8x32xf32>
    %206 = arith.divf %201, %205 : vector<8x32xf32>
    %207 = vector.broadcast %188 : vector<1x32xf32> to vector<8x32xf32>
    %208 = arith.addf %206, %207 : vector<8x32xf32>
    %c1_102 = arith.constant 1 : index
    %c0_103 = arith.constant 0 : index
    %c0_104 = arith.constant 0 : index
    %209 = vector.load %arg42[%c1_102, %c0_103, %c0_104] : memref<2x32x96xf32, #tpu.memory_space<vmem>>, vector<1x32x96xf32>
    %210 = vector.shape_cast %209 : vector<1x32x96xf32> to vector<32x96xf32>
    %c1_105 = arith.constant 1 : index
    %c0_106 = arith.constant 0 : index
    %c0_107 = arith.constant 0 : index
    %211 = vector.load %arg41[%c1_105, %c0_106, %c0_107] : memref<2x1x96xf32, #tpu.memory_space<vmem>>, vector<1x1x96xf32>
    %212 = vector.shape_cast %211 : vector<1x1x96xf32> to vector<1x96xf32>
    %c1_108 = arith.constant 1 : index
    %c0_109 = arith.constant 0 : index
    %c0_110 = arith.constant 0 : index
    %213 = vector.load %arg40[%c1_108, %c0_109, %c0_110] : memref<2x32x32xf32, #tpu.memory_space<vmem>>, vector<1x32x32xf32>
    %214 = vector.shape_cast %213 : vector<1x32x32xf32> to vector<32x32xf32>
    %c1_111 = arith.constant 1 : index
    %c0_112 = arith.constant 0 : index
    %c0_113 = arith.constant 0 : index
    %215 = vector.load %arg39[%c1_111, %c0_112, %c0_113] : memref<2x1x32xf32, #tpu.memory_space<vmem>>, vector<1x1x32xf32>
    %216 = vector.shape_cast %215 : vector<1x1x32xf32> to vector<1x32xf32>
    %cst_114 = arith.constant dense<0.000000e+00> : vector<8x96xf32>
    %217 = tpu.matmul %208, %210, %cst_114 {dimension_numbers = #tpu.dot_dimension_numbers<[1], [0], [0], [1], [0, 0, 1, 1], [], []>} : vector<8x32xf32>, vector<32x96xf32>, vector<8x96xf32> -> vector<8x96xf32>
    %218 = vector.broadcast %212 : vector<1x96xf32> to vector<8x96xf32>
    %219 = arith.addf %217, %218 : vector<8x96xf32>
    %220 = vector.extract_strided_slice %219 {offsets = [0, 0], sizes = [8, 32], strides = [1, 1]} : vector<8x96xf32> to vector<8x32xf32>
    %221 = vector.extract_strided_slice %219 {offsets = [0, 32], sizes = [8, 32], strides = [1, 1]} : vector<8x96xf32> to vector<8x32xf32>
    %222 = vector.extract_strided_slice %219 {offsets = [0, 64], sizes = [8, 32], strides = [1, 1]} : vector<8x96xf32> to vector<8x32xf32>
    %223 = vector.extract_strided_slice %220 {offsets = [0, 0], sizes = [8, 8], strides = [1, 1]} : vector<8x32xf32> to vector<8x8xf32>
    %224 = vector.extract_strided_slice %221 {offsets = [0, 0], sizes = [8, 8], strides = [1, 1]} : vector<8x32xf32> to vector<8x8xf32>
    %225 = vector.extract_strided_slice %222 {offsets = [0, 0], sizes = [8, 8], strides = [1, 1]} : vector<8x32xf32> to vector<8x8xf32>
    %cst_115 = arith.constant dense<0.000000e+00> : vector<8x8xf32>
    %226 = tpu.matmul %223, %224, %cst_115 {dimension_numbers = #tpu.dot_dimension_numbers<[1], [1], [0], [0], [0, 0, 1, 0], [], []>} : vector<8x8xf32>, vector<8x8xf32>, vector<8x8xf32> -> vector<8x8xf32>
    %cst_116 = arith.constant 0.353553385 : f32
    %227 = vector.broadcast %cst_116 : f32 to vector<8x8xf32>
    %228 = arith.mulf %226, %227 : vector<8x8xf32>
    %cst_117 = arith.constant -1.000000e+09 : f32
    %229 = vector.shape_cast %3 : vector<1x8xi1> to vector<1x8xi1>
    %230 = vector.broadcast %229 : vector<1x8xi1> to vector<8x8xi1>
    %231 = vector.broadcast %cst_117 : f32 to vector<8x8xf32>
    %232 = arith.select %230, %228, %231 : vector<8x8xi1>, vector<8x8xf32>
    %cst_118 = arith.constant dense<0xFF800000> : vector<8xf32>
    %233 = vector.multi_reduction <maximumf>, %232, %cst_118 [1] : vector<8x8xf32> to vector<8xf32>
    %234 = vector.shape_cast %233 : vector<8xf32> to vector<8x1xf32>
    %235 = vector.broadcast %234 : vector<8x1xf32> to vector<8x8xf32>
    %236 = arith.subf %232, %235 : vector<8x8xf32>
    %237 = math.exp %236 : vector<8x8xf32>
    %cst_119 = arith.constant dense<0.000000e+00> : vector<8xf32>
    %238 = vector.multi_reduction <add>, %237, %cst_119 [1] : vector<8x8xf32> to vector<8xf32>
    %239 = vector.shape_cast %238 : vector<8xf32> to vector<8x1xf32>
    %240 = tpu.reciprocal %239 {approx = true} : vector<8x1xf32> -> vector<8x1xf32>
    %241 = vector.broadcast %240 : vector<8x1xf32> to vector<8x8xf32>
    %242 = arith.mulf %237, %241 : vector<8x8xf32>
    %cst_120 = arith.constant dense<0.000000e+00> : vector<8x8xf32>
    %243 = tpu.matmul %242, %225, %cst_120 {dimension_numbers = #tpu.dot_dimension_numbers<[1], [0], [0], [1], [0, 0, 1, 1], [], []>} : vector<8x8xf32>, vector<8x8xf32>, vector<8x8xf32> -> vector<8x8xf32>
    %244 = vector.extract_strided_slice %220 {offsets = [0, 8], sizes = [8, 8], strides = [1, 1]} : vector<8x32xf32> to vector<8x8xf32>
    %245 = vector.extract_strided_slice %221 {offsets = [0, 8], sizes = [8, 8], strides = [1, 1]} : vector<8x32xf32> to vector<8x8xf32>
    %246 = vector.extract_strided_slice %222 {offsets = [0, 8], sizes = [8, 8], strides = [1, 1]} : vector<8x32xf32> to vector<8x8xf32>
    %cst_121 = arith.constant dense<0.000000e+00> : vector<8x8xf32>
    %247 = tpu.matmul %244, %245, %cst_121 {dimension_numbers = #tpu.dot_dimension_numbers<[1], [1], [0], [0], [0, 0, 1, 0], [], []>} : vector<8x8xf32>, vector<8x8xf32>, vector<8x8xf32> -> vector<8x8xf32>
    %cst_122 = arith.constant 0.353553385 : f32
    %248 = vector.broadcast %cst_122 : f32 to vector<8x8xf32>
    %249 = arith.mulf %247, %248 : vector<8x8xf32>
    %cst_123 = arith.constant -1.000000e+09 : f32
    %250 = vector.shape_cast %3 : vector<1x8xi1> to vector<1x8xi1>
    %251 = vector.broadcast %250 : vector<1x8xi1> to vector<8x8xi1>
    %252 = vector.broadcast %cst_123 : f32 to vector<8x8xf32>
    %253 = arith.select %251, %249, %252 : vector<8x8xi1>, vector<8x8xf32>
    %cst_124 = arith.constant dense<0xFF800000> : vector<8xf32>
    %254 = vector.multi_reduction <maximumf>, %253, %cst_124 [1] : vector<8x8xf32> to vector<8xf32>
    %255 = vector.shape_cast %254 : vector<8xf32> to vector<8x1xf32>
    %256 = vector.broadcast %255 : vector<8x1xf32> to vector<8x8xf32>
    %257 = arith.subf %253, %256 : vector<8x8xf32>
    %258 = math.exp %257 : vector<8x8xf32>
    %cst_125 = arith.constant dense<0.000000e+00> : vector<8xf32>
    %259 = vector.multi_reduction <add>, %258, %cst_125 [1] : vector<8x8xf32> to vector<8xf32>
    %260 = vector.shape_cast %259 : vector<8xf32> to vector<8x1xf32>
    %261 = tpu.reciprocal %260 {approx = true} : vector<8x1xf32> -> vector<8x1xf32>
    %262 = vector.broadcast %261 : vector<8x1xf32> to vector<8x8xf32>
    %263 = arith.mulf %258, %262 : vector<8x8xf32>
    %cst_126 = arith.constant dense<0.000000e+00> : vector<8x8xf32>
    %264 = tpu.matmul %263, %246, %cst_126 {dimension_numbers = #tpu.dot_dimension_numbers<[1], [0], [0], [1], [0, 0, 1, 1], [], []>} : vector<8x8xf32>, vector<8x8xf32>, vector<8x8xf32> -> vector<8x8xf32>
    %265 = vector.extract_strided_slice %220 {offsets = [0, 16], sizes = [8, 8], strides = [1, 1]} : vector<8x32xf32> to vector<8x8xf32>
    %266 = vector.extract_strided_slice %221 {offsets = [0, 16], sizes = [8, 8], strides = [1, 1]} : vector<8x32xf32> to vector<8x8xf32>
    %267 = vector.extract_strided_slice %222 {offsets = [0, 16], sizes = [8, 8], strides = [1, 1]} : vector<8x32xf32> to vector<8x8xf32>
    %cst_127 = arith.constant dense<0.000000e+00> : vector<8x8xf32>
    %268 = tpu.matmul %265, %266, %cst_127 {dimension_numbers = #tpu.dot_dimension_numbers<[1], [1], [0], [0], [0, 0, 1, 0], [], []>} : vector<8x8xf32>, vector<8x8xf32>, vector<8x8xf32> -> vector<8x8xf32>
    %cst_128 = arith.constant 0.353553385 : f32
    %269 = vector.broadcast %cst_128 : f32 to vector<8x8xf32>
    %270 = arith.mulf %268, %269 : vector<8x8xf32>
    %cst_129 = arith.constant -1.000000e+09 : f32
    %271 = vector.shape_cast %3 : vector<1x8xi1> to vector<1x8xi1>
    %272 = vector.broadcast %271 : vector<1x8xi1> to vector<8x8xi1>
    %273 = vector.broadcast %cst_129 : f32 to vector<8x8xf32>
    %274 = arith.select %272, %270, %273 : vector<8x8xi1>, vector<8x8xf32>
    %cst_130 = arith.constant dense<0xFF800000> : vector<8xf32>
    %275 = vector.multi_reduction <maximumf>, %274, %cst_130 [1] : vector<8x8xf32> to vector<8xf32>
    %276 = vector.shape_cast %275 : vector<8xf32> to vector<8x1xf32>
    %277 = vector.broadcast %276 : vector<8x1xf32> to vector<8x8xf32>
    %278 = arith.subf %274, %277 : vector<8x8xf32>
    %279 = math.exp %278 : vector<8x8xf32>
    %cst_131 = arith.constant dense<0.000000e+00> : vector<8xf32>
    %280 = vector.multi_reduction <add>, %279, %cst_131 [1] : vector<8x8xf32> to vector<8xf32>
    %281 = vector.shape_cast %280 : vector<8xf32> to vector<8x1xf32>
    %282 = tpu.reciprocal %281 {approx = true} : vector<8x1xf32> -> vector<8x1xf32>
    %283 = vector.broadcast %282 : vector<8x1xf32> to vector<8x8xf32>
    %284 = arith.mulf %279, %283 : vector<8x8xf32>
    %cst_132 = arith.constant dense<0.000000e+00> : vector<8x8xf32>
    %285 = tpu.matmul %284, %267, %cst_132 {dimension_numbers = #tpu.dot_dimension_numbers<[1], [0], [0], [1], [0, 0, 1, 1], [], []>} : vector<8x8xf32>, vector<8x8xf32>, vector<8x8xf32> -> vector<8x8xf32>
    %286 = vector.extract_strided_slice %220 {offsets = [0, 24], sizes = [8, 8], strides = [1, 1]} : vector<8x32xf32> to vector<8x8xf32>
    %287 = vector.extract_strided_slice %221 {offsets = [0, 24], sizes = [8, 8], strides = [1, 1]} : vector<8x32xf32> to vector<8x8xf32>
    %288 = vector.extract_strided_slice %222 {offsets = [0, 24], sizes = [8, 8], strides = [1, 1]} : vector<8x32xf32> to vector<8x8xf32>
    %cst_133 = arith.constant dense<0.000000e+00> : vector<8x8xf32>
    %289 = tpu.matmul %286, %287, %cst_133 {dimension_numbers = #tpu.dot_dimension_numbers<[1], [1], [0], [0], [0, 0, 1, 0], [], []>} : vector<8x8xf32>, vector<8x8xf32>, vector<8x8xf32> -> vector<8x8xf32>
    %cst_134 = arith.constant 0.353553385 : f32
    %290 = vector.broadcast %cst_134 : f32 to vector<8x8xf32>
    %291 = arith.mulf %289, %290 : vector<8x8xf32>
    %cst_135 = arith.constant -1.000000e+09 : f32
    %292 = vector.shape_cast %3 : vector<1x8xi1> to vector<1x8xi1>
    %293 = vector.broadcast %292 : vector<1x8xi1> to vector<8x8xi1>
    %294 = vector.broadcast %cst_135 : f32 to vector<8x8xf32>
    %295 = arith.select %293, %291, %294 : vector<8x8xi1>, vector<8x8xf32>
    %cst_136 = arith.constant dense<0xFF800000> : vector<8xf32>
    %296 = vector.multi_reduction <maximumf>, %295, %cst_136 [1] : vector<8x8xf32> to vector<8xf32>
    %297 = vector.shape_cast %296 : vector<8xf32> to vector<8x1xf32>
    %298 = vector.broadcast %297 : vector<8x1xf32> to vector<8x8xf32>
    %299 = arith.subf %295, %298 : vector<8x8xf32>
    %300 = math.exp %299 : vector<8x8xf32>
    %cst_137 = arith.constant dense<0.000000e+00> : vector<8xf32>
    %301 = vector.multi_reduction <add>, %300, %cst_137 [1] : vector<8x8xf32> to vector<8xf32>
    %302 = vector.shape_cast %301 : vector<8xf32> to vector<8x1xf32>
    %303 = tpu.reciprocal %302 {approx = true} : vector<8x1xf32> -> vector<8x1xf32>
    %304 = vector.broadcast %303 : vector<8x1xf32> to vector<8x8xf32>
    %305 = arith.mulf %300, %304 : vector<8x8xf32>
    %cst_138 = arith.constant dense<0.000000e+00> : vector<8x8xf32>
    %306 = tpu.matmul %305, %288, %cst_138 {dimension_numbers = #tpu.dot_dimension_numbers<[1], [0], [0], [1], [0, 0, 1, 1], [], []>} : vector<8x8xf32>, vector<8x8xf32>, vector<8x8xf32> -> vector<8x8xf32>
    %307 = tpu.concatenate %243, %264, %285, %306 in 1 : vector<8x8xf32>, vector<8x8xf32>, vector<8x8xf32>, vector<8x8xf32> -> vector<8x32xf32>
    %cst_139 = arith.constant dense<0.000000e+00> : vector<8x32xf32>
    %308 = tpu.matmul %307, %214, %cst_139 {dimension_numbers = #tpu.dot_dimension_numbers<[1], [0], [0], [1], [0, 0, 1, 1], [], []>} : vector<8x32xf32>, vector<32x32xf32>, vector<8x32xf32> -> vector<8x32xf32>
    %309 = vector.broadcast %216 : vector<1x32xf32> to vector<8x32xf32>
    %310 = arith.addf %308, %309 : vector<8x32xf32>
    %311 = arith.addf %184, %310 : vector<8x32xf32>
    %c1_140 = arith.constant 1 : index
    %c0_141 = arith.constant 0 : index
    %c0_142 = arith.constant 0 : index
    %312 = vector.load %arg36[%c1_140, %c0_141, %c0_142] : memref<2x1x32xf32, #tpu.memory_space<vmem>>, vector<1x1x32xf32>
    %313 = vector.shape_cast %312 : vector<1x1x32xf32> to vector<1x32xf32>
    %c1_143 = arith.constant 1 : index
    %c0_144 = arith.constant 0 : index
    %c0_145 = arith.constant 0 : index
    %314 = vector.load %arg35[%c1_143, %c0_144, %c0_145] : memref<2x1x32xf32, #tpu.memory_space<vmem>>, vector<1x1x32xf32>
    %315 = vector.shape_cast %314 : vector<1x1x32xf32> to vector<1x32xf32>
    %cst_146 = arith.constant dense<0.000000e+00> : vector<8xf32>
    %316 = vector.multi_reduction <add>, %311, %cst_146 [1] : vector<8x32xf32> to vector<8xf32>
    %317 = vector.shape_cast %316 : vector<8xf32> to vector<8x1xf32>
    %cst_147 = arith.constant 3.200000e+01 : f32
    %318 = vector.broadcast %cst_147 : f32 to vector<8x1xf32>
    %319 = arith.divf %317, %318 : vector<8x1xf32>
    %320 = vector.broadcast %319 : vector<8x1xf32> to vector<8x32xf32>
    %321 = arith.subf %311, %320 : vector<8x32xf32>
    %322 = arith.mulf %321, %321 : vector<8x32xf32>
    %cst_148 = arith.constant dense<0.000000e+00> : vector<8xf32>
    %323 = vector.multi_reduction <add>, %322, %cst_148 [1] : vector<8x32xf32> to vector<8xf32>
    %324 = vector.shape_cast %323 : vector<8xf32> to vector<8x1xf32>
    %cst_149 = arith.constant 3.100000e+01 : f32
    %325 = vector.broadcast %cst_149 : f32 to vector<8x1xf32>
    %326 = arith.divf %324, %325 : vector<8x1xf32>
    %327 = vector.broadcast %313 : vector<1x32xf32> to vector<8x32xf32>
    %328 = arith.mulf %327, %321 : vector<8x32xf32>
    %329 = math.sqrt %326 : vector<8x1xf32>
    %cst_150 = arith.constant 9.99999997E-7 : f32
    %330 = vector.broadcast %cst_150 : f32 to vector<8x1xf32>
    %331 = arith.addf %329, %330 : vector<8x1xf32>
    %332 = vector.broadcast %331 : vector<8x1xf32> to vector<8x32xf32>
    %333 = arith.divf %328, %332 : vector<8x32xf32>
    %334 = vector.broadcast %315 : vector<1x32xf32> to vector<8x32xf32>
    %335 = arith.addf %333, %334 : vector<8x32xf32>
    %c1_151 = arith.constant 1 : index
    %c0_152 = arith.constant 0 : index
    %c0_153 = arith.constant 0 : index
    %336 = vector.load %arg31[%c1_151, %c0_152, %c0_153] : memref<2x32x64xf32, #tpu.memory_space<vmem>>, vector<1x32x64xf32>
    %337 = vector.shape_cast %336 : vector<1x32x64xf32> to vector<32x64xf32>
    %c1_154 = arith.constant 1 : index
    %c0_155 = arith.constant 0 : index
    %c0_156 = arith.constant 0 : index
    %338 = vector.load %arg29[%c1_154, %c0_155, %c0_156] : memref<2x1x64xf32, #tpu.memory_space<vmem>>, vector<1x1x64xf32>
    %339 = vector.shape_cast %338 : vector<1x1x64xf32> to vector<1x64xf32>
    %c1_157 = arith.constant 1 : index
    %c0_158 = arith.constant 0 : index
    %c0_159 = arith.constant 0 : index
    %340 = vector.load %arg32[%c1_157, %c0_158, %c0_159] : memref<2x64x32xf32, #tpu.memory_space<vmem>>, vector<1x64x32xf32>
    %341 = vector.shape_cast %340 : vector<1x64x32xf32> to vector<64x32xf32>
    %c1_160 = arith.constant 1 : index
    %c0_161 = arith.constant 0 : index
    %c0_162 = arith.constant 0 : index
    %342 = vector.load %arg30[%c1_160, %c0_161, %c0_162] : memref<2x1x32xf32, #tpu.memory_space<vmem>>, vector<1x1x32xf32>
    %343 = vector.shape_cast %342 : vector<1x1x32xf32> to vector<1x32xf32>
    %cst_163 = arith.constant dense<0.000000e+00> : vector<8x64xf32>
    %344 = tpu.matmul %335, %337, %cst_163 {dimension_numbers = #tpu.dot_dimension_numbers<[1], [0], [0], [1], [0, 0, 1, 1], [], []>} : vector<8x32xf32>, vector<32x64xf32>, vector<8x64xf32> -> vector<8x64xf32>
    %345 = vector.broadcast %339 : vector<1x64xf32> to vector<8x64xf32>
    %346 = arith.addf %344, %345 : vector<8x64xf32>
    %cst_164 = arith.constant 0.000000e+00 : f32
    %347 = vector.broadcast %cst_164 : f32 to vector<8x64xf32>
    %348 = arith.maximumf %346, %347 : vector<8x64xf32>
    %cst_165 = arith.constant dense<0.000000e+00> : vector<8x32xf32>
    %349 = tpu.matmul %348, %341, %cst_165 {dimension_numbers = #tpu.dot_dimension_numbers<[1], [0], [0], [1], [0, 0, 1, 1], [], []>} : vector<8x64xf32>, vector<64x32xf32>, vector<8x32xf32> -> vector<8x32xf32>
    %350 = vector.broadcast %343 : vector<1x32xf32> to vector<8x32xf32>
    %351 = arith.addf %349, %350 : vector<8x32xf32>
    %352 = arith.addf %311, %351 : vector<8x32xf32>
    %c0_166 = arith.constant 0 : index
    %c0_167 = arith.constant 0 : index
    %353 = vector.load %arg38[%c0_166, %c0_167] : memref<1x32xf32, #tpu.memory_space<vmem>>, vector<1x32xf32>
    %c0_168 = arith.constant 0 : index
    %c0_169 = arith.constant 0 : index
    %354 = vector.load %arg37[%c0_168, %c0_169] : memref<1x32xf32, #tpu.memory_space<vmem>>, vector<1x32xf32>
    %cst_170 = arith.constant dense<0.000000e+00> : vector<8xf32>
    %355 = vector.multi_reduction <add>, %352, %cst_170 [1] : vector<8x32xf32> to vector<8xf32>
    %356 = vector.shape_cast %355 : vector<8xf32> to vector<8x1xf32>
    %cst_171 = arith.constant 3.200000e+01 : f32
    %357 = vector.broadcast %cst_171 : f32 to vector<8x1xf32>
    %358 = arith.divf %356, %357 : vector<8x1xf32>
    %359 = vector.broadcast %358 : vector<8x1xf32> to vector<8x32xf32>
    %360 = arith.subf %352, %359 : vector<8x32xf32>
    %361 = arith.mulf %360, %360 : vector<8x32xf32>
    %cst_172 = arith.constant dense<0.000000e+00> : vector<8xf32>
    %362 = vector.multi_reduction <add>, %361, %cst_172 [1] : vector<8x32xf32> to vector<8xf32>
    %363 = vector.shape_cast %362 : vector<8xf32> to vector<8x1xf32>
    %cst_173 = arith.constant 3.100000e+01 : f32
    %364 = vector.broadcast %cst_173 : f32 to vector<8x1xf32>
    %365 = arith.divf %363, %364 : vector<8x1xf32>
    %366 = vector.broadcast %353 : vector<1x32xf32> to vector<8x32xf32>
    %367 = arith.mulf %366, %360 : vector<8x32xf32>
    %368 = math.sqrt %365 : vector<8x1xf32>
    %cst_174 = arith.constant 9.99999997E-7 : f32
    %369 = vector.broadcast %cst_174 : f32 to vector<8x1xf32>
    %370 = arith.addf %368, %369 : vector<8x1xf32>
    %371 = vector.broadcast %370 : vector<8x1xf32> to vector<8x32xf32>
    %372 = arith.divf %367, %371 : vector<8x32xf32>
    %373 = vector.broadcast %354 : vector<1x32xf32> to vector<8x32xf32>
    %374 = arith.addf %372, %373 : vector<8x32xf32>
    %375 = tpu.iota {dimensions = array<i32: 0>} : vector<8x8xi32>
    %376 = tpu.iota {dimensions = array<i32: 1>} : vector<8x8xi32>
    %377 = arith.cmpi sge, %375, %376 : vector<8x8xi32>
    %378 = vector.broadcast %7 : vector<1x8xi1> to vector<8x8xi1>
    %379 = arith.andi %378, %377 : vector<8x8xi1>
    %cst_175 = arith.constant 5.65685415 : f32
    %380 = vector.broadcast %cst_175 : f32 to vector<8x32xf32>
    %381 = arith.mulf %11, %380 : vector<8x32xf32>
    %382 = arith.addf %381, %13 : vector<8x32xf32>
    %c0_176 = arith.constant 0 : index
    %c0_177 = arith.constant 0 : index
    %c0_178 = arith.constant 0 : index
    %383 = vector.load %arg18[%c0_176, %c0_177, %c0_178] : memref<2x1x32xf32, #tpu.memory_space<vmem>>, vector<1x1x32xf32>
    %384 = vector.shape_cast %383 : vector<1x1x32xf32> to vector<1x32xf32>
    %c0_179 = arith.constant 0 : index
    %c0_180 = arith.constant 0 : index
    %c0_181 = arith.constant 0 : index
    %385 = vector.load %arg17[%c0_179, %c0_180, %c0_181] : memref<2x1x32xf32, #tpu.memory_space<vmem>>, vector<1x1x32xf32>
    %386 = vector.shape_cast %385 : vector<1x1x32xf32> to vector<1x32xf32>
    %cst_182 = arith.constant dense<0.000000e+00> : vector<8xf32>
    %387 = vector.multi_reduction <add>, %382, %cst_182 [1] : vector<8x32xf32> to vector<8xf32>
    %388 = vector.shape_cast %387 : vector<8xf32> to vector<8x1xf32>
    %cst_183 = arith.constant 3.200000e+01 : f32
    %389 = vector.broadcast %cst_183 : f32 to vector<8x1xf32>
    %390 = arith.divf %388, %389 : vector<8x1xf32>
    %391 = vector.broadcast %390 : vector<8x1xf32> to vector<8x32xf32>
    %392 = arith.subf %382, %391 : vector<8x32xf32>
    %393 = arith.mulf %392, %392 : vector<8x32xf32>
    %cst_184 = arith.constant dense<0.000000e+00> : vector<8xf32>
    %394 = vector.multi_reduction <add>, %393, %cst_184 [1] : vector<8x32xf32> to vector<8xf32>
    %395 = vector.shape_cast %394 : vector<8xf32> to vector<8x1xf32>
    %cst_185 = arith.constant 3.100000e+01 : f32
    %396 = vector.broadcast %cst_185 : f32 to vector<8x1xf32>
    %397 = arith.divf %395, %396 : vector<8x1xf32>
    %398 = vector.broadcast %384 : vector<1x32xf32> to vector<8x32xf32>
    %399 = arith.mulf %398, %392 : vector<8x32xf32>
    %400 = math.sqrt %397 : vector<8x1xf32>
    %cst_186 = arith.constant 9.99999997E-7 : f32
    %401 = vector.broadcast %cst_186 : f32 to vector<8x1xf32>
    %402 = arith.addf %400, %401 : vector<8x1xf32>
    %403 = vector.broadcast %402 : vector<8x1xf32> to vector<8x32xf32>
    %404 = arith.divf %399, %403 : vector<8x32xf32>
    %405 = vector.broadcast %386 : vector<1x32xf32> to vector<8x32xf32>
    %406 = arith.addf %404, %405 : vector<8x32xf32>
    %c0_187 = arith.constant 0 : index
    %c0_188 = arith.constant 0 : index
    %c0_189 = arith.constant 0 : index
    %407 = vector.load %arg28[%c0_187, %c0_188, %c0_189] : memref<2x32x96xf32, #tpu.memory_space<vmem>>, vector<1x32x96xf32>
    %408 = vector.shape_cast %407 : vector<1x32x96xf32> to vector<32x96xf32>
    %c0_190 = arith.constant 0 : index
    %c0_191 = arith.constant 0 : index
    %c0_192 = arith.constant 0 : index
    %409 = vector.load %arg27[%c0_190, %c0_191, %c0_192] : memref<2x1x96xf32, #tpu.memory_space<vmem>>, vector<1x1x96xf32>
    %410 = vector.shape_cast %409 : vector<1x1x96xf32> to vector<1x96xf32>
    %c0_193 = arith.constant 0 : index
    %c0_194 = arith.constant 0 : index
    %c0_195 = arith.constant 0 : index
    %411 = vector.load %arg26[%c0_193, %c0_194, %c0_195] : memref<2x32x32xf32, #tpu.memory_space<vmem>>, vector<1x32x32xf32>
    %412 = vector.shape_cast %411 : vector<1x32x32xf32> to vector<32x32xf32>
    %c0_196 = arith.constant 0 : index
    %c0_197 = arith.constant 0 : index
    %c0_198 = arith.constant 0 : index
    %413 = vector.load %arg25[%c0_196, %c0_197, %c0_198] : memref<2x1x32xf32, #tpu.memory_space<vmem>>, vector<1x1x32xf32>
    %414 = vector.shape_cast %413 : vector<1x1x32xf32> to vector<1x32xf32>
    %cst_199 = arith.constant dense<0.000000e+00> : vector<8x96xf32>
    %415 = tpu.matmul %406, %408, %cst_199 {dimension_numbers = #tpu.dot_dimension_numbers<[1], [0], [0], [1], [0, 0, 1, 1], [], []>} : vector<8x32xf32>, vector<32x96xf32>, vector<8x96xf32> -> vector<8x96xf32>
    %416 = vector.broadcast %410 : vector<1x96xf32> to vector<8x96xf32>
    %417 = arith.addf %415, %416 : vector<8x96xf32>
    %418 = vector.extract_strided_slice %417 {offsets = [0, 0], sizes = [8, 32], strides = [1, 1]} : vector<8x96xf32> to vector<8x32xf32>
    %419 = vector.extract_strided_slice %417 {offsets = [0, 32], sizes = [8, 32], strides = [1, 1]} : vector<8x96xf32> to vector<8x32xf32>
    %420 = vector.extract_strided_slice %417 {offsets = [0, 64], sizes = [8, 32], strides = [1, 1]} : vector<8x96xf32> to vector<8x32xf32>
    %421 = vector.extract_strided_slice %418 {offsets = [0, 0], sizes = [8, 8], strides = [1, 1]} : vector<8x32xf32> to vector<8x8xf32>
    %422 = vector.extract_strided_slice %419 {offsets = [0, 0], sizes = [8, 8], strides = [1, 1]} : vector<8x32xf32> to vector<8x8xf32>
    %423 = vector.extract_strided_slice %420 {offsets = [0, 0], sizes = [8, 8], strides = [1, 1]} : vector<8x32xf32> to vector<8x8xf32>
    %cst_200 = arith.constant dense<0.000000e+00> : vector<8x8xf32>
    %424 = tpu.matmul %421, %422, %cst_200 {dimension_numbers = #tpu.dot_dimension_numbers<[1], [1], [0], [0], [0, 0, 1, 0], [], []>} : vector<8x8xf32>, vector<8x8xf32>, vector<8x8xf32> -> vector<8x8xf32>
    %cst_201 = arith.constant 0.353553385 : f32
    %425 = vector.broadcast %cst_201 : f32 to vector<8x8xf32>
    %426 = arith.mulf %424, %425 : vector<8x8xf32>
    %cst_202 = arith.constant -1.000000e+09 : f32
    %427 = vector.broadcast %cst_202 : f32 to vector<8x8xf32>
    %428 = arith.select %379, %426, %427 : vector<8x8xi1>, vector<8x8xf32>
    %cst_203 = arith.constant dense<0xFF800000> : vector<8xf32>
    %429 = vector.multi_reduction <maximumf>, %428, %cst_203 [1] : vector<8x8xf32> to vector<8xf32>
    %430 = vector.shape_cast %429 : vector<8xf32> to vector<8x1xf32>
    %431 = vector.broadcast %430 : vector<8x1xf32> to vector<8x8xf32>
    %432 = arith.subf %428, %431 : vector<8x8xf32>
    %433 = math.exp %432 : vector<8x8xf32>
    %cst_204 = arith.constant dense<0.000000e+00> : vector<8xf32>
    %434 = vector.multi_reduction <add>, %433, %cst_204 [1] : vector<8x8xf32> to vector<8xf32>
    %435 = vector.shape_cast %434 : vector<8xf32> to vector<8x1xf32>
    %436 = tpu.reciprocal %435 {approx = true} : vector<8x1xf32> -> vector<8x1xf32>
    %437 = vector.broadcast %436 : vector<8x1xf32> to vector<8x8xf32>
    %438 = arith.mulf %433, %437 : vector<8x8xf32>
    %cst_205 = arith.constant dense<0.000000e+00> : vector<8x8xf32>
    %439 = tpu.matmul %438, %423, %cst_205 {dimension_numbers = #tpu.dot_dimension_numbers<[1], [0], [0], [1], [0, 0, 1, 1], [], []>} : vector<8x8xf32>, vector<8x8xf32>, vector<8x8xf32> -> vector<8x8xf32>
    %440 = vector.extract_strided_slice %418 {offsets = [0, 8], sizes = [8, 8], strides = [1, 1]} : vector<8x32xf32> to vector<8x8xf32>
    %441 = vector.extract_strided_slice %419 {offsets = [0, 8], sizes = [8, 8], strides = [1, 1]} : vector<8x32xf32> to vector<8x8xf32>
    %442 = vector.extract_strided_slice %420 {offsets = [0, 8], sizes = [8, 8], strides = [1, 1]} : vector<8x32xf32> to vector<8x8xf32>
    %cst_206 = arith.constant dense<0.000000e+00> : vector<8x8xf32>
    %443 = tpu.matmul %440, %441, %cst_206 {dimension_numbers = #tpu.dot_dimension_numbers<[1], [1], [0], [0], [0, 0, 1, 0], [], []>} : vector<8x8xf32>, vector<8x8xf32>, vector<8x8xf32> -> vector<8x8xf32>
    %cst_207 = arith.constant 0.353553385 : f32
    %444 = vector.broadcast %cst_207 : f32 to vector<8x8xf32>
    %445 = arith.mulf %443, %444 : vector<8x8xf32>
    %cst_208 = arith.constant -1.000000e+09 : f32
    %446 = vector.broadcast %cst_208 : f32 to vector<8x8xf32>
    %447 = arith.select %379, %445, %446 : vector<8x8xi1>, vector<8x8xf32>
    %cst_209 = arith.constant dense<0xFF800000> : vector<8xf32>
    %448 = vector.multi_reduction <maximumf>, %447, %cst_209 [1] : vector<8x8xf32> to vector<8xf32>
    %449 = vector.shape_cast %448 : vector<8xf32> to vector<8x1xf32>
    %450 = vector.broadcast %449 : vector<8x1xf32> to vector<8x8xf32>
    %451 = arith.subf %447, %450 : vector<8x8xf32>
    %452 = math.exp %451 : vector<8x8xf32>
    %cst_210 = arith.constant dense<0.000000e+00> : vector<8xf32>
    %453 = vector.multi_reduction <add>, %452, %cst_210 [1] : vector<8x8xf32> to vector<8xf32>
    %454 = vector.shape_cast %453 : vector<8xf32> to vector<8x1xf32>
    %455 = tpu.reciprocal %454 {approx = true} : vector<8x1xf32> -> vector<8x1xf32>
    %456 = vector.broadcast %455 : vector<8x1xf32> to vector<8x8xf32>
    %457 = arith.mulf %452, %456 : vector<8x8xf32>
    %cst_211 = arith.constant dense<0.000000e+00> : vector<8x8xf32>
    %458 = tpu.matmul %457, %442, %cst_211 {dimension_numbers = #tpu.dot_dimension_numbers<[1], [0], [0], [1], [0, 0, 1, 1], [], []>} : vector<8x8xf32>, vector<8x8xf32>, vector<8x8xf32> -> vector<8x8xf32>
    %459 = vector.extract_strided_slice %418 {offsets = [0, 16], sizes = [8, 8], strides = [1, 1]} : vector<8x32xf32> to vector<8x8xf32>
    %460 = vector.extract_strided_slice %419 {offsets = [0, 16], sizes = [8, 8], strides = [1, 1]} : vector<8x32xf32> to vector<8x8xf32>
    %461 = vector.extract_strided_slice %420 {offsets = [0, 16], sizes = [8, 8], strides = [1, 1]} : vector<8x32xf32> to vector<8x8xf32>
    %cst_212 = arith.constant dense<0.000000e+00> : vector<8x8xf32>
    %462 = tpu.matmul %459, %460, %cst_212 {dimension_numbers = #tpu.dot_dimension_numbers<[1], [1], [0], [0], [0, 0, 1, 0], [], []>} : vector<8x8xf32>, vector<8x8xf32>, vector<8x8xf32> -> vector<8x8xf32>
    %cst_213 = arith.constant 0.353553385 : f32
    %463 = vector.broadcast %cst_213 : f32 to vector<8x8xf32>
    %464 = arith.mulf %462, %463 : vector<8x8xf32>
    %cst_214 = arith.constant -1.000000e+09 : f32
    %465 = vector.broadcast %cst_214 : f32 to vector<8x8xf32>
    %466 = arith.select %379, %464, %465 : vector<8x8xi1>, vector<8x8xf32>
    %cst_215 = arith.constant dense<0xFF800000> : vector<8xf32>
    %467 = vector.multi_reduction <maximumf>, %466, %cst_215 [1] : vector<8x8xf32> to vector<8xf32>
    %468 = vector.shape_cast %467 : vector<8xf32> to vector<8x1xf32>
    %469 = vector.broadcast %468 : vector<8x1xf32> to vector<8x8xf32>
    %470 = arith.subf %466, %469 : vector<8x8xf32>
    %471 = math.exp %470 : vector<8x8xf32>
    %cst_216 = arith.constant dense<0.000000e+00> : vector<8xf32>
    %472 = vector.multi_reduction <add>, %471, %cst_216 [1] : vector<8x8xf32> to vector<8xf32>
    %473 = vector.shape_cast %472 : vector<8xf32> to vector<8x1xf32>
    %474 = tpu.reciprocal %473 {approx = true} : vector<8x1xf32> -> vector<8x1xf32>
    %475 = vector.broadcast %474 : vector<8x1xf32> to vector<8x8xf32>
    %476 = arith.mulf %471, %475 : vector<8x8xf32>
    %cst_217 = arith.constant dense<0.000000e+00> : vector<8x8xf32>
    %477 = tpu.matmul %476, %461, %cst_217 {dimension_numbers = #tpu.dot_dimension_numbers<[1], [0], [0], [1], [0, 0, 1, 1], [], []>} : vector<8x8xf32>, vector<8x8xf32>, vector<8x8xf32> -> vector<8x8xf32>
    %478 = vector.extract_strided_slice %418 {offsets = [0, 24], sizes = [8, 8], strides = [1, 1]} : vector<8x32xf32> to vector<8x8xf32>
    %479 = vector.extract_strided_slice %419 {offsets = [0, 24], sizes = [8, 8], strides = [1, 1]} : vector<8x32xf32> to vector<8x8xf32>
    %480 = vector.extract_strided_slice %420 {offsets = [0, 24], sizes = [8, 8], strides = [1, 1]} : vector<8x32xf32> to vector<8x8xf32>
    %cst_218 = arith.constant dense<0.000000e+00> : vector<8x8xf32>
    %481 = tpu.matmul %478, %479, %cst_218 {dimension_numbers = #tpu.dot_dimension_numbers<[1], [1], [0], [0], [0, 0, 1, 0], [], []>} : vector<8x8xf32>, vector<8x8xf32>, vector<8x8xf32> -> vector<8x8xf32>
    %cst_219 = arith.constant 0.353553385 : f32
    %482 = vector.broadcast %cst_219 : f32 to vector<8x8xf32>
    %483 = arith.mulf %481, %482 : vector<8x8xf32>
    %cst_220 = arith.constant -1.000000e+09 : f32
    %484 = vector.broadcast %cst_220 : f32 to vector<8x8xf32>
    %485 = arith.select %379, %483, %484 : vector<8x8xi1>, vector<8x8xf32>
    %cst_221 = arith.constant dense<0xFF800000> : vector<8xf32>
    %486 = vector.multi_reduction <maximumf>, %485, %cst_221 [1] : vector<8x8xf32> to vector<8xf32>
    %487 = vector.shape_cast %486 : vector<8xf32> to vector<8x1xf32>
    %488 = vector.broadcast %487 : vector<8x1xf32> to vector<8x8xf32>
    %489 = arith.subf %485, %488 : vector<8x8xf32>
    %490 = math.exp %489 : vector<8x8xf32>
    %cst_222 = arith.constant dense<0.000000e+00> : vector<8xf32>
    %491 = vector.multi_reduction <add>, %490, %cst_222 [1] : vector<8x8xf32> to vector<8xf32>
    %492 = vector.shape_cast %491 : vector<8xf32> to vector<8x1xf32>
    %493 = tpu.reciprocal %492 {approx = true} : vector<8x1xf32> -> vector<8x1xf32>
    %494 = vector.broadcast %493 : vector<8x1xf32> to vector<8x8xf32>
    %495 = arith.mulf %490, %494 : vector<8x8xf32>
    %cst_223 = arith.constant dense<0.000000e+00> : vector<8x8xf32>
    %496 = tpu.matmul %495, %480, %cst_223 {dimension_numbers = #tpu.dot_dimension_numbers<[1], [0], [0], [1], [0, 0, 1, 1], [], []>} : vector<8x8xf32>, vector<8x8xf32>, vector<8x8xf32> -> vector<8x8xf32>
    %497 = tpu.concatenate %439, %458, %477, %496 in 1 : vector<8x8xf32>, vector<8x8xf32>, vector<8x8xf32>, vector<8x8xf32> -> vector<8x32xf32>
    %cst_224 = arith.constant dense<0.000000e+00> : vector<8x32xf32>
    %498 = tpu.matmul %497, %412, %cst_224 {dimension_numbers = #tpu.dot_dimension_numbers<[1], [0], [0], [1], [0, 0, 1, 1], [], []>} : vector<8x32xf32>, vector<32x32xf32>, vector<8x32xf32> -> vector<8x32xf32>
    %499 = vector.broadcast %414 : vector<1x32xf32> to vector<8x32xf32>
    %500 = arith.addf %498, %499 : vector<8x32xf32>
    %501 = arith.addf %382, %500 : vector<8x32xf32>
    %c0_225 = arith.constant 0 : index
    %c0_226 = arith.constant 0 : index
    %c0_227 = arith.constant 0 : index
    %502 = vector.load %arg20[%c0_225, %c0_226, %c0_227] : memref<2x1x32xf32, #tpu.memory_space<vmem>>, vector<1x1x32xf32>
    %503 = vector.shape_cast %502 : vector<1x1x32xf32> to vector<1x32xf32>
    %c0_228 = arith.constant 0 : index
    %c0_229 = arith.constant 0 : index
    %c0_230 = arith.constant 0 : index
    %504 = vector.load %arg19[%c0_228, %c0_229, %c0_230] : memref<2x1x32xf32, #tpu.memory_space<vmem>>, vector<1x1x32xf32>
    %505 = vector.shape_cast %504 : vector<1x1x32xf32> to vector<1x32xf32>
    %cst_231 = arith.constant dense<0.000000e+00> : vector<8xf32>
    %506 = vector.multi_reduction <add>, %501, %cst_231 [1] : vector<8x32xf32> to vector<8xf32>
    %507 = vector.shape_cast %506 : vector<8xf32> to vector<8x1xf32>
    %cst_232 = arith.constant 3.200000e+01 : f32
    %508 = vector.broadcast %cst_232 : f32 to vector<8x1xf32>
    %509 = arith.divf %507, %508 : vector<8x1xf32>
    %510 = vector.broadcast %509 : vector<8x1xf32> to vector<8x32xf32>
    %511 = arith.subf %501, %510 : vector<8x32xf32>
    %512 = arith.mulf %511, %511 : vector<8x32xf32>
    %cst_233 = arith.constant dense<0.000000e+00> : vector<8xf32>
    %513 = vector.multi_reduction <add>, %512, %cst_233 [1] : vector<8x32xf32> to vector<8xf32>
    %514 = vector.shape_cast %513 : vector<8xf32> to vector<8x1xf32>
    %cst_234 = arith.constant 3.100000e+01 : f32
    %515 = vector.broadcast %cst_234 : f32 to vector<8x1xf32>
    %516 = arith.divf %514, %515 : vector<8x1xf32>
    %517 = vector.broadcast %503 : vector<1x32xf32> to vector<8x32xf32>
    %518 = arith.mulf %517, %511 : vector<8x32xf32>
    %519 = math.sqrt %516 : vector<8x1xf32>
    %cst_235 = arith.constant 9.99999997E-7 : f32
    %520 = vector.broadcast %cst_235 : f32 to vector<8x1xf32>
    %521 = arith.addf %519, %520 : vector<8x1xf32>
    %522 = vector.broadcast %521 : vector<8x1xf32> to vector<8x32xf32>
    %523 = arith.divf %518, %522 : vector<8x32xf32>
    %524 = vector.broadcast %505 : vector<1x32xf32> to vector<8x32xf32>
    %525 = arith.addf %523, %524 : vector<8x32xf32>
    %c0_236 = arith.constant 0 : index
    %c0_237 = arith.constant 0 : index
    %c0_238 = arith.constant 0 : index
    %526 = vector.load %arg12[%c0_236, %c0_237, %c0_238] : memref<2x32x32xf32, #tpu.memory_space<vmem>>, vector<1x32x32xf32>
    %527 = vector.shape_cast %526 : vector<1x32x32xf32> to vector<32x32xf32>
    %c0_239 = arith.constant 0 : index
    %c0_240 = arith.constant 0 : index
    %c0_241 = arith.constant 0 : index
    %528 = vector.load %arg11[%c0_239, %c0_240, %c0_241] : memref<2x1x32xf32, #tpu.memory_space<vmem>>, vector<1x1x32xf32>
    %529 = vector.shape_cast %528 : vector<1x1x32xf32> to vector<1x32xf32>
    %c0_242 = arith.constant 0 : index
    %c0_243 = arith.constant 0 : index
    %c0_244 = arith.constant 0 : index
    %530 = vector.load %arg8[%c0_242, %c0_243, %c0_244] : memref<2x32x64xf32, #tpu.memory_space<vmem>>, vector<1x32x64xf32>
    %531 = vector.shape_cast %530 : vector<1x32x64xf32> to vector<32x64xf32>
    %c0_245 = arith.constant 0 : index
    %c0_246 = arith.constant 0 : index
    %c0_247 = arith.constant 0 : index
    %532 = vector.load %arg7[%c0_245, %c0_246, %c0_247] : memref<2x1x64xf32, #tpu.memory_space<vmem>>, vector<1x1x64xf32>
    %533 = vector.shape_cast %532 : vector<1x1x64xf32> to vector<1x64xf32>
    %c0_248 = arith.constant 0 : index
    %c0_249 = arith.constant 0 : index
    %c0_250 = arith.constant 0 : index
    %534 = vector.load %arg10[%c0_248, %c0_249, %c0_250] : memref<2x32x32xf32, #tpu.memory_space<vmem>>, vector<1x32x32xf32>
    %535 = vector.shape_cast %534 : vector<1x32x32xf32> to vector<32x32xf32>
    %c0_251 = arith.constant 0 : index
    %c0_252 = arith.constant 0 : index
    %c0_253 = arith.constant 0 : index
    %536 = vector.load %arg9[%c0_251, %c0_252, %c0_253] : memref<2x1x32xf32, #tpu.memory_space<vmem>>, vector<1x1x32xf32>
    %537 = vector.shape_cast %536 : vector<1x1x32xf32> to vector<1x32xf32>
    %cst_254 = arith.constant dense<0.000000e+00> : vector<8x32xf32>
    %538 = tpu.matmul %525, %527, %cst_254 {dimension_numbers = #tpu.dot_dimension_numbers<[1], [0], [0], [1], [0, 0, 1, 1], [], []>} : vector<8x32xf32>, vector<32x32xf32>, vector<8x32xf32> -> vector<8x32xf32>
    %539 = vector.broadcast %529 : vector<1x32xf32> to vector<8x32xf32>
    %540 = arith.addf %538, %539 : vector<8x32xf32>
    %cst_255 = arith.constant dense<0.000000e+00> : vector<8x64xf32>
    %541 = tpu.matmul %374, %531, %cst_255 {dimension_numbers = #tpu.dot_dimension_numbers<[1], [0], [0], [1], [0, 0, 1, 1], [], []>} : vector<8x32xf32>, vector<32x64xf32>, vector<8x64xf32> -> vector<8x64xf32>
    %542 = vector.broadcast %533 : vector<1x64xf32> to vector<8x64xf32>
    %543 = arith.addf %541, %542 : vector<8x64xf32>
    %544 = vector.extract_strided_slice %543 {offsets = [0, 0], sizes = [8, 32], strides = [1, 1]} : vector<8x64xf32> to vector<8x32xf32>
    %545 = vector.extract_strided_slice %543 {offsets = [0, 32], sizes = [8, 32], strides = [1, 1]} : vector<8x64xf32> to vector<8x32xf32>
    %546 = vector.extract_strided_slice %540 {offsets = [0, 0], sizes = [8, 8], strides = [1, 1]} : vector<8x32xf32> to vector<8x8xf32>
    %547 = vector.extract_strided_slice %544 {offsets = [0, 0], sizes = [8, 8], strides = [1, 1]} : vector<8x32xf32> to vector<8x8xf32>
    %548 = vector.extract_strided_slice %545 {offsets = [0, 0], sizes = [8, 8], strides = [1, 1]} : vector<8x32xf32> to vector<8x8xf32>
    %cst_256 = arith.constant dense<0.000000e+00> : vector<8x8xf32>
    %549 = tpu.matmul %546, %547, %cst_256 {dimension_numbers = #tpu.dot_dimension_numbers<[1], [1], [0], [0], [0, 0, 1, 0], [], []>} : vector<8x8xf32>, vector<8x8xf32>, vector<8x8xf32> -> vector<8x8xf32>
    %cst_257 = arith.constant 0.353553385 : f32
    %550 = vector.broadcast %cst_257 : f32 to vector<8x8xf32>
    %551 = arith.mulf %549, %550 : vector<8x8xf32>
    %cst_258 = arith.constant -1.000000e+09 : f32
    %552 = vector.shape_cast %3 : vector<1x8xi1> to vector<1x8xi1>
    %553 = vector.broadcast %552 : vector<1x8xi1> to vector<8x8xi1>
    %554 = vector.broadcast %cst_258 : f32 to vector<8x8xf32>
    %555 = arith.select %553, %551, %554 : vector<8x8xi1>, vector<8x8xf32>
    %cst_259 = arith.constant dense<0xFF800000> : vector<8xf32>
    %556 = vector.multi_reduction <maximumf>, %555, %cst_259 [1] : vector<8x8xf32> to vector<8xf32>
    %557 = vector.shape_cast %556 : vector<8xf32> to vector<8x1xf32>
    %558 = vector.broadcast %557 : vector<8x1xf32> to vector<8x8xf32>
    %559 = arith.subf %555, %558 : vector<8x8xf32>
    %560 = math.exp %559 : vector<8x8xf32>
    %cst_260 = arith.constant dense<0.000000e+00> : vector<8xf32>
    %561 = vector.multi_reduction <add>, %560, %cst_260 [1] : vector<8x8xf32> to vector<8xf32>
    %562 = vector.shape_cast %561 : vector<8xf32> to vector<8x1xf32>
    %563 = tpu.reciprocal %562 {approx = true} : vector<8x1xf32> -> vector<8x1xf32>
    %564 = vector.broadcast %563 : vector<8x1xf32> to vector<8x8xf32>
    %565 = arith.mulf %560, %564 : vector<8x8xf32>
    %cst_261 = arith.constant dense<0.000000e+00> : vector<8x8xf32>
    %566 = tpu.matmul %565, %548, %cst_261 {dimension_numbers = #tpu.dot_dimension_numbers<[1], [0], [0], [1], [0, 0, 1, 1], [], []>} : vector<8x8xf32>, vector<8x8xf32>, vector<8x8xf32> -> vector<8x8xf32>
    %567 = vector.extract_strided_slice %540 {offsets = [0, 8], sizes = [8, 8], strides = [1, 1]} : vector<8x32xf32> to vector<8x8xf32>
    %568 = vector.extract_strided_slice %544 {offsets = [0, 8], sizes = [8, 8], strides = [1, 1]} : vector<8x32xf32> to vector<8x8xf32>
    %569 = vector.extract_strided_slice %545 {offsets = [0, 8], sizes = [8, 8], strides = [1, 1]} : vector<8x32xf32> to vector<8x8xf32>
    %cst_262 = arith.constant dense<0.000000e+00> : vector<8x8xf32>
    %570 = tpu.matmul %567, %568, %cst_262 {dimension_numbers = #tpu.dot_dimension_numbers<[1], [1], [0], [0], [0, 0, 1, 0], [], []>} : vector<8x8xf32>, vector<8x8xf32>, vector<8x8xf32> -> vector<8x8xf32>
    %cst_263 = arith.constant 0.353553385 : f32
    %571 = vector.broadcast %cst_263 : f32 to vector<8x8xf32>
    %572 = arith.mulf %570, %571 : vector<8x8xf32>
    %cst_264 = arith.constant -1.000000e+09 : f32
    %573 = vector.shape_cast %3 : vector<1x8xi1> to vector<1x8xi1>
    %574 = vector.broadcast %573 : vector<1x8xi1> to vector<8x8xi1>
    %575 = vector.broadcast %cst_264 : f32 to vector<8x8xf32>
    %576 = arith.select %574, %572, %575 : vector<8x8xi1>, vector<8x8xf32>
    %cst_265 = arith.constant dense<0xFF800000> : vector<8xf32>
    %577 = vector.multi_reduction <maximumf>, %576, %cst_265 [1] : vector<8x8xf32> to vector<8xf32>
    %578 = vector.shape_cast %577 : vector<8xf32> to vector<8x1xf32>
    %579 = vector.broadcast %578 : vector<8x1xf32> to vector<8x8xf32>
    %580 = arith.subf %576, %579 : vector<8x8xf32>
    %581 = math.exp %580 : vector<8x8xf32>
    %cst_266 = arith.constant dense<0.000000e+00> : vector<8xf32>
    %582 = vector.multi_reduction <add>, %581, %cst_266 [1] : vector<8x8xf32> to vector<8xf32>
    %583 = vector.shape_cast %582 : vector<8xf32> to vector<8x1xf32>
    %584 = tpu.reciprocal %583 {approx = true} : vector<8x1xf32> -> vector<8x1xf32>
    %585 = vector.broadcast %584 : vector<8x1xf32> to vector<8x8xf32>
    %586 = arith.mulf %581, %585 : vector<8x8xf32>
    %cst_267 = arith.constant dense<0.000000e+00> : vector<8x8xf32>
    %587 = tpu.matmul %586, %569, %cst_267 {dimension_numbers = #tpu.dot_dimension_numbers<[1], [0], [0], [1], [0, 0, 1, 1], [], []>} : vector<8x8xf32>, vector<8x8xf32>, vector<8x8xf32> -> vector<8x8xf32>
    %588 = vector.extract_strided_slice %540 {offsets = [0, 16], sizes = [8, 8], strides = [1, 1]} : vector<8x32xf32> to vector<8x8xf32>
    %589 = vector.extract_strided_slice %544 {offsets = [0, 16], sizes = [8, 8], strides = [1, 1]} : vector<8x32xf32> to vector<8x8xf32>
    %590 = vector.extract_strided_slice %545 {offsets = [0, 16], sizes = [8, 8], strides = [1, 1]} : vector<8x32xf32> to vector<8x8xf32>
    %cst_268 = arith.constant dense<0.000000e+00> : vector<8x8xf32>
    %591 = tpu.matmul %588, %589, %cst_268 {dimension_numbers = #tpu.dot_dimension_numbers<[1], [1], [0], [0], [0, 0, 1, 0], [], []>} : vector<8x8xf32>, vector<8x8xf32>, vector<8x8xf32> -> vector<8x8xf32>
    %cst_269 = arith.constant 0.353553385 : f32
    %592 = vector.broadcast %cst_269 : f32 to vector<8x8xf32>
    %593 = arith.mulf %591, %592 : vector<8x8xf32>
    %cst_270 = arith.constant -1.000000e+09 : f32
    %594 = vector.shape_cast %3 : vector<1x8xi1> to vector<1x8xi1>
    %595 = vector.broadcast %594 : vector<1x8xi1> to vector<8x8xi1>
    %596 = vector.broadcast %cst_270 : f32 to vector<8x8xf32>
    %597 = arith.select %595, %593, %596 : vector<8x8xi1>, vector<8x8xf32>
    %cst_271 = arith.constant dense<0xFF800000> : vector<8xf32>
    %598 = vector.multi_reduction <maximumf>, %597, %cst_271 [1] : vector<8x8xf32> to vector<8xf32>
    %599 = vector.shape_cast %598 : vector<8xf32> to vector<8x1xf32>
    %600 = vector.broadcast %599 : vector<8x1xf32> to vector<8x8xf32>
    %601 = arith.subf %597, %600 : vector<8x8xf32>
    %602 = math.exp %601 : vector<8x8xf32>
    %cst_272 = arith.constant dense<0.000000e+00> : vector<8xf32>
    %603 = vector.multi_reduction <add>, %602, %cst_272 [1] : vector<8x8xf32> to vector<8xf32>
    %604 = vector.shape_cast %603 : vector<8xf32> to vector<8x1xf32>
    %605 = tpu.reciprocal %604 {approx = true} : vector<8x1xf32> -> vector<8x1xf32>
    %606 = vector.broadcast %605 : vector<8x1xf32> to vector<8x8xf32>
    %607 = arith.mulf %602, %606 : vector<8x8xf32>
    %cst_273 = arith.constant dense<0.000000e+00> : vector<8x8xf32>
    %608 = tpu.matmul %607, %590, %cst_273 {dimension_numbers = #tpu.dot_dimension_numbers<[1], [0], [0], [1], [0, 0, 1, 1], [], []>} : vector<8x8xf32>, vector<8x8xf32>, vector<8x8xf32> -> vector<8x8xf32>
    %609 = vector.extract_strided_slice %540 {offsets = [0, 24], sizes = [8, 8], strides = [1, 1]} : vector<8x32xf32> to vector<8x8xf32>
    %610 = vector.extract_strided_slice %544 {offsets = [0, 24], sizes = [8, 8], strides = [1, 1]} : vector<8x32xf32> to vector<8x8xf32>
    %611 = vector.extract_strided_slice %545 {offsets = [0, 24], sizes = [8, 8], strides = [1, 1]} : vector<8x32xf32> to vector<8x8xf32>
    %cst_274 = arith.constant dense<0.000000e+00> : vector<8x8xf32>
    %612 = tpu.matmul %609, %610, %cst_274 {dimension_numbers = #tpu.dot_dimension_numbers<[1], [1], [0], [0], [0, 0, 1, 0], [], []>} : vector<8x8xf32>, vector<8x8xf32>, vector<8x8xf32> -> vector<8x8xf32>
    %cst_275 = arith.constant 0.353553385 : f32
    %613 = vector.broadcast %cst_275 : f32 to vector<8x8xf32>
    %614 = arith.mulf %612, %613 : vector<8x8xf32>
    %cst_276 = arith.constant -1.000000e+09 : f32
    %615 = vector.shape_cast %3 : vector<1x8xi1> to vector<1x8xi1>
    %616 = vector.broadcast %615 : vector<1x8xi1> to vector<8x8xi1>
    %617 = vector.broadcast %cst_276 : f32 to vector<8x8xf32>
    %618 = arith.select %616, %614, %617 : vector<8x8xi1>, vector<8x8xf32>
    %cst_277 = arith.constant dense<0xFF800000> : vector<8xf32>
    %619 = vector.multi_reduction <maximumf>, %618, %cst_277 [1] : vector<8x8xf32> to vector<8xf32>
    %620 = vector.shape_cast %619 : vector<8xf32> to vector<8x1xf32>
    %621 = vector.broadcast %620 : vector<8x1xf32> to vector<8x8xf32>
    %622 = arith.subf %618, %621 : vector<8x8xf32>
    %623 = math.exp %622 : vector<8x8xf32>
    %cst_278 = arith.constant dense<0.000000e+00> : vector<8xf32>
    %624 = vector.multi_reduction <add>, %623, %cst_278 [1] : vector<8x8xf32> to vector<8xf32>
    %625 = vector.shape_cast %624 : vector<8xf32> to vector<8x1xf32>
    %626 = tpu.reciprocal %625 {approx = true} : vector<8x1xf32> -> vector<8x1xf32>
    %627 = vector.broadcast %626 : vector<8x1xf32> to vector<8x8xf32>
    %628 = arith.mulf %623, %627 : vector<8x8xf32>
    %cst_279 = arith.constant dense<0.000000e+00> : vector<8x8xf32>
    %629 = tpu.matmul %628, %611, %cst_279 {dimension_numbers = #tpu.dot_dimension_numbers<[1], [0], [0], [1], [0, 0, 1, 1], [], []>} : vector<8x8xf32>, vector<8x8xf32>, vector<8x8xf32> -> vector<8x8xf32>
    %630 = tpu.concatenate %566, %587, %608, %629 in 1 : vector<8x8xf32>, vector<8x8xf32>, vector<8x8xf32>, vector<8x8xf32> -> vector<8x32xf32>
    %cst_280 = arith.constant dense<0.000000e+00> : vector<8x32xf32>
    %631 = tpu.matmul %630, %535, %cst_280 {dimension_numbers = #tpu.dot_dimension_numbers<[1], [0], [0], [1], [0, 0, 1, 1], [], []>} : vector<8x32xf32>, vector<32x32xf32>, vector<8x32xf32> -> vector<8x32xf32>
    %632 = vector.broadcast %537 : vector<1x32xf32> to vector<8x32xf32>
    %633 = arith.addf %631, %632 : vector<8x32xf32>
    %634 = arith.addf %501, %633 : vector<8x32xf32>
    %c0_281 = arith.constant 0 : index
    %c0_282 = arith.constant 0 : index
    %c0_283 = arith.constant 0 : index
    %635 = vector.load %arg22[%c0_281, %c0_282, %c0_283] : memref<2x1x32xf32, #tpu.memory_space<vmem>>, vector<1x1x32xf32>
    %636 = vector.shape_cast %635 : vector<1x1x32xf32> to vector<1x32xf32>
    %c0_284 = arith.constant 0 : index
    %c0_285 = arith.constant 0 : index
    %c0_286 = arith.constant 0 : index
    %637 = vector.load %arg21[%c0_284, %c0_285, %c0_286] : memref<2x1x32xf32, #tpu.memory_space<vmem>>, vector<1x1x32xf32>
    %638 = vector.shape_cast %637 : vector<1x1x32xf32> to vector<1x32xf32>
    %cst_287 = arith.constant dense<0.000000e+00> : vector<8xf32>
    %639 = vector.multi_reduction <add>, %634, %cst_287 [1] : vector<8x32xf32> to vector<8xf32>
    %640 = vector.shape_cast %639 : vector<8xf32> to vector<8x1xf32>
    %cst_288 = arith.constant 3.200000e+01 : f32
    %641 = vector.broadcast %cst_288 : f32 to vector<8x1xf32>
    %642 = arith.divf %640, %641 : vector<8x1xf32>
    %643 = vector.broadcast %642 : vector<8x1xf32> to vector<8x32xf32>
    %644 = arith.subf %634, %643 : vector<8x32xf32>
    %645 = arith.mulf %644, %644 : vector<8x32xf32>
    %cst_289 = arith.constant dense<0.000000e+00> : vector<8xf32>
    %646 = vector.multi_reduction <add>, %645, %cst_289 [1] : vector<8x32xf32> to vector<8xf32>
    %647 = vector.shape_cast %646 : vector<8xf32> to vector<8x1xf32>
    %cst_290 = arith.constant 3.100000e+01 : f32
    %648 = vector.broadcast %cst_290 : f32 to vector<8x1xf32>
    %649 = arith.divf %647, %648 : vector<8x1xf32>
    %650 = vector.broadcast %636 : vector<1x32xf32> to vector<8x32xf32>
    %651 = arith.mulf %650, %644 : vector<8x32xf32>
    %652 = math.sqrt %649 : vector<8x1xf32>
    %cst_291 = arith.constant 9.99999997E-7 : f32
    %653 = vector.broadcast %cst_291 : f32 to vector<8x1xf32>
    %654 = arith.addf %652, %653 : vector<8x1xf32>
    %655 = vector.broadcast %654 : vector<8x1xf32> to vector<8x32xf32>
    %656 = arith.divf %651, %655 : vector<8x32xf32>
    %657 = vector.broadcast %638 : vector<1x32xf32> to vector<8x32xf32>
    %658 = arith.addf %656, %657 : vector<8x32xf32>
    %c0_292 = arith.constant 0 : index
    %c0_293 = arith.constant 0 : index
    %c0_294 = arith.constant 0 : index
    %659 = vector.load %arg15[%c0_292, %c0_293, %c0_294] : memref<2x32x64xf32, #tpu.memory_space<vmem>>, vector<1x32x64xf32>
    %660 = vector.shape_cast %659 : vector<1x32x64xf32> to vector<32x64xf32>
    %c0_295 = arith.constant 0 : index
    %c0_296 = arith.constant 0 : index
    %c0_297 = arith.constant 0 : index
    %661 = vector.load %arg13[%c0_295, %c0_296, %c0_297] : memref<2x1x64xf32, #tpu.memory_space<vmem>>, vector<1x1x64xf32>
    %662 = vector.shape_cast %661 : vector<1x1x64xf32> to vector<1x64xf32>
    %c0_298 = arith.constant 0 : index
    %c0_299 = arith.constant 0 : index
    %c0_300 = arith.constant 0 : index
    %663 = vector.load %arg16[%c0_298, %c0_299, %c0_300] : memref<2x64x32xf32, #tpu.memory_space<vmem>>, vector<1x64x32xf32>
    %664 = vector.shape_cast %663 : vector<1x64x32xf32> to vector<64x32xf32>
    %c0_301 = arith.constant 0 : index
    %c0_302 = arith.constant 0 : index
    %c0_303 = arith.constant 0 : index
    %665 = vector.load %arg14[%c0_301, %c0_302, %c0_303] : memref<2x1x32xf32, #tpu.memory_space<vmem>>, vector<1x1x32xf32>
    %666 = vector.shape_cast %665 : vector<1x1x32xf32> to vector<1x32xf32>
    %cst_304 = arith.constant dense<0.000000e+00> : vector<8x64xf32>
    %667 = tpu.matmul %658, %660, %cst_304 {dimension_numbers = #tpu.dot_dimension_numbers<[1], [0], [0], [1], [0, 0, 1, 1], [], []>} : vector<8x32xf32>, vector<32x64xf32>, vector<8x64xf32> -> vector<8x64xf32>
    %668 = vector.broadcast %662 : vector<1x64xf32> to vector<8x64xf32>
    %669 = arith.addf %667, %668 : vector<8x64xf32>
    %cst_305 = arith.constant 0.000000e+00 : f32
    %670 = vector.broadcast %cst_305 : f32 to vector<8x64xf32>
    %671 = arith.maximumf %669, %670 : vector<8x64xf32>
    %cst_306 = arith.constant dense<0.000000e+00> : vector<8x32xf32>
    %672 = tpu.matmul %671, %664, %cst_306 {dimension_numbers = #tpu.dot_dimension_numbers<[1], [0], [0], [1], [0, 0, 1, 1], [], []>} : vector<8x64xf32>, vector<64x32xf32>, vector<8x32xf32> -> vector<8x32xf32>
    %673 = vector.broadcast %666 : vector<1x32xf32> to vector<8x32xf32>
    %674 = arith.addf %672, %673 : vector<8x32xf32>
    %675 = arith.addf %634, %674 : vector<8x32xf32>
    %c1_307 = arith.constant 1 : index
    %c0_308 = arith.constant 0 : index
    %c0_309 = arith.constant 0 : index
    %676 = vector.load %arg18[%c1_307, %c0_308, %c0_309] : memref<2x1x32xf32, #tpu.memory_space<vmem>>, vector<1x1x32xf32>
    %677 = vector.shape_cast %676 : vector<1x1x32xf32> to vector<1x32xf32>
    %c1_310 = arith.constant 1 : index
    %c0_311 = arith.constant 0 : index
    %c0_312 = arith.constant 0 : index
    %678 = vector.load %arg17[%c1_310, %c0_311, %c0_312] : memref<2x1x32xf32, #tpu.memory_space<vmem>>, vector<1x1x32xf32>
    %679 = vector.shape_cast %678 : vector<1x1x32xf32> to vector<1x32xf32>
    %cst_313 = arith.constant dense<0.000000e+00> : vector<8xf32>
    %680 = vector.multi_reduction <add>, %675, %cst_313 [1] : vector<8x32xf32> to vector<8xf32>
    %681 = vector.shape_cast %680 : vector<8xf32> to vector<8x1xf32>
    %cst_314 = arith.constant 3.200000e+01 : f32
    %682 = vector.broadcast %cst_314 : f32 to vector<8x1xf32>
    %683 = arith.divf %681, %682 : vector<8x1xf32>
    %684 = vector.broadcast %683 : vector<8x1xf32> to vector<8x32xf32>
    %685 = arith.subf %675, %684 : vector<8x32xf32>
    %686 = arith.mulf %685, %685 : vector<8x32xf32>
    %cst_315 = arith.constant dense<0.000000e+00> : vector<8xf32>
    %687 = vector.multi_reduction <add>, %686, %cst_315 [1] : vector<8x32xf32> to vector<8xf32>
    %688 = vector.shape_cast %687 : vector<8xf32> to vector<8x1xf32>
    %cst_316 = arith.constant 3.100000e+01 : f32
    %689 = vector.broadcast %cst_316 : f32 to vector<8x1xf32>
    %690 = arith.divf %688, %689 : vector<8x1xf32>
    %691 = vector.broadcast %677 : vector<1x32xf32> to vector<8x32xf32>
    %692 = arith.mulf %691, %685 : vector<8x32xf32>
    %693 = math.sqrt %690 : vector<8x1xf32>
    %cst_317 = arith.constant 9.99999997E-7 : f32
    %694 = vector.broadcast %cst_317 : f32 to vector<8x1xf32>
    %695 = arith.addf %693, %694 : vector<8x1xf32>
    %696 = vector.broadcast %695 : vector<8x1xf32> to vector<8x32xf32>
    %697 = arith.divf %692, %696 : vector<8x32xf32>
    %698 = vector.broadcast %679 : vector<1x32xf32> to vector<8x32xf32>
    %699 = arith.addf %697, %698 : vector<8x32xf32>
    %c1_318 = arith.constant 1 : index
    %c0_319 = arith.constant 0 : index
    %c0_320 = arith.constant 0 : index
    %700 = vector.load %arg28[%c1_318, %c0_319, %c0_320] : memref<2x32x96xf32, #tpu.memory_space<vmem>>, vector<1x32x96xf32>
    %701 = vector.shape_cast %700 : vector<1x32x96xf32> to vector<32x96xf32>
    %c1_321 = arith.constant 1 : index
    %c0_322 = arith.constant 0 : index
    %c0_323 = arith.constant 0 : index
    %702 = vector.load %arg27[%c1_321, %c0_322, %c0_323] : memref<2x1x96xf32, #tpu.memory_space<vmem>>, vector<1x1x96xf32>
    %703 = vector.shape_cast %702 : vector<1x1x96xf32> to vector<1x96xf32>
    %c1_324 = arith.constant 1 : index
    %c0_325 = arith.constant 0 : index
    %c0_326 = arith.constant 0 : index
    %704 = vector.load %arg26[%c1_324, %c0_325, %c0_326] : memref<2x32x32xf32, #tpu.memory_space<vmem>>, vector<1x32x32xf32>
    %705 = vector.shape_cast %704 : vector<1x32x32xf32> to vector<32x32xf32>
    %c1_327 = arith.constant 1 : index
    %c0_328 = arith.constant 0 : index
    %c0_329 = arith.constant 0 : index
    %706 = vector.load %arg25[%c1_327, %c0_328, %c0_329] : memref<2x1x32xf32, #tpu.memory_space<vmem>>, vector<1x1x32xf32>
    %707 = vector.shape_cast %706 : vector<1x1x32xf32> to vector<1x32xf32>
    %cst_330 = arith.constant dense<0.000000e+00> : vector<8x96xf32>
    %708 = tpu.matmul %699, %701, %cst_330 {dimension_numbers = #tpu.dot_dimension_numbers<[1], [0], [0], [1], [0, 0, 1, 1], [], []>} : vector<8x32xf32>, vector<32x96xf32>, vector<8x96xf32> -> vector<8x96xf32>
    %709 = vector.broadcast %703 : vector<1x96xf32> to vector<8x96xf32>
    %710 = arith.addf %708, %709 : vector<8x96xf32>
    %711 = vector.extract_strided_slice %710 {offsets = [0, 0], sizes = [8, 32], strides = [1, 1]} : vector<8x96xf32> to vector<8x32xf32>
    %712 = vector.extract_strided_slice %710 {offsets = [0, 32], sizes = [8, 32], strides = [1, 1]} : vector<8x96xf32> to vector<8x32xf32>
    %713 = vector.extract_strided_slice %710 {offsets = [0, 64], sizes = [8, 32], strides = [1, 1]} : vector<8x96xf32> to vector<8x32xf32>
    %714 = vector.extract_strided_slice %711 {offsets = [0, 0], sizes = [8, 8], strides = [1, 1]} : vector<8x32xf32> to vector<8x8xf32>
    %715 = vector.extract_strided_slice %712 {offsets = [0, 0], sizes = [8, 8], strides = [1, 1]} : vector<8x32xf32> to vector<8x8xf32>
    %716 = vector.extract_strided_slice %713 {offsets = [0, 0], sizes = [8, 8], strides = [1, 1]} : vector<8x32xf32> to vector<8x8xf32>
    %cst_331 = arith.constant dense<0.000000e+00> : vector<8x8xf32>
    %717 = tpu.matmul %714, %715, %cst_331 {dimension_numbers = #tpu.dot_dimension_numbers<[1], [1], [0], [0], [0, 0, 1, 0], [], []>} : vector<8x8xf32>, vector<8x8xf32>, vector<8x8xf32> -> vector<8x8xf32>
    %cst_332 = arith.constant 0.353553385 : f32
    %718 = vector.broadcast %cst_332 : f32 to vector<8x8xf32>
    %719 = arith.mulf %717, %718 : vector<8x8xf32>
    %cst_333 = arith.constant -1.000000e+09 : f32
    %720 = vector.broadcast %cst_333 : f32 to vector<8x8xf32>
    %721 = arith.select %379, %719, %720 : vector<8x8xi1>, vector<8x8xf32>
    %cst_334 = arith.constant dense<0xFF800000> : vector<8xf32>
    %722 = vector.multi_reduction <maximumf>, %721, %cst_334 [1] : vector<8x8xf32> to vector<8xf32>
    %723 = vector.shape_cast %722 : vector<8xf32> to vector<8x1xf32>
    %724 = vector.broadcast %723 : vector<8x1xf32> to vector<8x8xf32>
    %725 = arith.subf %721, %724 : vector<8x8xf32>
    %726 = math.exp %725 : vector<8x8xf32>
    %cst_335 = arith.constant dense<0.000000e+00> : vector<8xf32>
    %727 = vector.multi_reduction <add>, %726, %cst_335 [1] : vector<8x8xf32> to vector<8xf32>
    %728 = vector.shape_cast %727 : vector<8xf32> to vector<8x1xf32>
    %729 = tpu.reciprocal %728 {approx = true} : vector<8x1xf32> -> vector<8x1xf32>
    %730 = vector.broadcast %729 : vector<8x1xf32> to vector<8x8xf32>
    %731 = arith.mulf %726, %730 : vector<8x8xf32>
    %cst_336 = arith.constant dense<0.000000e+00> : vector<8x8xf32>
    %732 = tpu.matmul %731, %716, %cst_336 {dimension_numbers = #tpu.dot_dimension_numbers<[1], [0], [0], [1], [0, 0, 1, 1], [], []>} : vector<8x8xf32>, vector<8x8xf32>, vector<8x8xf32> -> vector<8x8xf32>
    %733 = vector.extract_strided_slice %711 {offsets = [0, 8], sizes = [8, 8], strides = [1, 1]} : vector<8x32xf32> to vector<8x8xf32>
    %734 = vector.extract_strided_slice %712 {offsets = [0, 8], sizes = [8, 8], strides = [1, 1]} : vector<8x32xf32> to vector<8x8xf32>
    %735 = vector.extract_strided_slice %713 {offsets = [0, 8], sizes = [8, 8], strides = [1, 1]} : vector<8x32xf32> to vector<8x8xf32>
    %cst_337 = arith.constant dense<0.000000e+00> : vector<8x8xf32>
    %736 = tpu.matmul %733, %734, %cst_337 {dimension_numbers = #tpu.dot_dimension_numbers<[1], [1], [0], [0], [0, 0, 1, 0], [], []>} : vector<8x8xf32>, vector<8x8xf32>, vector<8x8xf32> -> vector<8x8xf32>
    %cst_338 = arith.constant 0.353553385 : f32
    %737 = vector.broadcast %cst_338 : f32 to vector<8x8xf32>
    %738 = arith.mulf %736, %737 : vector<8x8xf32>
    %cst_339 = arith.constant -1.000000e+09 : f32
    %739 = vector.broadcast %cst_339 : f32 to vector<8x8xf32>
    %740 = arith.select %379, %738, %739 : vector<8x8xi1>, vector<8x8xf32>
    %cst_340 = arith.constant dense<0xFF800000> : vector<8xf32>
    %741 = vector.multi_reduction <maximumf>, %740, %cst_340 [1] : vector<8x8xf32> to vector<8xf32>
    %742 = vector.shape_cast %741 : vector<8xf32> to vector<8x1xf32>
    %743 = vector.broadcast %742 : vector<8x1xf32> to vector<8x8xf32>
    %744 = arith.subf %740, %743 : vector<8x8xf32>
    %745 = math.exp %744 : vector<8x8xf32>
    %cst_341 = arith.constant dense<0.000000e+00> : vector<8xf32>
    %746 = vector.multi_reduction <add>, %745, %cst_341 [1] : vector<8x8xf32> to vector<8xf32>
    %747 = vector.shape_cast %746 : vector<8xf32> to vector<8x1xf32>
    %748 = tpu.reciprocal %747 {approx = true} : vector<8x1xf32> -> vector<8x1xf32>
    %749 = vector.broadcast %748 : vector<8x1xf32> to vector<8x8xf32>
    %750 = arith.mulf %745, %749 : vector<8x8xf32>
    %cst_342 = arith.constant dense<0.000000e+00> : vector<8x8xf32>
    %751 = tpu.matmul %750, %735, %cst_342 {dimension_numbers = #tpu.dot_dimension_numbers<[1], [0], [0], [1], [0, 0, 1, 1], [], []>} : vector<8x8xf32>, vector<8x8xf32>, vector<8x8xf32> -> vector<8x8xf32>
    %752 = vector.extract_strided_slice %711 {offsets = [0, 16], sizes = [8, 8], strides = [1, 1]} : vector<8x32xf32> to vector<8x8xf32>
    %753 = vector.extract_strided_slice %712 {offsets = [0, 16], sizes = [8, 8], strides = [1, 1]} : vector<8x32xf32> to vector<8x8xf32>
    %754 = vector.extract_strided_slice %713 {offsets = [0, 16], sizes = [8, 8], strides = [1, 1]} : vector<8x32xf32> to vector<8x8xf32>
    %cst_343 = arith.constant dense<0.000000e+00> : vector<8x8xf32>
    %755 = tpu.matmul %752, %753, %cst_343 {dimension_numbers = #tpu.dot_dimension_numbers<[1], [1], [0], [0], [0, 0, 1, 0], [], []>} : vector<8x8xf32>, vector<8x8xf32>, vector<8x8xf32> -> vector<8x8xf32>
    %cst_344 = arith.constant 0.353553385 : f32
    %756 = vector.broadcast %cst_344 : f32 to vector<8x8xf32>
    %757 = arith.mulf %755, %756 : vector<8x8xf32>
    %cst_345 = arith.constant -1.000000e+09 : f32
    %758 = vector.broadcast %cst_345 : f32 to vector<8x8xf32>
    %759 = arith.select %379, %757, %758 : vector<8x8xi1>, vector<8x8xf32>
    %cst_346 = arith.constant dense<0xFF800000> : vector<8xf32>
    %760 = vector.multi_reduction <maximumf>, %759, %cst_346 [1] : vector<8x8xf32> to vector<8xf32>
    %761 = vector.shape_cast %760 : vector<8xf32> to vector<8x1xf32>
    %762 = vector.broadcast %761 : vector<8x1xf32> to vector<8x8xf32>
    %763 = arith.subf %759, %762 : vector<8x8xf32>
    %764 = math.exp %763 : vector<8x8xf32>
    %cst_347 = arith.constant dense<0.000000e+00> : vector<8xf32>
    %765 = vector.multi_reduction <add>, %764, %cst_347 [1] : vector<8x8xf32> to vector<8xf32>
    %766 = vector.shape_cast %765 : vector<8xf32> to vector<8x1xf32>
    %767 = tpu.reciprocal %766 {approx = true} : vector<8x1xf32> -> vector<8x1xf32>
    %768 = vector.broadcast %767 : vector<8x1xf32> to vector<8x8xf32>
    %769 = arith.mulf %764, %768 : vector<8x8xf32>
    %cst_348 = arith.constant dense<0.000000e+00> : vector<8x8xf32>
    %770 = tpu.matmul %769, %754, %cst_348 {dimension_numbers = #tpu.dot_dimension_numbers<[1], [0], [0], [1], [0, 0, 1, 1], [], []>} : vector<8x8xf32>, vector<8x8xf32>, vector<8x8xf32> -> vector<8x8xf32>
    %771 = vector.extract_strided_slice %711 {offsets = [0, 24], sizes = [8, 8], strides = [1, 1]} : vector<8x32xf32> to vector<8x8xf32>
    %772 = vector.extract_strided_slice %712 {offsets = [0, 24], sizes = [8, 8], strides = [1, 1]} : vector<8x32xf32> to vector<8x8xf32>
    %773 = vector.extract_strided_slice %713 {offsets = [0, 24], sizes = [8, 8], strides = [1, 1]} : vector<8x32xf32> to vector<8x8xf32>
    %cst_349 = arith.constant dense<0.000000e+00> : vector<8x8xf32>
    %774 = tpu.matmul %771, %772, %cst_349 {dimension_numbers = #tpu.dot_dimension_numbers<[1], [1], [0], [0], [0, 0, 1, 0], [], []>} : vector<8x8xf32>, vector<8x8xf32>, vector<8x8xf32> -> vector<8x8xf32>
    %cst_350 = arith.constant 0.353553385 : f32
    %775 = vector.broadcast %cst_350 : f32 to vector<8x8xf32>
    %776 = arith.mulf %774, %775 : vector<8x8xf32>
    %cst_351 = arith.constant -1.000000e+09 : f32
    %777 = vector.broadcast %cst_351 : f32 to vector<8x8xf32>
    %778 = arith.select %379, %776, %777 : vector<8x8xi1>, vector<8x8xf32>
    %cst_352 = arith.constant dense<0xFF800000> : vector<8xf32>
    %779 = vector.multi_reduction <maximumf>, %778, %cst_352 [1] : vector<8x8xf32> to vector<8xf32>
    %780 = vector.shape_cast %779 : vector<8xf32> to vector<8x1xf32>
    %781 = vector.broadcast %780 : vector<8x1xf32> to vector<8x8xf32>
    %782 = arith.subf %778, %781 : vector<8x8xf32>
    %783 = math.exp %782 : vector<8x8xf32>
    %cst_353 = arith.constant dense<0.000000e+00> : vector<8xf32>
    %784 = vector.multi_reduction <add>, %783, %cst_353 [1] : vector<8x8xf32> to vector<8xf32>
    %785 = vector.shape_cast %784 : vector<8xf32> to vector<8x1xf32>
    %786 = tpu.reciprocal %785 {approx = true} : vector<8x1xf32> -> vector<8x1xf32>
    %787 = vector.broadcast %786 : vector<8x1xf32> to vector<8x8xf32>
    %788 = arith.mulf %783, %787 : vector<8x8xf32>
    %cst_354 = arith.constant dense<0.000000e+00> : vector<8x8xf32>
    %789 = tpu.matmul %788, %773, %cst_354 {dimension_numbers = #tpu.dot_dimension_numbers<[1], [0], [0], [1], [0, 0, 1, 1], [], []>} : vector<8x8xf32>, vector<8x8xf32>, vector<8x8xf32> -> vector<8x8xf32>
    %790 = tpu.concatenate %732, %751, %770, %789 in 1 : vector<8x8xf32>, vector<8x8xf32>, vector<8x8xf32>, vector<8x8xf32> -> vector<8x32xf32>
    %cst_355 = arith.constant dense<0.000000e+00> : vector<8x32xf32>
    %791 = tpu.matmul %790, %705, %cst_355 {dimension_numbers = #tpu.dot_dimension_numbers<[1], [0], [0], [1], [0, 0, 1, 1], [], []>} : vector<8x32xf32>, vector<32x32xf32>, vector<8x32xf32> -> vector<8x32xf32>
    %792 = vector.broadcast %707 : vector<1x32xf32> to vector<8x32xf32>
    %793 = arith.addf %791, %792 : vector<8x32xf32>
    %794 = arith.addf %675, %793 : vector<8x32xf32>
    %c1_356 = arith.constant 1 : index
    %c0_357 = arith.constant 0 : index
    %c0_358 = arith.constant 0 : index
    %795 = vector.load %arg20[%c1_356, %c0_357, %c0_358] : memref<2x1x32xf32, #tpu.memory_space<vmem>>, vector<1x1x32xf32>
    %796 = vector.shape_cast %795 : vector<1x1x32xf32> to vector<1x32xf32>
    %c1_359 = arith.constant 1 : index
    %c0_360 = arith.constant 0 : index
    %c0_361 = arith.constant 0 : index
    %797 = vector.load %arg19[%c1_359, %c0_360, %c0_361] : memref<2x1x32xf32, #tpu.memory_space<vmem>>, vector<1x1x32xf32>
    %798 = vector.shape_cast %797 : vector<1x1x32xf32> to vector<1x32xf32>
    %cst_362 = arith.constant dense<0.000000e+00> : vector<8xf32>
    %799 = vector.multi_reduction <add>, %794, %cst_362 [1] : vector<8x32xf32> to vector<8xf32>
    %800 = vector.shape_cast %799 : vector<8xf32> to vector<8x1xf32>
    %cst_363 = arith.constant 3.200000e+01 : f32
    %801 = vector.broadcast %cst_363 : f32 to vector<8x1xf32>
    %802 = arith.divf %800, %801 : vector<8x1xf32>
    %803 = vector.broadcast %802 : vector<8x1xf32> to vector<8x32xf32>
    %804 = arith.subf %794, %803 : vector<8x32xf32>
    %805 = arith.mulf %804, %804 : vector<8x32xf32>
    %cst_364 = arith.constant dense<0.000000e+00> : vector<8xf32>
    %806 = vector.multi_reduction <add>, %805, %cst_364 [1] : vector<8x32xf32> to vector<8xf32>
    %807 = vector.shape_cast %806 : vector<8xf32> to vector<8x1xf32>
    %cst_365 = arith.constant 3.100000e+01 : f32
    %808 = vector.broadcast %cst_365 : f32 to vector<8x1xf32>
    %809 = arith.divf %807, %808 : vector<8x1xf32>
    %810 = vector.broadcast %796 : vector<1x32xf32> to vector<8x32xf32>
    %811 = arith.mulf %810, %804 : vector<8x32xf32>
    %812 = math.sqrt %809 : vector<8x1xf32>
    %cst_366 = arith.constant 9.99999997E-7 : f32
    %813 = vector.broadcast %cst_366 : f32 to vector<8x1xf32>
    %814 = arith.addf %812, %813 : vector<8x1xf32>
    %815 = vector.broadcast %814 : vector<8x1xf32> to vector<8x32xf32>
    %816 = arith.divf %811, %815 : vector<8x32xf32>
    %817 = vector.broadcast %798 : vector<1x32xf32> to vector<8x32xf32>
    %818 = arith.addf %816, %817 : vector<8x32xf32>
    %c1_367 = arith.constant 1 : index
    %c0_368 = arith.constant 0 : index
    %c0_369 = arith.constant 0 : index
    %819 = vector.load %arg12[%c1_367, %c0_368, %c0_369] : memref<2x32x32xf32, #tpu.memory_space<vmem>>, vector<1x32x32xf32>
    %820 = vector.shape_cast %819 : vector<1x32x32xf32> to vector<32x32xf32>
    %c1_370 = arith.constant 1 : index
    %c0_371 = arith.constant 0 : index
    %c0_372 = arith.constant 0 : index
    %821 = vector.load %arg11[%c1_370, %c0_371, %c0_372] : memref<2x1x32xf32, #tpu.memory_space<vmem>>, vector<1x1x32xf32>
    %822 = vector.shape_cast %821 : vector<1x1x32xf32> to vector<1x32xf32>
    %c1_373 = arith.constant 1 : index
    %c0_374 = arith.constant 0 : index
    %c0_375 = arith.constant 0 : index
    %823 = vector.load %arg8[%c1_373, %c0_374, %c0_375] : memref<2x32x64xf32, #tpu.memory_space<vmem>>, vector<1x32x64xf32>
    %824 = vector.shape_cast %823 : vector<1x32x64xf32> to vector<32x64xf32>
    %c1_376 = arith.constant 1 : index
    %c0_377 = arith.constant 0 : index
    %c0_378 = arith.constant 0 : index
    %825 = vector.load %arg7[%c1_376, %c0_377, %c0_378] : memref<2x1x64xf32, #tpu.memory_space<vmem>>, vector<1x1x64xf32>
    %826 = vector.shape_cast %825 : vector<1x1x64xf32> to vector<1x64xf32>
    %c1_379 = arith.constant 1 : index
    %c0_380 = arith.constant 0 : index
    %c0_381 = arith.constant 0 : index
    %827 = vector.load %arg10[%c1_379, %c0_380, %c0_381] : memref<2x32x32xf32, #tpu.memory_space<vmem>>, vector<1x32x32xf32>
    %828 = vector.shape_cast %827 : vector<1x32x32xf32> to vector<32x32xf32>
    %c1_382 = arith.constant 1 : index
    %c0_383 = arith.constant 0 : index
    %c0_384 = arith.constant 0 : index
    %829 = vector.load %arg9[%c1_382, %c0_383, %c0_384] : memref<2x1x32xf32, #tpu.memory_space<vmem>>, vector<1x1x32xf32>
    %830 = vector.shape_cast %829 : vector<1x1x32xf32> to vector<1x32xf32>
    %cst_385 = arith.constant dense<0.000000e+00> : vector<8x32xf32>
    %831 = tpu.matmul %818, %820, %cst_385 {dimension_numbers = #tpu.dot_dimension_numbers<[1], [0], [0], [1], [0, 0, 1, 1], [], []>} : vector<8x32xf32>, vector<32x32xf32>, vector<8x32xf32> -> vector<8x32xf32>
    %832 = vector.broadcast %822 : vector<1x32xf32> to vector<8x32xf32>
    %833 = arith.addf %831, %832 : vector<8x32xf32>
    %cst_386 = arith.constant dense<0.000000e+00> : vector<8x64xf32>
    %834 = tpu.matmul %374, %824, %cst_386 {dimension_numbers = #tpu.dot_dimension_numbers<[1], [0], [0], [1], [0, 0, 1, 1], [], []>} : vector<8x32xf32>, vector<32x64xf32>, vector<8x64xf32> -> vector<8x64xf32>
    %835 = vector.broadcast %826 : vector<1x64xf32> to vector<8x64xf32>
    %836 = arith.addf %834, %835 : vector<8x64xf32>
    %837 = vector.extract_strided_slice %836 {offsets = [0, 0], sizes = [8, 32], strides = [1, 1]} : vector<8x64xf32> to vector<8x32xf32>
    %838 = vector.extract_strided_slice %836 {offsets = [0, 32], sizes = [8, 32], strides = [1, 1]} : vector<8x64xf32> to vector<8x32xf32>
    %839 = vector.extract_strided_slice %833 {offsets = [0, 0], sizes = [8, 8], strides = [1, 1]} : vector<8x32xf32> to vector<8x8xf32>
    %840 = vector.extract_strided_slice %837 {offsets = [0, 0], sizes = [8, 8], strides = [1, 1]} : vector<8x32xf32> to vector<8x8xf32>
    %841 = vector.extract_strided_slice %838 {offsets = [0, 0], sizes = [8, 8], strides = [1, 1]} : vector<8x32xf32> to vector<8x8xf32>
    %cst_387 = arith.constant dense<0.000000e+00> : vector<8x8xf32>
    %842 = tpu.matmul %839, %840, %cst_387 {dimension_numbers = #tpu.dot_dimension_numbers<[1], [1], [0], [0], [0, 0, 1, 0], [], []>} : vector<8x8xf32>, vector<8x8xf32>, vector<8x8xf32> -> vector<8x8xf32>
    %cst_388 = arith.constant 0.353553385 : f32
    %843 = vector.broadcast %cst_388 : f32 to vector<8x8xf32>
    %844 = arith.mulf %842, %843 : vector<8x8xf32>
    %cst_389 = arith.constant -1.000000e+09 : f32
    %845 = vector.shape_cast %3 : vector<1x8xi1> to vector<1x8xi1>
    %846 = vector.broadcast %845 : vector<1x8xi1> to vector<8x8xi1>
    %847 = vector.broadcast %cst_389 : f32 to vector<8x8xf32>
    %848 = arith.select %846, %844, %847 : vector<8x8xi1>, vector<8x8xf32>
    %cst_390 = arith.constant dense<0xFF800000> : vector<8xf32>
    %849 = vector.multi_reduction <maximumf>, %848, %cst_390 [1] : vector<8x8xf32> to vector<8xf32>
    %850 = vector.shape_cast %849 : vector<8xf32> to vector<8x1xf32>
    %851 = vector.broadcast %850 : vector<8x1xf32> to vector<8x8xf32>
    %852 = arith.subf %848, %851 : vector<8x8xf32>
    %853 = math.exp %852 : vector<8x8xf32>
    %cst_391 = arith.constant dense<0.000000e+00> : vector<8xf32>
    %854 = vector.multi_reduction <add>, %853, %cst_391 [1] : vector<8x8xf32> to vector<8xf32>
    %855 = vector.shape_cast %854 : vector<8xf32> to vector<8x1xf32>
    %856 = tpu.reciprocal %855 {approx = true} : vector<8x1xf32> -> vector<8x1xf32>
    %857 = vector.broadcast %856 : vector<8x1xf32> to vector<8x8xf32>
    %858 = arith.mulf %853, %857 : vector<8x8xf32>
    %cst_392 = arith.constant dense<0.000000e+00> : vector<8x8xf32>
    %859 = tpu.matmul %858, %841, %cst_392 {dimension_numbers = #tpu.dot_dimension_numbers<[1], [0], [0], [1], [0, 0, 1, 1], [], []>} : vector<8x8xf32>, vector<8x8xf32>, vector<8x8xf32> -> vector<8x8xf32>
    %860 = vector.extract_strided_slice %833 {offsets = [0, 8], sizes = [8, 8], strides = [1, 1]} : vector<8x32xf32> to vector<8x8xf32>
    %861 = vector.extract_strided_slice %837 {offsets = [0, 8], sizes = [8, 8], strides = [1, 1]} : vector<8x32xf32> to vector<8x8xf32>
    %862 = vector.extract_strided_slice %838 {offsets = [0, 8], sizes = [8, 8], strides = [1, 1]} : vector<8x32xf32> to vector<8x8xf32>
    %cst_393 = arith.constant dense<0.000000e+00> : vector<8x8xf32>
    %863 = tpu.matmul %860, %861, %cst_393 {dimension_numbers = #tpu.dot_dimension_numbers<[1], [1], [0], [0], [0, 0, 1, 0], [], []>} : vector<8x8xf32>, vector<8x8xf32>, vector<8x8xf32> -> vector<8x8xf32>
    %cst_394 = arith.constant 0.353553385 : f32
    %864 = vector.broadcast %cst_394 : f32 to vector<8x8xf32>
    %865 = arith.mulf %863, %864 : vector<8x8xf32>
    %cst_395 = arith.constant -1.000000e+09 : f32
    %866 = vector.shape_cast %3 : vector<1x8xi1> to vector<1x8xi1>
    %867 = vector.broadcast %866 : vector<1x8xi1> to vector<8x8xi1>
    %868 = vector.broadcast %cst_395 : f32 to vector<8x8xf32>
    %869 = arith.select %867, %865, %868 : vector<8x8xi1>, vector<8x8xf32>
    %cst_396 = arith.constant dense<0xFF800000> : vector<8xf32>
    %870 = vector.multi_reduction <maximumf>, %869, %cst_396 [1] : vector<8x8xf32> to vector<8xf32>
    %871 = vector.shape_cast %870 : vector<8xf32> to vector<8x1xf32>
    %872 = vector.broadcast %871 : vector<8x1xf32> to vector<8x8xf32>
    %873 = arith.subf %869, %872 : vector<8x8xf32>
    %874 = math.exp %873 : vector<8x8xf32>
    %cst_397 = arith.constant dense<0.000000e+00> : vector<8xf32>
    %875 = vector.multi_reduction <add>, %874, %cst_397 [1] : vector<8x8xf32> to vector<8xf32>
    %876 = vector.shape_cast %875 : vector<8xf32> to vector<8x1xf32>
    %877 = tpu.reciprocal %876 {approx = true} : vector<8x1xf32> -> vector<8x1xf32>
    %878 = vector.broadcast %877 : vector<8x1xf32> to vector<8x8xf32>
    %879 = arith.mulf %874, %878 : vector<8x8xf32>
    %cst_398 = arith.constant dense<0.000000e+00> : vector<8x8xf32>
    %880 = tpu.matmul %879, %862, %cst_398 {dimension_numbers = #tpu.dot_dimension_numbers<[1], [0], [0], [1], [0, 0, 1, 1], [], []>} : vector<8x8xf32>, vector<8x8xf32>, vector<8x8xf32> -> vector<8x8xf32>
    %881 = vector.extract_strided_slice %833 {offsets = [0, 16], sizes = [8, 8], strides = [1, 1]} : vector<8x32xf32> to vector<8x8xf32>
    %882 = vector.extract_strided_slice %837 {offsets = [0, 16], sizes = [8, 8], strides = [1, 1]} : vector<8x32xf32> to vector<8x8xf32>
    %883 = vector.extract_strided_slice %838 {offsets = [0, 16], sizes = [8, 8], strides = [1, 1]} : vector<8x32xf32> to vector<8x8xf32>
    %cst_399 = arith.constant dense<0.000000e+00> : vector<8x8xf32>
    %884 = tpu.matmul %881, %882, %cst_399 {dimension_numbers = #tpu.dot_dimension_numbers<[1], [1], [0], [0], [0, 0, 1, 0], [], []>} : vector<8x8xf32>, vector<8x8xf32>, vector<8x8xf32> -> vector<8x8xf32>
    %cst_400 = arith.constant 0.353553385 : f32
    %885 = vector.broadcast %cst_400 : f32 to vector<8x8xf32>
    %886 = arith.mulf %884, %885 : vector<8x8xf32>
    %cst_401 = arith.constant -1.000000e+09 : f32
    %887 = vector.shape_cast %3 : vector<1x8xi1> to vector<1x8xi1>
    %888 = vector.broadcast %887 : vector<1x8xi1> to vector<8x8xi1>
    %889 = vector.broadcast %cst_401 : f32 to vector<8x8xf32>
    %890 = arith.select %888, %886, %889 : vector<8x8xi1>, vector<8x8xf32>
    %cst_402 = arith.constant dense<0xFF800000> : vector<8xf32>
    %891 = vector.multi_reduction <maximumf>, %890, %cst_402 [1] : vector<8x8xf32> to vector<8xf32>
    %892 = vector.shape_cast %891 : vector<8xf32> to vector<8x1xf32>
    %893 = vector.broadcast %892 : vector<8x1xf32> to vector<8x8xf32>
    %894 = arith.subf %890, %893 : vector<8x8xf32>
    %895 = math.exp %894 : vector<8x8xf32>
    %cst_403 = arith.constant dense<0.000000e+00> : vector<8xf32>
    %896 = vector.multi_reduction <add>, %895, %cst_403 [1] : vector<8x8xf32> to vector<8xf32>
    %897 = vector.shape_cast %896 : vector<8xf32> to vector<8x1xf32>
    %898 = tpu.reciprocal %897 {approx = true} : vector<8x1xf32> -> vector<8x1xf32>
    %899 = vector.broadcast %898 : vector<8x1xf32> to vector<8x8xf32>
    %900 = arith.mulf %895, %899 : vector<8x8xf32>
    %cst_404 = arith.constant dense<0.000000e+00> : vector<8x8xf32>
    %901 = tpu.matmul %900, %883, %cst_404 {dimension_numbers = #tpu.dot_dimension_numbers<[1], [0], [0], [1], [0, 0, 1, 1], [], []>} : vector<8x8xf32>, vector<8x8xf32>, vector<8x8xf32> -> vector<8x8xf32>
    %902 = vector.extract_strided_slice %833 {offsets = [0, 24], sizes = [8, 8], strides = [1, 1]} : vector<8x32xf32> to vector<8x8xf32>
    %903 = vector.extract_strided_slice %837 {offsets = [0, 24], sizes = [8, 8], strides = [1, 1]} : vector<8x32xf32> to vector<8x8xf32>
    %904 = vector.extract_strided_slice %838 {offsets = [0, 24], sizes = [8, 8], strides = [1, 1]} : vector<8x32xf32> to vector<8x8xf32>
    %cst_405 = arith.constant dense<0.000000e+00> : vector<8x8xf32>
    %905 = tpu.matmul %902, %903, %cst_405 {dimension_numbers = #tpu.dot_dimension_numbers<[1], [1], [0], [0], [0, 0, 1, 0], [], []>} : vector<8x8xf32>, vector<8x8xf32>, vector<8x8xf32> -> vector<8x8xf32>
    %cst_406 = arith.constant 0.353553385 : f32
    %906 = vector.broadcast %cst_406 : f32 to vector<8x8xf32>
    %907 = arith.mulf %905, %906 : vector<8x8xf32>
    %cst_407 = arith.constant -1.000000e+09 : f32
    %908 = vector.shape_cast %3 : vector<1x8xi1> to vector<1x8xi1>
    %909 = vector.broadcast %908 : vector<1x8xi1> to vector<8x8xi1>
    %910 = vector.broadcast %cst_407 : f32 to vector<8x8xf32>
    %911 = arith.select %909, %907, %910 : vector<8x8xi1>, vector<8x8xf32>
    %cst_408 = arith.constant dense<0xFF800000> : vector<8xf32>
    %912 = vector.multi_reduction <maximumf>, %911, %cst_408 [1] : vector<8x8xf32> to vector<8xf32>
    %913 = vector.shape_cast %912 : vector<8xf32> to vector<8x1xf32>
    %914 = vector.broadcast %913 : vector<8x1xf32> to vector<8x8xf32>
    %915 = arith.subf %911, %914 : vector<8x8xf32>
    %916 = math.exp %915 : vector<8x8xf32>
    %cst_409 = arith.constant dense<0.000000e+00> : vector<8xf32>
    %917 = vector.multi_reduction <add>, %916, %cst_409 [1] : vector<8x8xf32> to vector<8xf32>
    %918 = vector.shape_cast %917 : vector<8xf32> to vector<8x1xf32>
    %919 = tpu.reciprocal %918 {approx = true} : vector<8x1xf32> -> vector<8x1xf32>
    %920 = vector.broadcast %919 : vector<8x1xf32> to vector<8x8xf32>
    %921 = arith.mulf %916, %920 : vector<8x8xf32>
    %cst_410 = arith.constant dense<0.000000e+00> : vector<8x8xf32>
    %922 = tpu.matmul %921, %904, %cst_410 {dimension_numbers = #tpu.dot_dimension_numbers<[1], [0], [0], [1], [0, 0, 1, 1], [], []>} : vector<8x8xf32>, vector<8x8xf32>, vector<8x8xf32> -> vector<8x8xf32>
    %923 = tpu.concatenate %859, %880, %901, %922 in 1 : vector<8x8xf32>, vector<8x8xf32>, vector<8x8xf32>, vector<8x8xf32> -> vector<8x32xf32>
    %cst_411 = arith.constant dense<0.000000e+00> : vector<8x32xf32>
    %924 = tpu.matmul %923, %828, %cst_411 {dimension_numbers = #tpu.dot_dimension_numbers<[1], [0], [0], [1], [0, 0, 1, 1], [], []>} : vector<8x32xf32>, vector<32x32xf32>, vector<8x32xf32> -> vector<8x32xf32>
    %925 = vector.broadcast %830 : vector<1x32xf32> to vector<8x32xf32>
    %926 = arith.addf %924, %925 : vector<8x32xf32>
    %927 = arith.addf %794, %926 : vector<8x32xf32>
    %c1_412 = arith.constant 1 : index
    %c0_413 = arith.constant 0 : index
    %c0_414 = arith.constant 0 : index
    %928 = vector.load %arg22[%c1_412, %c0_413, %c0_414] : memref<2x1x32xf32, #tpu.memory_space<vmem>>, vector<1x1x32xf32>
    %929 = vector.shape_cast %928 : vector<1x1x32xf32> to vector<1x32xf32>
    %c1_415 = arith.constant 1 : index
    %c0_416 = arith.constant 0 : index
    %c0_417 = arith.constant 0 : index
    %930 = vector.load %arg21[%c1_415, %c0_416, %c0_417] : memref<2x1x32xf32, #tpu.memory_space<vmem>>, vector<1x1x32xf32>
    %931 = vector.shape_cast %930 : vector<1x1x32xf32> to vector<1x32xf32>
    %cst_418 = arith.constant dense<0.000000e+00> : vector<8xf32>
    %932 = vector.multi_reduction <add>, %927, %cst_418 [1] : vector<8x32xf32> to vector<8xf32>
    %933 = vector.shape_cast %932 : vector<8xf32> to vector<8x1xf32>
    %cst_419 = arith.constant 3.200000e+01 : f32
    %934 = vector.broadcast %cst_419 : f32 to vector<8x1xf32>
    %935 = arith.divf %933, %934 : vector<8x1xf32>
    %936 = vector.broadcast %935 : vector<8x1xf32> to vector<8x32xf32>
    %937 = arith.subf %927, %936 : vector<8x32xf32>
    %938 = arith.mulf %937, %937 : vector<8x32xf32>
    %cst_420 = arith.constant dense<0.000000e+00> : vector<8xf32>
    %939 = vector.multi_reduction <add>, %938, %cst_420 [1] : vector<8x32xf32> to vector<8xf32>
    %940 = vector.shape_cast %939 : vector<8xf32> to vector<8x1xf32>
    %cst_421 = arith.constant 3.100000e+01 : f32
    %941 = vector.broadcast %cst_421 : f32 to vector<8x1xf32>
    %942 = arith.divf %940, %941 : vector<8x1xf32>
    %943 = vector.broadcast %929 : vector<1x32xf32> to vector<8x32xf32>
    %944 = arith.mulf %943, %937 : vector<8x32xf32>
    %945 = math.sqrt %942 : vector<8x1xf32>
    %cst_422 = arith.constant 9.99999997E-7 : f32
    %946 = vector.broadcast %cst_422 : f32 to vector<8x1xf32>
    %947 = arith.addf %945, %946 : vector<8x1xf32>
    %948 = vector.broadcast %947 : vector<8x1xf32> to vector<8x32xf32>
    %949 = arith.divf %944, %948 : vector<8x32xf32>
    %950 = vector.broadcast %931 : vector<1x32xf32> to vector<8x32xf32>
    %951 = arith.addf %949, %950 : vector<8x32xf32>
    %c1_423 = arith.constant 1 : index
    %c0_424 = arith.constant 0 : index
    %c0_425 = arith.constant 0 : index
    %952 = vector.load %arg15[%c1_423, %c0_424, %c0_425] : memref<2x32x64xf32, #tpu.memory_space<vmem>>, vector<1x32x64xf32>
    %953 = vector.shape_cast %952 : vector<1x32x64xf32> to vector<32x64xf32>
    %c1_426 = arith.constant 1 : index
    %c0_427 = arith.constant 0 : index
    %c0_428 = arith.constant 0 : index
    %954 = vector.load %arg13[%c1_426, %c0_427, %c0_428] : memref<2x1x64xf32, #tpu.memory_space<vmem>>, vector<1x1x64xf32>
    %955 = vector.shape_cast %954 : vector<1x1x64xf32> to vector<1x64xf32>
    %c1_429 = arith.constant 1 : index
    %c0_430 = arith.constant 0 : index
    %c0_431 = arith.constant 0 : index
    %956 = vector.load %arg16[%c1_429, %c0_430, %c0_431] : memref<2x64x32xf32, #tpu.memory_space<vmem>>, vector<1x64x32xf32>
    %957 = vector.shape_cast %956 : vector<1x64x32xf32> to vector<64x32xf32>
    %c1_432 = arith.constant 1 : index
    %c0_433 = arith.constant 0 : index
    %c0_434 = arith.constant 0 : index
    %958 = vector.load %arg14[%c1_432, %c0_433, %c0_434] : memref<2x1x32xf32, #tpu.memory_space<vmem>>, vector<1x1x32xf32>
    %959 = vector.shape_cast %958 : vector<1x1x32xf32> to vector<1x32xf32>
    %cst_435 = arith.constant dense<0.000000e+00> : vector<8x64xf32>
    %960 = tpu.matmul %951, %953, %cst_435 {dimension_numbers = #tpu.dot_dimension_numbers<[1], [0], [0], [1], [0, 0, 1, 1], [], []>} : vector<8x32xf32>, vector<32x64xf32>, vector<8x64xf32> -> vector<8x64xf32>
    %961 = vector.broadcast %955 : vector<1x64xf32> to vector<8x64xf32>
    %962 = arith.addf %960, %961 : vector<8x64xf32>
    %cst_436 = arith.constant 0.000000e+00 : f32
    %963 = vector.broadcast %cst_436 : f32 to vector<8x64xf32>
    %964 = arith.maximumf %962, %963 : vector<8x64xf32>
    %cst_437 = arith.constant dense<0.000000e+00> : vector<8x32xf32>
    %965 = tpu.matmul %964, %957, %cst_437 {dimension_numbers = #tpu.dot_dimension_numbers<[1], [0], [0], [1], [0, 0, 1, 1], [], []>} : vector<8x64xf32>, vector<64x32xf32>, vector<8x32xf32> -> vector<8x32xf32>
    %966 = vector.broadcast %959 : vector<1x32xf32> to vector<8x32xf32>
    %967 = arith.addf %965, %966 : vector<8x32xf32>
    %968 = arith.addf %927, %967 : vector<8x32xf32>
    %c0_438 = arith.constant 0 : index
    %c0_439 = arith.constant 0 : index
    %969 = vector.load %arg24[%c0_438, %c0_439] : memref<1x32xf32, #tpu.memory_space<vmem>>, vector<1x32xf32>
    %c0_440 = arith.constant 0 : index
    %c0_441 = arith.constant 0 : index
    %970 = vector.load %arg23[%c0_440, %c0_441] : memref<1x32xf32, #tpu.memory_space<vmem>>, vector<1x32xf32>
    %cst_442 = arith.constant dense<0.000000e+00> : vector<8xf32>
    %971 = vector.multi_reduction <add>, %968, %cst_442 [1] : vector<8x32xf32> to vector<8xf32>
    %972 = vector.shape_cast %971 : vector<8xf32> to vector<8x1xf32>
    %cst_443 = arith.constant 3.200000e+01 : f32
    %973 = vector.broadcast %cst_443 : f32 to vector<8x1xf32>
    %974 = arith.divf %972, %973 : vector<8x1xf32>
    %975 = vector.broadcast %974 : vector<8x1xf32> to vector<8x32xf32>
    %976 = arith.subf %968, %975 : vector<8x32xf32>
    %977 = arith.mulf %976, %976 : vector<8x32xf32>
    %cst_444 = arith.constant dense<0.000000e+00> : vector<8xf32>
    %978 = vector.multi_reduction <add>, %977, %cst_444 [1] : vector<8x32xf32> to vector<8xf32>
    %979 = vector.shape_cast %978 : vector<8xf32> to vector<8x1xf32>
    %cst_445 = arith.constant 3.100000e+01 : f32
    %980 = vector.broadcast %cst_445 : f32 to vector<8x1xf32>
    %981 = arith.divf %979, %980 : vector<8x1xf32>
    %982 = vector.broadcast %969 : vector<1x32xf32> to vector<8x32xf32>
    %983 = arith.mulf %982, %976 : vector<8x32xf32>
    %984 = math.sqrt %981 : vector<8x1xf32>
    %cst_446 = arith.constant 9.99999997E-7 : f32
    %985 = vector.broadcast %cst_446 : f32 to vector<8x1xf32>
    %986 = arith.addf %984, %985 : vector<8x1xf32>
    %987 = vector.broadcast %986 : vector<8x1xf32> to vector<8x32xf32>
    %988 = arith.divf %983, %987 : vector<8x32xf32>
    %989 = vector.broadcast %970 : vector<1x32xf32> to vector<8x32xf32>
    %990 = arith.addf %988, %989 : vector<8x32xf32>
    %c0_447 = arith.constant 0 : index
    %c0_448 = arith.constant 0 : index
    %c0_449 = arith.constant 0 : index
    %991 = vector.load %arg43[%c0_447, %c0_448, %c0_449] : memref<1x8x32xf32, #tpu.memory_space<vmem>>, vector<1x8x32xf32>
    %992 = vector.shape_cast %991 : vector<1x8x32xf32> to vector<8x32xf32>
    %993 = vector.shape_cast %990 : vector<8x32xf32> to vector<1x8x32xf32>
    tpu.vector_store %arg43[%c0_447, %c0_448, %c0_449], %993 {strides = array<i32>} : memref<1x8x32xf32, #tpu.memory_space<vmem>>, vector<1x8x32xf32>,
    return
  }
  func.func @transform_0(%arg0: i32) -> (i32, i32, i32) {
    %c0_i32 = arith.constant 0 : i32
    %c0_i32_0 = arith.constant 0 : i32
    %c0_i32_1 = arith.constant 0 : i32
    return %arg0, %c0_i32, %c0_i32_0 : i32, i32, i32
  }
  func.func @transform_1(%arg0: i32) -> (i32, i32, i32) {
    %c0_i32 = arith.constant 0 : i32
    %c0_i32_0 = arith.constant 0 : i32
    %c0_i32_1 = arith.constant 0 : i32
    return %arg0, %c0_i32, %c0_i32_0 : i32, i32, i32
  }
  func.func @transform_2(%arg0: i32) -> (i32, i32) {
    %c0_i32 = arith.constant 0 : i32
    %c0_i32_0 = arith.constant 0 : i32
    %c0_i32_1 = arith.constant 0 : i32
    return %c0_i32, %c0_i32_0 : i32, i32
  }
  func.func @transform_3(%arg0: i32) -> (i32, i32) {
    %c0_i32 = arith.constant 0 : i32
    %c0_i32_0 = arith.constant 0 : i32
    %c0_i32_1 = arith.constant 0 : i32
    return %c0_i32, %c0_i32_0 : i32, i32
  }
  func.func @transform_4(%arg0: i32) -> (i32, i32, i32) {
    %c0_i32 = arith.constant 0 : i32
    %c0_i32_0 = arith.constant 0 : i32
    %c0_i32_1 = arith.constant 0 : i32
    return %arg0, %c0_i32, %c0_i32_0 : i32, i32, i32
  }
  func.func @transform_5(%arg0: i32) -> (i32, i32, i32) {
    %c0_i32 = arith.constant 0 : i32
    %c0_i32_0 = arith.constant 0 : i32
    %c0_i32_1 = arith.constant 0 : i32
    return %arg0, %c0_i32, %c0_i32_0 : i32, i32, i32
  }
  func.func @transform_6(%arg0: i32) -> (i32, i32, i32) {
    %c0_i32 = arith.constant 0 : i32
    %c0_i32_0 = arith.constant 0 : i32
    %c0_i32_1 = arith.constant 0 : i32
    %c0_i32_2 = arith.constant 0 : i32
    return %c0_i32, %c0_i32_0, %c0_i32_1 : i32, i32, i32
  }
  func.func @transform_7(%arg0: i32) -> (i32, i32, i32) {
    %c0_i32 = arith.constant 0 : i32
    %c0_i32_0 = arith.constant 0 : i32
    %c0_i32_1 = arith.constant 0 : i32
    %c0_i32_2 = arith.constant 0 : i32
    return %c0_i32, %c0_i32_0, %c0_i32_1 : i32, i32, i32
  }
  func.func @transform_8(%arg0: i32) -> (i32, i32, i32) {
    %c0_i32 = arith.constant 0 : i32
    %c0_i32_0 = arith.constant 0 : i32
    %c0_i32_1 = arith.constant 0 : i32
    %c0_i32_2 = arith.constant 0 : i32
    return %c0_i32, %c0_i32_0, %c0_i32_1 : i32, i32, i32
  }
  func.func @transform_9(%arg0: i32) -> (i32, i32, i32) {
    %c0_i32 = arith.constant 0 : i32
    %c0_i32_0 = arith.constant 0 : i32
    %c0_i32_1 = arith.constant 0 : i32
    %c0_i32_2 = arith.constant 0 : i32
    return %c0_i32, %c0_i32_0, %c0_i32_1 : i32, i32, i32
  }
  func.func @transform_10(%arg0: i32) -> (i32, i32, i32) {
    %c0_i32 = arith.constant 0 : i32
    %c0_i32_0 = arith.constant 0 : i32
    %c0_i32_1 = arith.constant 0 : i32
    %c0_i32_2 = arith.constant 0 : i32
    return %c0_i32, %c0_i32_0, %c0_i32_1 : i32, i32, i32
  }
  func.func @transform_11(%arg0: i32) -> (i32, i32, i32) {
    %c0_i32 = arith.constant 0 : i32
    %c0_i32_0 = arith.constant 0 : i32
    %c0_i32_1 = arith.constant 0 : i32
    %c0_i32_2 = arith.constant 0 : i32
    return %c0_i32, %c0_i32_0, %c0_i32_1 : i32, i32, i32
  }
  func.func @transform_12(%arg0: i32) -> (i32, i32, i32) {
    %c0_i32 = arith.constant 0 : i32
    %c0_i32_0 = arith.constant 0 : i32
    %c0_i32_1 = arith.constant 0 : i32
    %c0_i32_2 = arith.constant 0 : i32
    return %c0_i32, %c0_i32_0, %c0_i32_1 : i32, i32, i32
  }
  func.func @transform_13(%arg0: i32) -> (i32, i32, i32) {
    %c0_i32 = arith.constant 0 : i32
    %c0_i32_0 = arith.constant 0 : i32
    %c0_i32_1 = arith.constant 0 : i32
    %c0_i32_2 = arith.constant 0 : i32
    return %c0_i32, %c0_i32_0, %c0_i32_1 : i32, i32, i32
  }
  func.func @transform_14(%arg0: i32) -> (i32, i32, i32) {
    %c0_i32 = arith.constant 0 : i32
    %c0_i32_0 = arith.constant 0 : i32
    %c0_i32_1 = arith.constant 0 : i32
    %c0_i32_2 = arith.constant 0 : i32
    return %c0_i32, %c0_i32_0, %c0_i32_1 : i32, i32, i32
  }
  func.func @transform_15(%arg0: i32) -> (i32, i32, i32) {
    %c0_i32 = arith.constant 0 : i32
    %c0_i32_0 = arith.constant 0 : i32
    %c0_i32_1 = arith.constant 0 : i32
    %c0_i32_2 = arith.constant 0 : i32
    return %c0_i32, %c0_i32_0, %c0_i32_1 : i32, i32, i32
  }
  func.func @transform_16(%arg0: i32) -> (i32, i32, i32) {
    %c0_i32 = arith.constant 0 : i32
    %c0_i32_0 = arith.constant 0 : i32
    %c0_i32_1 = arith.constant 0 : i32
    %c0_i32_2 = arith.constant 0 : i32
    return %c0_i32, %c0_i32_0, %c0_i32_1 : i32, i32, i32
  }
  func.func @transform_17(%arg0: i32) -> (i32, i32, i32) {
    %c0_i32 = arith.constant 0 : i32
    %c0_i32_0 = arith.constant 0 : i32
    %c0_i32_1 = arith.constant 0 : i32
    %c0_i32_2 = arith.constant 0 : i32
    return %c0_i32, %c0_i32_0, %c0_i32_1 : i32, i32, i32
  }
  func.func @transform_18(%arg0: i32) -> (i32, i32, i32) {
    %c0_i32 = arith.constant 0 : i32
    %c0_i32_0 = arith.constant 0 : i32
    %c0_i32_1 = arith.constant 0 : i32
    %c0_i32_2 = arith.constant 0 : i32
    return %c0_i32, %c0_i32_0, %c0_i32_1 : i32, i32, i32
  }
  func.func @transform_19(%arg0: i32) -> (i32, i32, i32) {
    %c0_i32 = arith.constant 0 : i32
    %c0_i32_0 = arith.constant 0 : i32
    %c0_i32_1 = arith.constant 0 : i32
    %c0_i32_2 = arith.constant 0 : i32
    return %c0_i32, %c0_i32_0, %c0_i32_1 : i32, i32, i32
  }
  func.func @transform_20(%arg0: i32) -> (i32, i32, i32) {
    %c0_i32 = arith.constant 0 : i32
    %c0_i32_0 = arith.constant 0 : i32
    %c0_i32_1 = arith.constant 0 : i32
    %c0_i32_2 = arith.constant 0 : i32
    return %c0_i32, %c0_i32_0, %c0_i32_1 : i32, i32, i32
  }
  func.func @transform_21(%arg0: i32) -> (i32, i32, i32) {
    %c0_i32 = arith.constant 0 : i32
    %c0_i32_0 = arith.constant 0 : i32
    %c0_i32_1 = arith.constant 0 : i32
    %c0_i32_2 = arith.constant 0 : i32
    return %c0_i32, %c0_i32_0, %c0_i32_1 : i32, i32, i32
  }
  func.func @transform_22(%arg0: i32) -> (i32, i32) {
    %c0_i32 = arith.constant 0 : i32
    %c0_i32_0 = arith.constant 0 : i32
    %c0_i32_1 = arith.constant 0 : i32
    return %c0_i32, %c0_i32_0 : i32, i32
  }
  func.func @transform_23(%arg0: i32) -> (i32, i32) {
    %c0_i32 = arith.constant 0 : i32
    %c0_i32_0 = arith.constant 0 : i32
    %c0_i32_1 = arith.constant 0 : i32
    return %c0_i32, %c0_i32_0 : i32, i32
  }
  func.func @transform_24(%arg0: i32) -> (i32, i32, i32) {
    %c0_i32 = arith.constant 0 : i32
    %c0_i32_0 = arith.constant 0 : i32
    %c0_i32_1 = arith.constant 0 : i32
    %c0_i32_2 = arith.constant 0 : i32
    return %c0_i32, %c0_i32_0, %c0_i32_1 : i32, i32, i32
  }
  func.func @transform_25(%arg0: i32) -> (i32, i32, i32) {
    %c0_i32 = arith.constant 0 : i32
    %c0_i32_0 = arith.constant 0 : i32
    %c0_i32_1 = arith.constant 0 : i32
    %c0_i32_2 = arith.constant 0 : i32
    return %c0_i32, %c0_i32_0, %c0_i32_1 : i32, i32, i32
  }
  func.func @transform_26(%arg0: i32) -> (i32, i32, i32) {
    %c0_i32 = arith.constant 0 : i32
    %c0_i32_0 = arith.constant 0 : i32
    %c0_i32_1 = arith.constant 0 : i32
    %c0_i32_2 = arith.constant 0 : i32
    return %c0_i32, %c0_i32_0, %c0_i32_1 : i32, i32, i32
  }
  func.func @transform_27(%arg0: i32) -> (i32, i32, i32) {
    %c0_i32 = arith.constant 0 : i32
    %c0_i32_0 = arith.constant 0 : i32
    %c0_i32_1 = arith.constant 0 : i32
    %c0_i32_2 = arith.constant 0 : i32
    return %c0_i32, %c0_i32_0, %c0_i32_1 : i32, i32, i32
  }
  func.func @transform_28(%arg0: i32) -> (i32, i32, i32) {
    %c0_i32 = arith.constant 0 : i32
    %c0_i32_0 = arith.constant 0 : i32
    %c0_i32_1 = arith.constant 0 : i32
    %c0_i32_2 = arith.constant 0 : i32
    return %c0_i32, %c0_i32_0, %c0_i32_1 : i32, i32, i32
  }
  func.func @transform_29(%arg0: i32) -> (i32, i32, i32) {
    %c0_i32 = arith.constant 0 : i32
    %c0_i32_0 = arith.constant 0 : i32
    %c0_i32_1 = arith.constant 0 : i32
    %c0_i32_2 = arith.constant 0 : i32
    return %c0_i32, %c0_i32_0, %c0_i32_1 : i32, i32, i32
  }
  func.func @transform_30(%arg0: i32) -> (i32, i32, i32) {
    %c0_i32 = arith.constant 0 : i32
    %c0_i32_0 = arith.constant 0 : i32
    %c0_i32_1 = arith.constant 0 : i32
    %c0_i32_2 = arith.constant 0 : i32
    return %c0_i32, %c0_i32_0, %c0_i32_1 : i32, i32, i32
  }
  func.func @transform_31(%arg0: i32) -> (i32, i32, i32) {
    %c0_i32 = arith.constant 0 : i32
    %c0_i32_0 = arith.constant 0 : i32
    %c0_i32_1 = arith.constant 0 : i32
    %c0_i32_2 = arith.constant 0 : i32
    return %c0_i32, %c0_i32_0, %c0_i32_1 : i32, i32, i32
  }
  func.func @transform_32(%arg0: i32) -> (i32, i32, i32) {
    %c0_i32 = arith.constant 0 : i32
    %c0_i32_0 = arith.constant 0 : i32
    %c0_i32_1 = arith.constant 0 : i32
    %c0_i32_2 = arith.constant 0 : i32
    return %c0_i32, %c0_i32_0, %c0_i32_1 : i32, i32, i32
  }
  func.func @transform_33(%arg0: i32) -> (i32, i32, i32) {
    %c0_i32 = arith.constant 0 : i32
    %c0_i32_0 = arith.constant 0 : i32
    %c0_i32_1 = arith.constant 0 : i32
    %c0_i32_2 = arith.constant 0 : i32
    return %c0_i32, %c0_i32_0, %c0_i32_1 : i32, i32, i32
  }
  func.func @transform_34(%arg0: i32) -> (i32, i32, i32) {
    %c0_i32 = arith.constant 0 : i32
    %c0_i32_0 = arith.constant 0 : i32
    %c0_i32_1 = arith.constant 0 : i32
    %c0_i32_2 = arith.constant 0 : i32
    return %c0_i32, %c0_i32_0, %c0_i32_1 : i32, i32, i32
  }
  func.func @transform_35(%arg0: i32) -> (i32, i32, i32) {
    %c0_i32 = arith.constant 0 : i32
    %c0_i32_0 = arith.constant 0 : i32
    %c0_i32_1 = arith.constant 0 : i32
    %c0_i32_2 = arith.constant 0 : i32
    return %c0_i32, %c0_i32_0, %c0_i32_1 : i32, i32, i32
  }
  func.func @transform_36(%arg0: i32) -> (i32, i32) {
    %c0_i32 = arith.constant 0 : i32
    %c0_i32_0 = arith.constant 0 : i32
    %c0_i32_1 = arith.constant 0 : i32
    return %c0_i32, %c0_i32_0 : i32, i32
  }
  func.func @transform_37(%arg0: i32) -> (i32, i32) {
    %c0_i32 = arith.constant 0 : i32
    %c0_i32_0 = arith.constant 0 : i32
    %c0_i32_1 = arith.constant 0 : i32
    return %c0_i32, %c0_i32_0 : i32, i32
  }
  func.func @transform_38(%arg0: i32) -> (i32, i32, i32) {
    %c0_i32 = arith.constant 0 : i32
    %c0_i32_0 = arith.constant 0 : i32
    %c0_i32_1 = arith.constant 0 : i32
    %c0_i32_2 = arith.constant 0 : i32
    return %c0_i32, %c0_i32_0, %c0_i32_1 : i32, i32, i32
  }
  func.func @transform_39(%arg0: i32) -> (i32, i32, i32) {
    %c0_i32 = arith.constant 0 : i32
    %c0_i32_0 = arith.constant 0 : i32
    %c0_i32_1 = arith.constant 0 : i32
    %c0_i32_2 = arith.constant 0 : i32
    return %c0_i32, %c0_i32_0, %c0_i32_1 : i32, i32, i32
  }
  func.func @transform_40(%arg0: i32) -> (i32, i32, i32) {
    %c0_i32 = arith.constant 0 : i32
    %c0_i32_0 = arith.constant 0 : i32
    %c0_i32_1 = arith.constant 0 : i32
    %c0_i32_2 = arith.constant 0 : i32
    return %c0_i32, %c0_i32_0, %c0_i32_1 : i32, i32, i32
  }
  func.func @transform_41(%arg0: i32) -> (i32, i32, i32) {
    %c0_i32 = arith.constant 0 : i32
    %c0_i32_0 = arith.constant 0 : i32
    %c0_i32_1 = arith.constant 0 : i32
    %c0_i32_2 = arith.constant 0 : i32
    return %c0_i32, %c0_i32_0, %c0_i32_1 : i32, i32, i32
  }
  func.func @transform_42(%arg0: i32) -> (i32, i32, i32) {
    %c0_i32 = arith.constant 0 : i32
    %c0_i32_0 = arith.constant 0 : i32
    %c0_i32_1 = arith.constant 0 : i32
    return %arg0, %c0_i32, %c0_i32_0 : i32, i32, i32
  }
}

</mosaic_0001>

<llo_original>
// kernel: encoder_decoder_pallas.1
$region0: #{encoder_decoder_pallas.1}
  #allocation0 [shape = 'u32[]', space=smem, size = 0x4, offset = 0x4, fixed_abs, tag = 'smem constant byte address 0x4 - core index']
  #allocation1 [shape = 'u32[144,128]{1,0:T(1,128)}', space=vmem, size = 0x12000, scoped, tag = 'internal scratch']
  %s0 = inlined_call_operand.smem [shape: u32[43], index: -1, kind: input, shape index: {}]
  %s1 = sld [smem:[%s0]]
  %s2 = scalar_lea.smem %s0, 1
  %s3 = sld [smem:[%s2]]
  %s4 = scalar_lea.smem %s0, 2
  %s5 = sld [smem:[%s4]]
  %s6 = scalar_lea.smem %s0, 3
  %s7 = sld [smem:[%s6]]
  %s8 = scalar_lea.smem %s0, 4
  %s9 = sld [smem:[%s8]]
  %s10 = scalar_lea.smem %s0, 5
  %s11 = sld [smem:[%s10]]
  %s12 = scalar_lea.smem %s0, 6
  %s13 = sld [smem:[%s12]]
  %s14 = scalar_lea.smem %s0, 7
  %s15 = sld [smem:[%s14]]
  %s16 = scalar_lea.smem %s0, 8
  %s17 = sld [smem:[%s16]]
  %s18 = scalar_lea.smem %s0, 9
  %s19 = sld [smem:[%s18]]
  %s20 = scalar_lea.smem %s0, 10
  %s21 = sld [smem:[%s20]]
  %s22 = scalar_lea.smem %s0, 11
  %s23 = sld [smem:[%s22]]
  %s24 = scalar_lea.smem %s0, 12
  %s25 = sld [smem:[%s24]]
  %s26 = scalar_lea.smem %s0, 13
  %s27 = sld [smem:[%s26]]
  %s28 = scalar_lea.smem %s0, 14
  %s29 = sld [smem:[%s28]]
  %s30 = scalar_lea.smem %s0, 15
  %s31 = sld [smem:[%s30]]
  %s32 = scalar_lea.smem %s0, 16
  %s33 = sld [smem:[%s32]]
  %s34 = scalar_lea.smem %s0, 17
  %s35 = sld [smem:[%s34]]
  %s36 = scalar_lea.smem %s0, 18
  %s37 = sld [smem:[%s36]]
  %s38 = scalar_lea.smem %s0, 19
  %s39 = sld [smem:[%s38]]
  %s40 = scalar_lea.smem %s0, 20
  %s41 = sld [smem:[%s40]]
  %s42 = scalar_lea.smem %s0, 21
  %s43 = sld [smem:[%s42]]
  %s44 = scalar_lea.smem %s0, 22
  %s45 = sld [smem:[%s44]]
  %s46 = scalar_lea.smem %s0, 23
  %s47 = sld [smem:[%s46]]
  %s48 = scalar_lea.smem %s0, 24
  %s49 = sld [smem:[%s48]]
  %s50 = scalar_lea.smem %s0, 25
  %s51 = sld [smem:[%s50]]
  %s52 = scalar_lea.smem %s0, 26
  %s53 = sld [smem:[%s52]]
  %s54 = scalar_lea.smem %s0, 27
  %s55 = sld [smem:[%s54]]
  %s56 = scalar_lea.smem %s0, 28
  %s57 = sld [smem:[%s56]]
  %s58 = scalar_lea.smem %s0, 29
  %s59 = sld [smem:[%s58]]
  %s60 = scalar_lea.smem %s0, 30
  %s61 = sld [smem:[%s60]]
  %s62 = scalar_lea.smem %s0, 31
  %s63 = sld [smem:[%s62]]
  %s64 = scalar_lea.smem %s0, 32
  %s65 = sld [smem:[%s64]]
  %s66 = scalar_lea.smem %s0, 33
  %s67 = sld [smem:[%s66]]
  %s68 = scalar_lea.smem %s0, 34
  %s69 = sld [smem:[%s68]]
  %s70 = scalar_lea.smem %s0, 35
  %s71 = sld [smem:[%s70]]
  %s72 = scalar_lea.smem %s0, 36
  %s73 = sld [smem:[%s72]]
  %s74 = scalar_lea.smem %s0, 37
  %s75 = sld [smem:[%s74]]
  %s76 = scalar_lea.smem %s0, 38
  %s77 = sld [smem:[%s76]]
  %s78 = scalar_lea.smem %s0, 39
  %s79 = sld [smem:[%s78]]
  %s80 = scalar_lea.smem %s0, 40
  %s81 = sld [smem:[%s80]]
  %s82 = scalar_lea.smem %s0, 41
  %s83 = sld [smem:[%s82]]
  %s84 = scalar_lea.smem %s0, 42
  %s85 = sld [smem:[%s84]]
  %s86 = sld [smem:[#allocation0]]
  $region201: #{encoder_decoder_pallas.1} parent=0
    _
  %s88 = ssub.s32 1, %s86
  %s89 = scalar_select 0, %s88, %s86
  $region1: #{encoder_decoder_pallas.1} parent=0
    #allocation2 [shape = 'u8[8192]{0}', space=vmem, size = 0x2000, scoped, tag = 'output window, operand 0']
    #allocation3 [shape = 's32[2]{0}', space=sflag, size = 0x8, scoped, tag = 'scoped memory for encoder_decoder_pallas.1']
    %90 = vsyncpa [#allocation3], 0
    %s91 = scalar_lea.sflag [#allocation3], 1
    %92 = vsyncpa %s91, 0
    loop: start=0, step=1, limit=4
    $region2: #{encoder_decoder_pallas.1} parent=1 // loop_pre_header
      _
    $region3: #{encoder_decoder_pallas.1} parent=1 // loop_header
      %s94 = sphi 0, %s98
      %p95 = scmp.ge.s32.totalorder %s94, 4
      %s104 = sphi 0, %s106
      %s107 = sphi 0, %s104
      %s108 = sphi 0, %s107
      %s124 = sphi 0, %s108
      %s130 = sphi 0, %s132
      %s133 = sphi 0, %s130
      %s134 = sphi 0, %s133
      %s150 = sphi 0, %s134
      %s154 = sphi 0, %s154
      %s156 = sphi 0, %s154
      %s157 = sphi 0, %s156
      %s171 = sphi 0, %s157
      %s175 = sphi 0, %s175
      %s177 = sphi 0, %s175
      %s178 = sphi 0, %s177
      %s192 = sphi 0, %s178
      %s198 = sphi 0, %s200
      %s201 = sphi 0, %s198
      %s202 = sphi 0, %s201
      %s218 = sphi 0, %s202
      %s224 = sphi 0, %s226
      %s227 = sphi 0, %s224
      %s228 = sphi 0, %s227
      %s244 = sphi 0, %s228
      %s248 = sphi 0, %s248
      %s250 = sphi 0, %s248
      %s251 = sphi 0, %s250
      %s265 = sphi 0, %s251
      %s269 = sphi 0, %s269
      %s271 = sphi 0, %s269
      %s272 = sphi 0, %s271
      %s286 = sphi 0, %s272
      %s290 = sphi 0, %s290
      %s292 = sphi 0, %s290
      %s293 = sphi 0, %s292
      %s307 = sphi 0, %s293
      %s311 = sphi 0, %s311
      %s313 = sphi 0, %s311
      %s314 = sphi 0, %s313
      %s328 = sphi 0, %s314
      %s332 = sphi 0, %s332
      %s334 = sphi 0, %s332
      %s335 = sphi 0, %s334
      %s349 = sphi 0, %s335
      %s353 = sphi 0, %s353
      %s355 = sphi 0, %s353
      %s356 = sphi 0, %s355
      %s370 = sphi 0, %s356
      %s374 = sphi 0, %s374
      %s376 = sphi 0, %s374
      %s377 = sphi 0, %s376
      %s391 = sphi 0, %s377
      %s395 = sphi 0, %s395
      %s397 = sphi 0, %s395
      %s398 = sphi 0, %s397
      %s412 = sphi 0, %s398
      %s416 = sphi 0, %s416
      %s418 = sphi 0, %s416
      %s419 = sphi 0, %s418
      %s433 = sphi 0, %s419
      %s437 = sphi 0, %s437
      %s439 = sphi 0, %s437
      %s440 = sphi 0, %s439
      %s454 = sphi 0, %s440
      %s458 = sphi 0, %s458
      %s460 = sphi 0, %s458
      %s461 = sphi 0, %s460
      %s475 = sphi 0, %s461
      %s479 = sphi 0, %s479
      %s481 = sphi 0, %s479
      %s482 = sphi 0, %s481
      %s496 = sphi 0, %s482
      %s500 = sphi 0, %s500
      %s502 = sphi 0, %s500
      %s503 = sphi 0, %s502
      %s517 = sphi 0, %s503
      %s521 = sphi 0, %s521
      %s523 = sphi 0, %s521
      %s524 = sphi 0, %s523
      %s538 = sphi 0, %s524
      %s542 = sphi 0, %s542
      %s544 = sphi 0, %s542
      %s545 = sphi 0, %s544
      %s559 = sphi 0, %s545
      %s563 = sphi 0, %s563
      %s565 = sphi 0, %s563
      %s566 = sphi 0, %s565
      %s580 = sphi 0, %s566
      %s584 = sphi 0, %s584
      %s586 = sphi 0, %s584
      %s587 = sphi 0, %s586
      %s601 = sphi 0, %s587
      %s605 = sphi 0, %s605
      %s607 = sphi 0, %s605
      %s608 = sphi 0, %s607
      %s622 = sphi 0, %s608
      %s626 = sphi 0, %s626
      %s628 = sphi 0, %s626
      %s629 = sphi 0, %s628
      %s643 = sphi 0, %s629
      %s647 = sphi 0, %s647
      %s649 = sphi 0, %s647
      %s650 = sphi 0, %s649
      %s664 = sphi 0, %s650
      %s668 = sphi 0, %s668
      %s670 = sphi 0, %s668
      %s671 = sphi 0, %s670
      %s685 = sphi 0, %s671
      %s689 = sphi 0, %s689
      %s691 = sphi 0, %s689
      %s692 = sphi 0, %s691
      %s706 = sphi 0, %s692
      %s710 = sphi 0, %s710
      %s712 = sphi 0, %s710
      %s713 = sphi 0, %s712
      %s727 = sphi 0, %s713
      %s731 = sphi 0, %s731
      %s733 = sphi 0, %s731
      %s734 = sphi 0, %s733
      %s748 = sphi 0, %s734
      %s752 = sphi 0, %s752
      %s754 = sphi 0, %s752
      %s755 = sphi 0, %s754
      %s769 = sphi 0, %s755
      %s773 = sphi 0, %s773
      %s775 = sphi 0, %s773
      %s776 = sphi 0, %s775
      %s790 = sphi 0, %s776
      %s794 = sphi 0, %s794
      %s796 = sphi 0, %s794
      %s797 = sphi 0, %s796
      %s811 = sphi 0, %s797
      %s815 = sphi 0, %s815
      %s817 = sphi 0, %s815
      %s818 = sphi 0, %s817
      %s832 = sphi 0, %s818
      %s836 = sphi 0, %s836
      %s838 = sphi 0, %s836
      %s839 = sphi 0, %s838
      %s853 = sphi 0, %s839
      %s857 = sphi 0, %s857
      %s859 = sphi 0, %s857
      %s860 = sphi 0, %s859
      %s874 = sphi 0, %s860
      %s878 = sphi 0, %s878
      %s880 = sphi 0, %s878
      %s881 = sphi 0, %s880
      %s895 = sphi 0, %s881
      %s899 = sphi 0, %s899
      %s901 = sphi 0, %s899
      %s902 = sphi 0, %s901
      %s916 = sphi 0, %s902
      %s920 = sphi 0, %s920
      %s922 = sphi 0, %s920
      %s923 = sphi 0, %s922
      %s937 = sphi 0, %s923
      %s941 = sphi 0, %s941
      %s943 = sphi 0, %s941
      %s944 = sphi 0, %s943
      %s958 = sphi 0, %s944
      %s962 = sphi 0, %s962
      %s964 = sphi 0, %s962
      %s965 = sphi 0, %s964
      %s979 = sphi 0, %s965
      %s983 = sphi 0, %s983
      %s985 = sphi 0, %s983
      %s986 = sphi 0, %s985
      %s1000 = sphi 0, %s986
      %s1006 = sphi 0, %s1008
      %s1009 = sphi 0, %s1006
      %s1010 = sphi 0, %s1009
      %s1026 = sphi 0, %s1010
    $region4: #{encoder_decoder_pallas.1} parent=1 // loop_header_branch
      %97 = sbr.rel (%p95) target = $region8
    $region5: #{encoder_decoder_pallas.1} parent=1 // loop_body
      %s99 = ssub.s32 %s94, 1
      %s100 = ssub.s32 %s94, 2
      %s101 = sadd.s32 %s94, 1
      %s102 = ssub.s32 %s94, %s101
      %p103 = scmp.eq.s32.totalorder %s102, 0
      %s105 = sadd.s32 %s104, 1
      %s106 = scalar_select %p103, %s104, %s105
      %p109 = pneg %p103
      %p110 = scmp.eq.s32.totalorder %s94, 1
      %p111 = por %p109, %p110
      %p112 = scmp.ne.s32.totalorder %s104, %s107
      %p113 = scmp.eq.s32.totalorder %s94, 0
      %p114 = por %p112, %p113
      %p115 = scmp.ne.s32.totalorder %s104, %s107
      %p116 = scmp.eq.s32.totalorder %s99, 1
      %p117 = por %p115, %p116
      %p118 = scmp.ne.s32.totalorder %s107, %s108
      %p119 = scmp.eq.s32.totalorder %s99, 0
      %p120 = por %p118, %p119
      %p121 = scmp.ne.s32.totalorder %s107, %s108
      %p122 = scmp.eq.s32.totalorder %s100, 1
      %p123 = por %p121, %p122
      %p125 = scmp.ne.s32.totalorder %s108, %s124
      %p126 = scmp.eq.s32.totalorder %s100, 0
      %p127 = por %p125, %p126
      %s128 = ssub.s32 %s94, %s101
      %p129 = scmp.eq.s32.totalorder %s128, 0
      %s131 = sadd.s32 %s130, 1
      %s132 = scalar_select %p129, %s130, %s131
      %p135 = pneg %p129
      %p136 = scmp.eq.s32.totalorder %s94, 1
      %p137 = por %p135, %p136
      %p138 = scmp.ne.s32.totalorder %s130, %s133
      %p139 = scmp.eq.s32.totalorder %s94, 0
      %p140 = por %p138, %p139
      %p141 = scmp.ne.s32.totalorder %s130, %s133
      %p142 = scmp.eq.s32.totalorder %s99, 1
      %p143 = por %p141, %p142
      %p144 = scmp.ne.s32.totalorder %s133, %s134
      %p145 = scmp.eq.s32.totalorder %s99, 0
      %p146 = por %p144, %p145
      %p147 = scmp.ne.s32.totalorder %s133, %s134
      %p148 = scmp.eq.s32.totalorder %s100, 1
      %p149 = por %p147, %p148
      %p151 = scmp.ne.s32.totalorder %s134, %s150
      %p152 = scmp.eq.s32.totalorder %s100, 0
      %p153 = por %p151, %p152
      %s155 = sadd.s32 %s154, 1
      %p158 = scmp.eq.s32.totalorder %s94, 1
      %p159 = scmp.ne.s32.totalorder %s154, %s156
      %p160 = scmp.eq.s32.totalorder %s94, 0
      %p161 = por %p159, %p160
      %p162 = scmp.ne.s32.totalorder %s154, %s156
      %p163 = scmp.eq.s32.totalorder %s99, 1
      %p164 = por %p162, %p163
      %p165 = scmp.ne.s32.totalorder %s156, %s157
      %p166 = scmp.eq.s32.totalorder %s99, 0
      %p167 = por %p165, %p166
      %p168 = scmp.ne.s32.totalorder %s156, %s157
      %p169 = scmp.eq.s32.totalorder %s100, 1
      %p170 = por %p168, %p169
      %p172 = scmp.ne.s32.totalorder %s157, %s171
      %p173 = scmp.eq.s32.totalorder %s100, 0
      %p174 = por %p172, %p173
      %s176 = sadd.s32 %s175, 1
      %p179 = scmp.eq.s32.totalorder %s94, 1
      %p180 = scmp.ne.s32.totalorder %s175, %s177
      %p181 = scmp.eq.s32.totalorder %s94, 0
      %p182 = por %p180, %p181
      %p183 = scmp.ne.s32.totalorder %s175, %s177
      %p184 = scmp.eq.s32.totalorder %s99, 1
      %p185 = por %p183, %p184
      %p186 = scmp.ne.s32.totalorder %s177, %s178
      %p187 = scmp.eq.s32.totalorder %s99, 0
      %p188 = por %p186, %p187
      %p189 = scmp.ne.s32.totalorder %s177, %s178
      %p190 = scmp.eq.s32.totalorder %s100, 1
      %p191 = por %p189, %p190
      %p193 = scmp.ne.s32.totalorder %s178, %s192
      %p194 = scmp.eq.s32.totalorder %s100, 0
      %p195 = por %p193, %p194
      %s196 = ssub.s32 %s94, %s101
      %p197 = scmp.eq.s32.totalorder %s196, 0
      %s199 = sadd.s32 %s198, 1
      %s200 = scalar_select %p197, %s198, %s199
      %p203 = pneg %p197
      %p204 = scmp.eq.s32.totalorder %s94, 1
      %p205 = por %p203, %p204
      %p206 = scmp.ne.s32.totalorder %s198, %s201
      %p207 = scmp.eq.s32.totalorder %s94, 0
      %p208 = por %p206, %p207
      %p209 = scmp.ne.s32.totalorder %s198, %s201
      %p210 = scmp.eq.s32.totalorder %s99, 1
      %p211 = por %p209, %p210
      %p212 = scmp.ne.s32.totalorder %s201, %s202
      %p213 = scmp.eq.s32.totalorder %s99, 0
      %p214 = por %p212, %p213
      %p215 = scmp.ne.s32.totalorder %s201, %s202
      %p216 = scmp.eq.s32.totalorder %s100, 1
      %p217 = por %p215, %p216
      %p219 = scmp.ne.s32.totalorder %s202, %s218
      %p220 = scmp.eq.s32.totalorder %s100, 0
      %p221 = por %p219, %p220
      %s222 = ssub.s32 %s94, %s101
      %p223 = scmp.eq.s32.totalorder %s222, 0
      %s225 = sadd.s32 %s224, 1
      %s226 = scalar_select %p223, %s224, %s225
      %p229 = pneg %p223
      %p230 = scmp.eq.s32.totalorder %s94, 1
      %p231 = por %p229, %p230
      %p232 = scmp.ne.s32.totalorder %s224, %s227
      %p233 = scmp.eq.s32.totalorder %s94, 0
      %p234 = por %p232, %p233
      %p235 = scmp.ne.s32.totalorder %s224, %s227
      %p236 = scmp.eq.s32.totalorder %s99, 1
      %p237 = por %p235, %p236
      %p238 = scmp.ne.s32.totalorder %s227, %s228
      %p239 = scmp.eq.s32.totalorder %s99, 0
      %p240 = por %p238, %p239
      %p241 = scmp.ne.s32.totalorder %s227, %s228
      %p242 = scmp.eq.s32.totalorder %s100, 1
      %p243 = por %p241, %p242
      %p245 = scmp.ne.s32.totalorder %s228, %s244
      %p246 = scmp.eq.s32.totalorder %s100, 0
      %p247 = por %p245, %p246
      %s249 = sadd.s32 %s248, 1
      %p252 = scmp.eq.s32.totalorder %s94, 1
      %p253 = scmp.ne.s32.totalorder %s248, %s250
      %p254 = scmp.eq.s32.totalorder %s94, 0
      %p255 = por %p253, %p254
      %p256 = scmp.ne.s32.totalorder %s248, %s250
      %p257 = scmp.eq.s32.totalorder %s99, 1
      %p258 = por %p256, %p257
      %p259 = scmp.ne.s32.totalorder %s250, %s251
      %p260 = scmp.eq.s32.totalorder %s99, 0
      %p261 = por %p259, %p260
      %p262 = scmp.ne.s32.totalorder %s250, %s251
      %p263 = scmp.eq.s32.totalorder %s100, 1
      %p264 = por %p262, %p263
      %p266 = scmp.ne.s32.totalorder %s251, %s265
      %p267 = scmp.eq.s32.totalorder %s100, 0
      %p268 = por %p266, %p267
      %s270 = sadd.s32 %s269, 1
      %p273 = scmp.eq.s32.totalorder %s94, 1
      %p274 = scmp.ne.s32.totalorder %s269, %s271
      %p275 = scmp.eq.s32.totalorder %s94, 0
      %p276 = por %p274, %p275
      %p277 = scmp.ne.s32.totalorder %s269, %s271
      %p278 = scmp.eq.s32.totalorder %s99, 1
      %p279 = por %p277, %p278
      %p280 = scmp.ne.s32.totalorder %s271, %s272
      %p281 = scmp.eq.s32.totalorder %s99, 0
      %p282 = por %p280, %p281
      %p283 = scmp.ne.s32.totalorder %s271, %s272
      %p284 = scmp.eq.s32.totalorder %s100, 1
      %p285 = por %p283, %p284
      %p287 = scmp.ne.s32.totalorder %s272, %s286
      %p288 = scmp.eq.s32.totalorder %s100, 0
      %p289 = por %p287, %p288
      %s291 = sadd.s32 %s290, 1
      %p294 = scmp.eq.s32.totalorder %s94, 1
      %p295 = scmp.ne.s32.totalorder %s290, %s292
      %p296 = scmp.eq.s32.totalorder %s94, 0
      %p297 = por %p295, %p296
      %p298 = scmp.ne.s32.totalorder %s290, %s292
      %p299 = scmp.eq.s32.totalorder %s99, 1
      %p300 = por %p298, %p299
      %p301 = scmp.ne.s32.totalorder %s292, %s293
      %p302 = scmp.eq.s32.totalorder %s99, 0
      %p303 = por %p301, %p302
      %p304 = scmp.ne.s32.totalorder %s292, %s293
      %p305 = scmp.eq.s32.totalorder %s100, 1
      %p306 = por %p304, %p305
      %p308 = scmp.ne.s32.totalorder %s293, %s307
      %p309 = scmp.eq.s32.totalorder %s100, 0
      %p310 = por %p308, %p309
      %s312 = sadd.s32 %s311, 1
      %p315 = scmp.eq.s32.totalorder %s94, 1
      %p316 = scmp.ne.s32.totalorder %s311, %s313
      %p317 = scmp.eq.s32.totalorder %s94, 0
      %p318 = por %p316, %p317
      %p319 = scmp.ne.s32.totalorder %s311, %s313
      %p320 = scmp.eq.s32.totalorder %s99, 1
      %p321 = por %p319, %p320
      %p322 = scmp.ne.s32.totalorder %s313, %s314
      %p323 = scmp.eq.s32.totalorder %s99, 0
      %p324 = por %p322, %p323
      %p325 = scmp.ne.s32.totalorder %s313, %s314
      %p326 = scmp.eq.s32.totalorder %s100, 1
      %p327 = por %p325, %p326
      %p329 = scmp.ne.s32.totalorder %s314, %s328
      %p330 = scmp.eq.s32.totalorder %s100, 0
      %p331 = por %p329, %p330
      %s333 = sadd.s32 %s332, 1
      %p336 = scmp.eq.s32.totalorder %s94, 1
      %p337 = scmp.ne.s32.totalorder %s332, %s334
      %p338 = scmp.eq.s32.totalorder %s94, 0
      %p339 = por %p337, %p338
      %p340 = scmp.ne.s32.totalorder %s332, %s334
      %p341 = scmp.eq.s32.totalorder %s99, 1
      %p342 = por %p340, %p341
      %p343 = scmp.ne.s32.totalorder %s334, %s335
      %p344 = scmp.eq.s32.totalorder %s99, 0
      %p345 = por %p343, %p344
      %p346 = scmp.ne.s32.totalorder %s334, %s335
      %p347 = scmp.eq.s32.totalorder %s100, 1
      %p348 = por %p346, %p347
      %p350 = scmp.ne.s32.totalorder %s335, %s349
      %p351 = scmp.eq.s32.totalorder %s100, 0
      %p352 = por %p350, %p351
      %s354 = sadd.s32 %s353, 1
      %p357 = scmp.eq.s32.totalorder %s94, 1
      %p358 = scmp.ne.s32.totalorder %s353, %s355
      %p359 = scmp.eq.s32.totalorder %s94, 0
      %p360 = por %p358, %p359
      %p361 = scmp.ne.s32.totalorder %s353, %s355
      %p362 = scmp.eq.s32.totalorder %s99, 1
      %p363 = por %p361, %p362
      %p364 = scmp.ne.s32.totalorder %s355, %s356
      %p365 = scmp.eq.s32.totalorder %s99, 0
      %p366 = por %p364, %p365
      %p367 = scmp.ne.s32.totalorder %s355, %s356
      %p368 = scmp.eq.s32.totalorder %s100, 1
      %p369 = por %p367, %p368
      %p371 = scmp.ne.s32.totalorder %s356, %s370
      %p372 = scmp.eq.s32.totalorder %s100, 0
      %p373 = por %p371, %p372
      %s375 = sadd.s32 %s374, 1
      %p378 = scmp.eq.s32.totalorder %s94, 1
      %p379 = scmp.ne.s32.totalorder %s374, %s376
      %p380 = scmp.eq.s32.totalorder %s94, 0
      %p381 = por %p379, %p380
      %p382 = scmp.ne.s32.totalorder %s374, %s376
      %p383 = scmp.eq.s32.totalorder %s99, 1
      %p384 = por %p382, %p383
      %p385 = scmp.ne.s32.totalorder %s376, %s377
      %p386 = scmp.eq.s32.totalorder %s99, 0
      %p387 = por %p385, %p386
      %p388 = scmp.ne.s32.totalorder %s376, %s377
      %p389 = scmp.eq.s32.totalorder %s100, 1
      %p390 = por %p388, %p389
      %p392 = scmp.ne.s32.totalorder %s377, %s391
      %p393 = scmp.eq.s32.totalorder %s100, 0
      %p394 = por %p392, %p393
      %s396 = sadd.s32 %s395, 1
      %p399 = scmp.eq.s32.totalorder %s94, 1
      %p400 = scmp.ne.s32.totalorder %s395, %s397
      %p401 = scmp.eq.s32.totalorder %s94, 0
      %p402 = por %p400, %p401
      %p403 = scmp.ne.s32.totalorder %s395, %s397
      %p404 = scmp.eq.s32.totalorder %s99, 1
      %p405 = por %p403, %p404
      %p406 = scmp.ne.s32.totalorder %s397, %s398
      %p407 = scmp.eq.s32.totalorder %s99, 0
      %p408 = por %p406, %p407
      %p409 = scmp.ne.s32.totalorder %s397, %s398
      %p410 = scmp.eq.s32.totalorder %s100, 1
      %p411 = por %p409, %p410
      %p413 = scmp.ne.s32.totalorder %s398, %s412
      %p414 = scmp.eq.s32.totalorder %s100, 0
      %p415 = por %p413, %p414
      %s417 = sadd.s32 %s416, 1
      %p420 = scmp.eq.s32.totalorder %s94, 1
      %p421 = scmp.ne.s32.totalorder %s416, %s418
      %p422 = scmp.eq.s32.totalorder %s94, 0
      %p423 = por %p421, %p422
      %p424 = scmp.ne.s32.totalorder %s416, %s418
      %p425 = scmp.eq.s32.totalorder %s99, 1
      %p426 = por %p424, %p425
      %p427 = scmp.ne.s32.totalorder %s418, %s419
      %p428 = scmp.eq.s32.totalorder %s99, 0
      %p429 = por %p427, %p428
      %p430 = scmp.ne.s32.totalorder %s418, %s419
      %p431 = scmp.eq.s32.totalorder %s100, 1
      %p432 = por %p430, %p431
      %p434 = scmp.ne.s32.totalorder %s419, %s433
      %p435 = scmp.eq.s32.totalorder %s100, 0
      %p436 = por %p434, %p435
      %s438 = sadd.s32 %s437, 1
      %p441 = scmp.eq.s32.totalorder %s94, 1
      %p442 = scmp.ne.s32.totalorder %s437, %s439
      %p443 = scmp.eq.s32.totalorder %s94, 0
      %p444 = por %p442, %p443
      %p445 = scmp.ne.s32.totalorder %s437, %s439
      %p446 = scmp.eq.s32.totalorder %s99, 1
      %p447 = por %p445, %p446
      %p448 = scmp.ne.s32.totalorder %s439, %s440
      %p449 = scmp.eq.s32.totalorder %s99, 0
      %p450 = por %p448, %p449
      %p451 = scmp.ne.s32.totalorder %s439, %s440
      %p452 = scmp.eq.s32.totalorder %s100, 1
      %p453 = por %p451, %p452
      %p455 = scmp.ne.s32.totalorder %s440, %s454
      %p456 = scmp.eq.s32.totalorder %s100, 0
      %p457 = por %p455, %p456
      %s459 = sadd.s32 %s458, 1
      %p462 = scmp.eq.s32.totalorder %s94, 1
      %p463 = scmp.ne.s32.totalorder %s458, %s460
      %p464 = scmp.eq.s32.totalorder %s94, 0
      %p465 = por %p463, %p464
      %p466 = scmp.ne.s32.totalorder %s458, %s460
      %p467 = scmp.eq.s32.totalorder %s99, 1
      %p468 = por %p466, %p467
      %p469 = scmp.ne.s32.totalorder %s460, %s461
      %p470 = scmp.eq.s32.totalorder %s99, 0
      %p471 = por %p469, %p470
      %p472 = scmp.ne.s32.totalorder %s460, %s461
      %p473 = scmp.eq.s32.totalorder %s100, 1
      %p474 = por %p472, %p473
      %p476 = scmp.ne.s32.totalorder %s461, %s475
      %p477 = scmp.eq.s32.totalorder %s100, 0
      %p478 = por %p476, %p477
      %s480 = sadd.s32 %s479, 1
      %p483 = scmp.eq.s32.totalorder %s94, 1
      %p484 = scmp.ne.s32.totalorder %s479, %s481
      %p485 = scmp.eq.s32.totalorder %s94, 0
      %p486 = por %p484, %p485
      %p487 = scmp.ne.s32.totalorder %s479, %s481
      %p488 = scmp.eq.s32.totalorder %s99, 1
      %p489 = por %p487, %p488
      %p490 = scmp.ne.s32.totalorder %s481, %s482
      %p491 = scmp.eq.s32.totalorder %s99, 0
      %p492 = por %p490, %p491
      %p493 = scmp.ne.s32.totalorder %s481, %s482
      %p494 = scmp.eq.s32.totalorder %s100, 1
      %p495 = por %p493, %p494
      %p497 = scmp.ne.s32.totalorder %s482, %s496
      %p498 = scmp.eq.s32.totalorder %s100, 0
      %p499 = por %p497, %p498
      %s501 = sadd.s32 %s500, 1
      %p504 = scmp.eq.s32.totalorder %s94, 1
      %p505 = scmp.ne.s32.totalorder %s500, %s502
      %p506 = scmp.eq.s32.totalorder %s94, 0
      %p507 = por %p505, %p506
      %p508 = scmp.ne.s32.totalorder %s500, %s502
      %p509 = scmp.eq.s32.totalorder %s99, 1
      %p510 = por %p508, %p509
      %p511 = scmp.ne.s32.totalorder %s502, %s503
      %p512 = scmp.eq.s32.totalorder %s99, 0
      %p513 = por %p511, %p512
      %p514 = scmp.ne.s32.totalorder %s502, %s503
      %p515 = scmp.eq.s32.totalorder %s100, 1
      %p516 = por %p514, %p515
      %p518 = scmp.ne.s32.totalorder %s503, %s517
      %p519 = scmp.eq.s32.totalorder %s100, 0
      %p520 = por %p518, %p519
      %s522 = sadd.s32 %s521, 1
      %p525 = scmp.eq.s32.totalorder %s94, 1
      %p526 = scmp.ne.s32.totalorder %s521, %s523
      %p527 = scmp.eq.s32.totalorder %s94, 0
      %p528 = por %p526, %p527
      %p529 = scmp.ne.s32.totalorder %s521, %s523
      %p530 = scmp.eq.s32.totalorder %s99, 1
      %p531 = por %p529, %p530
      %p532 = scmp.ne.s32.totalorder %s523, %s524
      %p533 = scmp.eq.s32.totalorder %s99, 0
      %p534 = por %p532, %p533
      %p535 = scmp.ne.s32.totalorder %s523, %s524
      %p536 = scmp.eq.s32.totalorder %s100, 1
      %p537 = por %p535, %p536
      %p539 = scmp.ne.s32.totalorder %s524, %s538
      %p540 = scmp.eq.s32.totalorder %s100, 0
      %p541 = por %p539, %p540
      %s543 = sadd.s32 %s542, 1
      %p546 = scmp.eq.s32.totalorder %s94, 1
      %p547 = scmp.ne.s32.totalorder %s542, %s544
      %p548 = scmp.eq.s32.totalorder %s94, 0
      %p549 = por %p547, %p548
      %p550 = scmp.ne.s32.totalorder %s542, %s544
      %p551 = scmp.eq.s32.totalorder %s99, 1
      %p552 = por %p550, %p551
      %p553 = scmp.ne.s32.totalorder %s544, %s545
      %p554 = scmp.eq.s32.totalorder %s99, 0
      %p555 = por %p553, %p554
      %p556 = scmp.ne.s32.totalorder %s544, %s545
      %p557 = scmp.eq.s32.totalorder %s100, 1
      %p558 = por %p556, %p557
      %p560 = scmp.ne.s32.totalorder %s545, %s559
      %p561 = scmp.eq.s32.totalorder %s100, 0
      %p562 = por %p560, %p561
      %s564 = sadd.s32 %s563, 1
      %p567 = scmp.eq.s32.totalorder %s94, 1
      %p568 = scmp.ne.s32.totalorder %s563, %s565
      %p569 = scmp.eq.s32.totalorder %s94, 0
      %p570 = por %p568, %p569
      %p571 = scmp.ne.s32.totalorder %s563, %s565
      %p572 = scmp.eq.s32.totalorder %s99, 1
      %p573 = por %p571, %p572
      %p574 = scmp.ne.s32.totalorder %s565, %s566
      %p575 = scmp.eq.s32.totalorder %s99, 0
      %p576 = por %p574, %p575
      %p577 = scmp.ne.s32.totalorder %s565, %s566
      %p578 = scmp.eq.s32.totalorder %s100, 1
      %p579 = por %p577, %p578
      %p581 = scmp.ne.s32.totalorder %s566, %s580
      %p582 = scmp.eq.s32.totalorder %s100, 0
      %p583 = por %p581, %p582
      %s585 = sadd.s32 %s584, 1
      %p588 = scmp.eq.s32.totalorder %s94, 1
      %p589 = scmp.ne.s32.totalorder %s584, %s586
      %p590 = scmp.eq.s32.totalorder %s94, 0
      %p591 = por %p589, %p590
      %p592 = scmp.ne.s32.totalorder %s584, %s586
      %p593 = scmp.eq.s32.totalorder %s99, 1
      %p594 = por %p592, %p593
      %p595 = scmp.ne.s32.totalorder %s586, %s587
      %p596 = scmp.eq.s32.totalorder %s99, 0
      %p597 = por %p595, %p596
      %p598 = scmp.ne.s32.totalorder %s586, %s587
      %p599 = scmp.eq.s32.totalorder %s100, 1
      %p600 = por %p598, %p599
      %p602 = scmp.ne.s32.totalorder %s587, %s601
      %p603 = scmp.eq.s32.totalorder %s100, 0
      %p604 = por %p602, %p603
      %s606 = sadd.s32 %s605, 1
      %p609 = scmp.eq.s32.totalorder %s94, 1
      %p610 = scmp.ne.s32.totalorder %s605, %s607
      %p611 = scmp.eq.s32.totalorder %s94, 0
      %p612 = por %p610, %p611
      %p613 = scmp.ne.s32.totalorder %s605, %s607
      %p614 = scmp.eq.s32.totalorder %s99, 1
      %p615 = por %p613, %p614
      %p616 = scmp.ne.s32.totalorder %s607, %s608
      %p617 = scmp.eq.s32.totalorder %s99, 0
      %p618 = por %p616, %p617
      %p619 = scmp.ne.s32.totalorder %s607, %s608
      %p620 = scmp.eq.s32.totalorder %s100, 1
      %p621 = por %p619, %p620
      %p623 = scmp.ne.s32.totalorder %s608, %s622
      %p624 = scmp.eq.s32.totalorder %s100, 0
      %p625 = por %p623, %p624
      %s627 = sadd.s32 %s626, 1
      %p630 = scmp.eq.s32.totalorder %s94, 1
      %p631 = scmp.ne.s32.totalorder %s626, %s628
      %p632 = scmp.eq.s32.totalorder %s94, 0
      %p633 = por %p631, %p632
      %p634 = scmp.ne.s32.totalorder %s626, %s628
      %p635 = scmp.eq.s32.totalorder %s99, 1
      %p636 = por %p634, %p635
      %p637 = scmp.ne.s32.totalorder %s628, %s629
      %p638 = scmp.eq.s32.totalorder %s99, 0
      %p639 = por %p637, %p638
      %p640 = scmp.ne.s32.totalorder %s628, %s629
      %p641 = scmp.eq.s32.totalorder %s100, 1
      %p642 = por %p640, %p641
      %p644 = scmp.ne.s32.totalorder %s629, %s643
      %p645 = scmp.eq.s32.totalorder %s100, 0
      %p646 = por %p644, %p645
      %s648 = sadd.s32 %s647, 1
      %p651 = scmp.eq.s32.totalorder %s94, 1
      %p652 = scmp.ne.s32.totalorder %s647, %s649
      %p653 = scmp.eq.s32.totalorder %s94, 0
      %p654 = por %p652, %p653
      %p655 = scmp.ne.s32.totalorder %s647, %s649
      %p656 = scmp.eq.s32.totalorder %s99, 1
      %p657 = por %p655, %p656
      %p658 = scmp.ne.s32.totalorder %s649, %s650
      %p659 = scmp.eq.s32.totalorder %s99, 0
      %p660 = por %p658, %p659
      %p661 = scmp.ne.s32.totalorder %s649, %s650
      %p662 = scmp.eq.s32.totalorder %s100, 1
      %p663 = por %p661, %p662
      %p665 = scmp.ne.s32.totalorder %s650, %s664
      %p666 = scmp.eq.s32.totalorder %s100, 0
      %p667 = por %p665, %p666
      %s669 = sadd.s32 %s668, 1
      %p672 = scmp.eq.s32.totalorder %s94, 1
      %p673 = scmp.ne.s32.totalorder %s668, %s670
      %p674 = scmp.eq.s32.totalorder %s94, 0
      %p675 = por %p673, %p674
      %p676 = scmp.ne.s32.totalorder %s668, %s670
      %p677 = scmp.eq.s32.totalorder %s99, 1
      %p678 = por %p676, %p677
      %p679 = scmp.ne.s32.totalorder %s670, %s671
      %p680 = scmp.eq.s32.totalorder %s99, 0
      %p681 = por %p679, %p680
      %p682 = scmp.ne.s32.totalorder %s670, %s671
      %p683 = scmp.eq.s32.totalorder %s100, 1
      %p684 = por %p682, %p683
      %p686 = scmp.ne.s32.totalorder %s671, %s685
      %p687 = scmp.eq.s32.totalorder %s100, 0
      %p688 = por %p686, %p687
      %s690 = sadd.s32 %s689, 1
      %p693 = scmp.eq.s32.totalorder %s94, 1
      %p694 = scmp.ne.s32.totalorder %s689, %s691
      %p695 = scmp.eq.s32.totalorder %s94, 0
      %p696 = por %p694, %p695
      %p697 = scmp.ne.s32.totalorder %s689, %s691
      %p698 = scmp.eq.s32.totalorder %s99, 1
      %p699 = por %p697, %p698
      %p700 = scmp.ne.s32.totalorder %s691, %s692
      %p701 = scmp.eq.s32.totalorder %s99, 0
      %p702 = por %p700, %p701
      %p703 = scmp.ne.s32.totalorder %s691, %s692
      %p704 = scmp.eq.s32.totalorder %s100, 1
      %p705 = por %p703, %p704
      %p707 = scmp.ne.s32.totalorder %s692, %s706
      %p708 = scmp.eq.s32.totalorder %s100, 0
      %p709 = por %p707, %p708
      %s711 = sadd.s32 %s710, 1
      %p714 = scmp.eq.s32.totalorder %s94, 1
      %p715 = scmp.ne.s32.totalorder %s710, %s712
      %p716 = scmp.eq.s32.totalorder %s94, 0
      %p717 = por %p715, %p716
      %p718 = scmp.ne.s32.totalorder %s710, %s712
      %p719 = scmp.eq.s32.totalorder %s99, 1
      %p720 = por %p718, %p719
      %p721 = scmp.ne.s32.totalorder %s712, %s713
      %p722 = scmp.eq.s32.totalorder %s99, 0
      %p723 = por %p721, %p722
      %p724 = scmp.ne.s32.totalorder %s712, %s713
      %p725 = scmp.eq.s32.totalorder %s100, 1
      %p726 = por %p724, %p725
      %p728 = scmp.ne.s32.totalorder %s713, %s727
      %p729 = scmp.eq.s32.totalorder %s100, 0
      %p730 = por %p728, %p729
      %s732 = sadd.s32 %s731, 1
      %p735 = scmp.eq.s32.totalorder %s94, 1
      %p736 = scmp.ne.s32.totalorder %s731, %s733
      %p737 = scmp.eq.s32.totalorder %s94, 0
      %p738 = por %p736, %p737
      %p739 = scmp.ne.s32.totalorder %s731, %s733
      %p740 = scmp.eq.s32.totalorder %s99, 1
      %p741 = por %p739, %p740
      %p742 = scmp.ne.s32.totalorder %s733, %s734
      %p743 = scmp.eq.s32.totalorder %s99, 0
      %p744 = por %p742, %p743
      %p745 = scmp.ne.s32.totalorder %s733, %s734
      %p746 = scmp.eq.s32.totalorder %s100, 1
      %p747 = por %p745, %p746
      %p749 = scmp.ne.s32.totalorder %s734, %s748
      %p750 = scmp.eq.s32.totalorder %s100, 0
      %p751 = por %p749, %p750
      %s753 = sadd.s32 %s752, 1
      %p756 = scmp.eq.s32.totalorder %s94, 1
      %p757 = scmp.ne.s32.totalorder %s752, %s754
      %p758 = scmp.eq.s32.totalorder %s94, 0
      %p759 = por %p757, %p758
      %p760 = scmp.ne.s32.totalorder %s752, %s754
      %p761 = scmp.eq.s32.totalorder %s99, 1
      %p762 = por %p760, %p761
      %p763 = scmp.ne.s32.totalorder %s754, %s755
      %p764 = scmp.eq.s32.totalorder %s99, 0
      %p765 = por %p763, %p764
      %p766 = scmp.ne.s32.totalorder %s754, %s755
      %p767 = scmp.eq.s32.totalorder %s100, 1
      %p768 = por %p766, %p767
      %p770 = scmp.ne.s32.totalorder %s755, %s769
      %p771 = scmp.eq.s32.totalorder %s100, 0
      %p772 = por %p770, %p771
      %s774 = sadd.s32 %s773, 1
      %p777 = scmp.eq.s32.totalorder %s94, 1
      %p778 = scmp.ne.s32.totalorder %s773, %s775
      %p779 = scmp.eq.s32.totalorder %s94, 0
      %p780 = por %p778, %p779
      %p781 = scmp.ne.s32.totalorder %s773, %s775
      %p782 = scmp.eq.s32.totalorder %s99, 1
      %p783 = por %p781, %p782
      %p784 = scmp.ne.s32.totalorder %s775, %s776
      %p785 = scmp.eq.s32.totalorder %s99, 0
      %p786 = por %p784, %p785
      %p787 = scmp.ne.s32.totalorder %s775, %s776
      %p788 = scmp.eq.s32.totalorder %s100, 1
      %p789 = por %p787, %p788
      %p791 = scmp.ne.s32.totalorder %s776, %s790
      %p792 = scmp.eq.s32.totalorder %s100, 0
      %p793 = por %p791, %p792
      %s795 = sadd.s32 %s794, 1
      %p798 = scmp.eq.s32.totalorder %s94, 1
      %p799 = scmp.ne.s32.totalorder %s794, %s796
      %p800 = scmp.eq.s32.totalorder %s94, 0
      %p801 = por %p799, %p800
      %p802 = scmp.ne.s32.totalorder %s794, %s796
      %p803 = scmp.eq.s32.totalorder %s99, 1
      %p804 = por %p802, %p803
      %p805 = scmp.ne.s32.totalorder %s796, %s797
      %p806 = scmp.eq.s32.totalorder %s99, 0
      %p807 = por %p805, %p806
      %p808 = scmp.ne.s32.totalorder %s796, %s797
      %p809 = scmp.eq.s32.totalorder %s100, 1
      %p810 = por %p808, %p809
      %p812 = scmp.ne.s32.totalorder %s797, %s811
      %p813 = scmp.eq.s32.totalorder %s100, 0
      %p814 = por %p812, %p813
      %s816 = sadd.s32 %s815, 1
      %p819 = scmp.eq.s32.totalorder %s94, 1
      %p820 = scmp.ne.s32.totalorder %s815, %s817
      %p821 = scmp.eq.s32.totalorder %s94, 0
      %p822 = por %p820, %p821
      %p823 = scmp.ne.s32.totalorder %s815, %s817
      %p824 = scmp.eq.s32.totalorder %s99, 1
      %p825 = por %p823, %p824
      %p826 = scmp.ne.s32.totalorder %s817, %s818
      %p827 = scmp.eq.s32.totalorder %s99, 0
      %p828 = por %p826, %p827
      %p829 = scmp.ne.s32.totalorder %s817, %s818
      %p830 = scmp.eq.s32.totalorder %s100, 1
      %p831 = por %p829, %p830
      %p833 = scmp.ne.s32.totalorder %s818, %s832
      %p834 = scmp.eq.s32.totalorder %s100, 0
      %p835 = por %p833, %p834
      %s837 = sadd.s32 %s836, 1
      %p840 = scmp.eq.s32.totalorder %s94, 1
      %p841 = scmp.ne.s32.totalorder %s836, %s838
      %p842 = scmp.eq.s32.totalorder %s94, 0
      %p843 = por %p841, %p842
      %p844 = scmp.ne.s32.totalorder %s836, %s838
      %p845 = scmp.eq.s32.totalorder %s99, 1
      %p846 = por %p844, %p845
      %p847 = scmp.ne.s32.totalorder %s838, %s839
      %p848 = scmp.eq.s32.totalorder %s99, 0
      %p849 = por %p847, %p848
      %p850 = scmp.ne.s32.totalorder %s838, %s839
      %p851 = scmp.eq.s32.totalorder %s100, 1
      %p852 = por %p850, %p851
      %p854 = scmp.ne.s32.totalorder %s839, %s853
      %p855 = scmp.eq.s32.totalorder %s100, 0
      %p856 = por %p854, %p855
      %s858 = sadd.s32 %s857, 1
      %p861 = scmp.eq.s32.totalorder %s94, 1
      %p862 = scmp.ne.s32.totalorder %s857, %s859
      %p863 = scmp.eq.s32.totalorder %s94, 0
      %p864 = por %p862, %p863
      %p865 = scmp.ne.s32.totalorder %s857, %s859
      %p866 = scmp.eq.s32.totalorder %s99, 1
      %p867 = por %p865, %p866
      %p868 = scmp.ne.s32.totalorder %s859, %s860
      %p869 = scmp.eq.s32.totalorder %s99, 0
      %p870 = por %p868, %p869
      %p871 = scmp.ne.s32.totalorder %s859, %s860
      %p872 = scmp.eq.s32.totalorder %s100, 1
      %p873 = por %p871, %p872
      %p875 = scmp.ne.s32.totalorder %s860, %s874
      %p876 = scmp.eq.s32.totalorder %s100, 0
      %p877 = por %p875, %p876
      %s879 = sadd.s32 %s878, 1
      %p882 = scmp.eq.s32.totalorder %s94, 1
      %p883 = scmp.ne.s32.totalorder %s878, %s880
      %p884 = scmp.eq.s32.totalorder %s94, 0
      %p885 = por %p883, %p884
      %p886 = scmp.ne.s32.totalorder %s878, %s880
      %p887 = scmp.eq.s32.totalorder %s99, 1
      %p888 = por %p886, %p887
      %p889 = scmp.ne.s32.totalorder %s880, %s881
      %p890 = scmp.eq.s32.totalorder %s99, 0
      %p891 = por %p889, %p890
      %p892 = scmp.ne.s32.totalorder %s880, %s881
      %p893 = scmp.eq.s32.totalorder %s100, 1
      %p894 = por %p892, %p893
      %p896 = scmp.ne.s32.totalorder %s881, %s895
      %p897 = scmp.eq.s32.totalorder %s100, 0
      %p898 = por %p896, %p897
      %s900 = sadd.s32 %s899, 1
      %p903 = scmp.eq.s32.totalorder %s94, 1
      %p904 = scmp.ne.s32.totalorder %s899, %s901
      %p905 = scmp.eq.s32.totalorder %s94, 0
      %p906 = por %p904, %p905
      %p907 = scmp.ne.s32.totalorder %s899, %s901
      %p908 = scmp.eq.s32.totalorder %s99, 1
      %p909 = por %p907, %p908
      %p910 = scmp.ne.s32.totalorder %s901, %s902
      %p911 = scmp.eq.s32.totalorder %s99, 0
      %p912 = por %p910, %p911
      %p913 = scmp.ne.s32.totalorder %s901, %s902
      %p914 = scmp.eq.s32.totalorder %s100, 1
      %p915 = por %p913, %p914
      %p917 = scmp.ne.s32.totalorder %s902, %s916
      %p918 = scmp.eq.s32.totalorder %s100, 0
      %p919 = por %p917, %p918
      %s921 = sadd.s32 %s920, 1
      %p924 = scmp.eq.s32.totalorder %s94, 1
      %p925 = scmp.ne.s32.totalorder %s920, %s922
      %p926 = scmp.eq.s32.totalorder %s94, 0
      %p927 = por %p925, %p926
      %p928 = scmp.ne.s32.totalorder %s920, %s922
      %p929 = scmp.eq.s32.totalorder %s99, 1
      %p930 = por %p928, %p929
      %p931 = scmp.ne.s32.totalorder %s922, %s923
      %p932 = scmp.eq.s32.totalorder %s99, 0
      %p933 = por %p931, %p932
      %p934 = scmp.ne.s32.totalorder %s922, %s923
      %p935 = scmp.eq.s32.totalorder %s100, 1
      %p936 = por %p934, %p935
      %p938 = scmp.ne.s32.totalorder %s923, %s937
      %p939 = scmp.eq.s32.totalorder %s100, 0
      %p940 = por %p938, %p939
      %s942 = sadd.s32 %s941, 1
      %p945 = scmp.eq.s32.totalorder %s94, 1
      %p946 = scmp.ne.s32.totalorder %s941, %s943
      %p947 = scmp.eq.s32.totalorder %s94, 0
      %p948 = por %p946, %p947
      %p949 = scmp.ne.s32.totalorder %s941, %s943
      %p950 = scmp.eq.s32.totalorder %s99, 1
      %p951 = por %p949, %p950
      %p952 = scmp.ne.s32.totalorder %s943, %s944
      %p953 = scmp.eq.s32.totalorder %s99, 0
      %p954 = por %p952, %p953
      %p955 = scmp.ne.s32.totalorder %s943, %s944
      %p956 = scmp.eq.s32.totalorder %s100, 1
      %p957 = por %p955, %p956
      %p959 = scmp.ne.s32.totalorder %s944, %s958
      %p960 = scmp.eq.s32.totalorder %s100, 0
      %p961 = por %p959, %p960
      %s963 = sadd.s32 %s962, 1
      %p966 = scmp.eq.s32.totalorder %s94, 1
      %p967 = scmp.ne.s32.totalorder %s962, %s964
      %p968 = scmp.eq.s32.totalorder %s94, 0
      %p969 = por %p967, %p968
      %p970 = scmp.ne.s32.totalorder %s962, %s964
      %p971 = scmp.eq.s32.totalorder %s99, 1
      %p972 = por %p970, %p971
      %p973 = scmp.ne.s32.totalorder %s964, %s965
      %p974 = scmp.eq.s32.totalorder %s99, 0
      %p975 = por %p973, %p974
      %p976 = scmp.ne.s32.totalorder %s964, %s965
      %p977 = scmp.eq.s32.totalorder %s100, 1
      %p978 = por %p976, %p977
      %p980 = scmp.ne.s32.totalorder %s965, %s979
      %p981 = scmp.eq.s32.totalorder %s100, 0
      %p982 = por %p980, %p981
      %s984 = sadd.s32 %s983, 1
      %p987 = scmp.eq.s32.totalorder %s94, 1
      %p988 = scmp.ne.s32.totalorder %s983, %s985
      %p989 = scmp.eq.s32.totalorder %s94, 0
      %p990 = por %p988, %p989
      %p991 = scmp.ne.s32.totalorder %s983, %s985
      %p992 = scmp.eq.s32.totalorder %s99, 1
      %p993 = por %p991, %p992
      %p994 = scmp.ne.s32.totalorder %s985, %s986
      %p995 = scmp.eq.s32.totalorder %s99, 0
      %p996 = por %p994, %p995
      %p997 = scmp.ne.s32.totalorder %s985, %s986
      %p998 = scmp.eq.s32.totalorder %s100, 1
      %p999 = por %p997, %p998
      %p1001 = scmp.ne.s32.totalorder %s986, %s1000
      %p1002 = scmp.eq.s32.totalorder %s100, 0
      %p1003 = por %p1001, %p1002
      %s1004 = ssub.s32 %s94, %s101
      %p1005 = scmp.eq.s32.totalorder %s1004, 0
      %s1007 = sadd.s32 %s1006, 1
      %s1008 = scalar_select %p1005, %s1006, %s1007
      %p1011 = pneg %p1005
      %p1012 = scmp.eq.s32.totalorder %s94, 1
      %p1013 = por %p1011, %p1012
      %p1014 = scmp.ne.s32.totalorder %s1006, %s1009
      %p1015 = scmp.eq.s32.totalorder %s94, 0
      %p1016 = por %p1014, %p1015
      %p1017 = scmp.ne.s32.totalorder %s1006, %s1009
      %p1018 = scmp.eq.s32.totalorder %s99, 1
      %p1019 = por %p1017, %p1018
      %p1020 = scmp.ne.s32.totalorder %s1009, %s1010
      %p1021 = scmp.eq.s32.totalorder %s99, 0
      %p1022 = por %p1020, %p1021
      %p1023 = scmp.ne.s32.totalorder %s1009, %s1010
      %p1024 = scmp.eq.s32.totalorder %s100, 1
      %p1025 = por %p1023, %p1024
      %p1027 = scmp.ne.s32.totalorder %s1010, %s1026
      %p1028 = scmp.eq.s32.totalorder %s100, 0
      %p1029 = por %p1027, %p1028
      %p1030 = scmp.le.s32.totalorder 1, %s94
      %p1031 = scmp.lt.s32.totalorder %s94, 3
      %p1032 = pnand %p1030, %p1031
      %p1033 = pneg %p1032
      // Predicated region
      $region9: #{encoder_decoder_pallas.1} parent=5 // pred_check
        _
      $region10: #{encoder_decoder_pallas.1} parent=5 // pred_check_branch
        %1035 = sbr.rel (%p1032) target = $region12
      $region11: #{encoder_decoder_pallas.1} parent=5 // pred_region
        %s1036 = ssub.s32 %s94, 1
        // Predicated region
        $region13: #{encoder_decoder_pallas.1} parent=11 // pred_check
          %p1037 = pneg %p167
        $region14: #{encoder_decoder_pallas.1} parent=11 // pred_check_branch
          %1039 = sbr.rel (%p1037) target = $region16
        $region15: #{encoder_decoder_pallas.1} parent=11 // pred_region
          _
        $region16: #{encoder_decoder_pallas.1} parent=11 // pred_fallthru
          _
        // Predicated region
        $region17: #{encoder_decoder_pallas.1} parent=11 // pred_check
          %p1040 = pneg %p188
        $region18: #{encoder_decoder_pallas.1} parent=11 // pred_check_branch
          %1042 = sbr.rel (%p1040) target = $region20
        $region19: #{encoder_decoder_pallas.1} parent=11 // pred_region
          _
        $region20: #{encoder_decoder_pallas.1} parent=11 // pred_fallthru
          _
        // Predicated region
        $region21: #{encoder_decoder_pallas.1} parent=11 // pred_check
          %p1043 = pneg %p261
        $region22: #{encoder_decoder_pallas.1} parent=11 // pred_check_branch
          %1045 = sbr.rel (%p1043) target = $region24
        $region23: #{encoder_decoder_pallas.1} parent=11 // pred_region
          _
        $region24: #{encoder_decoder_pallas.1} parent=11 // pred_fallthru
          _
        // Predicated region
        $region25: #{encoder_decoder_pallas.1} parent=11 // pred_check
          %p1046 = pneg %p282
        $region26: #{encoder_decoder_pallas.1} parent=11 // pred_check_branch
          %1048 = sbr.rel (%p1046) target = $region28
        $region27: #{encoder_decoder_pallas.1} parent=11 // pred_region
          _
        $region28: #{encoder_decoder_pallas.1} parent=11 // pred_fallthru
          _
        // Predicated region
        $region29: #{encoder_decoder_pallas.1} parent=11 // pred_check
          %p1049 = pneg %p303
        $region30: #{encoder_decoder_pallas.1} parent=11 // pred_check_branch
          %1051 = sbr.rel (%p1049) target = $region32
        $region31: #{encoder_decoder_pallas.1} parent=11 // pred_region
          _
        $region32: #{encoder_decoder_pallas.1} parent=11 // pred_fallthru
          _
        // Predicated region
        $region33: #{encoder_decoder_pallas.1} parent=11 // pred_check
          %p1052 = pneg %p324
        $region34: #{encoder_decoder_pallas.1} parent=11 // pred_check_branch
          %1054 = sbr.rel (%p1052) target = $region36
        $region35: #{encoder_decoder_pallas.1} parent=11 // pred_region
          _
        $region36: #{encoder_decoder_pallas.1} parent=11 // pred_fallthru
          _
        // Predicated region
        $region37: #{encoder_decoder_pallas.1} parent=11 // pred_check
          %p1055 = pneg %p345
        $region38: #{encoder_decoder_pallas.1} parent=11 // pred_check_branch
          %1057 = sbr.rel (%p1055) target = $region40
        $region39: #{encoder_decoder_pallas.1} parent=11 // pred_region
          _
        $region40: #{encoder_decoder_pallas.1} parent=11 // pred_fallthru
          _
        // Predicated region
        $region41: #{encoder_decoder_pallas.1} parent=11 // pred_check
          %p1058 = pneg %p366
        $region42: #{encoder_decoder_pallas.1} parent=11 // pred_check_branch
          %1060 = sbr.rel (%p1058) target = $region44
        $region43: #{encoder_decoder_pallas.1} parent=11 // pred_region
          _
        $region44: #{encoder_decoder_pallas.1} parent=11 // pred_fallthru
          _
        // Predicated region
        $region45: #{encoder_decoder_pallas.1} parent=11 // pred_check
          %p1061 = pneg %p387
        $region46: #{encoder_decoder_pallas.1} parent=11 // pred_check_branch
          %1063 = sbr.rel (%p1061) target = $region48
        $region47: #{encoder_decoder_pallas.1} parent=11 // pred_region
          _
        $region48: #{encoder_decoder_pallas.1} parent=11 // pred_fallthru
          _
        // Predicated region
        $region49: #{encoder_decoder_pallas.1} parent=11 // pred_check
          %p1064 = pneg %p408
        $region50: #{encoder_decoder_pallas.1} parent=11 // pred_check_branch
          %1066 = sbr.rel (%p1064) target = $region52
        $region51: #{encoder_decoder_pallas.1} parent=11 // pred_region
          _
        $region52: #{encoder_decoder_pallas.1} parent=11 // pred_fallthru
          _
        // Predicated region
        $region53: #{encoder_decoder_pallas.1} parent=11 // pred_check
          %p1067 = pneg %p429
        $region54: #{encoder_decoder_pallas.1} parent=11 // pred_check_branch
          %1069 = sbr.rel (%p1067) target = $region56
        $region55: #{encoder_decoder_pallas.1} parent=11 // pred_region
          _
        $region56: #{encoder_decoder_pallas.1} parent=11 // pred_fallthru
          _
        // Predicated region
        $region57: #{encoder_decoder_pallas.1} parent=11 // pred_check
          %p1070 = pneg %p450
        $region58: #{encoder_decoder_pallas.1} parent=11 // pred_check_branch
          %1072 = sbr.rel (%p1070) target = $region60
        $region59: #{encoder_decoder_pallas.1} parent=11 // pred_region
          _
        $region60: #{encoder_decoder_pallas.1} parent=11 // pred_fallthru
          _
        // Predicated region
        $region61: #{encoder_decoder_pallas.1} parent=11 // pred_check
          %p1073 = pneg %p471
        $region62: #{encoder_decoder_pallas.1} parent=11 // pred_check_branch
          %1075 = sbr.rel (%p1073) target = $region64
        $region63: #{encoder_decoder_pallas.1} parent=11 // pred_region
          _
        $region64: #{encoder_decoder_pallas.1} parent=11 // pred_fallthru
          _
        // Predicated region
        $region65: #{encoder_decoder_pallas.1} parent=11 // pred_check
          %p1076 = pneg %p492
        $region66: #{encoder_decoder_pallas.1} parent=11 // pred_check_branch
          %1078 = sbr.rel (%p1076) target = $region68
        $region67: #{encoder_decoder_pallas.1} parent=11 // pred_region
          _
        $region68: #{encoder_decoder_pallas.1} parent=11 // pred_fallthru
          _
        // Predicated region
        $region69: #{encoder_decoder_pallas.1} parent=11 // pred_check
          %p1079 = pneg %p513
        $region70: #{encoder_decoder_pallas.1} parent=11 // pred_check_branch
          %1081 = sbr.rel (%p1079) target = $region72
        $region71: #{encoder_decoder_pallas.1} parent=11 // pred_region
          _
        $region72: #{encoder_decoder_pallas.1} parent=11 // pred_fallthru
          _
        // Predicated region
        $region73: #{encoder_decoder_pallas.1} parent=11 // pred_check
          %p1082 = pneg %p534
        $region74: #{encoder_decoder_pallas.1} parent=11 // pred_check_branch
          %1084 = sbr.rel (%p1082) target = $region76
        $region75: #{encoder_decoder_pallas.1} parent=11 // pred_region
          _
        $region76: #{encoder_decoder_pallas.1} parent=11 // pred_fallthru
          _
        // Predicated region
        $region77: #{encoder_decoder_pallas.1} parent=11 // pred_check
          %p1085 = pneg %p555
        $region78: #{encoder_decoder_pallas.1} parent=11 // pred_check_branch
          %1087 = sbr.rel (%p1085) target = $region80
        $region79: #{encoder_decoder_pallas.1} parent=11 // pred_region
          _
        $region80: #{encoder_decoder_pallas.1} parent=11 // pred_fallthru
          _
        // Predicated region
        $region81: #{encoder_decoder_pallas.1} parent=11 // pred_check
          %p1088 = pneg %p576
        $region82: #{encoder_decoder_pallas.1} parent=11 // pred_check_branch
          %1090 = sbr.rel (%p1088) target = $region84
        $region83: #{encoder_decoder_pallas.1} parent=11 // pred_region
          _
        $region84: #{encoder_decoder_pallas.1} parent=11 // pred_fallthru
          _
        // Predicated region
        $region85: #{encoder_decoder_pallas.1} parent=11 // pred_check
          %p1091 = pneg %p597
        $region86: #{encoder_decoder_pallas.1} parent=11 // pred_check_branch
          %1093 = sbr.rel (%p1091) target = $region88
        $region87: #{encoder_decoder_pallas.1} parent=11 // pred_region
          _
        $region88: #{encoder_decoder_pallas.1} parent=11 // pred_fallthru
          _
        // Predicated region
        $region89: #{encoder_decoder_pallas.1} parent=11 // pred_check
          %p1094 = pneg %p618
        $region90: #{encoder_decoder_pallas.1} parent=11 // pred_check_branch
          %1096 = sbr.rel (%p1094) target = $region92
        $region91: #{encoder_decoder_pallas.1} parent=11 // pred_region
          _
        $region92: #{encoder_decoder_pallas.1} parent=11 // pred_fallthru
          _
        // Predicated region
        $region93: #{encoder_decoder_pallas.1} parent=11 // pred_check
          %p1097 = pneg %p639
        $region94: #{encoder_decoder_pallas.1} parent=11 // pred_check_branch
          %1099 = sbr.rel (%p1097) target = $region96
        $region95: #{encoder_decoder_pallas.1} parent=11 // pred_region
          _
        $region96: #{encoder_decoder_pallas.1} parent=11 // pred_fallthru
          _
        // Predicated region
        $region97: #{encoder_decoder_pallas.1} parent=11 // pred_check
          %p1100 = pneg %p660
        $region98: #{encoder_decoder_pallas.1} parent=11 // pred_check_branch
          %1102 = sbr.rel (%p1100) target = $region100
        $region99: #{encoder_decoder_pallas.1} parent=11 // pred_region
          _
        $region100: #{encoder_decoder_pallas.1} parent=11 // pred_fallthru
          _
        // Predicated region
        $region101: #{encoder_decoder_pallas.1} parent=11 // pred_check
          %p1103 = pneg %p681
        $region102: #{encoder_decoder_pallas.1} parent=11 // pred_check_branch
          %1105 = sbr.rel (%p1103) target = $region104
        $region103: #{encoder_decoder_pallas.1} parent=11 // pred_region
          _
        $region104: #{encoder_decoder_pallas.1} parent=11 // pred_fallthru
          _
        // Predicated region
        $region105: #{encoder_decoder_pallas.1} parent=11 // pred_check
          %p1106 = pneg %p702
        $region106: #{encoder_decoder_pallas.1} parent=11 // pred_check_branch
          %1108 = sbr.rel (%p1106) target = $region108
        $region107: #{encoder_decoder_pallas.1} parent=11 // pred_region
          _
        $region108: #{encoder_decoder_pallas.1} parent=11 // pred_fallthru
          _
        // Predicated region
        $region109: #{encoder_decoder_pallas.1} parent=11 // pred_check
          %p1109 = pneg %p723
        $region110: #{encoder_decoder_pallas.1} parent=11 // pred_check_branch
          %1111 = sbr.rel (%p1109) target = $region112
        $region111: #{encoder_decoder_pallas.1} parent=11 // pred_region
          _
        $region112: #{encoder_decoder_pallas.1} parent=11 // pred_fallthru
          _
        // Predicated region
        $region113: #{encoder_decoder_pallas.1} parent=11 // pred_check
          %p1112 = pneg %p744
        $region114: #{encoder_decoder_pallas.1} parent=11 // pred_check_branch
          %1114 = sbr.rel (%p1112) target = $region116
        $region115: #{encoder_decoder_pallas.1} parent=11 // pred_region
          _
        $region116: #{encoder_decoder_pallas.1} parent=11 // pred_fallthru
          _
        // Predicated region
        $region117: #{encoder_decoder_pallas.1} parent=11 // pred_check
          %p1115 = pneg %p765
        $region118: #{encoder_decoder_pallas.1} parent=11 // pred_check_branch
          %1117 = sbr.rel (%p1115) target = $region120
        $region119: #{encoder_decoder_pallas.1} parent=11 // pred_region
          _
        $region120: #{encoder_decoder_pallas.1} parent=11 // pred_fallthru
          _
        // Predicated region
        $region121: #{encoder_decoder_pallas.1} parent=11 // pred_check
          %p1118 = pneg %p786
        $region122: #{encoder_decoder_pallas.1} parent=11 // pred_check_branch
          %1120 = sbr.rel (%p1118) target = $region124
        $region123: #{encoder_decoder_pallas.1} parent=11 // pred_region
          _
        $region124: #{encoder_decoder_pallas.1} parent=11 // pred_fallthru
          _
        // Predicated region
        $region125: #{encoder_decoder_pallas.1} parent=11 // pred_check
          %p1121 = pneg %p807
        $region126: #{encoder_decoder_pallas.1} parent=11 // pred_check_branch
          %1123 = sbr.rel (%p1121) target = $region128
        $region127: #{encoder_decoder_pallas.1} parent=11 // pred_region
          _
        $region128: #{encoder_decoder_pallas.1} parent=11 // pred_fallthru
          _
        // Predicated region
        $region129: #{encoder_decoder_pallas.1} parent=11 // pred_check
          %p1124 = pneg %p828
        $region130: #{encoder_decoder_pallas.1} parent=11 // pred_check_branch
          %1126 = sbr.rel (%p1124) target = $region132
        $region131: #{encoder_decoder_pallas.1} parent=11 // pred_region
          _
        $region132: #{encoder_decoder_pallas.1} parent=11 // pred_fallthru
          _
        // Predicated region
        $region133: #{encoder_decoder_pallas.1} parent=11 // pred_check
          %p1127 = pneg %p849
        $region134: #{encoder_decoder_pallas.1} parent=11 // pred_check_branch
          %1129 = sbr.rel (%p1127) target = $region136
        $region135: #{encoder_decoder_pallas.1} parent=11 // pred_region
          _
        $region136: #{encoder_decoder_pallas.1} parent=11 // pred_fallthru
          _
        // Predicated region
        $region137: #{encoder_decoder_pallas.1} parent=11 // pred_check
          %p1130 = pneg %p870
        $region138: #{encoder_decoder_pallas.1} parent=11 // pred_check_branch
          %1132 = sbr.rel (%p1130) target = $region140
        $region139: #{encoder_decoder_pallas.1} parent=11 // pred_region
          _
        $region140: #{encoder_decoder_pallas.1} parent=11 // pred_fallthru
          _
        // Predicated region
        $region141: #{encoder_decoder_pallas.1} parent=11 // pred_check
          %p1133 = pneg %p891
        $region142: #{encoder_decoder_pallas.1} parent=11 // pred_check_branch
          %1135 = sbr.rel (%p1133) target = $region144
        $region143: #{encoder_decoder_pallas.1} parent=11 // pred_region
          _
        $region144: #{encoder_decoder_pallas.1} parent=11 // pred_fallthru
          _
        // Predicated region
        $region145: #{encoder_decoder_pallas.1} parent=11 // pred_check
          %p1136 = pneg %p912
        $region146: #{encoder_decoder_pallas.1} parent=11 // pred_check_branch
          %1138 = sbr.rel (%p1136) target = $region148
        $region147: #{encoder_decoder_pallas.1} parent=11 // pred_region
          _
        $region148: #{encoder_decoder_pallas.1} parent=11 // pred_fallthru
          _
        // Predicated region
        $region149: #{encoder_decoder_pallas.1} parent=11 // pred_check
          %p1139 = pneg %p933
        $region150: #{encoder_decoder_pallas.1} parent=11 // pred_check_branch
          %1141 = sbr.rel (%p1139) target = $region152
        $region151: #{encoder_decoder_pallas.1} parent=11 // pred_region
          _
        $region152: #{encoder_decoder_pallas.1} parent=11 // pred_fallthru
          _
        // Predicated region
        $region153: #{encoder_decoder_pallas.1} parent=11 // pred_check
          %p1142 = pneg %p954
        $region154: #{encoder_decoder_pallas.1} parent=11 // pred_check_branch
          %1144 = sbr.rel (%p1142) target = $region156
        $region155: #{encoder_decoder_pallas.1} parent=11 // pred_region
          _
        $region156: #{encoder_decoder_pallas.1} parent=11 // pred_fallthru
          _
        // Predicated region
        $region157: #{encoder_decoder_pallas.1} parent=11 // pred_check
          %p1145 = pneg %p975
        $region158: #{encoder_decoder_pallas.1} parent=11 // pred_check_branch
          %1147 = sbr.rel (%p1145) target = $region160
        $region159: #{encoder_decoder_pallas.1} parent=11 // pred_region
          _
        $region160: #{encoder_decoder_pallas.1} parent=11 // pred_fallthru
          _
        // Predicated region
        $region161: #{encoder_decoder_pallas.1} parent=11 // pred_check
          %p1148 = pneg %p996
        $region162: #{encoder_decoder_pallas.1} parent=11 // pred_check_branch
          %1150 = sbr.rel (%p1148) target = $region164
        $region163: #{encoder_decoder_pallas.1} parent=11 // pred_region
          _
        $region164: #{encoder_decoder_pallas.1} parent=11 // pred_fallthru
          _
      $region12: #{encoder_decoder_pallas.1} parent=5 // pred_fallthru
        _
      %p1151 = scmp.lt.s32.totalorder %s94, 2
      // Predicated region
      $region165: #{encoder_decoder_pallas.1} parent=5 // pred_check
        %p1152 = pneg %p1151
      $region166: #{encoder_decoder_pallas.1} parent=5 // pred_check_branch
        %1154 = sbr.rel (%p1152) target = $region168
      $region167: #{encoder_decoder_pallas.1} parent=5 // pred_region
        // Predicated region
        $region169: #{encoder_decoder_pallas.1} parent=167 // pred_check
          %p1155 = pneg %p114
        $region170: #{encoder_decoder_pallas.1} parent=167 // pred_check_branch
          %1157 = sbr.rel (%p1155) target = $region172
        $region171: #{encoder_decoder_pallas.1} parent=167 // pred_region
          %p1158 = scmp.lt.s32.totalorder %s94, 1
          %s1159 = scalar_select %p1158, %s94, 1
          %s1160 = smul.addr %s1159, 8
          %s1161 = scalar_lea.vmem %s1, %s1160
        $region172: #{encoder_decoder_pallas.1} parent=167 // pred_fallthru
          _
        // Predicated region
        $region173: #{encoder_decoder_pallas.1} parent=167 // pred_check
          %p1162 = pneg %p140
        $region174: #{encoder_decoder_pallas.1} parent=167 // pred_check_branch
          %1164 = sbr.rel (%p1162) target = $region176
        $region175: #{encoder_decoder_pallas.1} parent=167 // pred_region
          %p1165 = scmp.lt.s32.totalorder %s94, 1
          %s1166 = scalar_select %p1165, %s94, 1
          %s1167 = smul.addr %s1166, 8
          %s1168 = scalar_lea.vmem %s3, %s1167
        $region176: #{encoder_decoder_pallas.1} parent=167 // pred_fallthru
          _
        // Predicated region
        $region177: #{encoder_decoder_pallas.1} parent=167 // pred_check
          %p1169 = pneg %p208
        $region178: #{encoder_decoder_pallas.1} parent=167 // pred_check_branch
          %1171 = sbr.rel (%p1169) target = $region180
        $region179: #{encoder_decoder_pallas.1} parent=167 // pred_region
          %p1172 = scmp.lt.s32.totalorder %s94, 1
          %s1173 = scalar_select %p1172, %s94, 1
          %s1174 = scalar_lea.vmem %s9, %s1173
        $region180: #{encoder_decoder_pallas.1} parent=167 // pred_fallthru
          _
        // Predicated region
        $region181: #{encoder_decoder_pallas.1} parent=167 // pred_check
          %p1175 = pneg %p234
        $region182: #{encoder_decoder_pallas.1} parent=167 // pred_check_branch
          %1177 = sbr.rel (%p1175) target = $region184
        $region183: #{encoder_decoder_pallas.1} parent=167 // pred_region
          %p1178 = scmp.lt.s32.totalorder %s94, 1
          %s1179 = scalar_select %p1178, %s94, 1
          %s1180 = scalar_lea.vmem %s11, %s1179
        $region184: #{encoder_decoder_pallas.1} parent=167 // pred_fallthru
          _
      $region168: #{encoder_decoder_pallas.1} parent=5 // pred_fallthru
        _
      %p1181 = scmp.le.s32.totalorder 1, %s94
      %p1182 = scmp.lt.s32.totalorder %s94, 3
      %p1183 = pnand %p1181, %p1182
      %p1184 = pneg %p1183
      // Predicated region
      $region185: #{encoder_decoder_pallas.1} parent=5 // pred_check
        _
      $region186: #{encoder_decoder_pallas.1} parent=5 // pred_check_branch
        %1186 = sbr.rel (%p1183) target = $region188
      $region187: #{encoder_decoder_pallas.1} parent=5 // pred_region
        %s1187 = ssub.s32 %s94, 1
        %p1188 = scmp.lt.s32.totalorder %s99, 1
        %s1189 = scalar_select %p1188, %s99, 1
        %s1190 = smul.addr %s1189, 8
        %s1191 = scalar_lea.vmem %s1, %s1190
        %p1192 = pneg %p120
        %p1193 = pneg %p117
        %p1194 = scmp.lt.s32.totalorder %s99, 1
        %s1195 = scalar_select %p1194, %s99, 1
        %s1196 = smul.addr %s1195, 8
        %s1197 = scalar_lea.vmem %s3, %s1196
        %p1198 = pneg %p146
        %p1199 = pneg %p143
        %p1200 = pneg %p167
        %p1201 = pneg %p164
        %p1202 = pneg %p188
        %p1203 = pneg %p185
        %p1204 = scmp.lt.s32.totalorder %s99, 1
        %s1205 = scalar_select %p1204, %s99, 1
        %s1206 = scalar_lea.vmem %s9, %s1205
        %p1207 = pneg %p214
        %p1208 = pneg %p211
        %p1209 = scmp.lt.s32.totalorder %s99, 1
        %s1210 = scalar_select %p1209, %s99, 1
        %s1211 = scalar_lea.vmem %s11, %s1210
        %p1212 = pneg %p240
        %p1213 = pneg %p237
        %p1214 = pneg %p261
        %p1215 = pneg %p258
        %p1216 = pneg %p282
        %p1217 = pneg %p279
        %p1218 = pneg %p303
        %p1219 = pneg %p300
        %p1220 = pneg %p324
        %p1221 = pneg %p321
        %p1222 = pneg %p345
        %p1223 = pneg %p342
        %p1224 = pneg %p366
        %p1225 = pneg %p363
        %p1226 = pneg %p387
        %p1227 = pneg %p384
        %p1228 = pneg %p408
        %p1229 = pneg %p405
        %p1230 = pneg %p429
        %p1231 = pneg %p426
        %p1232 = pneg %p450
        %p1233 = pneg %p447
        %p1234 = pneg %p471
        %p1235 = pneg %p468
        %p1236 = pneg %p492
        %p1237 = pneg %p489
        %p1238 = pneg %p513
        %p1239 = pneg %p510
        %p1240 = pneg %p534
        %p1241 = pneg %p531
        %p1242 = pneg %p555
        %p1243 = pneg %p552
        %p1244 = pneg %p576
        %p1245 = pneg %p573
        %p1246 = pneg %p597
        %p1247 = pneg %p594
        %p1248 = pneg %p618
        %p1249 = pneg %p615
        %p1250 = pneg %p639
        %p1251 = pneg %p636
        %p1252 = pneg %p660
        %p1253 = pneg %p657
        %p1254 = pneg %p681
        %p1255 = pneg %p678
        %p1256 = pneg %p702
        %p1257 = pneg %p699
        %p1258 = pneg %p723
        %p1259 = pneg %p720
        %p1260 = pneg %p744
        %p1261 = pneg %p741
        %p1262 = pneg %p765
        %p1263 = pneg %p762
        %p1264 = pneg %p786
        %p1265 = pneg %p783
        %p1266 = pneg %p807
        %p1267 = pneg %p804
        %p1268 = pneg %p828
        %p1269 = pneg %p825
        %p1270 = pneg %p849
        %p1271 = pneg %p846
        %p1272 = pneg %p870
        %p1273 = pneg %p867
        %p1274 = pneg %p891
        %p1275 = pneg %p888
        %p1276 = pneg %p912
        %p1277 = pneg %p909
        %p1278 = pneg %p933
        %p1279 = pneg %p930
        %p1280 = pneg %p954
        %p1281 = pneg %p951
        %p1282 = pneg %p975
        %p1283 = pneg %p972
        %p1284 = pneg %p996
        %p1285 = pneg %p993
        %p1286 = pneg %p1022
        %p1287 = pneg %p1019
        %s1288 = sand.u32 %s1009, 1
        %s1289 = scalar_lea.sflag [#allocation3], %s1288
        %s1290 = sand.u32 %s1009, 1
        %s1291 = smul.addr %s1290, 8
        %s1292 = scalar_lea.vmem [#allocation2], %s1291
        %p1293 = scmp.lt.s32.totalorder %s99, 1
        %s1294 = scalar_select %p1293, %s99, 1
        %s1295 = smul.addr %s1294, 8
        %s1296 = scalar_lea.vmem %s1, %s1295
        %p1297 = scmp.lt.s32.totalorder %s99, 1
        %s1298 = scalar_select %p1297, %s99, 1
        %s1299 = smul.addr %s1298, 8
        %s1300 = scalar_lea.vmem %s3, %s1299
        %p1301 = scmp.lt.s32.totalorder %s99, 1
        %s1302 = scalar_select %p1301, %s99, 1
        %s1303 = scalar_lea.vmem %s9, %s1302
        %p1304 = scmp.lt.s32.totalorder %s99, 1
        %s1305 = scalar_select %p1304, %s99, 1
        %s1306 = scalar_lea.vmem %s11, %s1305
        %v1307 = vld [vmem:[%s1303] sm:$0x1]
        %vm1308 = vcmp.gt.f32.partialorder %v1307, 0.0
        %v1309 = vld [vmem:[%s1306] sm:$0x1]
        %vm1310 = vcmp.gt.f32.partialorder %v1309, 0.0
        %v1311 = vld [vmem:[%s1296] sm:$0xff]
        %v1312 = vld [vmem:[%s1300] sm:$0xff]
        %v1313 = vld [vmem:[%s5] sm:$0xff]
        %v1314 = vld [vmem:[%s7] sm:$0xff]
        %v1315 = vmul.f32 %v1311, 5.656854
        %v1316 = vadd.f32 %v1315, %v1313
        %v1317 = vld [vmem:[%s67] sm:$0x1]
        %v1318 = vld [vmem:[%s65] sm:$0x1]
        %vm1319 = vcmask 261120
        %v1320 = vsel %vm1319, %v1316, 0.0
        %1321 = vadd.xlane.f32.xlu0 %v1320
        %v1322 = vpop.xlane.xlu0 %1321
        %v1323 = vrcp.pop 32.0
        %v1324 = vmul.f32 %v1322, %v1323
        %v1325 = vsub.f32 %v1316, %v1324
        %v1326 = vmul.f32 %v1325, %v1325
        %v1327 = vsel %vm1319, %v1326, 0.0
        %1328 = vadd.xlane.f32.xlu0 %v1327
        %v1329 = vpop.xlane.xlu0 %1328
        %v1330 = vrcp.pop 31.0
        %v1331 = vmul.f32 %v1329, %v1330
        %v1333 = vlaneseq
        %v1334 = vshrl.u32 %v1333, 7
        %v1335 = vsub.s32 0, %v1334
        %v1336 = vrot.slane %v1317, %v1335
        %v1338 = vmul.f32 %v1336, %v1325
        %v1339 = vrsqrt.pop %v1331
        %v1340 = vmul.f32 %v1331, %v1339
        %vm1341 = vcmp.eq.f32.partialorder %v1331, inf
        %v1342 = vsel %vm1341, %v1331, %v1340
        %vm1343 = vcmp.eq.f32.partialorder %v1331, 0.0
        %v1344 = vand.u32 %v1331, 2147483648
        %v1345 = vsel %vm1343, %v1344, %v1342
        %v1346 = vadd.f32 %v1345, 1e-06
        %v1347 = vrcp.pop %v1346
        %v1348 = vmul.f32 %v1338, %v1347
        %v1350 = vlaneseq
        %v1351 = vshrl.u32 %v1350, 7
        %v1352 = vsub.s32 0, %v1351
        %v1353 = vrot.slane %v1318, %v1352
        %v1355 = vadd.f32 %v1348, %v1353
        %v1356 = vld [vmem:[%s83] sm:$0xff]
        %v1357 = vld [vmem:[%s83 + $0x8] sm:$0xff]
        %v1358 = vld [vmem:[%s83 + $0x10] sm:$0xff]
        %v1359 = vld [vmem:[%s83 + $0x18] sm:$0xff]
        %v1360 = vld [vmem:[%s81] sm:$0x1]
        %v1361 = vld [vmem:[%s79] sm:$0xff]
        %v1362 = vld [vmem:[%s79 + $0x8] sm:$0xff]
        %v1363 = vld [vmem:[%s79 + $0x10] sm:$0xff]
        %v1364 = vld [vmem:[%s79 + $0x18] sm:$0xff]
        %v1365 = vld [vmem:[%s77] sm:$0x1]
        %v1367 = vlaneseq
        %v1368 = vshrl.u32 %v1367, 7
        %v1369 = vsub.s32 0, %v1368
        %v1370 = vrot.slane %v1360, %v1369
        %v1373 = vsel %vm1319, %v1355, 0
        %1375 = vmatprep.subr.mxu0 0.0
        %1376 = vmatpush1.msra.mxu0 0.0
        %1377 = vmatprep.subr.mxu0 0.0
        %1378 = vmatpush1.msra.mxu0 0.0
        %1379 = vmatprep.subr.mxu0 0.0
        %1380 = vmatpush1.msra.mxu0 0.0
        %1381 = vmatprep.subr.mxu0 0.0
        %1382 = vmatpush1.msra.mxu0 0.0
        %1383 = vmatprep.subr.mxu0 0.0
        %1384 = vmatpush1.msra.mxu0 0.0
        %1385 = vmatprep.subr.mxu0 0.0
        %1386 = vmatpush1.msra.mxu0 0.0
        %1387 = vmatprep.subr.mxu0 0.0
        %1388 = vmatpush1.msra.mxu0 0.0
        %1389 = vmatprep.subr.mxu0 0.0
        %1390 = vmatpush1.msra.mxu0 0.0
        %1391 = vmatprep.subr.mxu0 0.0
        %1392 = vmatpush1.msra.mxu0 0.0
        %1393 = vmatprep.subr.mxu0 0.0
        %1394 = vmatpush1.msra.mxu0 0.0
        %1395 = vmatprep.subr.mxu0 0.0
        %1396 = vmatpush1.msra.mxu0 0.0
        %1397 = vmatprep.subr.mxu0 0.0
        %1398 = vmatpush1.msra.mxu0 0.0
        %1399 = vmatprep.subr.mxu0 0.0
        %1400 = vmatpush1.msra.mxu0 %v1359
        %1401 = vmatprep.subr.mxu0 0.0
        %1402 = vmatpush1.msra.mxu0 %v1358
        %1403 = vmatprep.subr.mxu0 0.0
        %1404 = vmatpush1.msra.mxu0 %v1357
        %1405 = vmatprep.subr.mxu0 0.0
        %1406 = vmatpush1.msra.mxu0 %v1356
        %1407 = vmatprep.subr.mxu0 0.0
        %1408 = vmatpush2.msra.mxu0 0.0
        %1409 = vmatprep.subr.mxu0 0.0
        %1410 = vmatpush2.msra.mxu0 0.0
        %1411 = vmatprep.subr.mxu0 0.0
        %1412 = vmatpush2.msra.mxu0 0.0
        %1413 = vmatprep.subr.mxu0 0.0
        %1414 = vmatpush2.msra.mxu0 0.0
        %1415 = vmatprep.subr.mxu0 0.0
        %1416 = vmatpush2.msra.mxu0 0.0
        %1417 = vmatprep.subr.mxu0 0.0
        %1418 = vmatpush2.msra.mxu0 0.0
        %1419 = vmatprep.subr.mxu0 0.0
        %1420 = vmatpush2.msra.mxu0 0.0
        %1421 = vmatprep.subr.mxu0 0.0
        %1422 = vmatpush2.msra.mxu0 0.0
        %1423 = vmatprep.subr.mxu0 0.0
        %1424 = vmatpush2.msra.mxu0 0.0
        %1425 = vmatprep.subr.mxu0 0.0
        %1426 = vmatpush2.msra.mxu0 0.0
        %1427 = vmatprep.subr.mxu0 0.0
        %1428 = vmatpush2.msra.mxu0 0.0
        %1429 = vmatprep.subr.mxu0 0.0
        %1430 = vmatpush2.msra.mxu0 0.0
        %1431 = vmatprep.subr.mxu0 0.0
        %1432 = vmatpush2.msra.mxu0 0.0
        %1433 = vmatprep.subr.mxu0 0.0
        %1434 = vmatpush2.msra.mxu0 0.0
        %1435 = vmatprep.subr.mxu0 0.0
        %1436 = vmatpush2.msra.mxu0 0.0
        %1437 = vmatprep.subr.mxu0 0.0
        %1438 = vmatpush2.msra.mxu0 0.0
        %1439 = vmatprep.mubr.f32.mxu0 0.0
        %1440 = vmatmul.mubr.f32.gmra.mxu0 %v1373
        %v1441 = vpop.f32.mrf.mxu0
        %v1442 = vadd.f32 %v1370, %v1441
        %v1443 = vpop.f32.mrf.mxu0
        %1444 = vdwg.mxu0
        %1446 = vrot.lane.b32.xlu0 %v1442, 96
        %v1447 = vpop.permute.xlu0 %1446
        %vm1448 = vcmask 64512
        %v1449 = vsel %vm1448, %v1442, 0
        %v1451 = vsel %vm1448, %v1447, 0
        %1453 = vmatprep.subr.mxu0 0.0
        %1454 = vmatpush1.xpose.msra.mxu0 0.0
        %1455 = vmatprep.subr.mxu0 0.0
        %1456 = vmatpush1.xpose.msra.mxu0 0.0
        %1457 = vmatprep.subr.mxu0 0.0
        %1458 = vmatpush1.xpose.msra.mxu0 0.0
        %1459 = vmatprep.subr.mxu0 0.0
        %1460 = vmatpush1.xpose.msra.mxu0 0.0
        %1461 = vmatprep.subr.mxu0 0.0
        %1462 = vmatpush1.xpose.msra.mxu0 0.0
        %1463 = vmatprep.subr.mxu0 0.0
        %1464 = vmatpush1.xpose.msra.mxu0 0.0
        %1465 = vmatprep.subr.mxu0 0.0
        %1466 = vmatpush1.xpose.msra.mxu0 0.0
        %1467 = vmatprep.subr.mxu0 0.0
        %1468 = vmatpush1.xpose.msra.mxu0 0.0
        %1469 = vmatprep.subr.mxu0 0.0
        %1470 = vmatpush1.xpose.msra.mxu0 0.0
        %1471 = vmatprep.subr.mxu0 0.0
        %1472 = vmatpush1.xpose.msra.mxu0 0.0
        %1473 = vmatprep.subr.mxu0 0.0
        %1474 = vmatpush1.xpose.msra.mxu0 0.0
        %1475 = vmatprep.subr.mxu0 0.0
        %1476 = vmatpush1.xpose.msra.mxu0 0.0
        %1477 = vmatprep.subr.mxu0 0.0
        %1478 = vmatpush1.xpose.msra.mxu0 0.0
        %1479 = vmatprep.subr.mxu0 0.0
        %1480 = vmatpush1.xpose.msra.mxu0 0.0
        %1481 = vmatprep.subr.mxu0 0.0
        %1482 = vmatpush1.xpose.msra.mxu0 0.0
        %1483 = vmatprep.subr.mxu0 0.0
        %1484 = vmatpush1.xpose.msra.mxu0 %v1451
        %1485 = vmatprep.subr.mxu0 0.0
        %1486 = vmatpush2.xpose.msra.mxu0 0.0
        %1487 = vmatprep.subr.mxu0 0.0
        %1488 = vmatpush2.xpose.msra.mxu0 0.0
        %1489 = vmatprep.subr.mxu0 0.0
        %1490 = vmatpush2.xpose.msra.mxu0 0.0
        %1491 = vmatprep.subr.mxu0 0.0
        %1492 = vmatpush2.xpose.msra.mxu0 0.0
        %1493 = vmatprep.subr.mxu0 0.0
        %1494 = vmatpush2.xpose.msra.mxu0 0.0
        %1495 = vmatprep.subr.mxu0 0.0
        %1496 = vmatpush2.xpose.msra.mxu0 0.0
        %1497 = vmatprep.subr.mxu0 0.0
        %1498 = vmatpush2.xpose.msra.mxu0 0.0
        %1499 = vmatprep.subr.mxu0 0.0
        %1500 = vmatpush2.xpose.msra.mxu0 0.0
        %1501 = vmatprep.subr.mxu0 0.0
        %1502 = vmatpush2.xpose.msra.mxu0 0.0
        %1503 = vmatprep.subr.mxu0 0.0
        %1504 = vmatpush2.xpose.msra.mxu0 0.0
        %1505 = vmatprep.subr.mxu0 0.0
        %1506 = vmatpush2.xpose.msra.mxu0 0.0
        %1507 = vmatprep.subr.mxu0 0.0
        %1508 = vmatpush2.xpose.msra.mxu0 0.0
        %1509 = vmatprep.subr.mxu0 0.0
        %1510 = vmatpush2.xpose.msra.mxu0 0.0
        %1511 = vmatprep.subr.mxu0 0.0
        %1512 = vmatpush2.xpose.msra.mxu0 0.0
        %1513 = vmatprep.subr.mxu0 0.0
        %1514 = vmatpush2.xpose.msra.mxu0 0.0
        %1515 = vmatprep.subr.mxu0 0.0
        %1516 = vmatpush2.xpose.msra.mxu0 0.0
        %1517 = vmatprep.mubr.f32.mxu0 0.0
        %1518 = vmatmul.mubr.f32.gmra.mxu0 %v1449
        %v1519 = vpop.f32.mrf.mxu0
        %v1520 = vadd.f32 0.0, %v1519
        %v1521 = vpop.f32.mrf.mxu0
        %1522 = vdwg.mxu0
        %v1523 = vmul.f32 %v1520, 0.35355338
        %v1524 = vsel %vm1308, 1, 0
        %v1525 = vlaneseq
        %v1526 = vshrl.u32 %v1525, 7
        %v1527 = vsub.s32 0, %v1526
        %v1528 = vrot.slane %v1524, %v1527
        %vm1529 = vcmp.eq.s32.totalorder %v1528, 1
        %v1530 = vsel %vm1529, %v1523, -1e+09
        %v1531 = vsel %vm1448, %v1530, -inf
        %1532 = vmax.xlane.f32.xlu0 %v1531
        %v1533 = vpop.xlane.xlu0 %1532
        %v1534 = vsub.f32 %v1530, %v1533
        %v1535 = vmul.f32 %v1534, 1.442695
        %v1536 = vpow.pop %v1535
        %v1537 = vsel %vm1448, %v1536, 0.0
        %1538 = vadd.xlane.f32.xlu0 %v1537
        %v1539 = vpop.xlane.xlu0 %1538
        %v1540 = vrcp.pop %v1539
        %v1541 = vmul.f32 %v1536, %v1540
        %1542 = vrot.lane.b32.xlu0 %v1442, 64
        %v1543 = vpop.permute.xlu0 %1542
        %v1546 = vsel %vm1448, %v1541, 0
        %1548 = vmatprep.subr.mxu0 0.0
        %1549 = vmatpush1.msra.mxu0 0.0
        %1550 = vmatprep.subr.mxu0 0.0
        %1551 = vmatpush1.msra.mxu0 0.0
        %1552 = vmatprep.subr.mxu0 0.0
        %1553 = vmatpush1.msra.mxu0 0.0
        %1554 = vmatprep.subr.mxu0 0.0
        %1555 = vmatpush1.msra.mxu0 0.0
        %1556 = vmatprep.subr.mxu0 0.0
        %1557 = vmatpush1.msra.mxu0 0.0
        %1558 = vmatprep.subr.mxu0 0.0
        %1559 = vmatpush1.msra.mxu0 0.0
        %1560 = vmatprep.subr.mxu0 0.0
        %1561 = vmatpush1.msra.mxu0 0.0
        %1562 = vmatprep.subr.mxu0 0.0
        %1563 = vmatpush1.msra.mxu0 0.0
        %1564 = vmatprep.subr.mxu0 0.0
        %1565 = vmatpush1.msra.mxu0 0.0
        %1566 = vmatprep.subr.mxu0 0.0
        %1567 = vmatpush1.msra.mxu0 0.0
        %1568 = vmatprep.subr.mxu0 0.0
        %1569 = vmatpush1.msra.mxu0 0.0
        %1570 = vmatprep.subr.mxu0 0.0
        %1571 = vmatpush1.msra.mxu0 0.0
        %1572 = vmatprep.subr.mxu0 0.0
        %1573 = vmatpush1.msra.mxu0 0.0
        %1574 = vmatprep.subr.mxu0 0.0
        %1575 = vmatpush1.msra.mxu0 0.0
        %1576 = vmatprep.subr.mxu0 0.0
        %1577 = vmatpush1.msra.mxu0 0.0
        %1578 = vmatprep.subr.mxu0 0.0
        %1579 = vmatpush1.msra.mxu0 %v1543
        %1580 = vmatprep.subr.mxu0 0.0
        %1581 = vmatpush2.msra.mxu0 0.0
        %1582 = vmatprep.subr.mxu0 0.0
        %1583 = vmatpush2.msra.mxu0 0.0
        %1584 = vmatprep.subr.mxu0 0.0
        %1585 = vmatpush2.msra.mxu0 0.0
        %1586 = vmatprep.subr.mxu0 0.0
        %1587 = vmatpush2.msra.mxu0 0.0
        %1588 = vmatprep.subr.mxu0 0.0
        %1589 = vmatpush2.msra.mxu0 0.0
        %1590 = vmatprep.subr.mxu0 0.0
        %1591 = vmatpush2.msra.mxu0 0.0
        %1592 = vmatprep.subr.mxu0 0.0
        %1593 = vmatpush2.msra.mxu0 0.0
        %1594 = vmatprep.subr.mxu0 0.0
        %1595 = vmatpush2.msra.mxu0 0.0
        %1596 = vmatprep.subr.mxu0 0.0
        %1597 = vmatpush2.msra.mxu0 0.0
        %1598 = vmatprep.subr.mxu0 0.0
        %1599 = vmatpush2.msra.mxu0 0.0
        %1600 = vmatprep.subr.mxu0 0.0
        %1601 = vmatpush2.msra.mxu0 0.0
        %1602 = vmatprep.subr.mxu0 0.0
        %1603 = vmatpush2.msra.mxu0 0.0
        %1604 = vmatprep.subr.mxu0 0.0
        %1605 = vmatpush2.msra.mxu0 0.0
        %1606 = vmatprep.subr.mxu0 0.0
        %1607 = vmatpush2.msra.mxu0 0.0
        %1608 = vmatprep.subr.mxu0 0.0
        %1609 = vmatpush2.msra.mxu0 0.0
        %1610 = vmatprep.subr.mxu0 0.0
        %1611 = vmatpush2.msra.mxu0 0.0
        %1612 = vmatprep.mubr.f32.mxu0 0.0
        %1613 = vmatmul.mubr.f32.gmra.mxu0 %v1546
        %v1614 = vpop.f32.mrf.mxu0
        %v1615 = vadd.f32 0.0, %v1614
        %v1616 = vpop.f32.mrf.mxu0
        %1617 = vdwg.mxu0
        %1618 = vrot.lane.b32.xlu0 %v1442, 120
        %v1619 = vpop.permute.xlu0 %1618
        %1620 = vrot.lane.b32.xlu0 %v1442, 88
        %v1621 = vpop.permute.xlu0 %1620
        %v1622 = vsel %vm1448, %v1619, 0
        %v1624 = vsel %vm1448, %v1621, 0
        %1626 = vmatprep.subr.mxu0 0.0
        %1627 = vmatpush1.xpose.msra.mxu0 0.0
        %1628 = vmatprep.subr.mxu0 0.0
        %1629 = vmatpush1.xpose.msra.mxu0 0.0
        %1630 = vmatprep.subr.mxu0 0.0
        %1631 = vmatpush1.xpose.msra.mxu0 0.0
        %1632 = vmatprep.subr.mxu0 0.0
        %1633 = vmatpush1.xpose.msra.mxu0 0.0
        %1634 = vmatprep.subr.mxu0 0.0
        %1635 = vmatpush1.xpose.msra.mxu0 0.0
        %1636 = vmatprep.subr.mxu0 0.0
        %1637 = vmatpush1.xpose.msra.mxu0 0.0
        %1638 = vmatprep.subr.mxu0 0.0
        %1639 = vmatpush1.xpose.msra.mxu0 0.0
        %1640 = vmatprep.subr.mxu0 0.0
        %1641 = vmatpush1.xpose.msra.mxu0 0.0
        %1642 = vmatprep.subr.mxu0 0.0
        %1643 = vmatpush1.xpose.msra.mxu0 0.0
        %1644 = vmatprep.subr.mxu0 0.0
        %1645 = vmatpush1.xpose.msra.mxu0 0.0
        %1646 = vmatprep.subr.mxu0 0.0
        %1647 = vmatpush1.xpose.msra.mxu0 0.0
        %1648 = vmatprep.subr.mxu0 0.0
        %1649 = vmatpush1.xpose.msra.mxu0 0.0
        %1650 = vmatprep.subr.mxu0 0.0
        %1651 = vmatpush1.xpose.msra.mxu0 0.0
        %1652 = vmatprep.subr.mxu0 0.0
        %1653 = vmatpush1.xpose.msra.mxu0 0.0
        %1654 = vmatprep.subr.mxu0 0.0
        %1655 = vmatpush1.xpose.msra.mxu0 0.0
        %1656 = vmatprep.subr.mxu0 0.0
        %1657 = vmatpush1.xpose.msra.mxu0 %v1624
        %1658 = vmatprep.subr.mxu0 0.0
        %1659 = vmatpush2.xpose.msra.mxu0 0.0
        %1660 = vmatprep.subr.mxu0 0.0
        %1661 = vmatpush2.xpose.msra.mxu0 0.0
        %1662 = vmatprep.subr.mxu0 0.0
        %1663 = vmatpush2.xpose.msra.mxu0 0.0
        %1664 = vmatprep.subr.mxu0 0.0
        %1665 = vmatpush2.xpose.msra.mxu0 0.0
        %1666 = vmatprep.subr.mxu0 0.0
        %1667 = vmatpush2.xpose.msra.mxu0 0.0
        %1668 = vmatprep.subr.mxu0 0.0
        %1669 = vmatpush2.xpose.msra.mxu0 0.0
        %1670 = vmatprep.subr.mxu0 0.0
        %1671 = vmatpush2.xpose.msra.mxu0 0.0
        %1672 = vmatprep.subr.mxu0 0.0
        %1673 = vmatpush2.xpose.msra.mxu0 0.0
        %1674 = vmatprep.subr.mxu0 0.0
        %1675 = vmatpush2.xpose.msra.mxu0 0.0
        %1676 = vmatprep.subr.mxu0 0.0
        %1677 = vmatpush2.xpose.msra.mxu0 0.0
        %1678 = vmatprep.subr.mxu0 0.0
        %1679 = vmatpush2.xpose.msra.mxu0 0.0
        %1680 = vmatprep.subr.mxu0 0.0
        %1681 = vmatpush2.xpose.msra.mxu0 0.0
        %1682 = vmatprep.subr.mxu0 0.0
        %1683 = vmatpush2.xpose.msra.mxu0 0.0
        %1684 = vmatprep.subr.mxu0 0.0
        %1685 = vmatpush2.xpose.msra.mxu0 0.0
        %1686 = vmatprep.subr.mxu0 0.0
        %1687 = vmatpush2.xpose.msra.mxu0 0.0
        %1688 = vmatprep.subr.mxu0 0.0
        %1689 = vmatpush2.xpose.msra.mxu0 0.0
        %1690 = vmatprep.mubr.f32.mxu0 0.0
        %1691 = vmatmul.mubr.f32.gmra.mxu0 %v1622
        %v1692 = vpop.f32.mrf.mxu0
        %v1693 = vadd.f32 0.0, %v1692
        %v1694 = vpop.f32.mrf.mxu0
        %1695 = vdwg.mxu0
        %v1696 = vmul.f32 %v1693, 0.35355338
        %v1697 = vsel %vm1529, %v1696, -1e+09
        %v1698 = vsel %vm1448, %v1697, -inf
        %1699 = vmax.xlane.f32.xlu0 %v1698
        %v1700 = vpop.xlane.xlu0 %1699
        %v1701 = vsub.f32 %v1697, %v1700
        %v1702 = vmul.f32 %v1701, 1.442695
        %v1703 = vpow.pop %v1702
        %v1704 = vsel %vm1448, %v1703, 0.0
        %1705 = vadd.xlane.f32.xlu0 %v1704
        %v1706 = vpop.xlane.xlu0 %1705
        %v1707 = vrcp.pop %v1706
        %v1708 = vmul.f32 %v1703, %v1707
        %1709 = vrot.lane.b32.xlu0 %v1442, 56
        %v1710 = vpop.permute.xlu0 %1709
        %v1713 = vsel %vm1448, %v1708, 0
        %1715 = vmatprep.subr.mxu0 0.0
        %1716 = vmatpush1.msra.mxu0 0.0
        %1717 = vmatprep.subr.mxu0 0.0
        %1718 = vmatpush1.msra.mxu0 0.0
        %1719 = vmatprep.subr.mxu0 0.0
        %1720 = vmatpush1.msra.mxu0 0.0
        %1721 = vmatprep.subr.mxu0 0.0
        %1722 = vmatpush1.msra.mxu0 0.0
        %1723 = vmatprep.subr.mxu0 0.0
        %1724 = vmatpush1.msra.mxu0 0.0
        %1725 = vmatprep.subr.mxu0 0.0
        %1726 = vmatpush1.msra.mxu0 0.0
        %1727 = vmatprep.subr.mxu0 0.0
        %1728 = vmatpush1.msra.mxu0 0.0
        %1729 = vmatprep.subr.mxu0 0.0
        %1730 = vmatpush1.msra.mxu0 0.0
        %1731 = vmatprep.subr.mxu0 0.0
        %1732 = vmatpush1.msra.mxu0 0.0
        %1733 = vmatprep.subr.mxu0 0.0
        %1734 = vmatpush1.msra.mxu0 0.0
        %1735 = vmatprep.subr.mxu0 0.0
        %1736 = vmatpush1.msra.mxu0 0.0
        %1737 = vmatprep.subr.mxu0 0.0
        %1738 = vmatpush1.msra.mxu0 0.0
        %1739 = vmatprep.subr.mxu0 0.0
        %1740 = vmatpush1.msra.mxu0 0.0
        %1741 = vmatprep.subr.mxu0 0.0
        %1742 = vmatpush1.msra.mxu0 0.0
        %1743 = vmatprep.subr.mxu0 0.0
        %1744 = vmatpush1.msra.mxu0 0.0
        %1745 = vmatprep.subr.mxu0 0.0
        %1746 = vmatpush1.msra.mxu0 %v1710
        %1747 = vmatprep.subr.mxu0 0.0
        %1748 = vmatpush2.msra.mxu0 0.0
        %1749 = vmatprep.subr.mxu0 0.0
        %1750 = vmatpush2.msra.mxu0 0.0
        %1751 = vmatprep.subr.mxu0 0.0
        %1752 = vmatpush2.msra.mxu0 0.0
        %1753 = vmatprep.subr.mxu0 0.0
        %1754 = vmatpush2.msra.mxu0 0.0
        %1755 = vmatprep.subr.mxu0 0.0
        %1756 = vmatpush2.msra.mxu0 0.0
        %1757 = vmatprep.subr.mxu0 0.0
        %1758 = vmatpush2.msra.mxu0 0.0
        %1759 = vmatprep.subr.mxu0 0.0
        %1760 = vmatpush2.msra.mxu0 0.0
        %1761 = vmatprep.subr.mxu0 0.0
        %1762 = vmatpush2.msra.mxu0 0.0
        %1763 = vmatprep.subr.mxu0 0.0
        %1764 = vmatpush2.msra.mxu0 0.0
        %1765 = vmatprep.subr.mxu0 0.0
        %1766 = vmatpush2.msra.mxu0 0.0
        %1767 = vmatprep.subr.mxu0 0.0
        %1768 = vmatpush2.msra.mxu0 0.0
        %1769 = vmatprep.subr.mxu0 0.0
        %1770 = vmatpush2.msra.mxu0 0.0
        %1771 = vmatprep.subr.mxu0 0.0
        %1772 = vmatpush2.msra.mxu0 0.0
        %1773 = vmatprep.subr.mxu0 0.0
        %1774 = vmatpush2.msra.mxu0 0.0
        %1775 = vmatprep.subr.mxu0 0.0
        %1776 = vmatpush2.msra.mxu0 0.0
        %1777 = vmatprep.subr.mxu0 0.0
        %1778 = vmatpush2.msra.mxu0 0.0
        %1779 = vmatprep.mubr.f32.mxu0 0.0
        %1780 = vmatmul.mubr.f32.gmra.mxu0 %v1713
        %v1781 = vpop.f32.mrf.mxu0
        %v1782 = vadd.f32 0.0, %v1781
        %v1783 = vpop.f32.mrf.mxu0
        %1784 = vdwg.mxu0
        %1785 = vrot.lane.b32.xlu0 %v1442, 112
        %v1786 = vpop.permute.xlu0 %1785
        %1787 = vrot.lane.b32.xlu0 %v1442, 80
        %v1788 = vpop.permute.xlu0 %1787
        %v1789 = vsel %vm1448, %v1786, 0
        %v1791 = vsel %vm1448, %v1788, 0
        %1793 = vmatprep.subr.mxu0 0.0
        %1794 = vmatpush1.xpose.msra.mxu0 0.0
        %1795 = vmatprep.subr.mxu0 0.0
        %1796 = vmatpush1.xpose.msra.mxu0 0.0
        %1797 = vmatprep.subr.mxu0 0.0
        %1798 = vmatpush1.xpose.msra.mxu0 0.0
        %1799 = vmatprep.subr.mxu0 0.0
        %1800 = vmatpush1.xpose.msra.mxu0 0.0
        %1801 = vmatprep.subr.mxu0 0.0
        %1802 = vmatpush1.xpose.msra.mxu0 0.0
        %1803 = vmatprep.subr.mxu0 0.0
        %1804 = vmatpush1.xpose.msra.mxu0 0.0
        %1805 = vmatprep.subr.mxu0 0.0
        %1806 = vmatpush1.xpose.msra.mxu0 0.0
        %1807 = vmatprep.subr.mxu0 0.0
        %1808 = vmatpush1.xpose.msra.mxu0 0.0
        %1809 = vmatprep.subr.mxu0 0.0
        %1810 = vmatpush1.xpose.msra.mxu0 0.0
        %1811 = vmatprep.subr.mxu0 0.0
        %1812 = vmatpush1.xpose.msra.mxu0 0.0
        %1813 = vmatprep.subr.mxu0 0.0
        %1814 = vmatpush1.xpose.msra.mxu0 0.0
        %1815 = vmatprep.subr.mxu0 0.0
        %1816 = vmatpush1.xpose.msra.mxu0 0.0
        %1817 = vmatprep.subr.mxu0 0.0
        %1818 = vmatpush1.xpose.msra.mxu0 0.0
        %1819 = vmatprep.subr.mxu0 0.0
        %1820 = vmatpush1.xpose.msra.mxu0 0.0
        %1821 = vmatprep.subr.mxu0 0.0
        %1822 = vmatpush1.xpose.msra.mxu0 0.0
        %1823 = vmatprep.subr.mxu0 0.0
        %1824 = vmatpush1.xpose.msra.mxu0 %v1791
        %1825 = vmatprep.subr.mxu0 0.0
        %1826 = vmatpush2.xpose.msra.mxu0 0.0
        %1827 = vmatprep.subr.mxu0 0.0
        %1828 = vmatpush2.xpose.msra.mxu0 0.0
        %1829 = vmatprep.subr.mxu0 0.0
        %1830 = vmatpush2.xpose.msra.mxu0 0.0
        %1831 = vmatprep.subr.mxu0 0.0
        %1832 = vmatpush2.xpose.msra.mxu0 0.0
        %1833 = vmatprep.subr.mxu0 0.0
        %1834 = vmatpush2.xpose.msra.mxu0 0.0
        %1835 = vmatprep.subr.mxu0 0.0
        %1836 = vmatpush2.xpose.msra.mxu0 0.0
        %1837 = vmatprep.subr.mxu0 0.0
        %1838 = vmatpush2.xpose.msra.mxu0 0.0
        %1839 = vmatprep.subr.mxu0 0.0
        %1840 = vmatpush2.xpose.msra.mxu0 0.0
        %1841 = vmatprep.subr.mxu0 0.0
        %1842 = vmatpush2.xpose.msra.mxu0 0.0
        %1843 = vmatprep.subr.mxu0 0.0
        %1844 = vmatpush2.xpose.msra.mxu0 0.0
        %1845 = vmatprep.subr.mxu0 0.0
        %1846 = vmatpush2.xpose.msra.mxu0 0.0
        %1847 = vmatprep.subr.mxu0 0.0
        %1848 = vmatpush2.xpose.msra.mxu0 0.0
        %1849 = vmatprep.subr.mxu0 0.0
        %1850 = vmatpush2.xpose.msra.mxu0 0.0
        %1851 = vmatprep.subr.mxu0 0.0
        %1852 = vmatpush2.xpose.msra.mxu0 0.0
        %1853 = vmatprep.subr.mxu0 0.0
        %1854 = vmatpush2.xpose.msra.mxu0 0.0
        %1855 = vmatprep.subr.mxu0 0.0
        %1856 = vmatpush2.xpose.msra.mxu0 0.0
        %1857 = vmatprep.mubr.f32.mxu0 0.0
        %1858 = vmatmul.mubr.f32.gmra.mxu0 %v1789
        %v1859 = vpop.f32.mrf.mxu0
        %v1860 = vadd.f32 0.0, %v1859
        %v1861 = vpop.f32.mrf.mxu0
        %1862 = vdwg.mxu0
        %v1863 = vmul.f32 %v1860, 0.35355338
        %v1864 = vsel %vm1529, %v1863, -1e+09
        %v1865 = vsel %vm1448, %v1864, -inf
        %1866 = vmax.xlane.f32.xlu0 %v1865
        %v1867 = vpop.xlane.xlu0 %1866
        %v1868 = vsub.f32 %v1864, %v1867
        %v1869 = vmul.f32 %v1868, 1.442695
        %v1870 = vpow.pop %v1869
        %v1871 = vsel %vm1448, %v1870, 0.0
        %1872 = vadd.xlane.f32.xlu0 %v1871
        %v1873 = vpop.xlane.xlu0 %1872
        %v1874 = vrcp.pop %v1873
        %v1875 = vmul.f32 %v1870, %v1874
        %1876 = vrot.lane.b32.xlu0 %v1442, 48
        %v1877 = vpop.permute.xlu0 %1876
        %v1880 = vsel %vm1448, %v1875, 0
        %1882 = vmatprep.subr.mxu0 0.0
        %1883 = vmatpush1.msra.mxu0 0.0
        %1884 = vmatprep.subr.mxu0 0.0
        %1885 = vmatpush1.msra.mxu0 0.0
        %1886 = vmatprep.subr.mxu0 0.0
        %1887 = vmatpush1.msra.mxu0 0.0
        %1888 = vmatprep.subr.mxu0 0.0
        %1889 = vmatpush1.msra.mxu0 0.0
        %1890 = vmatprep.subr.mxu0 0.0
        %1891 = vmatpush1.msra.mxu0 0.0
        %1892 = vmatprep.subr.mxu0 0.0
        %1893 = vmatpush1.msra.mxu0 0.0
        %1894 = vmatprep.subr.mxu0 0.0
        %1895 = vmatpush1.msra.mxu0 0.0
        %1896 = vmatprep.subr.mxu0 0.0
        %1897 = vmatpush1.msra.mxu0 0.0
        %1898 = vmatprep.subr.mxu0 0.0
        %1899 = vmatpush1.msra.mxu0 0.0
        %1900 = vmatprep.subr.mxu0 0.0
        %1901 = vmatpush1.msra.mxu0 0.0
        %1902 = vmatprep.subr.mxu0 0.0
        %1903 = vmatpush1.msra.mxu0 0.0
        %1904 = vmatprep.subr.mxu0 0.0
        %1905 = vmatpush1.msra.mxu0 0.0
        %1906 = vmatprep.subr.mxu0 0.0
        %1907 = vmatpush1.msra.mxu0 0.0
        %1908 = vmatprep.subr.mxu0 0.0
        %1909 = vmatpush1.msra.mxu0 0.0
        %1910 = vmatprep.subr.mxu0 0.0
        %1911 = vmatpush1.msra.mxu0 0.0
        %1912 = vmatprep.subr.mxu0 0.0
        %1913 = vmatpush1.msra.mxu0 %v1877
        %1914 = vmatprep.subr.mxu0 0.0
        %1915 = vmatpush2.msra.mxu0 0.0
        %1916 = vmatprep.subr.mxu0 0.0
        %1917 = vmatpush2.msra.mxu0 0.0
        %1918 = vmatprep.subr.mxu0 0.0
        %1919 = vmatpush2.msra.mxu0 0.0
        %1920 = vmatprep.subr.mxu0 0.0
        %1921 = vmatpush2.msra.mxu0 0.0
        %1922 = vmatprep.subr.mxu0 0.0
        %1923 = vmatpush2.msra.mxu0 0.0
        %1924 = vmatprep.subr.mxu0 0.0
        %1925 = vmatpush2.msra.mxu0 0.0
        %1926 = vmatprep.subr.mxu0 0.0
        %1927 = vmatpush2.msra.mxu0 0.0
        %1928 = vmatprep.subr.mxu0 0.0
        %1929 = vmatpush2.msra.mxu0 0.0
        %1930 = vmatprep.subr.mxu0 0.0
        %1931 = vmatpush2.msra.mxu0 0.0
        %1932 = vmatprep.subr.mxu0 0.0
        %1933 = vmatpush2.msra.mxu0 0.0
        %1934 = vmatprep.subr.mxu0 0.0
        %1935 = vmatpush2.msra.mxu0 0.0
        %1936 = vmatprep.subr.mxu0 0.0
        %1937 = vmatpush2.msra.mxu0 0.0
        %1938 = vmatprep.subr.mxu0 0.0
        %1939 = vmatpush2.msra.mxu0 0.0
        %1940 = vmatprep.subr.mxu0 0.0
        %1941 = vmatpush2.msra.mxu0 0.0
        %1942 = vmatprep.subr.mxu0 0.0
        %1943 = vmatpush2.msra.mxu0 0.0
        %1944 = vmatprep.subr.mxu0 0.0
        %1945 = vmatpush2.msra.mxu0 0.0
        %1946 = vmatprep.mubr.f32.mxu0 0.0
        %1947 = vmatmul.mubr.f32.gmra.mxu0 %v1880
        %v1948 = vpop.f32.mrf.mxu0
        %v1949 = vadd.f32 0.0, %v1948
        %v1950 = vpop.f32.mrf.mxu0
        %1951 = vdwg.mxu0
        %1952 = vrot.lane.b32.xlu0 %v1442, 104
        %v1953 = vpop.permute.xlu0 %1952
        %1954 = vrot.lane.b32.xlu0 %v1442, 72
        %v1955 = vpop.permute.xlu0 %1954
        %v1956 = vsel %vm1448, %v1953, 0
        %v1958 = vsel %vm1448, %v1955, 0
        %1960 = vmatprep.subr.mxu0 0.0
        %1961 = vmatpush1.xpose.msra.mxu0 0.0
        %1962 = vmatprep.subr.mxu0 0.0
        %1963 = vmatpush1.xpose.msra.mxu0 0.0
        %1964 = vmatprep.subr.mxu0 0.0
        %1965 = vmatpush1.xpose.msra.mxu0 0.0
        %1966 = vmatprep.subr.mxu0 0.0
        %1967 = vmatpush1.xpose.msra.mxu0 0.0
        %1968 = vmatprep.subr.mxu0 0.0
        %1969 = vmatpush1.xpose.msra.mxu0 0.0
        %1970 = vmatprep.subr.mxu0 0.0
        %1971 = vmatpush1.xpose.msra.mxu0 0.0
        %1972 = vmatprep.subr.mxu0 0.0
        %1973 = vmatpush1.xpose.msra.mxu0 0.0
        %1974 = vmatprep.subr.mxu0 0.0
        %1975 = vmatpush1.xpose.msra.mxu0 0.0
        %1976 = vmatprep.subr.mxu0 0.0
        %1977 = vmatpush1.xpose.msra.mxu0 0.0
        %1978 = vmatprep.subr.mxu0 0.0
        %1979 = vmatpush1.xpose.msra.mxu0 0.0
        %1980 = vmatprep.subr.mxu0 0.0
        %1981 = vmatpush1.xpose.msra.mxu0 0.0
        %1982 = vmatprep.subr.mxu0 0.0
        %1983 = vmatpush1.xpose.msra.mxu0 0.0
        %1984 = vmatprep.subr.mxu0 0.0
        %1985 = vmatpush1.xpose.msra.mxu0 0.0
        %1986 = vmatprep.subr.mxu0 0.0
        %1987 = vmatpush1.xpose.msra.mxu0 0.0
        %1988 = vmatprep.subr.mxu0 0.0
        %1989 = vmatpush1.xpose.msra.mxu0 0.0
        %1990 = vmatprep.subr.mxu0 0.0
        %1991 = vmatpush1.xpose.msra.mxu0 %v1958
        %1992 = vmatprep.subr.mxu0 0.0
        %1993 = vmatpush2.xpose.msra.mxu0 0.0
        %1994 = vmatprep.subr.mxu0 0.0
        %1995 = vmatpush2.xpose.msra.mxu0 0.0
        %1996 = vmatprep.subr.mxu0 0.0
        %1997 = vmatpush2.xpose.msra.mxu0 0.0
        %1998 = vmatprep.subr.mxu0 0.0
        %1999 = vmatpush2.xpose.msra.mxu0 0.0
        %2000 = vmatprep.subr.mxu0 0.0
        %2001 = vmatpush2.xpose.msra.mxu0 0.0
        %2002 = vmatprep.subr.mxu0 0.0
        %2003 = vmatpush2.xpose.msra.mxu0 0.0
        %2004 = vmatprep.subr.mxu0 0.0
        %2005 = vmatpush2.xpose.msra.mxu0 0.0
        %2006 = vmatprep.subr.mxu0 0.0
        %2007 = vmatpush2.xpose.msra.mxu0 0.0
        %2008 = vmatprep.subr.mxu0 0.0
        %2009 = vmatpush2.xpose.msra.mxu0 0.0
        %2010 = vmatprep.subr.mxu0 0.0
        %2011 = vmatpush2.xpose.msra.mxu0 0.0
        %2012 = vmatprep.subr.mxu0 0.0
        %2013 = vmatpush2.xpose.msra.mxu0 0.0
        %2014 = vmatprep.subr.mxu0 0.0
        %2015 = vmatpush2.xpose.msra.mxu0 0.0
        %2016 = vmatprep.subr.mxu0 0.0
        %2017 = vmatpush2.xpose.msra.mxu0 0.0
        %2018 = vmatprep.subr.mxu0 0.0
        %2019 = vmatpush2.xpose.msra.mxu0 0.0
        %2020 = vmatprep.subr.mxu0 0.0
        %2021 = vmatpush2.xpose.msra.mxu0 0.0
        %2022 = vmatprep.subr.mxu0 0.0
        %2023 = vmatpush2.xpose.msra.mxu0 0.0
        %2024 = vmatprep.mubr.f32.mxu0 0.0
        %2025 = vmatmul.mubr.f32.gmra.mxu0 %v1956
        %v2026 = vpop.f32.mrf.mxu0
        %v2027 = vadd.f32 0.0, %v2026
        %v2028 = vpop.f32.mrf.mxu0
        %2029 = vdwg.mxu0
        %v2030 = vmul.f32 %v2027, 0.35355338
        %v2031 = vsel %vm1529, %v2030, -1e+09
        %v2032 = vsel %vm1448, %v2031, -inf
        %2033 = vmax.xlane.f32.xlu0 %v2032
        %v2034 = vpop.xlane.xlu0 %2033
        %v2035 = vsub.f32 %v2031, %v2034
        %v2036 = vmul.f32 %v2035, 1.442695
        %v2037 = vpow.pop %v2036
        %v2038 = vsel %vm1448, %v2037, 0.0
        %2039 = vadd.xlane.f32.xlu0 %v2038
        %v2040 = vpop.xlane.xlu0 %2039
        %v2041 = vrcp.pop %v2040
        %v2042 = vmul.f32 %v2037, %v2041
        %2043 = vrot.lane.b32.xlu0 %v1442, 40
        %v2044 = vpop.permute.xlu0 %2043
        %v2047 = vsel %vm1448, %v2042, 0
        %2049 = vmatprep.subr.mxu0 0.0
        %2050 = vmatpush1.msra.mxu0 0.0
        %2051 = vmatprep.subr.mxu0 0.0
        %2052 = vmatpush1.msra.mxu0 0.0
        %2053 = vmatprep.subr.mxu0 0.0
        %2054 = vmatpush1.msra.mxu0 0.0
        %2055 = vmatprep.subr.mxu0 0.0
        %2056 = vmatpush1.msra.mxu0 0.0
        %2057 = vmatprep.subr.mxu0 0.0
        %2058 = vmatpush1.msra.mxu0 0.0
        %2059 = vmatprep.subr.mxu0 0.0
        %2060 = vmatpush1.msra.mxu0 0.0
        %2061 = vmatprep.subr.mxu0 0.0
        %2062 = vmatpush1.msra.mxu0 0.0
        %2063 = vmatprep.subr.mxu0 0.0
        %2064 = vmatpush1.msra.mxu0 0.0
        %2065 = vmatprep.subr.mxu0 0.0
        %2066 = vmatpush1.msra.mxu0 0.0
        %2067 = vmatprep.subr.mxu0 0.0
        %2068 = vmatpush1.msra.mxu0 0.0
        %2069 = vmatprep.subr.mxu0 0.0
        %2070 = vmatpush1.msra.mxu0 0.0
        %2071 = vmatprep.subr.mxu0 0.0
        %2072 = vmatpush1.msra.mxu0 0.0
        %2073 = vmatprep.subr.mxu0 0.0
        %2074 = vmatpush1.msra.mxu0 0.0
        %2075 = vmatprep.subr.mxu0 0.0
        %2076 = vmatpush1.msra.mxu0 0.0
        %2077 = vmatprep.subr.mxu0 0.0
        %2078 = vmatpush1.msra.mxu0 0.0
        %2079 = vmatprep.subr.mxu0 0.0
        %2080 = vmatpush1.msra.mxu0 %v2044
        %2081 = vmatprep.subr.mxu0 0.0
        %2082 = vmatpush2.msra.mxu0 0.0
        %2083 = vmatprep.subr.mxu0 0.0
        %2084 = vmatpush2.msra.mxu0 0.0
        %2085 = vmatprep.subr.mxu0 0.0
        %2086 = vmatpush2.msra.mxu0 0.0
        %2087 = vmatprep.subr.mxu0 0.0
        %2088 = vmatpush2.msra.mxu0 0.0
        %2089 = vmatprep.subr.mxu0 0.0
        %2090 = vmatpush2.msra.mxu0 0.0
        %2091 = vmatprep.subr.mxu0 0.0
        %2092 = vmatpush2.msra.mxu0 0.0
        %2093 = vmatprep.subr.mxu0 0.0
        %2094 = vmatpush2.msra.mxu0 0.0
        %2095 = vmatprep.subr.mxu0 0.0
        %2096 = vmatpush2.msra.mxu0 0.0
        %2097 = vmatprep.subr.mxu0 0.0
        %2098 = vmatpush2.msra.mxu0 0.0
        %2099 = vmatprep.subr.mxu0 0.0
        %2100 = vmatpush2.msra.mxu0 0.0
        %2101 = vmatprep.subr.mxu0 0.0
        %2102 = vmatpush2.msra.mxu0 0.0
        %2103 = vmatprep.subr.mxu0 0.0
        %2104 = vmatpush2.msra.mxu0 0.0
        %2105 = vmatprep.subr.mxu0 0.0
        %2106 = vmatpush2.msra.mxu0 0.0
        %2107 = vmatprep.subr.mxu0 0.0
        %2108 = vmatpush2.msra.mxu0 0.0
        %2109 = vmatprep.subr.mxu0 0.0
        %2110 = vmatpush2.msra.mxu0 0.0
        %2111 = vmatprep.subr.mxu0 0.0
        %2112 = vmatpush2.msra.mxu0 0.0
        %2113 = vmatprep.mubr.f32.mxu0 0.0
        %2114 = vmatmul.mubr.f32.gmra.mxu0 %v2047
        %v2115 = vpop.f32.mrf.mxu0
        %v2116 = vadd.f32 0.0, %v2115
        %v2117 = vpop.f32.mrf.mxu0
        %2118 = vdwg.mxu0
        %2120 = vrot.lane.b32.xlu0 %v1782, 8
        %v2121 = vpop.permute.xlu0 %2120
        %2124 = vrot.lane.b32.xlu0 %v1949, 16
        %v2125 = vpop.permute.xlu0 %2124
        %2128 = vrot.lane.b32.xlu0 %v2116, 24
        %v2129 = vpop.permute.xlu0 %2128
        %v2131 = vsel %vm1448, %v1615, %v2121
        %vm2132 = vcmask 130048
        %v2133 = vsel %vm2132, %v2131, %v2125
        %vm2134 = vcmask 195584
        %v2135 = vsel %vm2134, %v2133, %v2129
        %v2137 = vlaneseq
        %v2138 = vshrl.u32 %v2137, 7
        %v2139 = vsub.s32 0, %v2138
        %v2140 = vrot.slane %v1365, %v2139
        %v2143 = vsel %vm1319, %v2135, 0
        %2145 = vmatprep.subr.mxu0 0.0
        %2146 = vmatpush1.msra.mxu0 0.0
        %2147 = vmatprep.subr.mxu0 0.0
        %2148 = vmatpush1.msra.mxu0 0.0
        %2149 = vmatprep.subr.mxu0 0.0
        %2150 = vmatpush1.msra.mxu0 0.0
        %2151 = vmatprep.subr.mxu0 0.0
        %2152 = vmatpush1.msra.mxu0 0.0
        %2153 = vmatprep.subr.mxu0 0.0
        %2154 = vmatpush1.msra.mxu0 0.0
        %2155 = vmatprep.subr.mxu0 0.0
        %2156 = vmatpush1.msra.mxu0 0.0
        %2157 = vmatprep.subr.mxu0 0.0
        %2158 = vmatpush1.msra.mxu0 0.0
        %2159 = vmatprep.subr.mxu0 0.0
        %2160 = vmatpush1.msra.mxu0 0.0
        %2161 = vmatprep.subr.mxu0 0.0
        %2162 = vmatpush1.msra.mxu0 0.0
        %2163 = vmatprep.subr.mxu0 0.0
        %2164 = vmatpush1.msra.mxu0 0.0
        %2165 = vmatprep.subr.mxu0 0.0
        %2166 = vmatpush1.msra.mxu0 0.0
        %2167 = vmatprep.subr.mxu0 0.0
        %2168 = vmatpush1.msra.mxu0 0.0
        %2169 = vmatprep.subr.mxu0 0.0
        %2170 = vmatpush1.msra.mxu0 %v1364
        %2171 = vmatprep.subr.mxu0 0.0
        %2172 = vmatpush1.msra.mxu0 %v1363
        %2173 = vmatprep.subr.mxu0 0.0
        %2174 = vmatpush1.msra.mxu0 %v1362
        %2175 = vmatprep.subr.mxu0 0.0
        %2176 = vmatpush1.msra.mxu0 %v1361
        %2177 = vmatprep.subr.mxu0 0.0
        %2178 = vmatpush2.msra.mxu0 0.0
        %2179 = vmatprep.subr.mxu0 0.0
        %2180 = vmatpush2.msra.mxu0 0.0
        %2181 = vmatprep.subr.mxu0 0.0
        %2182 = vmatpush2.msra.mxu0 0.0
        %2183 = vmatprep.subr.mxu0 0.0
        %2184 = vmatpush2.msra.mxu0 0.0
        %2185 = vmatprep.subr.mxu0 0.0
        %2186 = vmatpush2.msra.mxu0 0.0
        %2187 = vmatprep.subr.mxu0 0.0
        %2188 = vmatpush2.msra.mxu0 0.0
        %2189 = vmatprep.subr.mxu0 0.0
        %2190 = vmatpush2.msra.mxu0 0.0
        %2191 = vmatprep.subr.mxu0 0.0
        %2192 = vmatpush2.msra.mxu0 0.0
        %2193 = vmatprep.subr.mxu0 0.0
        %2194 = vmatpush2.msra.mxu0 0.0
        %2195 = vmatprep.subr.mxu0 0.0
        %2196 = vmatpush2.msra.mxu0 0.0
        %2197 = vmatprep.subr.mxu0 0.0
        %2198 = vmatpush2.msra.mxu0 0.0
        %2199 = vmatprep.subr.mxu0 0.0
        %2200 = vmatpush2.msra.mxu0 0.0
        %2201 = vmatprep.subr.mxu0 0.0
        %2202 = vmatpush2.msra.mxu0 0.0
        %2203 = vmatprep.subr.mxu0 0.0
        %2204 = vmatpush2.msra.mxu0 0.0
        %2205 = vmatprep.subr.mxu0 0.0
        %2206 = vmatpush2.msra.mxu0 0.0
        %2207 = vmatprep.subr.mxu0 0.0
        %2208 = vmatpush2.msra.mxu0 0.0
        %2209 = vmatprep.mubr.f32.mxu0 0.0
        %2210 = vmatmul.mubr.f32.gmra.mxu0 %v2143
        %v2211 = vpop.f32.mrf.mxu0
        %v2212 = vadd.f32 %v2140, %v2211
        %v2213 = vpop.f32.mrf.mxu0
        %2214 = vdwg.mxu0
        %v2215 = vadd.f32 %v1316, %v2212
        %v2216 = vld [vmem:[%s71] sm:$0x1]
        %v2217 = vld [vmem:[%s69] sm:$0x1]
        %v2218 = vsel %vm1319, %v2215, 0.0
        %2219 = vadd.xlane.f32.xlu0 %v2218
        %v2220 = vpop.xlane.xlu0 %2219
        %v2221 = vmul.f32 %v2220, %v1323
        %v2222 = vsub.f32 %v2215, %v2221
        %v2223 = vmul.f32 %v2222, %v2222
        %v2224 = vsel %vm1319, %v2223, 0.0
        %2225 = vadd.xlane.f32.xlu0 %v2224
        %v2226 = vpop.xlane.xlu0 %2225
        %v2227 = vmul.f32 %v2226, %v1330
        %v2229 = vlaneseq
        %v2230 = vshrl.u32 %v2229, 7
        %v2231 = vsub.s32 0, %v2230
        %v2232 = vrot.slane %v2216, %v2231
        %v2234 = vmul.f32 %v2232, %v2222
        %v2235 = vrsqrt.pop %v2227
        %v2236 = vmul.f32 %v2227, %v2235
        %vm2237 = vcmp.eq.f32.partialorder %v2227, inf
        %v2238 = vsel %vm2237, %v2227, %v2236
        %vm2239 = vcmp.eq.f32.partialorder %v2227, 0.0
        %v2240 = vand.u32 %v2227, 2147483648
        %v2241 = vsel %vm2239, %v2240, %v2238
        %v2242 = vadd.f32 %v2241, 1e-06
        %v2243 = vrcp.pop %v2242
        %v2244 = vmul.f32 %v2234, %v2243
        %v2246 = vlaneseq
        %v2247 = vshrl.u32 %v2246, 7
        %v2248 = vsub.s32 0, %v2247
        %v2249 = vrot.slane %v2217, %v2248
        %v2251 = vadd.f32 %v2244, %v2249
        %v2252 = vld [vmem:[%s61] sm:$0xff]
        %v2253 = vld [vmem:[%s61 + $0x8] sm:$0xff]
        %v2254 = vld [vmem:[%s61 + $0x10] sm:$0xff]
        %v2255 = vld [vmem:[%s61 + $0x18] sm:$0xff]
        %v2256 = vld [vmem:[%s57] sm:$0x1]
        %v2257 = vld [vmem:[%s63] sm:$0xff]
        %v2258 = vld [vmem:[%s63 + $0x8] sm:$0xff]
        %v2259 = vld [vmem:[%s63 + $0x10] sm:$0xff]
        %v2260 = vld [vmem:[%s63 + $0x18] sm:$0xff]
        %v2261 = vld [vmem:[%s63 + $0x20] sm:$0xff]
        %v2262 = vld [vmem:[%s63 + $0x28] sm:$0xff]
        %v2263 = vld [vmem:[%s63 + $0x30] sm:$0xff]
        %v2264 = vld [vmem:[%s63 + $0x38] sm:$0xff]
        %v2265 = vld [vmem:[%s59] sm:$0x1]
        %v2267 = vlaneseq
        %v2268 = vshrl.u32 %v2267, 7
        %v2269 = vsub.s32 0, %v2268
        %v2270 = vrot.slane %v2256, %v2269
        %v2273 = vsel %vm1319, %v2251, 0
        %2275 = vmatprep.subr.mxu0 0.0
        %2276 = vmatpush1.msra.mxu0 0.0
        %2277 = vmatprep.subr.mxu0 0.0
        %2278 = vmatpush1.msra.mxu0 0.0
        %2279 = vmatprep.subr.mxu0 0.0
        %2280 = vmatpush1.msra.mxu0 0.0
        %2281 = vmatprep.subr.mxu0 0.0
        %2282 = vmatpush1.msra.mxu0 0.0
        %2283 = vmatprep.subr.mxu0 0.0
        %2284 = vmatpush1.msra.mxu0 0.0
        %2285 = vmatprep.subr.mxu0 0.0
        %2286 = vmatpush1.msra.mxu0 0.0
        %2287 = vmatprep.subr.mxu0 0.0
        %2288 = vmatpush1.msra.mxu0 0.0
        %2289 = vmatprep.subr.mxu0 0.0
        %2290 = vmatpush1.msra.mxu0 0.0
        %2291 = vmatprep.subr.mxu0 0.0
        %2292 = vmatpush1.msra.mxu0 0.0
        %2293 = vmatprep.subr.mxu0 0.0
        %2294 = vmatpush1.msra.mxu0 0.0
        %2295 = vmatprep.subr.mxu0 0.0
        %2296 = vmatpush1.msra.mxu0 0.0
        %2297 = vmatprep.subr.mxu0 0.0
        %2298 = vmatpush1.msra.mxu0 0.0
        %2299 = vmatprep.subr.mxu0 0.0
        %2300 = vmatpush1.msra.mxu0 %v2255
        %2301 = vmatprep.subr.mxu0 0.0
        %2302 = vmatpush1.msra.mxu0 %v2254
        %2303 = vmatprep.subr.mxu0 0.0
        %2304 = vmatpush1.msra.mxu0 %v2253
        %2305 = vmatprep.subr.mxu0 0.0
        %2306 = vmatpush1.msra.mxu0 %v2252
        %2307 = vmatprep.subr.mxu0 0.0
        %2308 = vmatpush2.msra.mxu0 0.0
        %2309 = vmatprep.subr.mxu0 0.0
        %2310 = vmatpush2.msra.mxu0 0.0
        %2311 = vmatprep.subr.mxu0 0.0
        %2312 = vmatpush2.msra.mxu0 0.0
        %2313 = vmatprep.subr.mxu0 0.0
        %2314 = vmatpush2.msra.mxu0 0.0
        %2315 = vmatprep.subr.mxu0 0.0
        %2316 = vmatpush2.msra.mxu0 0.0
        %2317 = vmatprep.subr.mxu0 0.0
        %2318 = vmatpush2.msra.mxu0 0.0
        %2319 = vmatprep.subr.mxu0 0.0
        %2320 = vmatpush2.msra.mxu0 0.0
        %2321 = vmatprep.subr.mxu0 0.0
        %2322 = vmatpush2.msra.mxu0 0.0
        %2323 = vmatprep.subr.mxu0 0.0
        %2324 = vmatpush2.msra.mxu0 0.0
        %2325 = vmatprep.subr.mxu0 0.0
        %2326 = vmatpush2.msra.mxu0 0.0
        %2327 = vmatprep.subr.mxu0 0.0
        %2328 = vmatpush2.msra.mxu0 0.0
        %2329 = vmatprep.subr.mxu0 0.0
        %2330 = vmatpush2.msra.mxu0 0.0
        %2331 = vmatprep.subr.mxu0 0.0
        %2332 = vmatpush2.msra.mxu0 0.0
        %2333 = vmatprep.subr.mxu0 0.0
        %2334 = vmatpush2.msra.mxu0 0.0
        %2335 = vmatprep.subr.mxu0 0.0
        %2336 = vmatpush2.msra.mxu0 0.0
        %2337 = vmatprep.subr.mxu0 0.0
        %2338 = vmatpush2.msra.mxu0 0.0
        %2339 = vmatprep.mubr.f32.mxu0 0.0
        %2340 = vmatmul.mubr.f32.gmra.mxu0 %v2273
        %v2341 = vpop.f32.mrf.mxu0
        %v2342 = vadd.f32 %v2270, %v2341
        %v2343 = vpop.f32.mrf.mxu0
        %2344 = vdwg.mxu0
        %v2345 = vmax.f32 %v2342, 0.0
        %v2347 = vlaneseq
        %v2348 = vshrl.u32 %v2347, 7
        %v2349 = vsub.s32 0, %v2348
        %v2350 = vrot.slane %v2265, %v2349
        %vm2352 = vcmask 523264
        %v2354 = vsel %vm2352, %v2345, 0
        %2356 = vmatprep.subr.mxu0 0.0
        %2357 = vmatpush1.msra.mxu0 0.0
        %2358 = vmatprep.subr.mxu0 0.0
        %2359 = vmatpush1.msra.mxu0 0.0
        %2360 = vmatprep.subr.mxu0 0.0
        %2361 = vmatpush1.msra.mxu0 0.0
        %2362 = vmatprep.subr.mxu0 0.0
        %2363 = vmatpush1.msra.mxu0 0.0
        %2364 = vmatprep.subr.mxu0 0.0
        %2365 = vmatpush1.msra.mxu0 0.0
        %2366 = vmatprep.subr.mxu0 0.0
        %2367 = vmatpush1.msra.mxu0 0.0
        %2368 = vmatprep.subr.mxu0 0.0
        %2369 = vmatpush1.msra.mxu0 0.0
        %2370 = vmatprep.subr.mxu0 0.0
        %2371 = vmatpush1.msra.mxu0 0.0
        %2372 = vmatprep.subr.mxu0 0.0
        %2373 = vmatpush1.msra.mxu0 %v2264
        %2374 = vmatprep.subr.mxu0 0.0
        %2375 = vmatpush1.msra.mxu0 %v2263
        %2376 = vmatprep.subr.mxu0 0.0
        %2377 = vmatpush1.msra.mxu0 %v2262
        %2378 = vmatprep.subr.mxu0 0.0
        %2379 = vmatpush1.msra.mxu0 %v2261
        %2380 = vmatprep.subr.mxu0 0.0
        %2381 = vmatpush1.msra.mxu0 %v2260
        %2382 = vmatprep.subr.mxu0 0.0
        %2383 = vmatpush1.msra.mxu0 %v2259
        %2384 = vmatprep.subr.mxu0 0.0
        %2385 = vmatpush1.msra.mxu0 %v2258
        %2386 = vmatprep.subr.mxu0 0.0
        %2387 = vmatpush1.msra.mxu0 %v2257
        %2388 = vmatprep.subr.mxu0 0.0
        %2389 = vmatpush2.msra.mxu0 0.0
        %2390 = vmatprep.subr.mxu0 0.0
        %2391 = vmatpush2.msra.mxu0 0.0
        %2392 = vmatprep.subr.mxu0 0.0
        %2393 = vmatpush2.msra.mxu0 0.0
        %2394 = vmatprep.subr.mxu0 0.0
        %2395 = vmatpush2.msra.mxu0 0.0
        %2396 = vmatprep.subr.mxu0 0.0
        %2397 = vmatpush2.msra.mxu0 0.0
        %2398 = vmatprep.subr.mxu0 0.0
        %2399 = vmatpush2.msra.mxu0 0.0
        %2400 = vmatprep.subr.mxu0 0.0
        %2401 = vmatpush2.msra.mxu0 0.0
        %2402 = vmatprep.subr.mxu0 0.0
        %2403 = vmatpush2.msra.mxu0 0.0
        %2404 = vmatprep.subr.mxu0 0.0
        %2405 = vmatpush2.msra.mxu0 0.0
        %2406 = vmatprep.subr.mxu0 0.0
        %2407 = vmatpush2.msra.mxu0 0.0
        %2408 = vmatprep.subr.mxu0 0.0
        %2409 = vmatpush2.msra.mxu0 0.0
        %2410 = vmatprep.subr.mxu0 0.0
        %2411 = vmatpush2.msra.mxu0 0.0
        %2412 = vmatprep.subr.mxu0 0.0
        %2413 = vmatpush2.msra.mxu0 0.0
        %2414 = vmatprep.subr.mxu0 0.0
        %2415 = vmatpush2.msra.mxu0 0.0
        %2416 = vmatprep.subr.mxu0 0.0
        %2417 = vmatpush2.msra.mxu0 0.0
        %2418 = vmatprep.subr.mxu0 0.0
        %2419 = vmatpush2.msra.mxu0 0.0
        %2420 = vmatprep.mubr.f32.mxu0 0.0
        %2421 = vmatmul.mubr.f32.gmra.mxu0 %v2354
        %v2422 = vpop.f32.mrf.mxu0
        %v2423 = vadd.f32 %v2350, %v2422
        %v2424 = vpop.f32.mrf.mxu0
        %2425 = vdwg.mxu0
        %v2426 = vadd.f32 %v2215, %v2423
        %s2427 = scalar_lea.vmem %s67, 1
        %v2428 = vld [vmem:[%s2427] sm:$0x1]
        %s2429 = scalar_lea.vmem %s65, 1
        %v2430 = vld [vmem:[%s2429] sm:$0x1]
        %v2431 = vsel %vm1319, %v2426, 0.0
        %2432 = vadd.xlane.f32.xlu0 %v2431
        %v2433 = vpop.xlane.xlu0 %2432
        %v2434 = vmul.f32 %v2433, %v1323
        %v2435 = vsub.f32 %v2426, %v2434
        %v2436 = vmul.f32 %v2435, %v2435
        %v2437 = vsel %vm1319, %v2436, 0.0
        %2438 = vadd.xlane.f32.xlu0 %v2437
        %v2439 = vpop.xlane.xlu0 %2438
        %v2440 = vmul.f32 %v2439, %v1330
        %v2442 = vlaneseq
        %v2443 = vshrl.u32 %v2442, 7
        %v2444 = vsub.s32 0, %v2443
        %v2445 = vrot.slane %v2428, %v2444
        %v2447 = vmul.f32 %v2445, %v2435
        %v2448 = vrsqrt.pop %v2440
        %v2449 = vmul.f32 %v2440, %v2448
        %vm2450 = vcmp.eq.f32.partialorder %v2440, inf
        %v2451 = vsel %vm2450, %v2440, %v2449
        %vm2452 = vcmp.eq.f32.partialorder %v2440, 0.0
        %v2453 = vand.u32 %v2440, 2147483648
        %v2454 = vsel %vm2452, %v2453, %v2451
        %v2455 = vadd.f32 %v2454, 1e-06
        %v2456 = vrcp.pop %v2455
        %v2457 = vmul.f32 %v2447, %v2456
        %v2459 = vlaneseq
        %v2460 = vshrl.u32 %v2459, 7
        %v2461 = vsub.s32 0, %v2460
        %v2462 = vrot.slane %v2430, %v2461
        %v2464 = vadd.f32 %v2457, %v2462
        %s2465 = scalar_lea.vmem %s83, 32
        %v2466 = vld [vmem:[%s2465] sm:$0xff]
        %v2467 = vld [vmem:[%s2465 + $0x8] sm:$0xff]
        %v2468 = vld [vmem:[%s2465 + $0x10] sm:$0xff]
        %v2469 = vld [vmem:[%s2465 + $0x18] sm:$0xff]
        %s2470 = scalar_lea.vmem %s81, 1
        %v2471 = vld [vmem:[%s2470] sm:$0x1]
        %s2472 = scalar_lea.vmem %s79, 32
        %v2473 = vld [vmem:[%s2472] sm:$0xff]
        %v2474 = vld [vmem:[%s2472 + $0x8] sm:$0xff]
        %v2475 = vld [vmem:[%s2472 + $0x10] sm:$0xff]
        %v2476 = vld [vmem:[%s2472 + $0x18] sm:$0xff]
        %s2477 = scalar_lea.vmem %s77, 1
        %v2478 = vld [vmem:[%s2477] sm:$0x1]
        %v2480 = vlaneseq
        %v2481 = vshrl.u32 %v2480, 7
        %v2482 = vsub.s32 0, %v2481
        %v2483 = vrot.slane %v2471, %v2482
        %v2486 = vsel %vm1319, %v2464, 0
        %2488 = vmatprep.subr.mxu0 0.0
        %2489 = vmatpush1.msra.mxu0 0.0
        %2490 = vmatprep.subr.mxu0 0.0
        %2491 = vmatpush1.msra.mxu0 0.0
        %2492 = vmatprep.subr.mxu0 0.0
        %2493 = vmatpush1.msra.mxu0 0.0
        %2494 = vmatprep.subr.mxu0 0.0
        %2495 = vmatpush1.msra.mxu0 0.0
        %2496 = vmatprep.subr.mxu0 0.0
        %2497 = vmatpush1.msra.mxu0 0.0
        %2498 = vmatprep.subr.mxu0 0.0
        %2499 = vmatpush1.msra.mxu0 0.0
        %2500 = vmatprep.subr.mxu0 0.0
        %2501 = vmatpush1.msra.mxu0 0.0
        %2502 = vmatprep.subr.mxu0 0.0
        %2503 = vmatpush1.msra.mxu0 0.0
        %2504 = vmatprep.subr.mxu0 0.0
        %2505 = vmatpush1.msra.mxu0 0.0
        %2506 = vmatprep.subr.mxu0 0.0
        %2507 = vmatpush1.msra.mxu0 0.0
        %2508 = vmatprep.subr.mxu0 0.0
        %2509 = vmatpush1.msra.mxu0 0.0
        %2510 = vmatprep.subr.mxu0 0.0
        %2511 = vmatpush1.msra.mxu0 0.0
        %2512 = vmatprep.subr.mxu0 0.0
        %2513 = vmatpush1.msra.mxu0 %v2469
        %2514 = vmatprep.subr.mxu0 0.0
        %2515 = vmatpush1.msra.mxu0 %v2468
        %2516 = vmatprep.subr.mxu0 0.0
        %2517 = vmatpush1.msra.mxu0 %v2467
        %2518 = vmatprep.subr.mxu0 0.0
        %2519 = vmatpush1.msra.mxu0 %v2466
        %2520 = vmatprep.subr.mxu0 0.0
        %2521 = vmatpush2.msra.mxu0 0.0
        %2522 = vmatprep.subr.mxu0 0.0
        %2523 = vmatpush2.msra.mxu0 0.0
        %2524 = vmatprep.subr.mxu0 0.0
        %2525 = vmatpush2.msra.mxu0 0.0
        %2526 = vmatprep.subr.mxu0 0.0
        %2527 = vmatpush2.msra.mxu0 0.0
        %2528 = vmatprep.subr.mxu0 0.0
        %2529 = vmatpush2.msra.mxu0 0.0
        %2530 = vmatprep.subr.mxu0 0.0
        %2531 = vmatpush2.msra.mxu0 0.0
        %2532 = vmatprep.subr.mxu0 0.0
        %2533 = vmatpush2.msra.mxu0 0.0
        %2534 = vmatprep.subr.mxu0 0.0
        %2535 = vmatpush2.msra.mxu0 0.0
        %2536 = vmatprep.subr.mxu0 0.0
        %2537 = vmatpush2.msra.mxu0 0.0
        %2538 = vmatprep.subr.mxu0 0.0
        %2539 = vmatpush2.msra.mxu0 0.0
        %2540 = vmatprep.subr.mxu0 0.0
        %2541 = vmatpush2.msra.mxu0 0.0
        %2542 = vmatprep.subr.mxu0 0.0
        %2543 = vmatpush2.msra.mxu0 0.0
        %2544 = vmatprep.subr.mxu0 0.0
        %2545 = vmatpush2.msra.mxu0 0.0
        %2546 = vmatprep.subr.mxu0 0.0
        %2547 = vmatpush2.msra.mxu0 0.0
        %2548 = vmatprep.subr.mxu0 0.0
        %2549 = vmatpush2.msra.mxu0 0.0
        %2550 = vmatprep.subr.mxu0 0.0
        %2551 = vmatpush2.msra.mxu0 0.0
        %2552 = vmatprep.mubr.f32.mxu0 0.0
        %2553 = vmatmul.mubr.f32.gmra.mxu0 %v2486
        %v2554 = vpop.f32.mrf.mxu0
        %v2555 = vadd.f32 %v2483, %v2554
        %v2556 = vpop.f32.mrf.mxu0
        %2557 = vdwg.mxu0
        %2559 = vrot.lane.b32.xlu0 %v2555, 96
        %v2560 = vpop.permute.xlu0 %2559
        %v2561 = vsel %vm1448, %v2555, 0
        %v2563 = vsel %vm1448, %v2560, 0
        %2565 = vmatprep.subr.mxu0 0.0
        %2566 = vmatpush1.xpose.msra.mxu0 0.0
        %2567 = vmatprep.subr.mxu0 0.0
        %2568 = vmatpush1.xpose.msra.mxu0 0.0
        %2569 = vmatprep.subr.mxu0 0.0
        %2570 = vmatpush1.xpose.msra.mxu0 0.0
        %2571 = vmatprep.subr.mxu0 0.0
        %2572 = vmatpush1.xpose.msra.mxu0 0.0
        %2573 = vmatprep.subr.mxu0 0.0
        %2574 = vmatpush1.xpose.msra.mxu0 0.0
        %2575 = vmatprep.subr.mxu0 0.0
        %2576 = vmatpush1.xpose.msra.mxu0 0.0
        %2577 = vmatprep.subr.mxu0 0.0
        %2578 = vmatpush1.xpose.msra.mxu0 0.0
        %2579 = vmatprep.subr.mxu0 0.0
        %2580 = vmatpush1.xpose.msra.mxu0 0.0
        %2581 = vmatprep.subr.mxu0 0.0
        %2582 = vmatpush1.xpose.msra.mxu0 0.0
        %2583 = vmatprep.subr.mxu0 0.0
        %2584 = vmatpush1.xpose.msra.mxu0 0.0
        %2585 = vmatprep.subr.mxu0 0.0
        %2586 = vmatpush1.xpose.msra.mxu0 0.0
        %2587 = vmatprep.subr.mxu0 0.0
        %2588 = vmatpush1.xpose.msra.mxu0 0.0
        %2589 = vmatprep.subr.mxu0 0.0
        %2590 = vmatpush1.xpose.msra.mxu0 0.0
        %2591 = vmatprep.subr.mxu0 0.0
        %2592 = vmatpush1.xpose.msra.mxu0 0.0
        %2593 = vmatprep.subr.mxu0 0.0
        %2594 = vmatpush1.xpose.msra.mxu0 0.0
        %2595 = vmatprep.subr.mxu0 0.0
        %2596 = vmatpush1.xpose.msra.mxu0 %v2563
        %2597 = vmatprep.subr.mxu0 0.0
        %2598 = vmatpush2.xpose.msra.mxu0 0.0
        %2599 = vmatprep.subr.mxu0 0.0
        %2600 = vmatpush2.xpose.msra.mxu0 0.0
        %2601 = vmatprep.subr.mxu0 0.0
        %2602 = vmatpush2.xpose.msra.mxu0 0.0
        %2603 = vmatprep.subr.mxu0 0.0
        %2604 = vmatpush2.xpose.msra.mxu0 0.0
        %2605 = vmatprep.subr.mxu0 0.0
        %2606 = vmatpush2.xpose.msra.mxu0 0.0
        %2607 = vmatprep.subr.mxu0 0.0
        %2608 = vmatpush2.xpose.msra.mxu0 0.0
        %2609 = vmatprep.subr.mxu0 0.0
        %2610 = vmatpush2.xpose.msra.mxu0 0.0
        %2611 = vmatprep.subr.mxu0 0.0
        %2612 = vmatpush2.xpose.msra.mxu0 0.0
        %2613 = vmatprep.subr.mxu0 0.0
        %2614 = vmatpush2.xpose.msra.mxu0 0.0
        %2615 = vmatprep.subr.mxu0 0.0
        %2616 = vmatpush2.xpose.msra.mxu0 0.0
        %2617 = vmatprep.subr.mxu0 0.0
        %2618 = vmatpush2.xpose.msra.mxu0 0.0
        %2619 = vmatprep.subr.mxu0 0.0
        %2620 = vmatpush2.xpose.msra.mxu0 0.0
        %2621 = vmatprep.subr.mxu0 0.0
        %2622 = vmatpush2.xpose.msra.mxu0 0.0
        %2623 = vmatprep.subr.mxu0 0.0
        %2624 = vmatpush2.xpose.msra.mxu0 0.0
        %2625 = vmatprep.subr.mxu0 0.0
        %2626 = vmatpush2.xpose.msra.mxu0 0.0
        %2627 = vmatprep.subr.mxu0 0.0
        %2628 = vmatpush2.xpose.msra.mxu0 0.0
        %2629 = vmatprep.mubr.f32.mxu0 0.0
        %2630 = vmatmul.mubr.f32.gmra.mxu0 %v2561
        %v2631 = vpop.f32.mrf.mxu0
        %v2632 = vadd.f32 0.0, %v2631
        %v2633 = vpop.f32.mrf.mxu0
        %2634 = vdwg.mxu0
        %v2635 = vmul.f32 %v2632, 0.35355338
        %v2636 = vsel %vm1529, %v2635, -1e+09
        %v2637 = vsel %vm1448, %v2636, -inf
        %2638 = vmax.xlane.f32.xlu0 %v2637
        %v2639 = vpop.xlane.xlu0 %2638
        %v2640 = vsub.f32 %v2636, %v2639
        %v2641 = vmul.f32 %v2640, 1.442695
        %v2642 = vpow.pop %v2641
        %v2643 = vsel %vm1448, %v2642, 0.0
        %2644 = vadd.xlane.f32.xlu0 %v2643
        %v2645 = vpop.xlane.xlu0 %2644
        %v2646 = vrcp.pop %v2645
        %v2647 = vmul.f32 %v2642, %v2646
        %2648 = vrot.lane.b32.xlu0 %v2555, 64
        %v2649 = vpop.permute.xlu0 %2648
        %v2652 = vsel %vm1448, %v2647, 0
        %2654 = vmatprep.subr.mxu0 0.0
        %2655 = vmatpush1.msra.mxu0 0.0
        %2656 = vmatprep.subr.mxu0 0.0
        %2657 = vmatpush1.msra.mxu0 0.0
        %2658 = vmatprep.subr.mxu0 0.0
        %2659 = vmatpush1.msra.mxu0 0.0
        %2660 = vmatprep.subr.mxu0 0.0
        %2661 = vmatpush1.msra.mxu0 0.0
        %2662 = vmatprep.subr.mxu0 0.0
        %2663 = vmatpush1.msra.mxu0 0.0
        %2664 = vmatprep.subr.mxu0 0.0
        %2665 = vmatpush1.msra.mxu0 0.0
        %2666 = vmatprep.subr.mxu0 0.0
        %2667 = vmatpush1.msra.mxu0 0.0
        %2668 = vmatprep.subr.mxu0 0.0
        %2669 = vmatpush1.msra.mxu0 0.0
        %2670 = vmatprep.subr.mxu0 0.0
        %2671 = vmatpush1.msra.mxu0 0.0
        %2672 = vmatprep.subr.mxu0 0.0
        %2673 = vmatpush1.msra.mxu0 0.0
        %2674 = vmatprep.subr.mxu0 0.0
        %2675 = vmatpush1.msra.mxu0 0.0
        %2676 = vmatprep.subr.mxu0 0.0
        %2677 = vmatpush1.msra.mxu0 0.0
        %2678 = vmatprep.subr.mxu0 0.0
        %2679 = vmatpush1.msra.mxu0 0.0
        %2680 = vmatprep.subr.mxu0 0.0
        %2681 = vmatpush1.msra.mxu0 0.0
        %2682 = vmatprep.subr.mxu0 0.0
        %2683 = vmatpush1.msra.mxu0 0.0
        %2684 = vmatprep.subr.mxu0 0.0
        %2685 = vmatpush1.msra.mxu0 %v2649
        %2686 = vmatprep.subr.mxu0 0.0
        %2687 = vmatpush2.msra.mxu0 0.0
        %2688 = vmatprep.subr.mxu0 0.0
        %2689 = vmatpush2.msra.mxu0 0.0
        %2690 = vmatprep.subr.mxu0 0.0
        %2691 = vmatpush2.msra.mxu0 0.0
        %2692 = vmatprep.subr.mxu0 0.0
        %2693 = vmatpush2.msra.mxu0 0.0
        %2694 = vmatprep.subr.mxu0 0.0
        %2695 = vmatpush2.msra.mxu0 0.0
        %2696 = vmatprep.subr.mxu0 0.0
        %2697 = vmatpush2.msra.mxu0 0.0
        %2698 = vmatprep.subr.mxu0 0.0
        %2699 = vmatpush2.msra.mxu0 0.0
        %2700 = vmatprep.subr.mxu0 0.0
        %2701 = vmatpush2.msra.mxu0 0.0
        %2702 = vmatprep.subr.mxu0 0.0
        %2703 = vmatpush2.msra.mxu0 0.0
        %2704 = vmatprep.subr.mxu0 0.0
        %2705 = vmatpush2.msra.mxu0 0.0
        %2706 = vmatprep.subr.mxu0 0.0
        %2707 = vmatpush2.msra.mxu0 0.0
        %2708 = vmatprep.subr.mxu0 0.0
        %2709 = vmatpush2.msra.mxu0 0.0
        %2710 = vmatprep.subr.mxu0 0.0
        %2711 = vmatpush2.msra.mxu0 0.0
        %2712 = vmatprep.subr.mxu0 0.0
        %2713 = vmatpush2.msra.mxu0 0.0
        %2714 = vmatprep.subr.mxu0 0.0
        %2715 = vmatpush2.msra.mxu0 0.0
        %2716 = vmatprep.subr.mxu0 0.0
        %2717 = vmatpush2.msra.mxu0 0.0
        %2718 = vmatprep.mubr.f32.mxu0 0.0
        %2719 = vmatmul.mubr.f32.gmra.mxu0 %v2652
        %v2720 = vpop.f32.mrf.mxu0
        %v2721 = vadd.f32 0.0, %v2720
        %v2722 = vpop.f32.mrf.mxu0
        %2723 = vdwg.mxu0
        %2724 = vrot.lane.b32.xlu0 %v2555, 120
        %v2725 = vpop.permute.xlu0 %2724
        %2726 = vrot.lane.b32.xlu0 %v2555, 88
        %v2727 = vpop.permute.xlu0 %2726
        %v2728 = vsel %vm1448, %v2725, 0
        %v2730 = vsel %vm1448, %v2727, 0
        %2732 = vmatprep.subr.mxu0 0.0
        %2733 = vmatpush1.xpose.msra.mxu0 0.0
        %2734 = vmatprep.subr.mxu0 0.0
        %2735 = vmatpush1.xpose.msra.mxu0 0.0
        %2736 = vmatprep.subr.mxu0 0.0
        %2737 = vmatpush1.xpose.msra.mxu0 0.0
        %2738 = vmatprep.subr.mxu0 0.0
        %2739 = vmatpush1.xpose.msra.mxu0 0.0
        %2740 = vmatprep.subr.mxu0 0.0
        %2741 = vmatpush1.xpose.msra.mxu0 0.0
        %2742 = vmatprep.subr.mxu0 0.0
        %2743 = vmatpush1.xpose.msra.mxu0 0.0
        %2744 = vmatprep.subr.mxu0 0.0
        %2745 = vmatpush1.xpose.msra.mxu0 0.0
        %2746 = vmatprep.subr.mxu0 0.0
        %2747 = vmatpush1.xpose.msra.mxu0 0.0
        %2748 = vmatprep.subr.mxu0 0.0
        %2749 = vmatpush1.xpose.msra.mxu0 0.0
        %2750 = vmatprep.subr.mxu0 0.0
        %2751 = vmatpush1.xpose.msra.mxu0 0.0
        %2752 = vmatprep.subr.mxu0 0.0
        %2753 = vmatpush1.xpose.msra.mxu0 0.0
        %2754 = vmatprep.subr.mxu0 0.0
        %2755 = vmatpush1.xpose.msra.mxu0 0.0
        %2756 = vmatprep.subr.mxu0 0.0
        %2757 = vmatpush1.xpose.msra.mxu0 0.0
        %2758 = vmatprep.subr.mxu0 0.0
        %2759 = vmatpush1.xpose.msra.mxu0 0.0
        %2760 = vmatprep.subr.mxu0 0.0
        %2761 = vmatpush1.xpose.msra.mxu0 0.0
        %2762 = vmatprep.subr.mxu0 0.0
        %2763 = vmatpush1.xpose.msra.mxu0 %v2730
        %2764 = vmatprep.subr.mxu0 0.0
        %2765 = vmatpush2.xpose.msra.mxu0 0.0
        %2766 = vmatprep.subr.mxu0 0.0
        %2767 = vmatpush2.xpose.msra.mxu0 0.0
        %2768 = vmatprep.subr.mxu0 0.0
        %2769 = vmatpush2.xpose.msra.mxu0 0.0
        %2770 = vmatprep.subr.mxu0 0.0
        %2771 = vmatpush2.xpose.msra.mxu0 0.0
        %2772 = vmatprep.subr.mxu0 0.0
        %2773 = vmatpush2.xpose.msra.mxu0 0.0
        %2774 = vmatprep.subr.mxu0 0.0
        %2775 = vmatpush2.xpose.msra.mxu0 0.0
        %2776 = vmatprep.subr.mxu0 0.0
        %2777 = vmatpush2.xpose.msra.mxu0 0.0
        %2778 = vmatprep.subr.mxu0 0.0
        %2779 = vmatpush2.xpose.msra.mxu0 0.0
        %2780 = vmatprep.subr.mxu0 0.0
        %2781 = vmatpush2.xpose.msra.mxu0 0.0
        %2782 = vmatprep.subr.mxu0 0.0
        %2783 = vmatpush2.xpose.msra.mxu0 0.0
        %2784 = vmatprep.subr.mxu0 0.0
        %2785 = vmatpush2.xpose.msra.mxu0 0.0
        %2786 = vmatprep.subr.mxu0 0.0
        %2787 = vmatpush2.xpose.msra.mxu0 0.0
        %2788 = vmatprep.subr.mxu0 0.0
        %2789 = vmatpush2.xpose.msra.mxu0 0.0
        %2790 = vmatprep.subr.mxu0 0.0
        %2791 = vmatpush2.xpose.msra.mxu0 0.0
        %2792 = vmatprep.subr.mxu0 0.0
        %2793 = vmatpush2.xpose.msra.mxu0 0.0
        %2794 = vmatprep.subr.mxu0 0.0
        %2795 = vmatpush2.xpose.msra.mxu0 0.0
        %2796 = vmatprep.mubr.f32.mxu0 0.0
        %2797 = vmatmul.mubr.f32.gmra.mxu0 %v2728
        %v2798 = vpop.f32.mrf.mxu0
        %v2799 = vadd.f32 0.0, %v2798
        %v2800 = vpop.f32.mrf.mxu0
        %2801 = vdwg.mxu0
        %v2802 = vmul.f32 %v2799, 0.35355338
        %v2803 = vsel %vm1529, %v2802, -1e+09
        %v2804 = vsel %vm1448, %v2803, -inf
        %2805 = vmax.xlane.f32.xlu0 %v2804
        %v2806 = vpop.xlane.xlu0 %2805
        %v2807 = vsub.f32 %v2803, %v2806
        %v2808 = vmul.f32 %v2807, 1.442695
        %v2809 = vpow.pop %v2808
        %v2810 = vsel %vm1448, %v2809, 0.0
        %2811 = vadd.xlane.f32.xlu0 %v2810
        %v2812 = vpop.xlane.xlu0 %2811
        %v2813 = vrcp.pop %v2812
        %v2814 = vmul.f32 %v2809, %v2813
        %2815 = vrot.lane.b32.xlu0 %v2555, 56
        %v2816 = vpop.permute.xlu0 %2815
        %v2819 = vsel %vm1448, %v2814, 0
        %2821 = vmatprep.subr.mxu0 0.0
        %2822 = vmatpush1.msra.mxu0 0.0
        %2823 = vmatprep.subr.mxu0 0.0
        %2824 = vmatpush1.msra.mxu0 0.0
        %2825 = vmatprep.subr.mxu0 0.0
        %2826 = vmatpush1.msra.mxu0 0.0
        %2827 = vmatprep.subr.mxu0 0.0
        %2828 = vmatpush1.msra.mxu0 0.0
        %2829 = vmatprep.subr.mxu0 0.0
        %2830 = vmatpush1.msra.mxu0 0.0
        %2831 = vmatprep.subr.mxu0 0.0
        %2832 = vmatpush1.msra.mxu0 0.0
        %2833 = vmatprep.subr.mxu0 0.0
        %2834 = vmatpush1.msra.mxu0 0.0
        %2835 = vmatprep.subr.mxu0 0.0
        %2836 = vmatpush1.msra.mxu0 0.0
        %2837 = vmatprep.subr.mxu0 0.0
        %2838 = vmatpush1.msra.mxu0 0.0
        %2839 = vmatprep.subr.mxu0 0.0
        %2840 = vmatpush1.msra.mxu0 0.0
        %2841 = vmatprep.subr.mxu0 0.0
        %2842 = vmatpush1.msra.mxu0 0.0
        %2843 = vmatprep.subr.mxu0 0.0
        %2844 = vmatpush1.msra.mxu0 0.0
        %2845 = vmatprep.subr.mxu0 0.0
        %2846 = vmatpush1.msra.mxu0 0.0
        %2847 = vmatprep.subr.mxu0 0.0
        %2848 = vmatpush1.msra.mxu0 0.0
        %2849 = vmatprep.subr.mxu0 0.0
        %2850 = vmatpush1.msra.mxu0 0.0
        %2851 = vmatprep.subr.mxu0 0.0
        %2852 = vmatpush1.msra.mxu0 %v2816
        %2853 = vmatprep.subr.mxu0 0.0
        %2854 = vmatpush2.msra.mxu0 0.0
        %2855 = vmatprep.subr.mxu0 0.0
        %2856 = vmatpush2.msra.mxu0 0.0
        %2857 = vmatprep.subr.mxu0 0.0
        %2858 = vmatpush2.msra.mxu0 0.0
        %2859 = vmatprep.subr.mxu0 0.0
        %2860 = vmatpush2.msra.mxu0 0.0
        %2861 = vmatprep.subr.mxu0 0.0
        %2862 = vmatpush2.msra.mxu0 0.0
        %2863 = vmatprep.subr.mxu0 0.0
        %2864 = vmatpush2.msra.mxu0 0.0
        %2865 = vmatprep.subr.mxu0 0.0
        %2866 = vmatpush2.msra.mxu0 0.0
        %2867 = vmatprep.subr.mxu0 0.0
        %2868 = vmatpush2.msra.mxu0 0.0
        %2869 = vmatprep.subr.mxu0 0.0
        %2870 = vmatpush2.msra.mxu0 0.0
        %2871 = vmatprep.subr.mxu0 0.0
        %2872 = vmatpush2.msra.mxu0 0.0
        %2873 = vmatprep.subr.mxu0 0.0
        %2874 = vmatpush2.msra.mxu0 0.0
        %2875 = vmatprep.subr.mxu0 0.0
        %2876 = vmatpush2.msra.mxu0 0.0
        %2877 = vmatprep.subr.mxu0 0.0
        %2878 = vmatpush2.msra.mxu0 0.0
        %2879 = vmatprep.subr.mxu0 0.0
        %2880 = vmatpush2.msra.mxu0 0.0
        %2881 = vmatprep.subr.mxu0 0.0
        %2882 = vmatpush2.msra.mxu0 0.0
        %2883 = vmatprep.subr.mxu0 0.0
        %2884 = vmatpush2.msra.mxu0 0.0
        %2885 = vmatprep.mubr.f32.mxu0 0.0
        %2886 = vmatmul.mubr.f32.gmra.mxu0 %v2819
        %v2887 = vpop.f32.mrf.mxu0
        %v2888 = vadd.f32 0.0, %v2887
        %v2889 = vpop.f32.mrf.mxu0
        %2890 = vdwg.mxu0
        %2891 = vrot.lane.b32.xlu0 %v2555, 112
        %v2892 = vpop.permute.xlu0 %2891
        %2893 = vrot.lane.b32.xlu0 %v2555, 80
        %v2894 = vpop.permute.xlu0 %2893
        %v2895 = vsel %vm1448, %v2892, 0
        %v2897 = vsel %vm1448, %v2894, 0
        %2899 = vmatprep.subr.mxu0 0.0
        %2900 = vmatpush1.xpose.msra.mxu0 0.0
        %2901 = vmatprep.subr.mxu0 0.0
        %2902 = vmatpush1.xpose.msra.mxu0 0.0
        %2903 = vmatprep.subr.mxu0 0.0
        %2904 = vmatpush1.xpose.msra.mxu0 0.0
        %2905 = vmatprep.subr.mxu0 0.0
        %2906 = vmatpush1.xpose.msra.mxu0 0.0
        %2907 = vmatprep.subr.mxu0 0.0
        %2908 = vmatpush1.xpose.msra.mxu0 0.0
        %2909 = vmatprep.subr.mxu0 0.0
        %2910 = vmatpush1.xpose.msra.mxu0 0.0
        %2911 = vmatprep.subr.mxu0 0.0
        %2912 = vmatpush1.xpose.msra.mxu0 0.0
        %2913 = vmatprep.subr.mxu0 0.0
        %2914 = vmatpush1.xpose.msra.mxu0 0.0
        %2915 = vmatprep.subr.mxu0 0.0
        %2916 = vmatpush1.xpose.msra.mxu0 0.0
        %2917 = vmatprep.subr.mxu0 0.0
        %2918 = vmatpush1.xpose.msra.mxu0 0.0
        %2919 = vmatprep.subr.mxu0 0.0
        %2920 = vmatpush1.xpose.msra.mxu0 0.0
        %2921 = vmatprep.subr.mxu0 0.0
        %2922 = vmatpush1.xpose.msra.mxu0 0.0
        %2923 = vmatprep.subr.mxu0 0.0
        %2924 = vmatpush1.xpose.msra.mxu0 0.0
        %2925 = vmatprep.subr.mxu0 0.0
        %2926 = vmatpush1.xpose.msra.mxu0 0.0
        %2927 = vmatprep.subr.mxu0 0.0
        %2928 = vmatpush1.xpose.msra.mxu0 0.0
        %2929 = vmatprep.subr.mxu0 0.0
        %2930 = vmatpush1.xpose.msra.mxu0 %v2897
        %2931 = vmatprep.subr.mxu0 0.0
        %2932 = vmatpush2.xpose.msra.mxu0 0.0
        %2933 = vmatprep.subr.mxu0 0.0
        %2934 = vmatpush2.xpose.msra.mxu0 0.0
        %2935 = vmatprep.subr.mxu0 0.0
        %2936 = vmatpush2.xpose.msra.mxu0 0.0
        %2937 = vmatprep.subr.mxu0 0.0
        %2938 = vmatpush2.xpose.msra.mxu0 0.0
        %2939 = vmatprep.subr.mxu0 0.0
        %2940 = vmatpush2.xpose.msra.mxu0 0.0
        %2941 = vmatprep.subr.mxu0 0.0
        %2942 = vmatpush2.xpose.msra.mxu0 0.0
        %2943 = vmatprep.subr.mxu0 0.0
        %2944 = vmatpush2.xpose.msra.mxu0 0.0
        %2945 = vmatprep.subr.mxu0 0.0
        %2946 = vmatpush2.xpose.msra.mxu0 0.0
        %2947 = vmatprep.subr.mxu0 0.0
        %2948 = vmatpush2.xpose.msra.mxu0 0.0
        %2949 = vmatprep.subr.mxu0 0.0
        %2950 = vmatpush2.xpose.msra.mxu0 0.0
        %2951 = vmatprep.subr.mxu0 0.0
        %2952 = vmatpush2.xpose.msra.mxu0 0.0
        %2953 = vmatprep.subr.mxu0 0.0
        %2954 = vmatpush2.xpose.msra.mxu0 0.0
        %2955 = vmatprep.subr.mxu0 0.0
        %2956 = vmatpush2.xpose.msra.mxu0 0.0
        %2957 = vmatprep.subr.mxu0 0.0
        %2958 = vmatpush2.xpose.msra.mxu0 0.0
        %2959 = vmatprep.subr.mxu0 0.0
        %2960 = vmatpush2.xpose.msra.mxu0 0.0
        %2961 = vmatprep.subr.mxu0 0.0
        %2962 = vmatpush2.xpose.msra.mxu0 0.0
        %2963 = vmatprep.mubr.f32.mxu0 0.0
        %2964 = vmatmul.mubr.f32.gmra.mxu0 %v2895
        %v2965 = vpop.f32.mrf.mxu0
        %v2966 = vadd.f32 0.0, %v2965
        %v2967 = vpop.f32.mrf.mxu0
        %2968 = vdwg.mxu0
        %v2969 = vmul.f32 %v2966, 0.35355338
        %v2970 = vsel %vm1529, %v2969, -1e+09
        %v2971 = vsel %vm1448, %v2970, -inf
        %2972 = vmax.xlane.f32.xlu0 %v2971
        %v2973 = vpop.xlane.xlu0 %2972
        %v2974 = vsub.f32 %v2970, %v2973
        %v2975 = vmul.f32 %v2974, 1.442695
        %v2976 = vpow.pop %v2975
        %v2977 = vsel %vm1448, %v2976, 0.0
        %2978 = vadd.xlane.f32.xlu0 %v2977
        %v2979 = vpop.xlane.xlu0 %2978
        %v2980 = vrcp.pop %v2979
        %v2981 = vmul.f32 %v2976, %v2980
        %2982 = vrot.lane.b32.xlu0 %v2555, 48
        %v2983 = vpop.permute.xlu0 %2982
        %v2986 = vsel %vm1448, %v2981, 0
        %2988 = vmatprep.subr.mxu0 0.0
        %2989 = vmatpush1.msra.mxu0 0.0
        %2990 = vmatprep.subr.mxu0 0.0
        %2991 = vmatpush1.msra.mxu0 0.0
        %2992 = vmatprep.subr.mxu0 0.0
        %2993 = vmatpush1.msra.mxu0 0.0
        %2994 = vmatprep.subr.mxu0 0.0
        %2995 = vmatpush1.msra.mxu0 0.0
        %2996 = vmatprep.subr.mxu0 0.0
        %2997 = vmatpush1.msra.mxu0 0.0
        %2998 = vmatprep.subr.mxu0 0.0
        %2999 = vmatpush1.msra.mxu0 0.0
        %3000 = vmatprep.subr.mxu0 0.0
        %3001 = vmatpush1.msra.mxu0 0.0
        %3002 = vmatprep.subr.mxu0 0.0
        %3003 = vmatpush1.msra.mxu0 0.0
        %3004 = vmatprep.subr.mxu0 0.0
        %3005 = vmatpush1.msra.mxu0 0.0
        %3006 = vmatprep.subr.mxu0 0.0
        %3007 = vmatpush1.msra.mxu0 0.0
        %3008 = vmatprep.subr.mxu0 0.0
        %3009 = vmatpush1.msra.mxu0 0.0
        %3010 = vmatprep.subr.mxu0 0.0
        %3011 = vmatpush1.msra.mxu0 0.0
        %3012 = vmatprep.subr.mxu0 0.0
        %3013 = vmatpush1.msra.mxu0 0.0
        %3014 = vmatprep.subr.mxu0 0.0
        %3015 = vmatpush1.msra.mxu0 0.0
        %3016 = vmatprep.subr.mxu0 0.0
        %3017 = vmatpush1.msra.mxu0 0.0
        %3018 = vmatprep.subr.mxu0 0.0
        %3019 = vmatpush1.msra.mxu0 %v2983
        %3020 = vmatprep.subr.mxu0 0.0
        %3021 = vmatpush2.msra.mxu0 0.0
        %3022 = vmatprep.subr.mxu0 0.0
        %3023 = vmatpush2.msra.mxu0 0.0
        %3024 = vmatprep.subr.mxu0 0.0
        %3025 = vmatpush2.msra.mxu0 0.0
        %3026 = vmatprep.subr.mxu0 0.0
        %3027 = vmatpush2.msra.mxu0 0.0
        %3028 = vmatprep.subr.mxu0 0.0
        %3029 = vmatpush2.msra.mxu0 0.0
        %3030 = vmatprep.subr.mxu0 0.0
        %3031 = vmatpush2.msra.mxu0 0.0
        %3032 = vmatprep.subr.mxu0 0.0
        %3033 = vmatpush2.msra.mxu0 0.0
        %3034 = vmatprep.subr.mxu0 0.0
        %3035 = vmatpush2.msra.mxu0 0.0
        %3036 = vmatprep.subr.mxu0 0.0
        %3037 = vmatpush2.msra.mxu0 0.0
        %3038 = vmatprep.subr.mxu0 0.0
        %3039 = vmatpush2.msra.mxu0 0.0
        %3040 = vmatprep.subr.mxu0 0.0
        %3041 = vmatpush2.msra.mxu0 0.0
        %3042 = vmatprep.subr.mxu0 0.0
        %3043 = vmatpush2.msra.mxu0 0.0
        %3044 = vmatprep.subr.mxu0 0.0
        %3045 = vmatpush2.msra.mxu0 0.0
        %3046 = vmatprep.subr.mxu0 0.0
        %3047 = vmatpush2.msra.mxu0 0.0
        %3048 = vmatprep.subr.mxu0 0.0
        %3049 = vmatpush2.msra.mxu0 0.0
        %3050 = vmatprep.subr.mxu0 0.0
        %3051 = vmatpush2.msra.mxu0 0.0
        %3052 = vmatprep.mubr.f32.mxu0 0.0
        %3053 = vmatmul.mubr.f32.gmra.mxu0 %v2986
        %v3054 = vpop.f32.mrf.mxu0
        %v3055 = vadd.f32 0.0, %v3054
        %v3056 = vpop.f32.mrf.mxu0
        %3057 = vdwg.mxu0
        %3058 = vrot.lane.b32.xlu0 %v2555, 104
        %v3059 = vpop.permute.xlu0 %3058
        %3060 = vrot.lane.b32.xlu0 %v2555, 72
        %v3061 = vpop.permute.xlu0 %3060
        %v3062 = vsel %vm1448, %v3059, 0
        %v3064 = vsel %vm1448, %v3061, 0
        %3066 = vmatprep.subr.mxu0 0.0
        %3067 = vmatpush1.xpose.msra.mxu0 0.0
        %3068 = vmatprep.subr.mxu0 0.0
        %3069 = vmatpush1.xpose.msra.mxu0 0.0
        %3070 = vmatprep.subr.mxu0 0.0
        %3071 = vmatpush1.xpose.msra.mxu0 0.0
        %3072 = vmatprep.subr.mxu0 0.0
        %3073 = vmatpush1.xpose.msra.mxu0 0.0
        %3074 = vmatprep.subr.mxu0 0.0
        %3075 = vmatpush1.xpose.msra.mxu0 0.0
        %3076 = vmatprep.subr.mxu0 0.0
        %3077 = vmatpush1.xpose.msra.mxu0 0.0
        %3078 = vmatprep.subr.mxu0 0.0
        %3079 = vmatpush1.xpose.msra.mxu0 0.0
        %3080 = vmatprep.subr.mxu0 0.0
        %3081 = vmatpush1.xpose.msra.mxu0 0.0
        %3082 = vmatprep.subr.mxu0 0.0
        %3083 = vmatpush1.xpose.msra.mxu0 0.0
        %3084 = vmatprep.subr.mxu0 0.0
        %3085 = vmatpush1.xpose.msra.mxu0 0.0
        %3086 = vmatprep.subr.mxu0 0.0
        %3087 = vmatpush1.xpose.msra.mxu0 0.0
        %3088 = vmatprep.subr.mxu0 0.0
        %3089 = vmatpush1.xpose.msra.mxu0 0.0
        %3090 = vmatprep.subr.mxu0 0.0
        %3091 = vmatpush1.xpose.msra.mxu0 0.0
        %3092 = vmatprep.subr.mxu0 0.0
        %3093 = vmatpush1.xpose.msra.mxu0 0.0
        %3094 = vmatprep.subr.mxu0 0.0
        %3095 = vmatpush1.xpose.msra.mxu0 0.0
        %3096 = vmatprep.subr.mxu0 0.0
        %3097 = vmatpush1.xpose.msra.mxu0 %v3064
        %3098 = vmatprep.subr.mxu0 0.0
        %3099 = vmatpush2.xpose.msra.mxu0 0.0
        %3100 = vmatprep.subr.mxu0 0.0
        %3101 = vmatpush2.xpose.msra.mxu0 0.0
        %3102 = vmatprep.subr.mxu0 0.0
        %3103 = vmatpush2.xpose.msra.mxu0 0.0
        %3104 = vmatprep.subr.mxu0 0.0
        %3105 = vmatpush2.xpose.msra.mxu0 0.0
        %3106 = vmatprep.subr.mxu0 0.0
        %3107 = vmatpush2.xpose.msra.mxu0 0.0
        %3108 = vmatprep.subr.mxu0 0.0
        %3109 = vmatpush2.xpose.msra.mxu0 0.0
        %3110 = vmatprep.subr.mxu0 0.0
        %3111 = vmatpush2.xpose.msra.mxu0 0.0
        %3112 = vmatprep.subr.mxu0 0.0
        %3113 = vmatpush2.xpose.msra.mxu0 0.0
        %3114 = vmatprep.subr.mxu0 0.0
        %3115 = vmatpush2.xpose.msra.mxu0 0.0
        %3116 = vmatprep.subr.mxu0 0.0
        %3117 = vmatpush2.xpose.msra.mxu0 0.0
        %3118 = vmatprep.subr.mxu0 0.0
        %3119 = vmatpush2.xpose.msra.mxu0 0.0
        %3120 = vmatprep.subr.mxu0 0.0
        %3121 = vmatpush2.xpose.msra.mxu0 0.0
        %3122 = vmatprep.subr.mxu0 0.0
        %3123 = vmatpush2.xpose.msra.mxu0 0.0
        %3124 = vmatprep.subr.mxu0 0.0
        %3125 = vmatpush2.xpose.msra.mxu0 0.0
        %3126 = vmatprep.subr.mxu0 0.0
        %3127 = vmatpush2.xpose.msra.mxu0 0.0
        %3128 = vmatprep.subr.mxu0 0.0
        %3129 = vmatpush2.xpose.msra.mxu0 0.0
        %3130 = vmatprep.mubr.f32.mxu0 0.0
        %3131 = vmatmul.mubr.f32.gmra.mxu0 %v3062
        %v3132 = vpop.f32.mrf.mxu0
        %v3133 = vadd.f32 0.0, %v3132
        %v3134 = vpop.f32.mrf.mxu0
        %3135 = vdwg.mxu0
        %v3136 = vmul.f32 %v3133, 0.35355338
        %v3137 = vsel %vm1529, %v3136, -1e+09
        %v3138 = vsel %vm1448, %v3137, -inf
        %3139 = vmax.xlane.f32.xlu0 %v3138
        %v3140 = vpop.xlane.xlu0 %3139
        %v3141 = vsub.f32 %v3137, %v3140
        %v3142 = vmul.f32 %v3141, 1.442695
        %v3143 = vpow.pop %v3142
        %v3144 = vsel %vm1448, %v3143, 0.0
        %3145 = vadd.xlane.f32.xlu0 %v3144
        %v3146 = vpop.xlane.xlu0 %3145
        %v3147 = vrcp.pop %v3146
        %v3148 = vmul.f32 %v3143, %v3147
        %3149 = vrot.lane.b32.xlu0 %v2555, 40
        %v3150 = vpop.permute.xlu0 %3149
        %v3153 = vsel %vm1448, %v3148, 0
        %3155 = vmatprep.subr.mxu0 0.0
        %3156 = vmatpush1.msra.mxu0 0.0
        %3157 = vmatprep.subr.mxu0 0.0
        %3158 = vmatpush1.msra.mxu0 0.0
        %3159 = vmatprep.subr.mxu0 0.0
        %3160 = vmatpush1.msra.mxu0 0.0
        %3161 = vmatprep.subr.mxu0 0.0
        %3162 = vmatpush1.msra.mxu0 0.0
        %3163 = vmatprep.subr.mxu0 0.0
        %3164 = vmatpush1.msra.mxu0 0.0
        %3165 = vmatprep.subr.mxu0 0.0
        %3166 = vmatpush1.msra.mxu0 0.0
        %3167 = vmatprep.subr.mxu0 0.0
        %3168 = vmatpush1.msra.mxu0 0.0
        %3169 = vmatprep.subr.mxu0 0.0
        %3170 = vmatpush1.msra.mxu0 0.0
        %3171 = vmatprep.subr.mxu0 0.0
        %3172 = vmatpush1.msra.mxu0 0.0
        %3173 = vmatprep.subr.mxu0 0.0
        %3174 = vmatpush1.msra.mxu0 0.0
        %3175 = vmatprep.subr.mxu0 0.0
        %3176 = vmatpush1.msra.mxu0 0.0
        %3177 = vmatprep.subr.mxu0 0.0
        %3178 = vmatpush1.msra.mxu0 0.0
        %3179 = vmatprep.subr.mxu0 0.0
        %3180 = vmatpush1.msra.mxu0 0.0
        %3181 = vmatprep.subr.mxu0 0.0
        %3182 = vmatpush1.msra.mxu0 0.0
        %3183 = vmatprep.subr.mxu0 0.0
        %3184 = vmatpush1.msra.mxu0 0.0
        %3185 = vmatprep.subr.mxu0 0.0
        %3186 = vmatpush1.msra.mxu0 %v3150
        %3187 = vmatprep.subr.mxu0 0.0
        %3188 = vmatpush2.msra.mxu0 0.0
        %3189 = vmatprep.subr.mxu0 0.0
        %3190 = vmatpush2.msra.mxu0 0.0
        %3191 = vmatprep.subr.mxu0 0.0
        %3192 = vmatpush2.msra.mxu0 0.0
        %3193 = vmatprep.subr.mxu0 0.0
        %3194 = vmatpush2.msra.mxu0 0.0
        %3195 = vmatprep.subr.mxu0 0.0
        %3196 = vmatpush2.msra.mxu0 0.0
        %3197 = vmatprep.subr.mxu0 0.0
        %3198 = vmatpush2.msra.mxu0 0.0
        %3199 = vmatprep.subr.mxu0 0.0
        %3200 = vmatpush2.msra.mxu0 0.0
        %3201 = vmatprep.subr.mxu0 0.0
        %3202 = vmatpush2.msra.mxu0 0.0
        %3203 = vmatprep.subr.mxu0 0.0
        %3204 = vmatpush2.msra.mxu0 0.0
        %3205 = vmatprep.subr.mxu0 0.0
        %3206 = vmatpush2.msra.mxu0 0.0
        %3207 = vmatprep.subr.mxu0 0.0
        %3208 = vmatpush2.msra.mxu0 0.0
        %3209 = vmatprep.subr.mxu0 0.0
        %3210 = vmatpush2.msra.mxu0 0.0
        %3211 = vmatprep.subr.mxu0 0.0
        %3212 = vmatpush2.msra.mxu0 0.0
        %3213 = vmatprep.subr.mxu0 0.0
        %3214 = vmatpush2.msra.mxu0 0.0
        %3215 = vmatprep.subr.mxu0 0.0
        %3216 = vmatpush2.msra.mxu0 0.0
        %3217 = vmatprep.subr.mxu0 0.0
        %3218 = vmatpush2.msra.mxu0 0.0
        %3219 = vmatprep.mubr.f32.mxu0 0.0
        %3220 = vmatmul.mubr.f32.gmra.mxu0 %v3153
        %v3221 = vpop.f32.mrf.mxu0
        %v3222 = vadd.f32 0.0, %v3221
        %v3223 = vpop.f32.mrf.mxu0
        %3224 = vdwg.mxu0
        %3226 = vrot.lane.b32.xlu0 %v2888, 8
        %v3227 = vpop.permute.xlu0 %3226
        %3230 = vrot.lane.b32.xlu0 %v3055, 16
        %v3231 = vpop.permute.xlu0 %3230
        %3234 = vrot.lane.b32.xlu0 %v3222, 24
        %v3235 = vpop.permute.xlu0 %3234
        %v3237 = vsel %vm1448, %v2721, %v3227
        %v3238 = vsel %vm2132, %v3237, %v3231
        %v3239 = vsel %vm2134, %v3238, %v3235
        %v3241 = vlaneseq
        %v3242 = vshrl.u32 %v3241, 7
        %v3243 = vsub.s32 0, %v3242
        %v3244 = vrot.slane %v2478, %v3243
        %v3247 = vsel %vm1319, %v3239, 0
        %3249 = vmatprep.subr.mxu0 0.0
        %3250 = vmatpush1.msra.mxu0 0.0
        %3251 = vmatprep.subr.mxu0 0.0
        %3252 = vmatpush1.msra.mxu0 0.0
        %3253 = vmatprep.subr.mxu0 0.0
        %3254 = vmatpush1.msra.mxu0 0.0
        %3255 = vmatprep.subr.mxu0 0.0
        %3256 = vmatpush1.msra.mxu0 0.0
        %3257 = vmatprep.subr.mxu0 0.0
        %3258 = vmatpush1.msra.mxu0 0.0
        %3259 = vmatprep.subr.mxu0 0.0
        %3260 = vmatpush1.msra.mxu0 0.0
        %3261 = vmatprep.subr.mxu0 0.0
        %3262 = vmatpush1.msra.mxu0 0.0
        %3263 = vmatprep.subr.mxu0 0.0
        %3264 = vmatpush1.msra.mxu0 0.0
        %3265 = vmatprep.subr.mxu0 0.0
        %3266 = vmatpush1.msra.mxu0 0.0
        %3267 = vmatprep.subr.mxu0 0.0
        %3268 = vmatpush1.msra.mxu0 0.0
        %3269 = vmatprep.subr.mxu0 0.0
        %3270 = vmatpush1.msra.mxu0 0.0
        %3271 = vmatprep.subr.mxu0 0.0
        %3272 = vmatpush1.msra.mxu0 0.0
        %3273 = vmatprep.subr.mxu0 0.0
        %3274 = vmatpush1.msra.mxu0 %v2476
        %3275 = vmatprep.subr.mxu0 0.0
        %3276 = vmatpush1.msra.mxu0 %v2475
        %3277 = vmatprep.subr.mxu0 0.0
        %3278 = vmatpush1.msra.mxu0 %v2474
        %3279 = vmatprep.subr.mxu0 0.0
        %3280 = vmatpush1.msra.mxu0 %v2473
        %3281 = vmatprep.subr.mxu0 0.0
        %3282 = vmatpush2.msra.mxu0 0.0
        %3283 = vmatprep.subr.mxu0 0.0
        %3284 = vmatpush2.msra.mxu0 0.0
        %3285 = vmatprep.subr.mxu0 0.0
        %3286 = vmatpush2.msra.mxu0 0.0
        %3287 = vmatprep.subr.mxu0 0.0
        %3288 = vmatpush2.msra.mxu0 0.0
        %3289 = vmatprep.subr.mxu0 0.0
        %3290 = vmatpush2.msra.mxu0 0.0
        %3291 = vmatprep.subr.mxu0 0.0
        %3292 = vmatpush2.msra.mxu0 0.0
        %3293 = vmatprep.subr.mxu0 0.0
        %3294 = vmatpush2.msra.mxu0 0.0
        %3295 = vmatprep.subr.mxu0 0.0
        %3296 = vmatpush2.msra.mxu0 0.0
        %3297 = vmatprep.subr.mxu0 0.0
        %3298 = vmatpush2.msra.mxu0 0.0
        %3299 = vmatprep.subr.mxu0 0.0
        %3300 = vmatpush2.msra.mxu0 0.0
        %3301 = vmatprep.subr.mxu0 0.0
        %3302 = vmatpush2.msra.mxu0 0.0
        %3303 = vmatprep.subr.mxu0 0.0
        %3304 = vmatpush2.msra.mxu0 0.0
        %3305 = vmatprep.subr.mxu0 0.0
        %3306 = vmatpush2.msra.mxu0 0.0
        %3307 = vmatprep.subr.mxu0 0.0
        %3308 = vmatpush2.msra.mxu0 0.0
        %3309 = vmatprep.subr.mxu0 0.0
        %3310 = vmatpush2.msra.mxu0 0.0
        %3311 = vmatprep.subr.mxu0 0.0
        %3312 = vmatpush2.msra.mxu0 0.0
        %3313 = vmatprep.mubr.f32.mxu0 0.0
        %3314 = vmatmul.mubr.f32.gmra.mxu0 %v3247
        %v3315 = vpop.f32.mrf.mxu0
        %v3316 = vadd.f32 %v3244, %v3315
        %v3317 = vpop.f32.mrf.mxu0
        %3318 = vdwg.mxu0
        %v3319 = vadd.f32 %v2426, %v3316
        %s3320 = scalar_lea.vmem %s71, 1
        %v3321 = vld [vmem:[%s3320] sm:$0x1]
        %s3322 = scalar_lea.vmem %s69, 1
        %v3323 = vld [vmem:[%s3322] sm:$0x1]
        %v3324 = vsel %vm1319, %v3319, 0.0
        %3325 = vadd.xlane.f32.xlu0 %v3324
        %v3326 = vpop.xlane.xlu0 %3325
        %v3327 = vmul.f32 %v3326, %v1323
        %v3328 = vsub.f32 %v3319, %v3327
        %v3329 = vmul.f32 %v3328, %v3328
        %v3330 = vsel %vm1319, %v3329, 0.0
        %3331 = vadd.xlane.f32.xlu0 %v3330
        %v3332 = vpop.xlane.xlu0 %3331
        %v3333 = vmul.f32 %v3332, %v1330
        %v3335 = vlaneseq
        %v3336 = vshrl.u32 %v3335, 7
        %v3337 = vsub.s32 0, %v3336
        %v3338 = vrot.slane %v3321, %v3337
        %v3340 = vmul.f32 %v3338, %v3328
        %v3341 = vrsqrt.pop %v3333
        %v3342 = vmul.f32 %v3333, %v3341
        %vm3343 = vcmp.eq.f32.partialorder %v3333, inf
        %v3344 = vsel %vm3343, %v3333, %v3342
        %vm3345 = vcmp.eq.f32.partialorder %v3333, 0.0
        %v3346 = vand.u32 %v3333, 2147483648
        %v3347 = vsel %vm3345, %v3346, %v3344
        %v3348 = vadd.f32 %v3347, 1e-06
        %v3349 = vrcp.pop %v3348
        %v3350 = vmul.f32 %v3340, %v3349
        %v3352 = vlaneseq
        %v3353 = vshrl.u32 %v3352, 7
        %v3354 = vsub.s32 0, %v3353
        %v3355 = vrot.slane %v3323, %v3354
        %v3357 = vadd.f32 %v3350, %v3355
        %s3358 = scalar_lea.vmem %s61, 32
        %v3359 = vld [vmem:[%s3358] sm:$0xff]
        %v3360 = vld [vmem:[%s3358 + $0x8] sm:$0xff]
        %v3361 = vld [vmem:[%s3358 + $0x10] sm:$0xff]
        %v3362 = vld [vmem:[%s3358 + $0x18] sm:$0xff]
        %s3363 = scalar_lea.vmem %s57, 1
        %v3364 = vld [vmem:[%s3363] sm:$0x1]
        %s3365 = scalar_lea.vmem %s63, 64
        %v3366 = vld [vmem:[%s3365] sm:$0xff]
        %v3367 = vld [vmem:[%s3365 + $0x8] sm:$0xff]
        %v3368 = vld [vmem:[%s3365 + $0x10] sm:$0xff]
        %v3369 = vld [vmem:[%s3365 + $0x18] sm:$0xff]
        %v3370 = vld [vmem:[%s3365 + $0x20] sm:$0xff]
        %v3371 = vld [vmem:[%s3365 + $0x28] sm:$0xff]
        %v3372 = vld [vmem:[%s3365 + $0x30] sm:$0xff]
        %v3373 = vld [vmem:[%s3365 + $0x38] sm:$0xff]
        %s3374 = scalar_lea.vmem %s59, 1
        %v3375 = vld [vmem:[%s3374] sm:$0x1]
        %v3377 = vlaneseq
        %v3378 = vshrl.u32 %v3377, 7
        %v3379 = vsub.s32 0, %v3378
        %v3380 = vrot.slane %v3364, %v3379
        %v3383 = vsel %vm1319, %v3357, 0
        %3385 = vmatprep.subr.mxu0 0.0
        %3386 = vmatpush1.msra.mxu0 0.0
        %3387 = vmatprep.subr.mxu0 0.0
        %3388 = vmatpush1.msra.mxu0 0.0
        %3389 = vmatprep.subr.mxu0 0.0
        %3390 = vmatpush1.msra.mxu0 0.0
        %3391 = vmatprep.subr.mxu0 0.0
        %3392 = vmatpush1.msra.mxu0 0.0
        %3393 = vmatprep.subr.mxu0 0.0
        %3394 = vmatpush1.msra.mxu0 0.0
        %3395 = vmatprep.subr.mxu0 0.0
        %3396 = vmatpush1.msra.mxu0 0.0
        %3397 = vmatprep.subr.mxu0 0.0
        %3398 = vmatpush1.msra.mxu0 0.0
        %3399 = vmatprep.subr.mxu0 0.0
        %3400 = vmatpush1.msra.mxu0 0.0
        %3401 = vmatprep.subr.mxu0 0.0
        %3402 = vmatpush1.msra.mxu0 0.0
        %3403 = vmatprep.subr.mxu0 0.0
        %3404 = vmatpush1.msra.mxu0 0.0
        %3405 = vmatprep.subr.mxu0 0.0
        %3406 = vmatpush1.msra.mxu0 0.0
        %3407 = vmatprep.subr.mxu0 0.0
        %3408 = vmatpush1.msra.mxu0 0.0
        %3409 = vmatprep.subr.mxu0 0.0
        %3410 = vmatpush1.msra.mxu0 %v3362
        %3411 = vmatprep.subr.mxu0 0.0
        %3412 = vmatpush1.msra.mxu0 %v3361
        %3413 = vmatprep.subr.mxu0 0.0
        %3414 = vmatpush1.msra.mxu0 %v3360
        %3415 = vmatprep.subr.mxu0 0.0
        %3416 = vmatpush1.msra.mxu0 %v3359
        %3417 = vmatprep.subr.mxu0 0.0
        %3418 = vmatpush2.msra.mxu0 0.0
        %3419 = vmatprep.subr.mxu0 0.0
        %3420 = vmatpush2.msra.mxu0 0.0
        %3421 = vmatprep.subr.mxu0 0.0
        %3422 = vmatpush2.msra.mxu0 0.0
        %3423 = vmatprep.subr.mxu0 0.0
        %3424 = vmatpush2.msra.mxu0 0.0
        %3425 = vmatprep.subr.mxu0 0.0
        %3426 = vmatpush2.msra.mxu0 0.0
        %3427 = vmatprep.subr.mxu0 0.0
        %3428 = vmatpush2.msra.mxu0 0.0
        %3429 = vmatprep.subr.mxu0 0.0
        %3430 = vmatpush2.msra.mxu0 0.0
        %3431 = vmatprep.subr.mxu0 0.0
        %3432 = vmatpush2.msra.mxu0 0.0
        %3433 = vmatprep.subr.mxu0 0.0
        %3434 = vmatpush2.msra.mxu0 0.0
        %3435 = vmatprep.subr.mxu0 0.0
        %3436 = vmatpush2.msra.mxu0 0.0
        %3437 = vmatprep.subr.mxu0 0.0
        %3438 = vmatpush2.msra.mxu0 0.0
        %3439 = vmatprep.subr.mxu0 0.0
        %3440 = vmatpush2.msra.mxu0 0.0
        %3441 = vmatprep.subr.mxu0 0.0
        %3442 = vmatpush2.msra.mxu0 0.0
        %3443 = vmatprep.subr.mxu0 0.0
        %3444 = vmatpush2.msra.mxu0 0.0
        %3445 = vmatprep.subr.mxu0 0.0
        %3446 = vmatpush2.msra.mxu0 0.0
        %3447 = vmatprep.subr.mxu0 0.0
        %3448 = vmatpush2.msra.mxu0 0.0
        %3449 = vmatprep.mubr.f32.mxu0 0.0
        %3450 = vmatmul.mubr.f32.gmra.mxu0 %v3383
        %v3451 = vpop.f32.mrf.mxu0
        %v3452 = vadd.f32 %v3380, %v3451
        %v3453 = vpop.f32.mrf.mxu0
        %3454 = vdwg.mxu0
        %v3455 = vmax.f32 %v3452, 0.0
        %v3457 = vlaneseq
        %v3458 = vshrl.u32 %v3457, 7
        %v3459 = vsub.s32 0, %v3458
        %v3460 = vrot.slane %v3375, %v3459
        %v3463 = vsel %vm2352, %v3455, 0
        %3465 = vmatprep.subr.mxu0 0.0
        %3466 = vmatpush1.msra.mxu0 0.0
        %3467 = vmatprep.subr.mxu0 0.0
        %3468 = vmatpush1.msra.mxu0 0.0
        %3469 = vmatprep.subr.mxu0 0.0
        %3470 = vmatpush1.msra.mxu0 0.0
        %3471 = vmatprep.subr.mxu0 0.0
        %3472 = vmatpush1.msra.mxu0 0.0
        %3473 = vmatprep.subr.mxu0 0.0
        %3474 = vmatpush1.msra.mxu0 0.0
        %3475 = vmatprep.subr.mxu0 0.0
        %3476 = vmatpush1.msra.mxu0 0.0
        %3477 = vmatprep.subr.mxu0 0.0
        %3478 = vmatpush1.msra.mxu0 0.0
        %3479 = vmatprep.subr.mxu0 0.0
        %3480 = vmatpush1.msra.mxu0 0.0
        %3481 = vmatprep.subr.mxu0 0.0
        %3482 = vmatpush1.msra.mxu0 %v3373
        %3483 = vmatprep.subr.mxu0 0.0
        %3484 = vmatpush1.msra.mxu0 %v3372
        %3485 = vmatprep.subr.mxu0 0.0
        %3486 = vmatpush1.msra.mxu0 %v3371
        %3487 = vmatprep.subr.mxu0 0.0
        %3488 = vmatpush1.msra.mxu0 %v3370
        %3489 = vmatprep.subr.mxu0 0.0
        %3490 = vmatpush1.msra.mxu0 %v3369
        %3491 = vmatprep.subr.mxu0 0.0
        %3492 = vmatpush1.msra.mxu0 %v3368
        %3493 = vmatprep.subr.mxu0 0.0
        %3494 = vmatpush1.msra.mxu0 %v3367
        %3495 = vmatprep.subr.mxu0 0.0
        %3496 = vmatpush1.msra.mxu0 %v3366
        %3497 = vmatprep.subr.mxu0 0.0
        %3498 = vmatpush2.msra.mxu0 0.0
        %3499 = vmatprep.subr.mxu0 0.0
        %3500 = vmatpush2.msra.mxu0 0.0
        %3501 = vmatprep.subr.mxu0 0.0
        %3502 = vmatpush2.msra.mxu0 0.0
        %3503 = vmatprep.subr.mxu0 0.0
        %3504 = vmatpush2.msra.mxu0 0.0
        %3505 = vmatprep.subr.mxu0 0.0
        %3506 = vmatpush2.msra.mxu0 0.0
        %3507 = vmatprep.subr.mxu0 0.0
        %3508 = vmatpush2.msra.mxu0 0.0
        %3509 = vmatprep.subr.mxu0 0.0
        %3510 = vmatpush2.msra.mxu0 0.0
        %3511 = vmatprep.subr.mxu0 0.0
        %3512 = vmatpush2.msra.mxu0 0.0
        %3513 = vmatprep.subr.mxu0 0.0
        %3514 = vmatpush2.msra.mxu0 0.0
        %3515 = vmatprep.subr.mxu0 0.0
        %3516 = vmatpush2.msra.mxu0 0.0
        %3517 = vmatprep.subr.mxu0 0.0
        %3518 = vmatpush2.msra.mxu0 0.0
        %3519 = vmatprep.subr.mxu0 0.0
        %3520 = vmatpush2.msra.mxu0 0.0
        %3521 = vmatprep.subr.mxu0 0.0
        %3522 = vmatpush2.msra.mxu0 0.0
        %3523 = vmatprep.subr.mxu0 0.0
        %3524 = vmatpush2.msra.mxu0 0.0
        %3525 = vmatprep.subr.mxu0 0.0
        %3526 = vmatpush2.msra.mxu0 0.0
        %3527 = vmatprep.subr.mxu0 0.0
        %3528 = vmatpush2.msra.mxu0 0.0
        %3529 = vmatprep.mubr.f32.mxu0 0.0
        %3530 = vmatmul.mubr.f32.gmra.mxu0 %v3463
        %v3531 = vpop.f32.mrf.mxu0
        %v3532 = vadd.f32 %v3460, %v3531
        %v3533 = vpop.f32.mrf.mxu0
        %3534 = vdwg.mxu0
        %v3535 = vadd.f32 %v3319, %v3532
        %v3536 = vld [vmem:[%s75] sm:$0x1]
        %v3537 = vld [vmem:[%s73] sm:$0x1]
        %v3538 = vsel %vm1319, %v3535, 0.0
        %3539 = vadd.xlane.f32.xlu0 %v3538
        %v3540 = vpop.xlane.xlu0 %3539
        %v3541 = vmul.f32 %v3540, %v1323
        %v3542 = vsub.f32 %v3535, %v3541
        %v3543 = vmul.f32 %v3542, %v3542
        %v3544 = vsel %vm1319, %v3543, 0.0
        %3545 = vadd.xlane.f32.xlu0 %v3544
        %v3546 = vpop.xlane.xlu0 %3545
        %v3547 = vmul.f32 %v3546, %v1330
        %v3549 = vlaneseq
        %v3550 = vshrl.u32 %v3549, 7
        %v3551 = vsub.s32 0, %v3550
        %v3552 = vrot.slane %v3536, %v3551
        %v3554 = vmul.f32 %v3552, %v3542
        %v3555 = vrsqrt.pop %v3547
        %v3556 = vmul.f32 %v3547, %v3555
        %vm3557 = vcmp.eq.f32.partialorder %v3547, inf
        %v3558 = vsel %vm3557, %v3547, %v3556
        %vm3559 = vcmp.eq.f32.partialorder %v3547, 0.0
        %v3560 = vand.u32 %v3547, 2147483648
        %v3561 = vsel %vm3559, %v3560, %v3558
        %v3562 = vadd.f32 %v3561, 1e-06
        %v3563 = vrcp.pop %v3562
        %v3564 = vmul.f32 %v3554, %v3563
        %v3566 = vlaneseq
        %v3567 = vshrl.u32 %v3566, 7
        %v3568 = vsub.s32 0, %v3567
        %v3569 = vrot.slane %v3537, %v3568
        %v3571 = vadd.f32 %v3564, %v3569
        %v3572 = vlaneseq
        %v3573 = vshrl.u32 %v3572, 7
        %v3574 = vlaneseq
        %v3575 = vand.u32 %v3574, 127
        %vm3576 = vcmp.ge.s32.totalorder %v3573, %v3575
        %v3577 = vsel %vm1310, 1, 0
        %v3578 = vlaneseq
        %v3579 = vshrl.u32 %v3578, 7
        %v3580 = vsub.s32 0, %v3579
        %v3581 = vrot.slane %v3577, %v3580
        %vm3582 = vcmp.eq.s32.totalorder %v3581, 1
        %vm3583 = vmand %vm3582, %vm3576
        %v3584 = vmul.f32 %v1312, 5.656854
        %v3585 = vadd.f32 %v3584, %v1314
        %v3586 = vld [vmem:[%s35] sm:$0x1]
        %v3587 = vld [vmem:[%s33] sm:$0x1]
        %v3588 = vsel %vm1319, %v3585, 0.0
        %3589 = vadd.xlane.f32.xlu0 %v3588
        %v3590 = vpop.xlane.xlu0 %3589
        %v3591 = vmul.f32 %v3590, %v1323
        %v3592 = vsub.f32 %v3585, %v3591
        %v3593 = vmul.f32 %v3592, %v3592
        %v3594 = vsel %vm1319, %v3593, 0.0
        %3595 = vadd.xlane.f32.xlu0 %v3594
        %v3596 = vpop.xlane.xlu0 %3595
        %v3597 = vmul.f32 %v3596, %v1330
        %v3599 = vlaneseq
        %v3600 = vshrl.u32 %v3599, 7
        %v3601 = vsub.s32 0, %v3600
        %v3602 = vrot.slane %v3586, %v3601
        %v3604 = vmul.f32 %v3602, %v3592
        %v3605 = vrsqrt.pop %v3597
        %v3606 = vmul.f32 %v3597, %v3605
        %vm3607 = vcmp.eq.f32.partialorder %v3597, inf
        %v3608 = vsel %vm3607, %v3597, %v3606
        %vm3609 = vcmp.eq.f32.partialorder %v3597, 0.0
        %v3610 = vand.u32 %v3597, 2147483648
        %v3611 = vsel %vm3609, %v3610, %v3608
        %v3612 = vadd.f32 %v3611, 1e-06
        %v3613 = vrcp.pop %v3612
        %v3614 = vmul.f32 %v3604, %v3613
        %v3616 = vlaneseq
        %v3617 = vshrl.u32 %v3616, 7
        %v3618 = vsub.s32 0, %v3617
        %v3619 = vrot.slane %v3587, %v3618
        %v3621 = vadd.f32 %v3614, %v3619
        %v3622 = vld [vmem:[%s55] sm:$0xff]
        %v3623 = vld [vmem:[%s55 + $0x8] sm:$0xff]
        %v3624 = vld [vmem:[%s55 + $0x10] sm:$0xff]
        %v3625 = vld [vmem:[%s55 + $0x18] sm:$0xff]
        %v3626 = vld [vmem:[%s53] sm:$0x1]
        %v3627 = vld [vmem:[%s51] sm:$0xff]
        %v3628 = vld [vmem:[%s51 + $0x8] sm:$0xff]
        %v3629 = vld [vmem:[%s51 + $0x10] sm:$0xff]
        %v3630 = vld [vmem:[%s51 + $0x18] sm:$0xff]
        %v3631 = vld [vmem:[%s49] sm:$0x1]
        %v3633 = vlaneseq
        %v3634 = vshrl.u32 %v3633, 7
        %v3635 = vsub.s32 0, %v3634
        %v3636 = vrot.slane %v3626, %v3635
        %v3639 = vsel %vm1319, %v3621, 0
        %3641 = vmatprep.subr.mxu0 0.0
        %3642 = vmatpush1.msra.mxu0 0.0
        %3643 = vmatprep.subr.mxu0 0.0
        %3644 = vmatpush1.msra.mxu0 0.0
        %3645 = vmatprep.subr.mxu0 0.0
        %3646 = vmatpush1.msra.mxu0 0.0
        %3647 = vmatprep.subr.mxu0 0.0
        %3648 = vmatpush1.msra.mxu0 0.0
        %3649 = vmatprep.subr.mxu0 0.0
        %3650 = vmatpush1.msra.mxu0 0.0
        %3651 = vmatprep.subr.mxu0 0.0
        %3652 = vmatpush1.msra.mxu0 0.0
        %3653 = vmatprep.subr.mxu0 0.0
        %3654 = vmatpush1.msra.mxu0 0.0
        %3655 = vmatprep.subr.mxu0 0.0
        %3656 = vmatpush1.msra.mxu0 0.0
        %3657 = vmatprep.subr.mxu0 0.0
        %3658 = vmatpush1.msra.mxu0 0.0
        %3659 = vmatprep.subr.mxu0 0.0
        %3660 = vmatpush1.msra.mxu0 0.0
        %3661 = vmatprep.subr.mxu0 0.0
        %3662 = vmatpush1.msra.mxu0 0.0
        %3663 = vmatprep.subr.mxu0 0.0
        %3664 = vmatpush1.msra.mxu0 0.0
        %3665 = vmatprep.subr.mxu0 0.0
        %3666 = vmatpush1.msra.mxu0 %v3625
        %3667 = vmatprep.subr.mxu0 0.0
        %3668 = vmatpush1.msra.mxu0 %v3624
        %3669 = vmatprep.subr.mxu0 0.0
        %3670 = vmatpush1.msra.mxu0 %v3623
        %3671 = vmatprep.subr.mxu0 0.0
        %3672 = vmatpush1.msra.mxu0 %v3622
        %3673 = vmatprep.subr.mxu0 0.0
        %3674 = vmatpush2.msra.mxu0 0.0
        %3675 = vmatprep.subr.mxu0 0.0
        %3676 = vmatpush2.msra.mxu0 0.0
        %3677 = vmatprep.subr.mxu0 0.0
        %3678 = vmatpush2.msra.mxu0 0.0
        %3679 = vmatprep.subr.mxu0 0.0
        %3680 = vmatpush2.msra.mxu0 0.0
        %3681 = vmatprep.subr.mxu0 0.0
        %3682 = vmatpush2.msra.mxu0 0.0
        %3683 = vmatprep.subr.mxu0 0.0
        %3684 = vmatpush2.msra.mxu0 0.0
        %3685 = vmatprep.subr.mxu0 0.0
        %3686 = vmatpush2.msra.mxu0 0.0
        %3687 = vmatprep.subr.mxu0 0.0
        %3688 = vmatpush2.msra.mxu0 0.0
        %3689 = vmatprep.subr.mxu0 0.0
        %3690 = vmatpush2.msra.mxu0 0.0
        %3691 = vmatprep.subr.mxu0 0.0
        %3692 = vmatpush2.msra.mxu0 0.0
        %3693 = vmatprep.subr.mxu0 0.0
        %3694 = vmatpush2.msra.mxu0 0.0
        %3695 = vmatprep.subr.mxu0 0.0
        %3696 = vmatpush2.msra.mxu0 0.0
        %3697 = vmatprep.subr.mxu0 0.0
        %3698 = vmatpush2.msra.mxu0 0.0
        %3699 = vmatprep.subr.mxu0 0.0
        %3700 = vmatpush2.msra.mxu0 0.0
        %3701 = vmatprep.subr.mxu0 0.0
        %3702 = vmatpush2.msra.mxu0 0.0
        %3703 = vmatprep.subr.mxu0 0.0
        %3704 = vmatpush2.msra.mxu0 0.0
        %3705 = vmatprep.mubr.f32.mxu0 0.0
        %3706 = vmatmul.mubr.f32.gmra.mxu0 %v3639
        %v3707 = vpop.f32.mrf.mxu0
        %v3708 = vadd.f32 %v3636, %v3707
        %v3709 = vpop.f32.mrf.mxu0
        %3710 = vdwg.mxu0
        %3712 = vrot.lane.b32.xlu0 %v3708, 96
        %v3713 = vpop.permute.xlu0 %3712
        %v3714 = vsel %vm1448, %v3708, 0
        %v3716 = vsel %vm1448, %v3713, 0
        %3718 = vmatprep.subr.mxu0 0.0
        %3719 = vmatpush1.xpose.msra.mxu0 0.0
        %3720 = vmatprep.subr.mxu0 0.0
        %3721 = vmatpush1.xpose.msra.mxu0 0.0
        %3722 = vmatprep.subr.mxu0 0.0
        %3723 = vmatpush1.xpose.msra.mxu0 0.0
        %3724 = vmatprep.subr.mxu0 0.0
        %3725 = vmatpush1.xpose.msra.mxu0 0.0
        %3726 = vmatprep.subr.mxu0 0.0
        %3727 = vmatpush1.xpose.msra.mxu0 0.0
        %3728 = vmatprep.subr.mxu0 0.0
        %3729 = vmatpush1.xpose.msra.mxu0 0.0
        %3730 = vmatprep.subr.mxu0 0.0
        %3731 = vmatpush1.xpose.msra.mxu0 0.0
        %3732 = vmatprep.subr.mxu0 0.0
        %3733 = vmatpush1.xpose.msra.mxu0 0.0
        %3734 = vmatprep.subr.mxu0 0.0
        %3735 = vmatpush1.xpose.msra.mxu0 0.0
        %3736 = vmatprep.subr.mxu0 0.0
        %3737 = vmatpush1.xpose.msra.mxu0 0.0
        %3738 = vmatprep.subr.mxu0 0.0
        %3739 = vmatpush1.xpose.msra.mxu0 0.0
        %3740 = vmatprep.subr.mxu0 0.0
        %3741 = vmatpush1.xpose.msra.mxu0 0.0
        %3742 = vmatprep.subr.mxu0 0.0
        %3743 = vmatpush1.xpose.msra.mxu0 0.0
        %3744 = vmatprep.subr.mxu0 0.0
        %3745 = vmatpush1.xpose.msra.mxu0 0.0
        %3746 = vmatprep.subr.mxu0 0.0
        %3747 = vmatpush1.xpose.msra.mxu0 0.0
        %3748 = vmatprep.subr.mxu0 0.0
        %3749 = vmatpush1.xpose.msra.mxu0 %v3716
        %3750 = vmatprep.subr.mxu0 0.0
        %3751 = vmatpush2.xpose.msra.mxu0 0.0
        %3752 = vmatprep.subr.mxu0 0.0
        %3753 = vmatpush2.xpose.msra.mxu0 0.0
        %3754 = vmatprep.subr.mxu0 0.0
        %3755 = vmatpush2.xpose.msra.mxu0 0.0
        %3756 = vmatprep.subr.mxu0 0.0
        %3757 = vmatpush2.xpose.msra.mxu0 0.0
        %3758 = vmatprep.subr.mxu0 0.0
        %3759 = vmatpush2.xpose.msra.mxu0 0.0
        %3760 = vmatprep.subr.mxu0 0.0
        %3761 = vmatpush2.xpose.msra.mxu0 0.0
        %3762 = vmatprep.subr.mxu0 0.0
        %3763 = vmatpush2.xpose.msra.mxu0 0.0
        %3764 = vmatprep.subr.mxu0 0.0
        %3765 = vmatpush2.xpose.msra.mxu0 0.0
        %3766 = vmatprep.subr.mxu0 0.0
        %3767 = vmatpush2.xpose.msra.mxu0 0.0
        %3768 = vmatprep.subr.mxu0 0.0
        %3769 = vmatpush2.xpose.msra.mxu0 0.0
        %3770 = vmatprep.subr.mxu0 0.0
        %3771 = vmatpush2.xpose.msra.mxu0 0.0
        %3772 = vmatprep.subr.mxu0 0.0
        %3773 = vmatpush2.xpose.msra.mxu0 0.0
        %3774 = vmatprep.subr.mxu0 0.0
        %3775 = vmatpush2.xpose.msra.mxu0 0.0
        %3776 = vmatprep.subr.mxu0 0.0
        %3777 = vmatpush2.xpose.msra.mxu0 0.0
        %3778 = vmatprep.subr.mxu0 0.0
        %3779 = vmatpush2.xpose.msra.mxu0 0.0
        %3780 = vmatprep.subr.mxu0 0.0
        %3781 = vmatpush2.xpose.msra.mxu0 0.0
        %3782 = vmatprep.mubr.f32.mxu0 0.0
        %3783 = vmatmul.mubr.f32.gmra.mxu0 %v3714
        %v3784 = vpop.f32.mrf.mxu0
        %v3785 = vadd.f32 0.0, %v3784
        %v3786 = vpop.f32.mrf.mxu0
        %3787 = vdwg.mxu0
        %v3788 = vmul.f32 %v3785, 0.35355338
        %v3789 = vsel %vm3583, %v3788, -1e+09
        %v3790 = vsel %vm1448, %v3789, -inf
        %3791 = vmax.xlane.f32.xlu0 %v3790
        %v3792 = vpop.xlane.xlu0 %3791
        %v3793 = vsub.f32 %v3789, %v3792
        %v3794 = vmul.f32 %v3793, 1.442695
        %v3795 = vpow.pop %v3794
        %v3796 = vsel %vm1448, %v3795, 0.0
        %3797 = vadd.xlane.f32.xlu0 %v3796
        %v3798 = vpop.xlane.xlu0 %3797
        %v3799 = vrcp.pop %v3798
        %v3800 = vmul.f32 %v3795, %v3799
        %3801 = vrot.lane.b32.xlu0 %v3708, 64
        %v3802 = vpop.permute.xlu0 %3801
        %v3805 = vsel %vm1448, %v3800, 0
        %3807 = vmatprep.subr.mxu0 0.0
        %3808 = vmatpush1.msra.mxu0 0.0
        %3809 = vmatprep.subr.mxu0 0.0
        %3810 = vmatpush1.msra.mxu0 0.0
        %3811 = vmatprep.subr.mxu0 0.0
        %3812 = vmatpush1.msra.mxu0 0.0
        %3813 = vmatprep.subr.mxu0 0.0
        %3814 = vmatpush1.msra.mxu0 0.0
        %3815 = vmatprep.subr.mxu0 0.0
        %3816 = vmatpush1.msra.mxu0 0.0
        %3817 = vmatprep.subr.mxu0 0.0
        %3818 = vmatpush1.msra.mxu0 0.0
        %3819 = vmatprep.subr.mxu0 0.0
        %3820 = vmatpush1.msra.mxu0 0.0
        %3821 = vmatprep.subr.mxu0 0.0
        %3822 = vmatpush1.msra.mxu0 0.0
        %3823 = vmatprep.subr.mxu0 0.0
        %3824 = vmatpush1.msra.mxu0 0.0
        %3825 = vmatprep.subr.mxu0 0.0
        %3826 = vmatpush1.msra.mxu0 0.0
        %3827 = vmatprep.subr.mxu0 0.0
        %3828 = vmatpush1.msra.mxu0 0.0
        %3829 = vmatprep.subr.mxu0 0.0
        %3830 = vmatpush1.msra.mxu0 0.0
        %3831 = vmatprep.subr.mxu0 0.0
        %3832 = vmatpush1.msra.mxu0 0.0
        %3833 = vmatprep.subr.mxu0 0.0
        %3834 = vmatpush1.msra.mxu0 0.0
        %3835 = vmatprep.subr.mxu0 0.0
        %3836 = vmatpush1.msra.mxu0 0.0
        %3837 = vmatprep.subr.mxu0 0.0
        %3838 = vmatpush1.msra.mxu0 %v3802
        %3839 = vmatprep.subr.mxu0 0.0
        %3840 = vmatpush2.msra.mxu0 0.0
        %3841 = vmatprep.subr.mxu0 0.0
        %3842 = vmatpush2.msra.mxu0 0.0
        %3843 = vmatprep.subr.mxu0 0.0
        %3844 = vmatpush2.msra.mxu0 0.0
        %3845 = vmatprep.subr.mxu0 0.0
        %3846 = vmatpush2.msra.mxu0 0.0
        %3847 = vmatprep.subr.mxu0 0.0
        %3848 = vmatpush2.msra.mxu0 0.0
        %3849 = vmatprep.subr.mxu0 0.0
        %3850 = vmatpush2.msra.mxu0 0.0
        %3851 = vmatprep.subr.mxu0 0.0
        %3852 = vmatpush2.msra.mxu0 0.0
        %3853 = vmatprep.subr.mxu0 0.0
        %3854 = vmatpush2.msra.mxu0 0.0
        %3855 = vmatprep.subr.mxu0 0.0
        %3856 = vmatpush2.msra.mxu0 0.0
        %3857 = vmatprep.subr.mxu0 0.0
        %3858 = vmatpush2.msra.mxu0 0.0
        %3859 = vmatprep.subr.mxu0 0.0
        %3860 = vmatpush2.msra.mxu0 0.0
        %3861 = vmatprep.subr.mxu0 0.0
        %3862 = vmatpush2.msra.mxu0 0.0
        %3863 = vmatprep.subr.mxu0 0.0
        %3864 = vmatpush2.msra.mxu0 0.0
        %3865 = vmatprep.subr.mxu0 0.0
        %3866 = vmatpush2.msra.mxu0 0.0
        %3867 = vmatprep.subr.mxu0 0.0
        %3868 = vmatpush2.msra.mxu0 0.0
        %3869 = vmatprep.subr.mxu0 0.0
        %3870 = vmatpush2.msra.mxu0 0.0
        %3871 = vmatprep.mubr.f32.mxu0 0.0
        %3872 = vmatmul.mubr.f32.gmra.mxu0 %v3805
        %v3873 = vpop.f32.mrf.mxu0
        %v3874 = vadd.f32 0.0, %v3873
        %v3875 = vpop.f32.mrf.mxu0
        %3876 = vdwg.mxu0
        %3877 = vrot.lane.b32.xlu0 %v3708, 120
        %v3878 = vpop.permute.xlu0 %3877
        %3879 = vrot.lane.b32.xlu0 %v3708, 88
        %v3880 = vpop.permute.xlu0 %3879
        %v3881 = vsel %vm1448, %v3878, 0
        %v3883 = vsel %vm1448, %v3880, 0
        %3885 = vmatprep.subr.mxu0 0.0
        %3886 = vmatpush1.xpose.msra.mxu0 0.0
        %3887 = vmatprep.subr.mxu0 0.0
        %3888 = vmatpush1.xpose.msra.mxu0 0.0
        %3889 = vmatprep.subr.mxu0 0.0
        %3890 = vmatpush1.xpose.msra.mxu0 0.0
        %3891 = vmatprep.subr.mxu0 0.0
        %3892 = vmatpush1.xpose.msra.mxu0 0.0
        %3893 = vmatprep.subr.mxu0 0.0
        %3894 = vmatpush1.xpose.msra.mxu0 0.0
        %3895 = vmatprep.subr.mxu0 0.0
        %3896 = vmatpush1.xpose.msra.mxu0 0.0
        %3897 = vmatprep.subr.mxu0 0.0
        %3898 = vmatpush1.xpose.msra.mxu0 0.0
        %3899 = vmatprep.subr.mxu0 0.0
        %3900 = vmatpush1.xpose.msra.mxu0 0.0
        %3901 = vmatprep.subr.mxu0 0.0
        %3902 = vmatpush1.xpose.msra.mxu0 0.0
        %3903 = vmatprep.subr.mxu0 0.0
        %3904 = vmatpush1.xpose.msra.mxu0 0.0
        %3905 = vmatprep.subr.mxu0 0.0
        %3906 = vmatpush1.xpose.msra.mxu0 0.0
        %3907 = vmatprep.subr.mxu0 0.0
        %3908 = vmatpush1.xpose.msra.mxu0 0.0
        %3909 = vmatprep.subr.mxu0 0.0
        %3910 = vmatpush1.xpose.msra.mxu0 0.0
        %3911 = vmatprep.subr.mxu0 0.0
        %3912 = vmatpush1.xpose.msra.mxu0 0.0
        %3913 = vmatprep.subr.mxu0 0.0
        %3914 = vmatpush1.xpose.msra.mxu0 0.0
        %3915 = vmatprep.subr.mxu0 0.0
        %3916 = vmatpush1.xpose.msra.mxu0 %v3883
        %3917 = vmatprep.subr.mxu0 0.0
        %3918 = vmatpush2.xpose.msra.mxu0 0.0
        %3919 = vmatprep.subr.mxu0 0.0
        %3920 = vmatpush2.xpose.msra.mxu0 0.0
        %3921 = vmatprep.subr.mxu0 0.0
        %3922 = vmatpush2.xpose.msra.mxu0 0.0
        %3923 = vmatprep.subr.mxu0 0.0
        %3924 = vmatpush2.xpose.msra.mxu0 0.0
        %3925 = vmatprep.subr.mxu0 0.0
        %3926 = vmatpush2.xpose.msra.mxu0 0.0
        %3927 = vmatprep.subr.mxu0 0.0
        %3928 = vmatpush2.xpose.msra.mxu0 0.0
        %3929 = vmatprep.subr.mxu0 0.0
        %3930 = vmatpush2.xpose.msra.mxu0 0.0
        %3931 = vmatprep.subr.mxu0 0.0
        %3932 = vmatpush2.xpose.msra.mxu0 0.0
        %3933 = vmatprep.subr.mxu0 0.0
        %3934 = vmatpush2.xpose.msra.mxu0 0.0
        %3935 = vmatprep.subr.mxu0 0.0
        %3936 = vmatpush2.xpose.msra.mxu0 0.0
        %3937 = vmatprep.subr.mxu0 0.0
        %3938 = vmatpush2.xpose.msra.mxu0 0.0
        %3939 = vmatprep.subr.mxu0 0.0
        %3940 = vmatpush2.xpose.msra.mxu0 0.0
        %3941 = vmatprep.subr.mxu0 0.0
        %3942 = vmatpush2.xpose.msra.mxu0 0.0
        %3943 = vmatprep.subr.mxu0 0.0
        %3944 = vmatpush2.xpose.msra.mxu0 0.0
        %3945 = vmatprep.subr.mxu0 0.0
        %3946 = vmatpush2.xpose.msra.mxu0 0.0
        %3947 = vmatprep.subr.mxu0 0.0
        %3948 = vmatpush2.xpose.msra.mxu0 0.0
        %3949 = vmatprep.mubr.f32.mxu0 0.0
        %3950 = vmatmul.mubr.f32.gmra.mxu0 %v3881
        %v3951 = vpop.f32.mrf.mxu0
        %v3952 = vadd.f32 0.0, %v3951
        %v3953 = vpop.f32.mrf.mxu0
        %3954 = vdwg.mxu0
        %v3955 = vmul.f32 %v3952, 0.35355338
        %v3956 = vsel %vm3583, %v3955, -1e+09
        %v3957 = vsel %vm1448, %v3956, -inf
        %3958 = vmax.xlane.f32.xlu0 %v3957
        %v3959 = vpop.xlane.xlu0 %3958
        %v3960 = vsub.f32 %v3956, %v3959
        %v3961 = vmul.f32 %v3960, 1.442695
        %v3962 = vpow.pop %v3961
        %v3963 = vsel %vm1448, %v3962, 0.0
        %3964 = vadd.xlane.f32.xlu0 %v3963
        %v3965 = vpop.xlane.xlu0 %3964
        %v3966 = vrcp.pop %v3965
        %v3967 = vmul.f32 %v3962, %v3966
        %3968 = vrot.lane.b32.xlu0 %v3708, 56
        %v3969 = vpop.permute.xlu0 %3968
        %v3972 = vsel %vm1448, %v3967, 0
        %3974 = vmatprep.subr.mxu0 0.0
        %3975 = vmatpush1.msra.mxu0 0.0
        %3976 = vmatprep.subr.mxu0 0.0
        %3977 = vmatpush1.msra.mxu0 0.0
        %3978 = vmatprep.subr.mxu0 0.0
        %3979 = vmatpush1.msra.mxu0 0.0
        %3980 = vmatprep.subr.mxu0 0.0
        %3981 = vmatpush1.msra.mxu0 0.0
        %3982 = vmatprep.subr.mxu0 0.0
        %3983 = vmatpush1.msra.mxu0 0.0
        %3984 = vmatprep.subr.mxu0 0.0
        %3985 = vmatpush1.msra.mxu0 0.0
        %3986 = vmatprep.subr.mxu0 0.0
        %3987 = vmatpush1.msra.mxu0 0.0
        %3988 = vmatprep.subr.mxu0 0.0
        %3989 = vmatpush1.msra.mxu0 0.0
        %3990 = vmatprep.subr.mxu0 0.0
        %3991 = vmatpush1.msra.mxu0 0.0
        %3992 = vmatprep.subr.mxu0 0.0
        %3993 = vmatpush1.msra.mxu0 0.0
        %3994 = vmatprep.subr.mxu0 0.0
        %3995 = vmatpush1.msra.mxu0 0.0
        %3996 = vmatprep.subr.mxu0 0.0
        %3997 = vmatpush1.msra.mxu0 0.0
        %3998 = vmatprep.subr.mxu0 0.0
        %3999 = vmatpush1.msra.mxu0 0.0
        %4000 = vmatprep.subr.mxu0 0.0
        %4001 = vmatpush1.msra.mxu0 0.0
        %4002 = vmatprep.subr.mxu0 0.0
        %4003 = vmatpush1.msra.mxu0 0.0
        %4004 = vmatprep.subr.mxu0 0.0
        %4005 = vmatpush1.msra.mxu0 %v3969
        %4006 = vmatprep.subr.mxu0 0.0
        %4007 = vmatpush2.msra.mxu0 0.0
        %4008 = vmatprep.subr.mxu0 0.0
        %4009 = vmatpush2.msra.mxu0 0.0
        %4010 = vmatprep.subr.mxu0 0.0
        %4011 = vmatpush2.msra.mxu0 0.0
        %4012 = vmatprep.subr.mxu0 0.0
        %4013 = vmatpush2.msra.mxu0 0.0
        %4014 = vmatprep.subr.mxu0 0.0
        %4015 = vmatpush2.msra.mxu0 0.0
        %4016 = vmatprep.subr.mxu0 0.0
        %4017 = vmatpush2.msra.mxu0 0.0
        %4018 = vmatprep.subr.mxu0 0.0
        %4019 = vmatpush2.msra.mxu0 0.0
        %4020 = vmatprep.subr.mxu0 0.0
        %4021 = vmatpush2.msra.mxu0 0.0
        %4022 = vmatprep.subr.mxu0 0.0
        %4023 = vmatpush2.msra.mxu0 0.0
        %4024 = vmatprep.subr.mxu0 0.0
        %4025 = vmatpush2.msra.mxu0 0.0
        %4026 = vmatprep.subr.mxu0 0.0
        %4027 = vmatpush2.msra.mxu0 0.0
        %4028 = vmatprep.subr.mxu0 0.0
        %4029 = vmatpush2.msra.mxu0 0.0
        %4030 = vmatprep.subr.mxu0 0.0
        %4031 = vmatpush2.msra.mxu0 0.0
        %4032 = vmatprep.subr.mxu0 0.0
        %4033 = vmatpush2.msra.mxu0 0.0
        %4034 = vmatprep.subr.mxu0 0.0
        %4035 = vmatpush2.msra.mxu0 0.0
        %4036 = vmatprep.subr.mxu0 0.0
        %4037 = vmatpush2.msra.mxu0 0.0
        %4038 = vmatprep.mubr.f32.mxu0 0.0
        %4039 = vmatmul.mubr.f32.gmra.mxu0 %v3972
        %v4040 = vpop.f32.mrf.mxu0
        %v4041 = vadd.f32 0.0, %v4040
        %v4042 = vpop.f32.mrf.mxu0
        %4043 = vdwg.mxu0
        %4044 = vrot.lane.b32.xlu0 %v3708, 112
        %v4045 = vpop.permute.xlu0 %4044
        %4046 = vrot.lane.b32.xlu0 %v3708, 80
        %v4047 = vpop.permute.xlu0 %4046
        %v4048 = vsel %vm1448, %v4045, 0
        %v4050 = vsel %vm1448, %v4047, 0
        %4052 = vmatprep.subr.mxu0 0.0
        %4053 = vmatpush1.xpose.msra.mxu0 0.0
        %4054 = vmatprep.subr.mxu0 0.0
        %4055 = vmatpush1.xpose.msra.mxu0 0.0
        %4056 = vmatprep.subr.mxu0 0.0
        %4057 = vmatpush1.xpose.msra.mxu0 0.0
        %4058 = vmatprep.subr.mxu0 0.0
        %4059 = vmatpush1.xpose.msra.mxu0 0.0
        %4060 = vmatprep.subr.mxu0 0.0
        %4061 = vmatpush1.xpose.msra.mxu0 0.0
        %4062 = vmatprep.subr.mxu0 0.0
        %4063 = vmatpush1.xpose.msra.mxu0 0.0
        %4064 = vmatprep.subr.mxu0 0.0
        %4065 = vmatpush1.xpose.msra.mxu0 0.0
        %4066 = vmatprep.subr.mxu0 0.0
        %4067 = vmatpush1.xpose.msra.mxu0 0.0
        %4068 = vmatprep.subr.mxu0 0.0
        %4069 = vmatpush1.xpose.msra.mxu0 0.0
        %4070 = vmatprep.subr.mxu0 0.0
        %4071 = vmatpush1.xpose.msra.mxu0 0.0
        %4072 = vmatprep.subr.mxu0 0.0
        %4073 = vmatpush1.xpose.msra.mxu0 0.0
        %4074 = vmatprep.subr.mxu0 0.0
        %4075 = vmatpush1.xpose.msra.mxu0 0.0
        %4076 = vmatprep.subr.mxu0 0.0
        %4077 = vmatpush1.xpose.msra.mxu0 0.0
        %4078 = vmatprep.subr.mxu0 0.0
        %4079 = vmatpush1.xpose.msra.mxu0 0.0
        %4080 = vmatprep.subr.mxu0 0.0
        %4081 = vmatpush1.xpose.msra.mxu0 0.0
        %4082 = vmatprep.subr.mxu0 0.0
        %4083 = vmatpush1.xpose.msra.mxu0 %v4050
        %4084 = vmatprep.subr.mxu0 0.0
        %4085 = vmatpush2.xpose.msra.mxu0 0.0
        %4086 = vmatprep.subr.mxu0 0.0
        %4087 = vmatpush2.xpose.msra.mxu0 0.0
        %4088 = vmatprep.subr.mxu0 0.0
        %4089 = vmatpush2.xpose.msra.mxu0 0.0
        %4090 = vmatprep.subr.mxu0 0.0
        %4091 = vmatpush2.xpose.msra.mxu0 0.0
        %4092 = vmatprep.subr.mxu0 0.0
        %4093 = vmatpush2.xpose.msra.mxu0 0.0
        %4094 = vmatprep.subr.mxu0 0.0
        %4095 = vmatpush2.xpose.msra.mxu0 0.0
        %4096 = vmatprep.subr.mxu0 0.0
        %4097 = vmatpush2.xpose.msra.mxu0 0.0
        %4098 = vmatprep.subr.mxu0 0.0
        %4099 = vmatpush2.xpose.msra.mxu0 0.0
        %4100 = vmatprep.subr.mxu0 0.0
        %4101 = vmatpush2.xpose.msra.mxu0 0.0
        %4102 = vmatprep.subr.mxu0 0.0
        %4103 = vmatpush2.xpose.msra.mxu0 0.0
        %4104 = vmatprep.subr.mxu0 0.0
        %4105 = vmatpush2.xpose.msra.mxu0 0.0
        %4106 = vmatprep.subr.mxu0 0.0
        %4107 = vmatpush2.xpose.msra.mxu0 0.0
        %4108 = vmatprep.subr.mxu0 0.0
        %4109 = vmatpush2.xpose.msra.mxu0 0.0
        %4110 = vmatprep.subr.mxu0 0.0
        %4111 = vmatpush2.xpose.msra.mxu0 0.0
        %4112 = vmatprep.subr.mxu0 0.0
        %4113 = vmatpush2.xpose.msra.mxu0 0.0
        %4114 = vmatprep.subr.mxu0 0.0
        %4115 = vmatpush2.xpose.msra.mxu0 0.0
        %4116 = vmatprep.mubr.f32.mxu0 0.0
        %4117 = vmatmul.mubr.f32.gmra.mxu0 %v4048
        %v4118 = vpop.f32.mrf.mxu0
        %v4119 = vadd.f32 0.0, %v4118
        %v4120 = vpop.f32.mrf.mxu0
        %4121 = vdwg.mxu0
        %v4122 = vmul.f32 %v4119, 0.35355338
        %v4123 = vsel %vm3583, %v4122, -1e+09
        %v4124 = vsel %vm1448, %v4123, -inf
        %4125 = vmax.xlane.f32.xlu0 %v4124
        %v4126 = vpop.xlane.xlu0 %4125
        %v4127 = vsub.f32 %v4123, %v4126
        %v4128 = vmul.f32 %v4127, 1.442695
        %v4129 = vpow.pop %v4128
        %v4130 = vsel %vm1448, %v4129, 0.0
        %4131 = vadd.xlane.f32.xlu0 %v4130
        %v4132 = vpop.xlane.xlu0 %4131
        %v4133 = vrcp.pop %v4132
        %v4134 = vmul.f32 %v4129, %v4133
        %4135 = vrot.lane.b32.xlu0 %v3708, 48
        %v4136 = vpop.permute.xlu0 %4135
        %v4139 = vsel %vm1448, %v4134, 0
        %4141 = vmatprep.subr.mxu0 0.0
        %4142 = vmatpush1.msra.mxu0 0.0
        %4143 = vmatprep.subr.mxu0 0.0
        %4144 = vmatpush1.msra.mxu0 0.0
        %4145 = vmatprep.subr.mxu0 0.0
        %4146 = vmatpush1.msra.mxu0 0.0
        %4147 = vmatprep.subr.mxu0 0.0
        %4148 = vmatpush1.msra.mxu0 0.0
        %4149 = vmatprep.subr.mxu0 0.0
        %4150 = vmatpush1.msra.mxu0 0.0
        %4151 = vmatprep.subr.mxu0 0.0
        %4152 = vmatpush1.msra.mxu0 0.0
        %4153 = vmatprep.subr.mxu0 0.0
        %4154 = vmatpush1.msra.mxu0 0.0
        %4155 = vmatprep.subr.mxu0 0.0
        %4156 = vmatpush1.msra.mxu0 0.0
        %4157 = vmatprep.subr.mxu0 0.0
        %4158 = vmatpush1.msra.mxu0 0.0
        %4159 = vmatprep.subr.mxu0 0.0
        %4160 = vmatpush1.msra.mxu0 0.0
        %4161 = vmatprep.subr.mxu0 0.0
        %4162 = vmatpush1.msra.mxu0 0.0
        %4163 = vmatprep.subr.mxu0 0.0
        %4164 = vmatpush1.msra.mxu0 0.0
        %4165 = vmatprep.subr.mxu0 0.0
        %4166 = vmatpush1.msra.mxu0 0.0
        %4167 = vmatprep.subr.mxu0 0.0
        %4168 = vmatpush1.msra.mxu0 0.0
        %4169 = vmatprep.subr.mxu0 0.0
        %4170 = vmatpush1.msra.mxu0 0.0
        %4171 = vmatprep.subr.mxu0 0.0
        %4172 = vmatpush1.msra.mxu0 %v4136
        %4173 = vmatprep.subr.mxu0 0.0
        %4174 = vmatpush2.msra.mxu0 0.0
        %4175 = vmatprep.subr.mxu0 0.0
        %4176 = vmatpush2.msra.mxu0 0.0
        %4177 = vmatprep.subr.mxu0 0.0
        %4178 = vmatpush2.msra.mxu0 0.0
        %4179 = vmatprep.subr.mxu0 0.0
        %4180 = vmatpush2.msra.mxu0 0.0
        %4181 = vmatprep.subr.mxu0 0.0
        %4182 = vmatpush2.msra.mxu0 0.0
        %4183 = vmatprep.subr.mxu0 0.0
        %4184 = vmatpush2.msra.mxu0 0.0
        %4185 = vmatprep.subr.mxu0 0.0
        %4186 = vmatpush2.msra.mxu0 0.0
        %4187 = vmatprep.subr.mxu0 0.0
        %4188 = vmatpush2.msra.mxu0 0.0
        %4189 = vmatprep.subr.mxu0 0.0
        %4190 = vmatpush2.msra.mxu0 0.0
        %4191 = vmatprep.subr.mxu0 0.0
        %4192 = vmatpush2.msra.mxu0 0.0
        %4193 = vmatprep.subr.mxu0 0.0
        %4194 = vmatpush2.msra.mxu0 0.0
        %4195 = vmatprep.subr.mxu0 0.0
        %4196 = vmatpush2.msra.mxu0 0.0
        %4197 = vmatprep.subr.mxu0 0.0
        %4198 = vmatpush2.msra.mxu0 0.0
        %4199 = vmatprep.subr.mxu0 0.0
        %4200 = vmatpush2.msra.mxu0 0.0
        %4201 = vmatprep.subr.mxu0 0.0
        %4202 = vmatpush2.msra.mxu0 0.0
        %4203 = vmatprep.subr.mxu0 0.0
        %4204 = vmatpush2.msra.mxu0 0.0
        %4205 = vmatprep.mubr.f32.mxu0 0.0
        %4206 = vmatmul.mubr.f32.gmra.mxu0 %v4139
        %v4207 = vpop.f32.mrf.mxu0
        %v4208 = vadd.f32 0.0, %v4207
        %v4209 = vpop.f32.mrf.mxu0
        %4210 = vdwg.mxu0
        %4211 = vrot.lane.b32.xlu0 %v3708, 104
        %v4212 = vpop.permute.xlu0 %4211
        %4213 = vrot.lane.b32.xlu0 %v3708, 72
        %v4214 = vpop.permute.xlu0 %4213
        %v4215 = vsel %vm1448, %v4212, 0
        %v4217 = vsel %vm1448, %v4214, 0
        %4219 = vmatprep.subr.mxu0 0.0
        %4220 = vmatpush1.xpose.msra.mxu0 0.0
        %4221 = vmatprep.subr.mxu0 0.0
        %4222 = vmatpush1.xpose.msra.mxu0 0.0
        %4223 = vmatprep.subr.mxu0 0.0
        %4224 = vmatpush1.xpose.msra.mxu0 0.0
        %4225 = vmatprep.subr.mxu0 0.0
        %4226 = vmatpush1.xpose.msra.mxu0 0.0
        %4227 = vmatprep.subr.mxu0 0.0
        %4228 = vmatpush1.xpose.msra.mxu0 0.0
        %4229 = vmatprep.subr.mxu0 0.0
        %4230 = vmatpush1.xpose.msra.mxu0 0.0
        %4231 = vmatprep.subr.mxu0 0.0
        %4232 = vmatpush1.xpose.msra.mxu0 0.0
        %4233 = vmatprep.subr.mxu0 0.0
        %4234 = vmatpush1.xpose.msra.mxu0 0.0
        %4235 = vmatprep.subr.mxu0 0.0
        %4236 = vmatpush1.xpose.msra.mxu0 0.0
        %4237 = vmatprep.subr.mxu0 0.0
        %4238 = vmatpush1.xpose.msra.mxu0 0.0
        %4239 = vmatprep.subr.mxu0 0.0
        %4240 = vmatpush1.xpose.msra.mxu0 0.0
        %4241 = vmatprep.subr.mxu0 0.0
        %4242 = vmatpush1.xpose.msra.mxu0 0.0
        %4243 = vmatprep.subr.mxu0 0.0
        %4244 = vmatpush1.xpose.msra.mxu0 0.0
        %4245 = vmatprep.subr.mxu0 0.0
        %4246 = vmatpush1.xpose.msra.mxu0 0.0
        %4247 = vmatprep.subr.mxu0 0.0
        %4248 = vmatpush1.xpose.msra.mxu0 0.0
        %4249 = vmatprep.subr.mxu0 0.0
        %4250 = vmatpush1.xpose.msra.mxu0 %v4217
        %4251 = vmatprep.subr.mxu0 0.0
        %4252 = vmatpush2.xpose.msra.mxu0 0.0
        %4253 = vmatprep.subr.mxu0 0.0
        %4254 = vmatpush2.xpose.msra.mxu0 0.0
        %4255 = vmatprep.subr.mxu0 0.0
        %4256 = vmatpush2.xpose.msra.mxu0 0.0
        %4257 = vmatprep.subr.mxu0 0.0
        %4258 = vmatpush2.xpose.msra.mxu0 0.0
        %4259 = vmatprep.subr.mxu0 0.0
        %4260 = vmatpush2.xpose.msra.mxu0 0.0
        %4261 = vmatprep.subr.mxu0 0.0
        %4262 = vmatpush2.xpose.msra.mxu0 0.0
        %4263 = vmatprep.subr.mxu0 0.0
        %4264 = vmatpush2.xpose.msra.mxu0 0.0
        %4265 = vmatprep.subr.mxu0 0.0
        %4266 = vmatpush2.xpose.msra.mxu0 0.0
        %4267 = vmatprep.subr.mxu0 0.0
        %4268 = vmatpush2.xpose.msra.mxu0 0.0
        %4269 = vmatprep.subr.mxu0 0.0
        %4270 = vmatpush2.xpose.msra.mxu0 0.0
        %4271 = vmatprep.subr.mxu0 0.0
        %4272 = vmatpush2.xpose.msra.mxu0 0.0
        %4273 = vmatprep.subr.mxu0 0.0
        %4274 = vmatpush2.xpose.msra.mxu0 0.0
        %4275 = vmatprep.subr.mxu0 0.0
        %4276 = vmatpush2.xpose.msra.mxu0 0.0
        %4277 = vmatprep.subr.mxu0 0.0
        %4278 = vmatpush2.xpose.msra.mxu0 0.0
        %4279 = vmatprep.subr.mxu0 0.0
        %4280 = vmatpush2.xpose.msra.mxu0 0.0
        %4281 = vmatprep.subr.mxu0 0.0
        %4282 = vmatpush2.xpose.msra.mxu0 0.0
        %4283 = vmatprep.mubr.f32.mxu0 0.0
        %4284 = vmatmul.mubr.f32.gmra.mxu0 %v4215
        %v4285 = vpop.f32.mrf.mxu0
        %v4286 = vadd.f32 0.0, %v4285
        %v4287 = vpop.f32.mrf.mxu0
        %4288 = vdwg.mxu0
        %v4289 = vmul.f32 %v4286, 0.35355338
        %v4290 = vsel %vm3583, %v4289, -1e+09
        %v4291 = vsel %vm1448, %v4290, -inf
        %4292 = vmax.xlane.f32.xlu0 %v4291
        %v4293 = vpop.xlane.xlu0 %4292
        %v4294 = vsub.f32 %v4290, %v4293
        %v4295 = vmul.f32 %v4294, 1.442695
        %v4296 = vpow.pop %v4295
        %v4297 = vsel %vm1448, %v4296, 0.0
        %4298 = vadd.xlane.f32.xlu0 %v4297
        %v4299 = vpop.xlane.xlu0 %4298
        %v4300 = vrcp.pop %v4299
        %v4301 = vmul.f32 %v4296, %v4300
        %4302 = vrot.lane.b32.xlu0 %v3708, 40
        %v4303 = vpop.permute.xlu0 %4302
        %v4306 = vsel %vm1448, %v4301, 0
        %4308 = vmatprep.subr.mxu0 0.0
        %4309 = vmatpush1.msra.mxu0 0.0
        %4310 = vmatprep.subr.mxu0 0.0
        %4311 = vmatpush1.msra.mxu0 0.0
        %4312 = vmatprep.subr.mxu0 0.0
        %4313 = vmatpush1.msra.mxu0 0.0
        %4314 = vmatprep.subr.mxu0 0.0
        %4315 = vmatpush1.msra.mxu0 0.0
        %4316 = vmatprep.subr.mxu0 0.0
        %4317 = vmatpush1.msra.mxu0 0.0
        %4318 = vmatprep.subr.mxu0 0.0
        %4319 = vmatpush1.msra.mxu0 0.0
        %4320 = vmatprep.subr.mxu0 0.0
        %4321 = vmatpush1.msra.mxu0 0.0
        %4322 = vmatprep.subr.mxu0 0.0
        %4323 = vmatpush1.msra.mxu0 0.0
        %4324 = vmatprep.subr.mxu0 0.0
        %4325 = vmatpush1.msra.mxu0 0.0
        %4326 = vmatprep.subr.mxu0 0.0
        %4327 = vmatpush1.msra.mxu0 0.0
        %4328 = vmatprep.subr.mxu0 0.0
        %4329 = vmatpush1.msra.mxu0 0.0
        %4330 = vmatprep.subr.mxu0 0.0
        %4331 = vmatpush1.msra.mxu0 0.0
        %4332 = vmatprep.subr.mxu0 0.0
        %4333 = vmatpush1.msra.mxu0 0.0
        %4334 = vmatprep.subr.mxu0 0.0
        %4335 = vmatpush1.msra.mxu0 0.0
        %4336 = vmatprep.subr.mxu0 0.0
        %4337 = vmatpush1.msra.mxu0 0.0
        %4338 = vmatprep.subr.mxu0 0.0
        %4339 = vmatpush1.msra.mxu0 %v4303
        %4340 = vmatprep.subr.mxu0 0.0
        %4341 = vmatpush2.msra.mxu0 0.0
        %4342 = vmatprep.subr.mxu0 0.0
        %4343 = vmatpush2.msra.mxu0 0.0
        %4344 = vmatprep.subr.mxu0 0.0
        %4345 = vmatpush2.msra.mxu0 0.0
        %4346 = vmatprep.subr.mxu0 0.0
        %4347 = vmatpush2.msra.mxu0 0.0
        %4348 = vmatprep.subr.mxu0 0.0
        %4349 = vmatpush2.msra.mxu0 0.0
        %4350 = vmatprep.subr.mxu0 0.0
        %4351 = vmatpush2.msra.mxu0 0.0
        %4352 = vmatprep.subr.mxu0 0.0
        %4353 = vmatpush2.msra.mxu0 0.0
        %4354 = vmatprep.subr.mxu0 0.0
        %4355 = vmatpush2.msra.mxu0 0.0
        %4356 = vmatprep.subr.mxu0 0.0
        %4357 = vmatpush2.msra.mxu0 0.0
        %4358 = vmatprep.subr.mxu0 0.0
        %4359 = vmatpush2.msra.mxu0 0.0
        %4360 = vmatprep.subr.mxu0 0.0
        %4361 = vmatpush2.msra.mxu0 0.0
        %4362 = vmatprep.subr.mxu0 0.0
        %4363 = vmatpush2.msra.mxu0 0.0
        %4364 = vmatprep.subr.mxu0 0.0
        %4365 = vmatpush2.msra.mxu0 0.0
        %4366 = vmatprep.subr.mxu0 0.0
        %4367 = vmatpush2.msra.mxu0 0.0
        %4368 = vmatprep.subr.mxu0 0.0
        %4369 = vmatpush2.msra.mxu0 0.0
        %4370 = vmatprep.subr.mxu0 0.0
        %4371 = vmatpush2.msra.mxu0 0.0
        %4372 = vmatprep.mubr.f32.mxu0 0.0
        %4373 = vmatmul.mubr.f32.gmra.mxu0 %v4306
        %v4374 = vpop.f32.mrf.mxu0
        %v4375 = vadd.f32 0.0, %v4374
        %v4376 = vpop.f32.mrf.mxu0
        %4377 = vdwg.mxu0
        %4379 = vrot.lane.b32.xlu0 %v4041, 8
        %v4380 = vpop.permute.xlu0 %4379
        %4383 = vrot.lane.b32.xlu0 %v4208, 16
        %v4384 = vpop.permute.xlu0 %4383
        %4387 = vrot.lane.b32.xlu0 %v4375, 24
        %v4388 = vpop.permute.xlu0 %4387
        %v4390 = vsel %vm1448, %v3874, %v4380
        %v4391 = vsel %vm2132, %v4390, %v4384
        %v4392 = vsel %vm2134, %v4391, %v4388
        %v4394 = vlaneseq
        %v4395 = vshrl.u32 %v4394, 7
        %v4396 = vsub.s32 0, %v4395
        %v4397 = vrot.slane %v3631, %v4396
        %v4400 = vsel %vm1319, %v4392, 0
        %4402 = vmatprep.subr.mxu0 0.0
        %4403 = vmatpush1.msra.mxu0 0.0
        %4404 = vmatprep.subr.mxu0 0.0
        %4405 = vmatpush1.msra.mxu0 0.0
        %4406 = vmatprep.subr.mxu0 0.0
        %4407 = vmatpush1.msra.mxu0 0.0
        %4408 = vmatprep.subr.mxu0 0.0
        %4409 = vmatpush1.msra.mxu0 0.0
        %4410 = vmatprep.subr.mxu0 0.0
        %4411 = vmatpush1.msra.mxu0 0.0
        %4412 = vmatprep.subr.mxu0 0.0
        %4413 = vmatpush1.msra.mxu0 0.0
        %4414 = vmatprep.subr.mxu0 0.0
        %4415 = vmatpush1.msra.mxu0 0.0
        %4416 = vmatprep.subr.mxu0 0.0
        %4417 = vmatpush1.msra.mxu0 0.0
        %4418 = vmatprep.subr.mxu0 0.0
        %4419 = vmatpush1.msra.mxu0 0.0
        %4420 = vmatprep.subr.mxu0 0.0
        %4421 = vmatpush1.msra.mxu0 0.0
        %4422 = vmatprep.subr.mxu0 0.0
        %4423 = vmatpush1.msra.mxu0 0.0
        %4424 = vmatprep.subr.mxu0 0.0
        %4425 = vmatpush1.msra.mxu0 0.0
        %4426 = vmatprep.subr.mxu0 0.0
        %4427 = vmatpush1.msra.mxu0 %v3630
        %4428 = vmatprep.subr.mxu0 0.0
        %4429 = vmatpush1.msra.mxu0 %v3629
        %4430 = vmatprep.subr.mxu0 0.0
        %4431 = vmatpush1.msra.mxu0 %v3628
        %4432 = vmatprep.subr.mxu0 0.0
        %4433 = vmatpush1.msra.mxu0 %v3627
        %4434 = vmatprep.subr.mxu0 0.0
        %4435 = vmatpush2.msra.mxu0 0.0
        %4436 = vmatprep.subr.mxu0 0.0
        %4437 = vmatpush2.msra.mxu0 0.0
        %4438 = vmatprep.subr.mxu0 0.0
        %4439 = vmatpush2.msra.mxu0 0.0
        %4440 = vmatprep.subr.mxu0 0.0
        %4441 = vmatpush2.msra.mxu0 0.0
        %4442 = vmatprep.subr.mxu0 0.0
        %4443 = vmatpush2.msra.mxu0 0.0
        %4444 = vmatprep.subr.mxu0 0.0
        %4445 = vmatpush2.msra.mxu0 0.0
        %4446 = vmatprep.subr.mxu0 0.0
        %4447 = vmatpush2.msra.mxu0 0.0
        %4448 = vmatprep.subr.mxu0 0.0
        %4449 = vmatpush2.msra.mxu0 0.0
        %4450 = vmatprep.subr.mxu0 0.0
        %4451 = vmatpush2.msra.mxu0 0.0
        %4452 = vmatprep.subr.mxu0 0.0
        %4453 = vmatpush2.msra.mxu0 0.0
        %4454 = vmatprep.subr.mxu0 0.0
        %4455 = vmatpush2.msra.mxu0 0.0
        %4456 = vmatprep.subr.mxu0 0.0
        %4457 = vmatpush2.msra.mxu0 0.0
        %4458 = vmatprep.subr.mxu0 0.0
        %4459 = vmatpush2.msra.mxu0 0.0
        %4460 = vmatprep.subr.mxu0 0.0
        %4461 = vmatpush2.msra.mxu0 0.0
        %4462 = vmatprep.subr.mxu0 0.0
        %4463 = vmatpush2.msra.mxu0 0.0
        %4464 = vmatprep.subr.mxu0 0.0
        %4465 = vmatpush2.msra.mxu0 0.0
        %4466 = vmatprep.mubr.f32.mxu0 0.0
        %4467 = vmatmul.mubr.f32.gmra.mxu0 %v4400
        %v4468 = vpop.f32.mrf.mxu0
        %v4469 = vadd.f32 %v4397, %v4468
        %v4470 = vpop.f32.mrf.mxu0
        %4471 = vdwg.mxu0
        %v4472 = vadd.f32 %v3585, %v4469
        %v4473 = vld [vmem:[%s39] sm:$0x1]
        %v4474 = vld [vmem:[%s37] sm:$0x1]
        %v4475 = vsel %vm1319, %v4472, 0.0
        %4476 = vadd.xlane.f32.xlu0 %v4475
        %v4477 = vpop.xlane.xlu0 %4476
        %v4478 = vmul.f32 %v4477, %v1323
        %v4479 = vsub.f32 %v4472, %v4478
        %v4480 = vmul.f32 %v4479, %v4479
        %v4481 = vsel %vm1319, %v4480, 0.0
        %4482 = vadd.xlane.f32.xlu0 %v4481
        %v4483 = vpop.xlane.xlu0 %4482
        %v4484 = vmul.f32 %v4483, %v1330
        %v4486 = vlaneseq
        %v4487 = vshrl.u32 %v4486, 7
        %v4488 = vsub.s32 0, %v4487
        %v4489 = vrot.slane %v4473, %v4488
        %v4491 = vmul.f32 %v4489, %v4479
        %v4492 = vrsqrt.pop %v4484
        %v4493 = vmul.f32 %v4484, %v4492
        %vm4494 = vcmp.eq.f32.partialorder %v4484, inf
        %v4495 = vsel %vm4494, %v4484, %v4493
        %vm4496 = vcmp.eq.f32.partialorder %v4484, 0.0
        %v4497 = vand.u32 %v4484, 2147483648
        %v4498 = vsel %vm4496, %v4497, %v4495
        %v4499 = vadd.f32 %v4498, 1e-06
        %v4500 = vrcp.pop %v4499
        %v4501 = vmul.f32 %v4491, %v4500
        %v4503 = vlaneseq
        %v4504 = vshrl.u32 %v4503, 7
        %v4505 = vsub.s32 0, %v4504
        %v4506 = vrot.slane %v4474, %v4505
        %v4508 = vadd.f32 %v4501, %v4506
        %v4509 = vld [vmem:[%s23] sm:$0xff]
        %v4510 = vld [vmem:[%s23 + $0x8] sm:$0xff]
        %v4511 = vld [vmem:[%s23 + $0x10] sm:$0xff]
        %v4512 = vld [vmem:[%s23 + $0x18] sm:$0xff]
        %v4513 = vld [vmem:[%s21] sm:$0x1]
        %v4514 = vld [vmem:[%s15] sm:$0xff]
        %v4515 = vld [vmem:[%s15 + $0x8] sm:$0xff]
        %v4516 = vld [vmem:[%s15 + $0x10] sm:$0xff]
        %v4517 = vld [vmem:[%s15 + $0x18] sm:$0xff]
        %v4518 = vld [vmem:[%s13] sm:$0x1]
        %v4519 = vld [vmem:[%s19] sm:$0xff]
        %v4520 = vld [vmem:[%s19 + $0x8] sm:$0xff]
        %v4521 = vld [vmem:[%s19 + $0x10] sm:$0xff]
        %v4522 = vld [vmem:[%s19 + $0x18] sm:$0xff]
        %v4523 = vld [vmem:[%s17] sm:$0x1]
        %v4525 = vlaneseq
        %v4526 = vshrl.u32 %v4525, 7
        %v4527 = vsub.s32 0, %v4526
        %v4528 = vrot.slane %v4513, %v4527
        %v4531 = vsel %vm1319, %v4508, 0
        %4533 = vmatprep.subr.mxu0 0.0
        %4534 = vmatpush1.msra.mxu0 0.0
        %4535 = vmatprep.subr.mxu0 0.0
        %4536 = vmatpush1.msra.mxu0 0.0
        %4537 = vmatprep.subr.mxu0 0.0
        %4538 = vmatpush1.msra.mxu0 0.0
        %4539 = vmatprep.subr.mxu0 0.0
        %4540 = vmatpush1.msra.mxu0 0.0
        %4541 = vmatprep.subr.mxu0 0.0
        %4542 = vmatpush1.msra.mxu0 0.0
        %4543 = vmatprep.subr.mxu0 0.0
        %4544 = vmatpush1.msra.mxu0 0.0
        %4545 = vmatprep.subr.mxu0 0.0
        %4546 = vmatpush1.msra.mxu0 0.0
        %4547 = vmatprep.subr.mxu0 0.0
        %4548 = vmatpush1.msra.mxu0 0.0
        %4549 = vmatprep.subr.mxu0 0.0
        %4550 = vmatpush1.msra.mxu0 0.0
        %4551 = vmatprep.subr.mxu0 0.0
        %4552 = vmatpush1.msra.mxu0 0.0
        %4553 = vmatprep.subr.mxu0 0.0
        %4554 = vmatpush1.msra.mxu0 0.0
        %4555 = vmatprep.subr.mxu0 0.0
        %4556 = vmatpush1.msra.mxu0 0.0
        %4557 = vmatprep.subr.mxu0 0.0
        %4558 = vmatpush1.msra.mxu0 %v4512
        %4559 = vmatprep.subr.mxu0 0.0
        %4560 = vmatpush1.msra.mxu0 %v4511
        %4561 = vmatprep.subr.mxu0 0.0
        %4562 = vmatpush1.msra.mxu0 %v4510
        %4563 = vmatprep.subr.mxu0 0.0
        %4564 = vmatpush1.msra.mxu0 %v4509
        %4565 = vmatprep.subr.mxu0 0.0
        %4566 = vmatpush2.msra.mxu0 0.0
        %4567 = vmatprep.subr.mxu0 0.0
        %4568 = vmatpush2.msra.mxu0 0.0
        %4569 = vmatprep.subr.mxu0 0.0
        %4570 = vmatpush2.msra.mxu0 0.0
        %4571 = vmatprep.subr.mxu0 0.0
        %4572 = vmatpush2.msra.mxu0 0.0
        %4573 = vmatprep.subr.mxu0 0.0
        %4574 = vmatpush2.msra.mxu0 0.0
        %4575 = vmatprep.subr.mxu0 0.0
        %4576 = vmatpush2.msra.mxu0 0.0
        %4577 = vmatprep.subr.mxu0 0.0
        %4578 = vmatpush2.msra.mxu0 0.0
        %4579 = vmatprep.subr.mxu0 0.0
        %4580 = vmatpush2.msra.mxu0 0.0
        %4581 = vmatprep.subr.mxu0 0.0
        %4582 = vmatpush2.msra.mxu0 0.0
        %4583 = vmatprep.subr.mxu0 0.0
        %4584 = vmatpush2.msra.mxu0 0.0
        %4585 = vmatprep.subr.mxu0 0.0
        %4586 = vmatpush2.msra.mxu0 0.0
        %4587 = vmatprep.subr.mxu0 0.0
        %4588 = vmatpush2.msra.mxu0 0.0
        %4589 = vmatprep.subr.mxu0 0.0
        %4590 = vmatpush2.msra.mxu0 0.0
        %4591 = vmatprep.subr.mxu0 0.0
        %4592 = vmatpush2.msra.mxu0 0.0
        %4593 = vmatprep.subr.mxu0 0.0
        %4594 = vmatpush2.msra.mxu0 0.0
        %4595 = vmatprep.subr.mxu0 0.0
        %4596 = vmatpush2.msra.mxu0 0.0
        %4597 = vmatprep.mubr.f32.mxu0 0.0
        %4598 = vmatmul.mubr.f32.gmra.mxu0 %v4531
        %v4599 = vpop.f32.mrf.mxu0
        %v4600 = vadd.f32 %v4528, %v4599
        %v4601 = vpop.f32.mrf.mxu0
        %4602 = vdwg.mxu0
        %v4604 = vlaneseq
        %v4605 = vshrl.u32 %v4604, 7
        %v4606 = vsub.s32 0, %v4605
        %v4607 = vrot.slane %v4518, %v4606
        %v4610 = vsel %vm1319, %v3571, 0
        %4612 = vmatprep.subr.mxu0 0.0
        %4613 = vmatpush1.msra.mxu0 0.0
        %4614 = vmatprep.subr.mxu0 0.0
        %4615 = vmatpush1.msra.mxu0 0.0
        %4616 = vmatprep.subr.mxu0 0.0
        %4617 = vmatpush1.msra.mxu0 0.0
        %4618 = vmatprep.subr.mxu0 0.0
        %4619 = vmatpush1.msra.mxu0 0.0
        %4620 = vmatprep.subr.mxu0 0.0
        %4621 = vmatpush1.msra.mxu0 0.0
        %4622 = vmatprep.subr.mxu0 0.0
        %4623 = vmatpush1.msra.mxu0 0.0
        %4624 = vmatprep.subr.mxu0 0.0
        %4625 = vmatpush1.msra.mxu0 0.0
        %4626 = vmatprep.subr.mxu0 0.0
        %4627 = vmatpush1.msra.mxu0 0.0
        %4628 = vmatprep.subr.mxu0 0.0
        %4629 = vmatpush1.msra.mxu0 0.0
        %4630 = vmatprep.subr.mxu0 0.0
        %4631 = vmatpush1.msra.mxu0 0.0
        %4632 = vmatprep.subr.mxu0 0.0
        %4633 = vmatpush1.msra.mxu0 0.0
        %4634 = vmatprep.subr.mxu0 0.0
        %4635 = vmatpush1.msra.mxu0 0.0
        %4636 = vmatprep.subr.mxu0 0.0
        %4637 = vmatpush1.msra.mxu0 %v4517
        %4638 = vmatprep.subr.mxu0 0.0
        %4639 = vmatpush1.msra.mxu0 %v4516
        %4640 = vmatprep.subr.mxu0 0.0
        %4641 = vmatpush1.msra.mxu0 %v4515
        %4642 = vmatprep.subr.mxu0 0.0
        %4643 = vmatpush1.msra.mxu0 %v4514
        %4644 = vmatprep.subr.mxu0 0.0
        %4645 = vmatpush2.msra.mxu0 0.0
        %4646 = vmatprep.subr.mxu0 0.0
        %4647 = vmatpush2.msra.mxu0 0.0
        %4648 = vmatprep.subr.mxu0 0.0
        %4649 = vmatpush2.msra.mxu0 0.0
        %4650 = vmatprep.subr.mxu0 0.0
        %4651 = vmatpush2.msra.mxu0 0.0
        %4652 = vmatprep.subr.mxu0 0.0
        %4653 = vmatpush2.msra.mxu0 0.0
        %4654 = vmatprep.subr.mxu0 0.0
        %4655 = vmatpush2.msra.mxu0 0.0
        %4656 = vmatprep.subr.mxu0 0.0
        %4657 = vmatpush2.msra.mxu0 0.0
        %4658 = vmatprep.subr.mxu0 0.0
        %4659 = vmatpush2.msra.mxu0 0.0
        %4660 = vmatprep.subr.mxu0 0.0
        %4661 = vmatpush2.msra.mxu0 0.0
        %4662 = vmatprep.subr.mxu0 0.0
        %4663 = vmatpush2.msra.mxu0 0.0
        %4664 = vmatprep.subr.mxu0 0.0
        %4665 = vmatpush2.msra.mxu0 0.0
        %4666 = vmatprep.subr.mxu0 0.0
        %4667 = vmatpush2.msra.mxu0 0.0
        %4668 = vmatprep.subr.mxu0 0.0
        %4669 = vmatpush2.msra.mxu0 0.0
        %4670 = vmatprep.subr.mxu0 0.0
        %4671 = vmatpush2.msra.mxu0 0.0
        %4672 = vmatprep.subr.mxu0 0.0
        %4673 = vmatpush2.msra.mxu0 0.0
        %4674 = vmatprep.subr.mxu0 0.0
        %4675 = vmatpush2.msra.mxu0 0.0
        %4676 = vmatprep.mubr.f32.mxu0 0.0
        %4677 = vmatmul.mubr.f32.gmra.mxu0 %v4610
        %v4678 = vpop.f32.mrf.mxu0
        %v4679 = vadd.f32 %v4607, %v4678
        %v4680 = vpop.f32.mrf.mxu0
        %4681 = vdwg.mxu0
        %v4683 = vsel %vm1448, %v4600, 0
        %v4686 = vsel %vm1448, %v4679, 0
        %4688 = vmatprep.subr.mxu0 0.0
        %4689 = vmatpush1.xpose.msra.mxu0 0.0
        %4690 = vmatprep.subr.mxu0 0.0
        %4691 = vmatpush1.xpose.msra.mxu0 0.0
        %4692 = vmatprep.subr.mxu0 0.0
        %4693 = vmatpush1.xpose.msra.mxu0 0.0
        %4694 = vmatprep.subr.mxu0 0.0
        %4695 = vmatpush1.xpose.msra.mxu0 0.0
        %4696 = vmatprep.subr.mxu0 0.0
        %4697 = vmatpush1.xpose.msra.mxu0 0.0
        %4698 = vmatprep.subr.mxu0 0.0
        %4699 = vmatpush1.xpose.msra.mxu0 0.0
        %4700 = vmatprep.subr.mxu0 0.0
        %4701 = vmatpush1.xpose.msra.mxu0 0.0
        %4702 = vmatprep.subr.mxu0 0.0
        %4703 = vmatpush1.xpose.msra.mxu0 0.0
        %4704 = vmatprep.subr.mxu0 0.0
        %4705 = vmatpush1.xpose.msra.mxu0 0.0
        %4706 = vmatprep.subr.mxu0 0.0
        %4707 = vmatpush1.xpose.msra.mxu0 0.0
        %4708 = vmatprep.subr.mxu0 0.0
        %4709 = vmatpush1.xpose.msra.mxu0 0.0
        %4710 = vmatprep.subr.mxu0 0.0
        %4711 = vmatpush1.xpose.msra.mxu0 0.0
        %4712 = vmatprep.subr.mxu0 0.0
        %4713 = vmatpush1.xpose.msra.mxu0 0.0
        %4714 = vmatprep.subr.mxu0 0.0
        %4715 = vmatpush1.xpose.msra.mxu0 0.0
        %4716 = vmatprep.subr.mxu0 0.0
        %4717 = vmatpush1.xpose.msra.mxu0 0.0
        %4718 = vmatprep.subr.mxu0 0.0
        %4719 = vmatpush1.xpose.msra.mxu0 %v4686
        %4720 = vmatprep.subr.mxu0 0.0
        %4721 = vmatpush2.xpose.msra.mxu0 0.0
        %4722 = vmatprep.subr.mxu0 0.0
        %4723 = vmatpush2.xpose.msra.mxu0 0.0
        %4724 = vmatprep.subr.mxu0 0.0
        %4725 = vmatpush2.xpose.msra.mxu0 0.0
        %4726 = vmatprep.subr.mxu0 0.0
        %4727 = vmatpush2.xpose.msra.mxu0 0.0
        %4728 = vmatprep.subr.mxu0 0.0
        %4729 = vmatpush2.xpose.msra.mxu0 0.0
        %4730 = vmatprep.subr.mxu0 0.0
        %4731 = vmatpush2.xpose.msra.mxu0 0.0
        %4732 = vmatprep.subr.mxu0 0.0
        %4733 = vmatpush2.xpose.msra.mxu0 0.0
        %4734 = vmatprep.subr.mxu0 0.0
        %4735 = vmatpush2.xpose.msra.mxu0 0.0
        %4736 = vmatprep.subr.mxu0 0.0
        %4737 = vmatpush2.xpose.msra.mxu0 0.0
        %4738 = vmatprep.subr.mxu0 0.0
        %4739 = vmatpush2.xpose.msra.mxu0 0.0
        %4740 = vmatprep.subr.mxu0 0.0
        %4741 = vmatpush2.xpose.msra.mxu0 0.0
        %4742 = vmatprep.subr.mxu0 0.0
        %4743 = vmatpush2.xpose.msra.mxu0 0.0
        %4744 = vmatprep.subr.mxu0 0.0
        %4745 = vmatpush2.xpose.msra.mxu0 0.0
        %4746 = vmatprep.subr.mxu0 0.0
        %4747 = vmatpush2.xpose.msra.mxu0 0.0
        %4748 = vmatprep.subr.mxu0 0.0
        %4749 = vmatpush2.xpose.msra.mxu0 0.0
        %4750 = vmatprep.subr.mxu0 0.0
        %4751 = vmatpush2.xpose.msra.mxu0 0.0
        %4752 = vmatprep.mubr.f32.mxu0 0.0
        %4753 = vmatmul.mubr.f32.gmra.mxu0 %v4683
        %v4754 = vpop.f32.mrf.mxu0
        %v4755 = vadd.f32 0.0, %v4754
        %v4756 = vpop.f32.mrf.mxu0
        %4757 = vdwg.mxu0
        %v4758 = vmul.f32 %v4755, 0.35355338
        %v4759 = vsel %vm1529, %v4758, -1e+09
        %v4760 = vsel %vm1448, %v4759, -inf
        %4761 = vmax.xlane.f32.xlu0 %v4760
        %v4762 = vpop.xlane.xlu0 %4761
        %v4763 = vsub.f32 %v4759, %v4762
        %v4764 = vmul.f32 %v4763, 1.442695
        %v4765 = vpow.pop %v4764
        %v4766 = vsel %vm1448, %v4765, 0.0
        %4767 = vadd.xlane.f32.xlu0 %v4766
        %v4768 = vpop.xlane.xlu0 %4767
        %v4769 = vrcp.pop %v4768
        %v4770 = vmul.f32 %v4765, %v4769
        %4771 = vrot.lane.b32.xlu0 %v4679, 96
        %v4772 = vpop.permute.xlu0 %4771
        %v4775 = vsel %vm1448, %v4770, 0
        %4777 = vmatprep.subr.mxu0 0.0
        %4778 = vmatpush1.msra.mxu0 0.0
        %4779 = vmatprep.subr.mxu0 0.0
        %4780 = vmatpush1.msra.mxu0 0.0
        %4781 = vmatprep.subr.mxu0 0.0
        %4782 = vmatpush1.msra.mxu0 0.0
        %4783 = vmatprep.subr.mxu0 0.0
        %4784 = vmatpush1.msra.mxu0 0.0
        %4785 = vmatprep.subr.mxu0 0.0
        %4786 = vmatpush1.msra.mxu0 0.0
        %4787 = vmatprep.subr.mxu0 0.0
        %4788 = vmatpush1.msra.mxu0 0.0
        %4789 = vmatprep.subr.mxu0 0.0
        %4790 = vmatpush1.msra.mxu0 0.0
        %4791 = vmatprep.subr.mxu0 0.0
        %4792 = vmatpush1.msra.mxu0 0.0
        %4793 = vmatprep.subr.mxu0 0.0
        %4794 = vmatpush1.msra.mxu0 0.0
        %4795 = vmatprep.subr.mxu0 0.0
        %4796 = vmatpush1.msra.mxu0 0.0
        %4797 = vmatprep.subr.mxu0 0.0
        %4798 = vmatpush1.msra.mxu0 0.0
        %4799 = vmatprep.subr.mxu0 0.0
        %4800 = vmatpush1.msra.mxu0 0.0
        %4801 = vmatprep.subr.mxu0 0.0
        %4802 = vmatpush1.msra.mxu0 0.0
        %4803 = vmatprep.subr.mxu0 0.0
        %4804 = vmatpush1.msra.mxu0 0.0
        %4805 = vmatprep.subr.mxu0 0.0
        %4806 = vmatpush1.msra.mxu0 0.0
        %4807 = vmatprep.subr.mxu0 0.0
        %4808 = vmatpush1.msra.mxu0 %v4772
        %4809 = vmatprep.subr.mxu0 0.0
        %4810 = vmatpush2.msra.mxu0 0.0
        %4811 = vmatprep.subr.mxu0 0.0
        %4812 = vmatpush2.msra.mxu0 0.0
        %4813 = vmatprep.subr.mxu0 0.0
        %4814 = vmatpush2.msra.mxu0 0.0
        %4815 = vmatprep.subr.mxu0 0.0
        %4816 = vmatpush2.msra.mxu0 0.0
        %4817 = vmatprep.subr.mxu0 0.0
        %4818 = vmatpush2.msra.mxu0 0.0
        %4819 = vmatprep.subr.mxu0 0.0
        %4820 = vmatpush2.msra.mxu0 0.0
        %4821 = vmatprep.subr.mxu0 0.0
        %4822 = vmatpush2.msra.mxu0 0.0
        %4823 = vmatprep.subr.mxu0 0.0
        %4824 = vmatpush2.msra.mxu0 0.0
        %4825 = vmatprep.subr.mxu0 0.0
        %4826 = vmatpush2.msra.mxu0 0.0
        %4827 = vmatprep.subr.mxu0 0.0
        %4828 = vmatpush2.msra.mxu0 0.0
        %4829 = vmatprep.subr.mxu0 0.0
        %4830 = vmatpush2.msra.mxu0 0.0
        %4831 = vmatprep.subr.mxu0 0.0
        %4832 = vmatpush2.msra.mxu0 0.0
        %4833 = vmatprep.subr.mxu0 0.0
        %4834 = vmatpush2.msra.mxu0 0.0
        %4835 = vmatprep.subr.mxu0 0.0
        %4836 = vmatpush2.msra.mxu0 0.0
        %4837 = vmatprep.subr.mxu0 0.0
        %4838 = vmatpush2.msra.mxu0 0.0
        %4839 = vmatprep.subr.mxu0 0.0
        %4840 = vmatpush2.msra.mxu0 0.0
        %4841 = vmatprep.mubr.f32.mxu0 0.0
        %4842 = vmatmul.mubr.f32.gmra.mxu0 %v4775
        %v4843 = vpop.f32.mrf.mxu0
        %v4844 = vadd.f32 0.0, %v4843
        %v4845 = vpop.f32.mrf.mxu0
        %4846 = vdwg.mxu0
        %4847 = vrot.lane.b32.xlu0 %v4600, 120
        %v4848 = vpop.permute.xlu0 %4847
        %4849 = vrot.lane.b32.xlu0 %v4679, 120
        %v4850 = vpop.permute.xlu0 %4849
        %v4851 = vsel %vm1448, %v4848, 0
        %v4853 = vsel %vm1448, %v4850, 0
        %4855 = vmatprep.subr.mxu0 0.0
        %4856 = vmatpush1.xpose.msra.mxu0 0.0
        %4857 = vmatprep.subr.mxu0 0.0
        %4858 = vmatpush1.xpose.msra.mxu0 0.0
        %4859 = vmatprep.subr.mxu0 0.0
        %4860 = vmatpush1.xpose.msra.mxu0 0.0
        %4861 = vmatprep.subr.mxu0 0.0
        %4862 = vmatpush1.xpose.msra.mxu0 0.0
        %4863 = vmatprep.subr.mxu0 0.0
        %4864 = vmatpush1.xpose.msra.mxu0 0.0
        %4865 = vmatprep.subr.mxu0 0.0
        %4866 = vmatpush1.xpose.msra.mxu0 0.0
        %4867 = vmatprep.subr.mxu0 0.0
        %4868 = vmatpush1.xpose.msra.mxu0 0.0
        %4869 = vmatprep.subr.mxu0 0.0
        %4870 = vmatpush1.xpose.msra.mxu0 0.0
        %4871 = vmatprep.subr.mxu0 0.0
        %4872 = vmatpush1.xpose.msra.mxu0 0.0
        %4873 = vmatprep.subr.mxu0 0.0
        %4874 = vmatpush1.xpose.msra.mxu0 0.0
        %4875 = vmatprep.subr.mxu0 0.0
        %4876 = vmatpush1.xpose.msra.mxu0 0.0
        %4877 = vmatprep.subr.mxu0 0.0
        %4878 = vmatpush1.xpose.msra.mxu0 0.0
        %4879 = vmatprep.subr.mxu0 0.0
        %4880 = vmatpush1.xpose.msra.mxu0 0.0
        %4881 = vmatprep.subr.mxu0 0.0
        %4882 = vmatpush1.xpose.msra.mxu0 0.0
        %4883 = vmatprep.subr.mxu0 0.0
        %4884 = vmatpush1.xpose.msra.mxu0 0.0
        %4885 = vmatprep.subr.mxu0 0.0
        %4886 = vmatpush1.xpose.msra.mxu0 %v4853
        %4887 = vmatprep.subr.mxu0 0.0
        %4888 = vmatpush2.xpose.msra.mxu0 0.0
        %4889 = vmatprep.subr.mxu0 0.0
        %4890 = vmatpush2.xpose.msra.mxu0 0.0
        %4891 = vmatprep.subr.mxu0 0.0
        %4892 = vmatpush2.xpose.msra.mxu0 0.0
        %4893 = vmatprep.subr.mxu0 0.0
        %4894 = vmatpush2.xpose.msra.mxu0 0.0
        %4895 = vmatprep.subr.mxu0 0.0
        %4896 = vmatpush2.xpose.msra.mxu0 0.0
        %4897 = vmatprep.subr.mxu0 0.0
        %4898 = vmatpush2.xpose.msra.mxu0 0.0
        %4899 = vmatprep.subr.mxu0 0.0
        %4900 = vmatpush2.xpose.msra.mxu0 0.0
        %4901 = vmatprep.subr.mxu0 0.0
        %4902 = vmatpush2.xpose.msra.mxu0 0.0
        %4903 = vmatprep.subr.mxu0 0.0
        %4904 = vmatpush2.xpose.msra.mxu0 0.0
        %4905 = vmatprep.subr.mxu0 0.0
        %4906 = vmatpush2.xpose.msra.mxu0 0.0
        %4907 = vmatprep.subr.mxu0 0.0
        %4908 = vmatpush2.xpose.msra.mxu0 0.0
        %4909 = vmatprep.subr.mxu0 0.0
        %4910 = vmatpush2.xpose.msra.mxu0 0.0
        %4911 = vmatprep.subr.mxu0 0.0
        %4912 = vmatpush2.xpose.msra.mxu0 0.0
        %4913 = vmatprep.subr.mxu0 0.0
        %4914 = vmatpush2.xpose.msra.mxu0 0.0
        %4915 = vmatprep.subr.mxu0 0.0
        %4916 = vmatpush2.xpose.msra.mxu0 0.0
        %4917 = vmatprep.subr.mxu0 0.0
        %4918 = vmatpush2.xpose.msra.mxu0 0.0
        %4919 = vmatprep.mubr.f32.mxu0 0.0
        %4920 = vmatmul.mubr.f32.gmra.mxu0 %v4851
        %v4921 = vpop.f32.mrf.mxu0
        %v4922 = vadd.f32 0.0, %v4921
        %v4923 = vpop.f32.mrf.mxu0
        %4924 = vdwg.mxu0
        %v4925 = vmul.f32 %v4922, 0.35355338
        %v4926 = vsel %vm1529, %v4925, -1e+09
        %v4927 = vsel %vm1448, %v4926, -inf
        %4928 = vmax.xlane.f32.xlu0 %v4927
        %v4929 = vpop.xlane.xlu0 %4928
        %v4930 = vsub.f32 %v4926, %v4929
        %v4931 = vmul.f32 %v4930, 1.442695
        %v4932 = vpow.pop %v4931
        %v4933 = vsel %vm1448, %v4932, 0.0
        %4934 = vadd.xlane.f32.xlu0 %v4933
        %v4935 = vpop.xlane.xlu0 %4934
        %v4936 = vrcp.pop %v4935
        %v4937 = vmul.f32 %v4932, %v4936
        %4938 = vrot.lane.b32.xlu0 %v4679, 88
        %v4939 = vpop.permute.xlu0 %4938
        %v4942 = vsel %vm1448, %v4937, 0
        %4944 = vmatprep.subr.mxu0 0.0
        %4945 = vmatpush1.msra.mxu0 0.0
        %4946 = vmatprep.subr.mxu0 0.0
        %4947 = vmatpush1.msra.mxu0 0.0
        %4948 = vmatprep.subr.mxu0 0.0
        %4949 = vmatpush1.msra.mxu0 0.0
        %4950 = vmatprep.subr.mxu0 0.0
        %4951 = vmatpush1.msra.mxu0 0.0
        %4952 = vmatprep.subr.mxu0 0.0
        %4953 = vmatpush1.msra.mxu0 0.0
        %4954 = vmatprep.subr.mxu0 0.0
        %4955 = vmatpush1.msra.mxu0 0.0
        %4956 = vmatprep.subr.mxu0 0.0
        %4957 = vmatpush1.msra.mxu0 0.0
        %4958 = vmatprep.subr.mxu0 0.0
        %4959 = vmatpush1.msra.mxu0 0.0
        %4960 = vmatprep.subr.mxu0 0.0
        %4961 = vmatpush1.msra.mxu0 0.0
        %4962 = vmatprep.subr.mxu0 0.0
        %4963 = vmatpush1.msra.mxu0 0.0
        %4964 = vmatprep.subr.mxu0 0.0
        %4965 = vmatpush1.msra.mxu0 0.0
        %4966 = vmatprep.subr.mxu0 0.0
        %4967 = vmatpush1.msra.mxu0 0.0
        %4968 = vmatprep.subr.mxu0 0.0
        %4969 = vmatpush1.msra.mxu0 0.0
        %4970 = vmatprep.subr.mxu0 0.0
        %4971 = vmatpush1.msra.mxu0 0.0
        %4972 = vmatprep.subr.mxu0 0.0
        %4973 = vmatpush1.msra.mxu0 0.0
        %4974 = vmatprep.subr.mxu0 0.0
        %4975 = vmatpush1.msra.mxu0 %v4939
        %4976 = vmatprep.subr.mxu0 0.0
        %4977 = vmatpush2.msra.mxu0 0.0
        %4978 = vmatprep.subr.mxu0 0.0
        %4979 = vmatpush2.msra.mxu0 0.0
        %4980 = vmatprep.subr.mxu0 0.0
        %4981 = vmatpush2.msra.mxu0 0.0
        %4982 = vmatprep.subr.mxu0 0.0
        %4983 = vmatpush2.msra.mxu0 0.0
        %4984 = vmatprep.subr.mxu0 0.0
        %4985 = vmatpush2.msra.mxu0 0.0
        %4986 = vmatprep.subr.mxu0 0.0
        %4987 = vmatpush2.msra.mxu0 0.0
        %4988 = vmatprep.subr.mxu0 0.0
        %4989 = vmatpush2.msra.mxu0 0.0
        %4990 = vmatprep.subr.mxu0 0.0
        %4991 = vmatpush2.msra.mxu0 0.0
        %4992 = vmatprep.subr.mxu0 0.0
        %4993 = vmatpush2.msra.mxu0 0.0
        %4994 = vmatprep.subr.mxu0 0.0
        %4995 = vmatpush2.msra.mxu0 0.0
        %4996 = vmatprep.subr.mxu0 0.0
        %4997 = vmatpush2.msra.mxu0 0.0
        %4998 = vmatprep.subr.mxu0 0.0
        %4999 = vmatpush2.msra.mxu0 0.0
        %5000 = vmatprep.subr.mxu0 0.0
        %5001 = vmatpush2.msra.mxu0 0.0
        %5002 = vmatprep.subr.mxu0 0.0
        %5003 = vmatpush2.msra.mxu0 0.0
        %5004 = vmatprep.subr.mxu0 0.0
        %5005 = vmatpush2.msra.mxu0 0.0
        %5006 = vmatprep.subr.mxu0 0.0
        %5007 = vmatpush2.msra.mxu0 0.0
        %5008 = vmatprep.mubr.f32.mxu0 0.0
        %5009 = vmatmul.mubr.f32.gmra.mxu0 %v4942
        %v5010 = vpop.f32.mrf.mxu0
        %v5011 = vadd.f32 0.0, %v5010
        %v5012 = vpop.f32.mrf.mxu0
        %5013 = vdwg.mxu0
        %5014 = vrot.lane.b32.xlu0 %v4600, 112
        %v5015 = vpop.permute.xlu0 %5014
        %5016 = vrot.lane.b32.xlu0 %v4679, 112
        %v5017 = vpop.permute.xlu0 %5016
        %v5018 = vsel %vm1448, %v5015, 0
        %v5020 = vsel %vm1448, %v5017, 0
        %5022 = vmatprep.subr.mxu0 0.0
        %5023 = vmatpush1.xpose.msra.mxu0 0.0
        %5024 = vmatprep.subr.mxu0 0.0
        %5025 = vmatpush1.xpose.msra.mxu0 0.0
        %5026 = vmatprep.subr.mxu0 0.0
        %5027 = vmatpush1.xpose.msra.mxu0 0.0
        %5028 = vmatprep.subr.mxu0 0.0
        %5029 = vmatpush1.xpose.msra.mxu0 0.0
        %5030 = vmatprep.subr.mxu0 0.0
        %5031 = vmatpush1.xpose.msra.mxu0 0.0
        %5032 = vmatprep.subr.mxu0 0.0
        %5033 = vmatpush1.xpose.msra.mxu0 0.0
        %5034 = vmatprep.subr.mxu0 0.0
        %5035 = vmatpush1.xpose.msra.mxu0 0.0
        %5036 = vmatprep.subr.mxu0 0.0
        %5037 = vmatpush1.xpose.msra.mxu0 0.0
        %5038 = vmatprep.subr.mxu0 0.0
        %5039 = vmatpush1.xpose.msra.mxu0 0.0
        %5040 = vmatprep.subr.mxu0 0.0
        %5041 = vmatpush1.xpose.msra.mxu0 0.0
        %5042 = vmatprep.subr.mxu0 0.0
        %5043 = vmatpush1.xpose.msra.mxu0 0.0
        %5044 = vmatprep.subr.mxu0 0.0
        %5045 = vmatpush1.xpose.msra.mxu0 0.0
        %5046 = vmatprep.subr.mxu0 0.0
        %5047 = vmatpush1.xpose.msra.mxu0 0.0
        %5048 = vmatprep.subr.mxu0 0.0
        %5049 = vmatpush1.xpose.msra.mxu0 0.0
        %5050 = vmatprep.subr.mxu0 0.0
        %5051 = vmatpush1.xpose.msra.mxu0 0.0
        %5052 = vmatprep.subr.mxu0 0.0
        %5053 = vmatpush1.xpose.msra.mxu0 %v5020
        %5054 = vmatprep.subr.mxu0 0.0
        %5055 = vmatpush2.xpose.msra.mxu0 0.0
        %5056 = vmatprep.subr.mxu0 0.0
        %5057 = vmatpush2.xpose.msra.mxu0 0.0
        %5058 = vmatprep.subr.mxu0 0.0
        %5059 = vmatpush2.xpose.msra.mxu0 0.0
        %5060 = vmatprep.subr.mxu0 0.0
        %5061 = vmatpush2.xpose.msra.mxu0 0.0
        %5062 = vmatprep.subr.mxu0 0.0
        %5063 = vmatpush2.xpose.msra.mxu0 0.0
        %5064 = vmatprep.subr.mxu0 0.0
        %5065 = vmatpush2.xpose.msra.mxu0 0.0
        %5066 = vmatprep.subr.mxu0 0.0
        %5067 = vmatpush2.xpose.msra.mxu0 0.0
        %5068 = vmatprep.subr.mxu0 0.0
        %5069 = vmatpush2.xpose.msra.mxu0 0.0
        %5070 = vmatprep.subr.mxu0 0.0
        %5071 = vmatpush2.xpose.msra.mxu0 0.0
        %5072 = vmatprep.subr.mxu0 0.0
        %5073 = vmatpush2.xpose.msra.mxu0 0.0
        %5074 = vmatprep.subr.mxu0 0.0
        %5075 = vmatpush2.xpose.msra.mxu0 0.0
        %5076 = vmatprep.subr.mxu0 0.0
        %5077 = vmatpush2.xpose.msra.mxu0 0.0
        %5078 = vmatprep.subr.mxu0 0.0
        %5079 = vmatpush2.xpose.msra.mxu0 0.0
        %5080 = vmatprep.subr.mxu0 0.0
        %5081 = vmatpush2.xpose.msra.mxu0 0.0
        %5082 = vmatprep.subr.mxu0 0.0
        %5083 = vmatpush2.xpose.msra.mxu0 0.0
        %5084 = vmatprep.subr.mxu0 0.0
        %5085 = vmatpush2.xpose.msra.mxu0 0.0
        %5086 = vmatprep.mubr.f32.mxu0 0.0
        %5087 = vmatmul.mubr.f32.gmra.mxu0 %v5018
        %v5088 = vpop.f32.mrf.mxu0
        %v5089 = vadd.f32 0.0, %v5088
        %v5090 = vpop.f32.mrf.mxu0
        %5091 = vdwg.mxu0
        %v5092 = vmul.f32 %v5089, 0.35355338
        %v5093 = vsel %vm1529, %v5092, -1e+09
        %v5094 = vsel %vm1448, %v5093, -inf
        %5095 = vmax.xlane.f32.xlu0 %v5094
        %v5096 = vpop.xlane.xlu0 %5095
        %v5097 = vsub.f32 %v5093, %v5096
        %v5098 = vmul.f32 %v5097, 1.442695
        %v5099 = vpow.pop %v5098
        %v5100 = vsel %vm1448, %v5099, 0.0
        %5101 = vadd.xlane.f32.xlu0 %v5100
        %v5102 = vpop.xlane.xlu0 %5101
        %v5103 = vrcp.pop %v5102
        %v5104 = vmul.f32 %v5099, %v5103
        %5105 = vrot.lane.b32.xlu0 %v4679, 80
        %v5106 = vpop.permute.xlu0 %5105
        %v5109 = vsel %vm1448, %v5104, 0
        %5111 = vmatprep.subr.mxu0 0.0
        %5112 = vmatpush1.msra.mxu0 0.0
        %5113 = vmatprep.subr.mxu0 0.0
        %5114 = vmatpush1.msra.mxu0 0.0
        %5115 = vmatprep.subr.mxu0 0.0
        %5116 = vmatpush1.msra.mxu0 0.0
        %5117 = vmatprep.subr.mxu0 0.0
        %5118 = vmatpush1.msra.mxu0 0.0
        %5119 = vmatprep.subr.mxu0 0.0
        %5120 = vmatpush1.msra.mxu0 0.0
        %5121 = vmatprep.subr.mxu0 0.0
        %5122 = vmatpush1.msra.mxu0 0.0
        %5123 = vmatprep.subr.mxu0 0.0
        %5124 = vmatpush1.msra.mxu0 0.0
        %5125 = vmatprep.subr.mxu0 0.0
        %5126 = vmatpush1.msra.mxu0 0.0
        %5127 = vmatprep.subr.mxu0 0.0
        %5128 = vmatpush1.msra.mxu0 0.0
        %5129 = vmatprep.subr.mxu0 0.0
        %5130 = vmatpush1.msra.mxu0 0.0
        %5131 = vmatprep.subr.mxu0 0.0
        %5132 = vmatpush1.msra.mxu0 0.0
        %5133 = vmatprep.subr.mxu0 0.0
        %5134 = vmatpush1.msra.mxu0 0.0
        %5135 = vmatprep.subr.mxu0 0.0
        %5136 = vmatpush1.msra.mxu0 0.0
        %5137 = vmatprep.subr.mxu0 0.0
        %5138 = vmatpush1.msra.mxu0 0.0
        %5139 = vmatprep.subr.mxu0 0.0
        %5140 = vmatpush1.msra.mxu0 0.0
        %5141 = vmatprep.subr.mxu0 0.0
        %5142 = vmatpush1.msra.mxu0 %v5106
        %5143 = vmatprep.subr.mxu0 0.0
        %5144 = vmatpush2.msra.mxu0 0.0
        %5145 = vmatprep.subr.mxu0 0.0
        %5146 = vmatpush2.msra.mxu0 0.0
        %5147 = vmatprep.subr.mxu0 0.0
        %5148 = vmatpush2.msra.mxu0 0.0
        %5149 = vmatprep.subr.mxu0 0.0
        %5150 = vmatpush2.msra.mxu0 0.0
        %5151 = vmatprep.subr.mxu0 0.0
        %5152 = vmatpush2.msra.mxu0 0.0
        %5153 = vmatprep.subr.mxu0 0.0
        %5154 = vmatpush2.msra.mxu0 0.0
        %5155 = vmatprep.subr.mxu0 0.0
        %5156 = vmatpush2.msra.mxu0 0.0
        %5157 = vmatprep.subr.mxu0 0.0
        %5158 = vmatpush2.msra.mxu0 0.0
        %5159 = vmatprep.subr.mxu0 0.0
        %5160 = vmatpush2.msra.mxu0 0.0
        %5161 = vmatprep.subr.mxu0 0.0
        %5162 = vmatpush2.msra.mxu0 0.0
        %5163 = vmatprep.subr.mxu0 0.0
        %5164 = vmatpush2.msra.mxu0 0.0
        %5165 = vmatprep.subr.mxu0 0.0
        %5166 = vmatpush2.msra.mxu0 0.0
        %5167 = vmatprep.subr.mxu0 0.0
        %5168 = vmatpush2.msra.mxu0 0.0
        %5169 = vmatprep.subr.mxu0 0.0
        %5170 = vmatpush2.msra.mxu0 0.0
        %5171 = vmatprep.subr.mxu0 0.0
        %5172 = vmatpush2.msra.mxu0 0.0
        %5173 = vmatprep.subr.mxu0 0.0
        %5174 = vmatpush2.msra.mxu0 0.0
        %5175 = vmatprep.mubr.f32.mxu0 0.0
        %5176 = vmatmul.mubr.f32.gmra.mxu0 %v5109
        %v5177 = vpop.f32.mrf.mxu0
        %v5178 = vadd.f32 0.0, %v5177
        %v5179 = vpop.f32.mrf.mxu0
        %5180 = vdwg.mxu0
        %5181 = vrot.lane.b32.xlu0 %v4600, 104
        %v5182 = vpop.permute.xlu0 %5181
        %5183 = vrot.lane.b32.xlu0 %v4679, 104
        %v5184 = vpop.permute.xlu0 %5183
        %v5185 = vsel %vm1448, %v5182, 0
        %v5187 = vsel %vm1448, %v5184, 0
        %5189 = vmatprep.subr.mxu0 0.0
        %5190 = vmatpush1.xpose.msra.mxu0 0.0
        %5191 = vmatprep.subr.mxu0 0.0
        %5192 = vmatpush1.xpose.msra.mxu0 0.0
        %5193 = vmatprep.subr.mxu0 0.0
        %5194 = vmatpush1.xpose.msra.mxu0 0.0
        %5195 = vmatprep.subr.mxu0 0.0
        %5196 = vmatpush1.xpose.msra.mxu0 0.0
        %5197 = vmatprep.subr.mxu0 0.0
        %5198 = vmatpush1.xpose.msra.mxu0 0.0
        %5199 = vmatprep.subr.mxu0 0.0
        %5200 = vmatpush1.xpose.msra.mxu0 0.0
        %5201 = vmatprep.subr.mxu0 0.0
        %5202 = vmatpush1.xpose.msra.mxu0 0.0
        %5203 = vmatprep.subr.mxu0 0.0
        %5204 = vmatpush1.xpose.msra.mxu0 0.0
        %5205 = vmatprep.subr.mxu0 0.0
        %5206 = vmatpush1.xpose.msra.mxu0 0.0
        %5207 = vmatprep.subr.mxu0 0.0
        %5208 = vmatpush1.xpose.msra.mxu0 0.0
        %5209 = vmatprep.subr.mxu0 0.0
        %5210 = vmatpush1.xpose.msra.mxu0 0.0
        %5211 = vmatprep.subr.mxu0 0.0
        %5212 = vmatpush1.xpose.msra.mxu0 0.0
        %5213 = vmatprep.subr.mxu0 0.0
        %5214 = vmatpush1.xpose.msra.mxu0 0.0
        %5215 = vmatprep.subr.mxu0 0.0
        %5216 = vmatpush1.xpose.msra.mxu0 0.0
        %5217 = vmatprep.subr.mxu0 0.0
        %5218 = vmatpush1.xpose.msra.mxu0 0.0
        %5219 = vmatprep.subr.mxu0 0.0
        %5220 = vmatpush1.xpose.msra.mxu0 %v5187
        %5221 = vmatprep.subr.mxu0 0.0
        %5222 = vmatpush2.xpose.msra.mxu0 0.0
        %5223 = vmatprep.subr.mxu0 0.0
        %5224 = vmatpush2.xpose.msra.mxu0 0.0
        %5225 = vmatprep.subr.mxu0 0.0
        %5226 = vmatpush2.xpose.msra.mxu0 0.0
        %5227 = vmatprep.subr.mxu0 0.0
        %5228 = vmatpush2.xpose.msra.mxu0 0.0
        %5229 = vmatprep.subr.mxu0 0.0
        %5230 = vmatpush2.xpose.msra.mxu0 0.0
        %5231 = vmatprep.subr.mxu0 0.0
        %5232 = vmatpush2.xpose.msra.mxu0 0.0
        %5233 = vmatprep.subr.mxu0 0.0
        %5234 = vmatpush2.xpose.msra.mxu0 0.0
        %5235 = vmatprep.subr.mxu0 0.0
        %5236 = vmatpush2.xpose.msra.mxu0 0.0
        %5237 = vmatprep.subr.mxu0 0.0
        %5238 = vmatpush2.xpose.msra.mxu0 0.0
        %5239 = vmatprep.subr.mxu0 0.0
        %5240 = vmatpush2.xpose.msra.mxu0 0.0
        %5241 = vmatprep.subr.mxu0 0.0
        %5242 = vmatpush2.xpose.msra.mxu0 0.0
        %5243 = vmatprep.subr.mxu0 0.0
        %5244 = vmatpush2.xpose.msra.mxu0 0.0
        %5245 = vmatprep.subr.mxu0 0.0
        %5246 = vmatpush2.xpose.msra.mxu0 0.0
        %5247 = vmatprep.subr.mxu0 0.0
        %5248 = vmatpush2.xpose.msra.mxu0 0.0
        %5249 = vmatprep.subr.mxu0 0.0
        %5250 = vmatpush2.xpose.msra.mxu0 0.0
        %5251 = vmatprep.subr.mxu0 0.0
        %5252 = vmatpush2.xpose.msra.mxu0 0.0
        %5253 = vmatprep.mubr.f32.mxu0 0.0
        %5254 = vmatmul.mubr.f32.gmra.mxu0 %v5185
        %v5255 = vpop.f32.mrf.mxu0
        %v5256 = vadd.f32 0.0, %v5255
        %v5257 = vpop.f32.mrf.mxu0
        %5258 = vdwg.mxu0
        %v5259 = vmul.f32 %v5256, 0.35355338
        %v5260 = vsel %vm1529, %v5259, -1e+09
        %v5261 = vsel %vm1448, %v5260, -inf
        %5262 = vmax.xlane.f32.xlu0 %v5261
        %v5263 = vpop.xlane.xlu0 %5262
        %v5264 = vsub.f32 %v5260, %v5263
        %v5265 = vmul.f32 %v5264, 1.442695
        %v5266 = vpow.pop %v5265
        %v5267 = vsel %vm1448, %v5266, 0.0
        %5268 = vadd.xlane.f32.xlu0 %v5267
        %v5269 = vpop.xlane.xlu0 %5268
        %v5270 = vrcp.pop %v5269
        %v5271 = vmul.f32 %v5266, %v5270
        %5272 = vrot.lane.b32.xlu0 %v4679, 72
        %v5273 = vpop.permute.xlu0 %5272
        %v5276 = vsel %vm1448, %v5271, 0
        %5278 = vmatprep.subr.mxu0 0.0
        %5279 = vmatpush1.msra.mxu0 0.0
        %5280 = vmatprep.subr.mxu0 0.0
        %5281 = vmatpush1.msra.mxu0 0.0
        %5282 = vmatprep.subr.mxu0 0.0
        %5283 = vmatpush1.msra.mxu0 0.0
        %5284 = vmatprep.subr.mxu0 0.0
        %5285 = vmatpush1.msra.mxu0 0.0
        %5286 = vmatprep.subr.mxu0 0.0
        %5287 = vmatpush1.msra.mxu0 0.0
        %5288 = vmatprep.subr.mxu0 0.0
        %5289 = vmatpush1.msra.mxu0 0.0
        %5290 = vmatprep.subr.mxu0 0.0
        %5291 = vmatpush1.msra.mxu0 0.0
        %5292 = vmatprep.subr.mxu0 0.0
        %5293 = vmatpush1.msra.mxu0 0.0
        %5294 = vmatprep.subr.mxu0 0.0
        %5295 = vmatpush1.msra.mxu0 0.0
        %5296 = vmatprep.subr.mxu0 0.0
        %5297 = vmatpush1.msra.mxu0 0.0
        %5298 = vmatprep.subr.mxu0 0.0
        %5299 = vmatpush1.msra.mxu0 0.0
        %5300 = vmatprep.subr.mxu0 0.0
        %5301 = vmatpush1.msra.mxu0 0.0
        %5302 = vmatprep.subr.mxu0 0.0
        %5303 = vmatpush1.msra.mxu0 0.0
        %5304 = vmatprep.subr.mxu0 0.0
        %5305 = vmatpush1.msra.mxu0 0.0
        %5306 = vmatprep.subr.mxu0 0.0
        %5307 = vmatpush1.msra.mxu0 0.0
        %5308 = vmatprep.subr.mxu0 0.0
        %5309 = vmatpush1.msra.mxu0 %v5273
        %5310 = vmatprep.subr.mxu0 0.0
        %5311 = vmatpush2.msra.mxu0 0.0
        %5312 = vmatprep.subr.mxu0 0.0
        %5313 = vmatpush2.msra.mxu0 0.0
        %5314 = vmatprep.subr.mxu0 0.0
        %5315 = vmatpush2.msra.mxu0 0.0
        %5316 = vmatprep.subr.mxu0 0.0
        %5317 = vmatpush2.msra.mxu0 0.0
        %5318 = vmatprep.subr.mxu0 0.0
        %5319 = vmatpush2.msra.mxu0 0.0
        %5320 = vmatprep.subr.mxu0 0.0
        %5321 = vmatpush2.msra.mxu0 0.0
        %5322 = vmatprep.subr.mxu0 0.0
        %5323 = vmatpush2.msra.mxu0 0.0
        %5324 = vmatprep.subr.mxu0 0.0
        %5325 = vmatpush2.msra.mxu0 0.0
        %5326 = vmatprep.subr.mxu0 0.0
        %5327 = vmatpush2.msra.mxu0 0.0
        %5328 = vmatprep.subr.mxu0 0.0
        %5329 = vmatpush2.msra.mxu0 0.0
        %5330 = vmatprep.subr.mxu0 0.0
        %5331 = vmatpush2.msra.mxu0 0.0
        %5332 = vmatprep.subr.mxu0 0.0
        %5333 = vmatpush2.msra.mxu0 0.0
        %5334 = vmatprep.subr.mxu0 0.0
        %5335 = vmatpush2.msra.mxu0 0.0
        %5336 = vmatprep.subr.mxu0 0.0
        %5337 = vmatpush2.msra.mxu0 0.0
        %5338 = vmatprep.subr.mxu0 0.0
        %5339 = vmatpush2.msra.mxu0 0.0
        %5340 = vmatprep.subr.mxu0 0.0
        %5341 = vmatpush2.msra.mxu0 0.0
        %5342 = vmatprep.mubr.f32.mxu0 0.0
        %5343 = vmatmul.mubr.f32.gmra.mxu0 %v5276
        %v5344 = vpop.f32.mrf.mxu0
        %v5345 = vadd.f32 0.0, %v5344
        %v5346 = vpop.f32.mrf.mxu0
        %5347 = vdwg.mxu0
        %5349 = vrot.lane.b32.xlu0 %v5011, 8
        %v5350 = vpop.permute.xlu0 %5349
        %5353 = vrot.lane.b32.xlu0 %v5178, 16
        %v5354 = vpop.permute.xlu0 %5353
        %5357 = vrot.lane.b32.xlu0 %v5345, 24
        %v5358 = vpop.permute.xlu0 %5357
        %v5360 = vsel %vm1448, %v4844, %v5350
        %v5361 = vsel %vm2132, %v5360, %v5354
        %v5362 = vsel %vm2134, %v5361, %v5358
        %v5364 = vlaneseq
        %v5365 = vshrl.u32 %v5364, 7
        %v5366 = vsub.s32 0, %v5365
        %v5367 = vrot.slane %v4523, %v5366
        %v5370 = vsel %vm1319, %v5362, 0
        %5372 = vmatprep.subr.mxu0 0.0
        %5373 = vmatpush1.msra.mxu0 0.0
        %5374 = vmatprep.subr.mxu0 0.0
        %5375 = vmatpush1.msra.mxu0 0.0
        %5376 = vmatprep.subr.mxu0 0.0
        %5377 = vmatpush1.msra.mxu0 0.0
        %5378 = vmatprep.subr.mxu0 0.0
        %5379 = vmatpush1.msra.mxu0 0.0
        %5380 = vmatprep.subr.mxu0 0.0
        %5381 = vmatpush1.msra.mxu0 0.0
        %5382 = vmatprep.subr.mxu0 0.0
        %5383 = vmatpush1.msra.mxu0 0.0
        %5384 = vmatprep.subr.mxu0 0.0
        %5385 = vmatpush1.msra.mxu0 0.0
        %5386 = vmatprep.subr.mxu0 0.0
        %5387 = vmatpush1.msra.mxu0 0.0
        %5388 = vmatprep.subr.mxu0 0.0
        %5389 = vmatpush1.msra.mxu0 0.0
        %5390 = vmatprep.subr.mxu0 0.0
        %5391 = vmatpush1.msra.mxu0 0.0
        %5392 = vmatprep.subr.mxu0 0.0
        %5393 = vmatpush1.msra.mxu0 0.0
        %5394 = vmatprep.subr.mxu0 0.0
        %5395 = vmatpush1.msra.mxu0 0.0
        %5396 = vmatprep.subr.mxu0 0.0
        %5397 = vmatpush1.msra.mxu0 %v4522
        %5398 = vmatprep.subr.mxu0 0.0
        %5399 = vmatpush1.msra.mxu0 %v4521
        %5400 = vmatprep.subr.mxu0 0.0
        %5401 = vmatpush1.msra.mxu0 %v4520
        %5402 = vmatprep.subr.mxu0 0.0
        %5403 = vmatpush1.msra.mxu0 %v4519
        %5404 = vmatprep.subr.mxu0 0.0
        %5405 = vmatpush2.msra.mxu0 0.0
        %5406 = vmatprep.subr.mxu0 0.0
        %5407 = vmatpush2.msra.mxu0 0.0
        %5408 = vmatprep.subr.mxu0 0.0
        %5409 = vmatpush2.msra.mxu0 0.0
        %5410 = vmatprep.subr.mxu0 0.0
        %5411 = vmatpush2.msra.mxu0 0.0
        %5412 = vmatprep.subr.mxu0 0.0
        %5413 = vmatpush2.msra.mxu0 0.0
        %5414 = vmatprep.subr.mxu0 0.0
        %5415 = vmatpush2.msra.mxu0 0.0
        %5416 = vmatprep.subr.mxu0 0.0
        %5417 = vmatpush2.msra.mxu0 0.0
        %5418 = vmatprep.subr.mxu0 0.0
        %5419 = vmatpush2.msra.mxu0 0.0
        %5420 = vmatprep.subr.mxu0 0.0
        %5421 = vmatpush2.msra.mxu0 0.0
        %5422 = vmatprep.subr.mxu0 0.0
        %5423 = vmatpush2.msra.mxu0 0.0
        %5424 = vmatprep.subr.mxu0 0.0
        %5425 = vmatpush2.msra.mxu0 0.0
        %5426 = vmatprep.subr.mxu0 0.0
        %5427 = vmatpush2.msra.mxu0 0.0
        %5428 = vmatprep.subr.mxu0 0.0
        %5429 = vmatpush2.msra.mxu0 0.0
        %5430 = vmatprep.subr.mxu0 0.0
        %5431 = vmatpush2.msra.mxu0 0.0
        %5432 = vmatprep.subr.mxu0 0.0
        %5433 = vmatpush2.msra.mxu0 0.0
        %5434 = vmatprep.subr.mxu0 0.0
        %5435 = vmatpush2.msra.mxu0 0.0
        %5436 = vmatprep.mubr.f32.mxu0 0.0
        %5437 = vmatmul.mubr.f32.gmra.mxu0 %v5370
        %v5438 = vpop.f32.mrf.mxu0
        %v5439 = vadd.f32 %v5367, %v5438
        %v5440 = vpop.f32.mrf.mxu0
        %5441 = vdwg.mxu0
        %v5442 = vadd.f32 %v4472, %v5439
        %v5443 = vld [vmem:[%s43] sm:$0x1]
        %v5444 = vld [vmem:[%s41] sm:$0x1]
        %v5445 = vsel %vm1319, %v5442, 0.0
        %5446 = vadd.xlane.f32.xlu0 %v5445
        %v5447 = vpop.xlane.xlu0 %5446
        %v5448 = vmul.f32 %v5447, %v1323
        %v5449 = vsub.f32 %v5442, %v5448
        %v5450 = vmul.f32 %v5449, %v5449
        %v5451 = vsel %vm1319, %v5450, 0.0
        %5452 = vadd.xlane.f32.xlu0 %v5451
        %v5453 = vpop.xlane.xlu0 %5452
        %v5454 = vmul.f32 %v5453, %v1330
        %v5456 = vlaneseq
        %v5457 = vshrl.u32 %v5456, 7
        %v5458 = vsub.s32 0, %v5457
        %v5459 = vrot.slane %v5443, %v5458
        %v5461 = vmul.f32 %v5459, %v5449
        %v5462 = vrsqrt.pop %v5454
        %v5463 = vmul.f32 %v5454, %v5462
        %vm5464 = vcmp.eq.f32.partialorder %v5454, inf
        %v5465 = vsel %vm5464, %v5454, %v5463
        %vm5466 = vcmp.eq.f32.partialorder %v5454, 0.0
        %v5467 = vand.u32 %v5454, 2147483648
        %v5468 = vsel %vm5466, %v5467, %v5465
        %v5469 = vadd.f32 %v5468, 1e-06
        %v5470 = vrcp.pop %v5469
        %v5471 = vmul.f32 %v5461, %v5470
        %v5473 = vlaneseq
        %v5474 = vshrl.u32 %v5473, 7
        %v5475 = vsub.s32 0, %v5474
        %v5476 = vrot.slane %v5444, %v5475
        %v5478 = vadd.f32 %v5471, %v5476
        %v5479 = vld [vmem:[%s29] sm:$0xff]
        %v5480 = vld [vmem:[%s29 + $0x8] sm:$0xff]
        %v5481 = vld [vmem:[%s29 + $0x10] sm:$0xff]
        %v5482 = vld [vmem:[%s29 + $0x18] sm:$0xff]
        %v5483 = vld [vmem:[%s25] sm:$0x1]
        %v5484 = vld [vmem:[%s31] sm:$0xff]
        %v5485 = vld [vmem:[%s31 + $0x8] sm:$0xff]
        %v5486 = vld [vmem:[%s31 + $0x10] sm:$0xff]
        %v5487 = vld [vmem:[%s31 + $0x18] sm:$0xff]
        %v5488 = vld [vmem:[%s31 + $0x20] sm:$0xff]
        %v5489 = vld [vmem:[%s31 + $0x28] sm:$0xff]
        %v5490 = vld [vmem:[%s31 + $0x30] sm:$0xff]
        %v5491 = vld [vmem:[%s31 + $0x38] sm:$0xff]
        %v5492 = vld [vmem:[%s27] sm:$0x1]
        %v5494 = vlaneseq
        %v5495 = vshrl.u32 %v5494, 7
        %v5496 = vsub.s32 0, %v5495
        %v5497 = vrot.slane %v5483, %v5496
        %v5500 = vsel %vm1319, %v5478, 0
        %5502 = vmatprep.subr.mxu0 0.0
        %5503 = vmatpush1.msra.mxu0 0.0
        %5504 = vmatprep.subr.mxu0 0.0
        %5505 = vmatpush1.msra.mxu0 0.0
        %5506 = vmatprep.subr.mxu0 0.0
        %5507 = vmatpush1.msra.mxu0 0.0
        %5508 = vmatprep.subr.mxu0 0.0
        %5509 = vmatpush1.msra.mxu0 0.0
        %5510 = vmatprep.subr.mxu0 0.0
        %5511 = vmatpush1.msra.mxu0 0.0
        %5512 = vmatprep.subr.mxu0 0.0
        %5513 = vmatpush1.msra.mxu0 0.0
        %5514 = vmatprep.subr.mxu0 0.0
        %5515 = vmatpush1.msra.mxu0 0.0
        %5516 = vmatprep.subr.mxu0 0.0
        %5517 = vmatpush1.msra.mxu0 0.0
        %5518 = vmatprep.subr.mxu0 0.0
        %5519 = vmatpush1.msra.mxu0 0.0
        %5520 = vmatprep.subr.mxu0 0.0
        %5521 = vmatpush1.msra.mxu0 0.0
        %5522 = vmatprep.subr.mxu0 0.0
        %5523 = vmatpush1.msra.mxu0 0.0
        %5524 = vmatprep.subr.mxu0 0.0
        %5525 = vmatpush1.msra.mxu0 0.0
        %5526 = vmatprep.subr.mxu0 0.0
        %5527 = vmatpush1.msra.mxu0 %v5482
        %5528 = vmatprep.subr.mxu0 0.0
        %5529 = vmatpush1.msra.mxu0 %v5481
        %5530 = vmatprep.subr.mxu0 0.0
        %5531 = vmatpush1.msra.mxu0 %v5480
        %5532 = vmatprep.subr.mxu0 0.0
        %5533 = vmatpush1.msra.mxu0 %v5479
        %5534 = vmatprep.subr.mxu0 0.0
        %5535 = vmatpush2.msra.mxu0 0.0
        %5536 = vmatprep.subr.mxu0 0.0
        %5537 = vmatpush2.msra.mxu0 0.0
        %5538 = vmatprep.subr.mxu0 0.0
        %5539 = vmatpush2.msra.mxu0 0.0
        %5540 = vmatprep.subr.mxu0 0.0
        %5541 = vmatpush2.msra.mxu0 0.0
        %5542 = vmatprep.subr.mxu0 0.0
        %5543 = vmatpush2.msra.mxu0 0.0
        %5544 = vmatprep.subr.mxu0 0.0
        %5545 = vmatpush2.msra.mxu0 0.0
        %5546 = vmatprep.subr.mxu0 0.0
        %5547 = vmatpush2.msra.mxu0 0.0
        %5548 = vmatprep.subr.mxu0 0.0
        %5549 = vmatpush2.msra.mxu0 0.0
        %5550 = vmatprep.subr.mxu0 0.0
        %5551 = vmatpush2.msra.mxu0 0.0
        %5552 = vmatprep.subr.mxu0 0.0
        %5553 = vmatpush2.msra.mxu0 0.0
        %5554 = vmatprep.subr.mxu0 0.0
        %5555 = vmatpush2.msra.mxu0 0.0
        %5556 = vmatprep.subr.mxu0 0.0
        %5557 = vmatpush2.msra.mxu0 0.0
        %5558 = vmatprep.subr.mxu0 0.0
        %5559 = vmatpush2.msra.mxu0 0.0
        %5560 = vmatprep.subr.mxu0 0.0
        %5561 = vmatpush2.msra.mxu0 0.0
        %5562 = vmatprep.subr.mxu0 0.0
        %5563 = vmatpush2.msra.mxu0 0.0
        %5564 = vmatprep.subr.mxu0 0.0
        %5565 = vmatpush2.msra.mxu0 0.0
        %5566 = vmatprep.mubr.f32.mxu0 0.0
        %5567 = vmatmul.mubr.f32.gmra.mxu0 %v5500
        %v5568 = vpop.f32.mrf.mxu0
        %v5569 = vadd.f32 %v5497, %v5568
        %v5570 = vpop.f32.mrf.mxu0
        %5571 = vdwg.mxu0
        %v5572 = vmax.f32 %v5569, 0.0
        %v5574 = vlaneseq
        %v5575 = vshrl.u32 %v5574, 7
        %v5576 = vsub.s32 0, %v5575
        %v5577 = vrot.slane %v5492, %v5576
        %v5580 = vsel %vm2352, %v5572, 0
        %5582 = vmatprep.subr.mxu0 0.0
        %5583 = vmatpush1.msra.mxu0 0.0
        %5584 = vmatprep.subr.mxu0 0.0
        %5585 = vmatpush1.msra.mxu0 0.0
        %5586 = vmatprep.subr.mxu0 0.0
        %5587 = vmatpush1.msra.mxu0 0.0
        %5588 = vmatprep.subr.mxu0 0.0
        %5589 = vmatpush1.msra.mxu0 0.0
        %5590 = vmatprep.subr.mxu0 0.0
        %5591 = vmatpush1.msra.mxu0 0.0
        %5592 = vmatprep.subr.mxu0 0.0
        %5593 = vmatpush1.msra.mxu0 0.0
        %5594 = vmatprep.subr.mxu0 0.0
        %5595 = vmatpush1.msra.mxu0 0.0
        %5596 = vmatprep.subr.mxu0 0.0
        %5597 = vmatpush1.msra.mxu0 0.0
        %5598 = vmatprep.subr.mxu0 0.0
        %5599 = vmatpush1.msra.mxu0 %v5491
        %5600 = vmatprep.subr.mxu0 0.0
        %5601 = vmatpush1.msra.mxu0 %v5490
        %5602 = vmatprep.subr.mxu0 0.0
        %5603 = vmatpush1.msra.mxu0 %v5489
        %5604 = vmatprep.subr.mxu0 0.0
        %5605 = vmatpush1.msra.mxu0 %v5488
        %5606 = vmatprep.subr.mxu0 0.0
        %5607 = vmatpush1.msra.mxu0 %v5487
        %5608 = vmatprep.subr.mxu0 0.0
        %5609 = vmatpush1.msra.mxu0 %v5486
        %5610 = vmatprep.subr.mxu0 0.0
        %5611 = vmatpush1.msra.mxu0 %v5485
        %5612 = vmatprep.subr.mxu0 0.0
        %5613 = vmatpush1.msra.mxu0 %v5484
        %5614 = vmatprep.subr.mxu0 0.0
        %5615 = vmatpush2.msra.mxu0 0.0
        %5616 = vmatprep.subr.mxu0 0.0
        %5617 = vmatpush2.msra.mxu0 0.0
        %5618 = vmatprep.subr.mxu0 0.0
        %5619 = vmatpush2.msra.mxu0 0.0
        %5620 = vmatprep.subr.mxu0 0.0
        %5621 = vmatpush2.msra.mxu0 0.0
        %5622 = vmatprep.subr.mxu0 0.0
        %5623 = vmatpush2.msra.mxu0 0.0
        %5624 = vmatprep.subr.mxu0 0.0
        %5625 = vmatpush2.msra.mxu0 0.0
        %5626 = vmatprep.subr.mxu0 0.0
        %5627 = vmatpush2.msra.mxu0 0.0
        %5628 = vmatprep.subr.mxu0 0.0
        %5629 = vmatpush2.msra.mxu0 0.0
        %5630 = vmatprep.subr.mxu0 0.0
        %5631 = vmatpush2.msra.mxu0 0.0
        %5632 = vmatprep.subr.mxu0 0.0
        %5633 = vmatpush2.msra.mxu0 0.0
        %5634 = vmatprep.subr.mxu0 0.0
        %5635 = vmatpush2.msra.mxu0 0.0
        %5636 = vmatprep.subr.mxu0 0.0
        %5637 = vmatpush2.msra.mxu0 0.0
        %5638 = vmatprep.subr.mxu0 0.0
        %5639 = vmatpush2.msra.mxu0 0.0
        %5640 = vmatprep.subr.mxu0 0.0
        %5641 = vmatpush2.msra.mxu0 0.0
        %5642 = vmatprep.subr.mxu0 0.0
        %5643 = vmatpush2.msra.mxu0 0.0
        %5644 = vmatprep.subr.mxu0 0.0
        %5645 = vmatpush2.msra.mxu0 0.0
        %5646 = vmatprep.mubr.f32.mxu0 0.0
        %5647 = vmatmul.mubr.f32.gmra.mxu0 %v5580
        %v5648 = vpop.f32.mrf.mxu0
        %v5649 = vadd.f32 %v5577, %v5648
        %v5650 = vpop.f32.mrf.mxu0
        %5651 = vdwg.mxu0
        %v5652 = vadd.f32 %v5442, %v5649
        %s5653 = scalar_lea.vmem %s35, 1
        %v5654 = vld [vmem:[%s5653] sm:$0x1]
        %s5655 = scalar_lea.vmem %s33, 1
        %v5656 = vld [vmem:[%s5655] sm:$0x1]
        %v5657 = vsel %vm1319, %v5652, 0.0
        %5658 = vadd.xlane.f32.xlu0 %v5657
        %v5659 = vpop.xlane.xlu0 %5658
        %v5660 = vmul.f32 %v5659, %v1323
        %v5661 = vsub.f32 %v5652, %v5660
        %v5662 = vmul.f32 %v5661, %v5661
        %v5663 = vsel %vm1319, %v5662, 0.0
        %5664 = vadd.xlane.f32.xlu0 %v5663
        %v5665 = vpop.xlane.xlu0 %5664
        %v5666 = vmul.f32 %v5665, %v1330
        %v5668 = vlaneseq
        %v5669 = vshrl.u32 %v5668, 7
        %v5670 = vsub.s32 0, %v5669
        %v5671 = vrot.slane %v5654, %v5670
        %v5673 = vmul.f32 %v5671, %v5661
        %v5674 = vrsqrt.pop %v5666
        %v5675 = vmul.f32 %v5666, %v5674
        %vm5676 = vcmp.eq.f32.partialorder %v5666, inf
        %v5677 = vsel %vm5676, %v5666, %v5675
        %vm5678 = vcmp.eq.f32.partialorder %v5666, 0.0
        %v5679 = vand.u32 %v5666, 2147483648
        %v5680 = vsel %vm5678, %v5679, %v5677
        %v5681 = vadd.f32 %v5680, 1e-06
        %v5682 = vrcp.pop %v5681
        %v5683 = vmul.f32 %v5673, %v5682
        %v5685 = vlaneseq
        %v5686 = vshrl.u32 %v5685, 7
        %v5687 = vsub.s32 0, %v5686
        %v5688 = vrot.slane %v5656, %v5687
        %v5690 = vadd.f32 %v5683, %v5688
        %s5691 = scalar_lea.vmem %s55, 32
        %v5692 = vld [vmem:[%s5691] sm:$0xff]
        %v5693 = vld [vmem:[%s5691 + $0x8] sm:$0xff]
        %v5694 = vld [vmem:[%s5691 + $0x10] sm:$0xff]
        %v5695 = vld [vmem:[%s5691 + $0x18] sm:$0xff]
        %s5696 = scalar_lea.vmem %s53, 1
        %v5697 = vld [vmem:[%s5696] sm:$0x1]
        %s5698 = scalar_lea.vmem %s51, 32
        %v5699 = vld [vmem:[%s5698] sm:$0xff]
        %v5700 = vld [vmem:[%s5698 + $0x8] sm:$0xff]
        %v5701 = vld [vmem:[%s5698 + $0x10] sm:$0xff]
        %v5702 = vld [vmem:[%s5698 + $0x18] sm:$0xff]
        %s5703 = scalar_lea.vmem %s49, 1
        %v5704 = vld [vmem:[%s5703] sm:$0x1]
        %v5706 = vlaneseq
        %v5707 = vshrl.u32 %v5706, 7
        %v5708 = vsub.s32 0, %v5707
        %v5709 = vrot.slane %v5697, %v5708
        %v5712 = vsel %vm1319, %v5690, 0
        %5714 = vmatprep.subr.mxu0 0.0
        %5715 = vmatpush1.msra.mxu0 0.0
        %5716 = vmatprep.subr.mxu0 0.0
        %5717 = vmatpush1.msra.mxu0 0.0
        %5718 = vmatprep.subr.mxu0 0.0
        %5719 = vmatpush1.msra.mxu0 0.0
        %5720 = vmatprep.subr.mxu0 0.0
        %5721 = vmatpush1.msra.mxu0 0.0
        %5722 = vmatprep.subr.mxu0 0.0
        %5723 = vmatpush1.msra.mxu0 0.0
        %5724 = vmatprep.subr.mxu0 0.0
        %5725 = vmatpush1.msra.mxu0 0.0
        %5726 = vmatprep.subr.mxu0 0.0
        %5727 = vmatpush1.msra.mxu0 0.0
        %5728 = vmatprep.subr.mxu0 0.0
        %5729 = vmatpush1.msra.mxu0 0.0
        %5730 = vmatprep.subr.mxu0 0.0
        %5731 = vmatpush1.msra.mxu0 0.0
        %5732 = vmatprep.subr.mxu0 0.0
        %5733 = vmatpush1.msra.mxu0 0.0
        %5734 = vmatprep.subr.mxu0 0.0
        %5735 = vmatpush1.msra.mxu0 0.0
        %5736 = vmatprep.subr.mxu0 0.0
        %5737 = vmatpush1.msra.mxu0 0.0
        %5738 = vmatprep.subr.mxu0 0.0
        %5739 = vmatpush1.msra.mxu0 %v5695
        %5740 = vmatprep.subr.mxu0 0.0
        %5741 = vmatpush1.msra.mxu0 %v5694
        %5742 = vmatprep.subr.mxu0 0.0
        %5743 = vmatpush1.msra.mxu0 %v5693
        %5744 = vmatprep.subr.mxu0 0.0
        %5745 = vmatpush1.msra.mxu0 %v5692
        %5746 = vmatprep.subr.mxu0 0.0
        %5747 = vmatpush2.msra.mxu0 0.0
        %5748 = vmatprep.subr.mxu0 0.0
        %5749 = vmatpush2.msra.mxu0 0.0
        %5750 = vmatprep.subr.mxu0 0.0
        %5751 = vmatpush2.msra.mxu0 0.0
        %5752 = vmatprep.subr.mxu0 0.0
        %5753 = vmatpush2.msra.mxu0 0.0
        %5754 = vmatprep.subr.mxu0 0.0
        %5755 = vmatpush2.msra.mxu0 0.0
        %5756 = vmatprep.subr.mxu0 0.0
        %5757 = vmatpush2.msra.mxu0 0.0
        %5758 = vmatprep.subr.mxu0 0.0
        %5759 = vmatpush2.msra.mxu0 0.0
        %5760 = vmatprep.subr.mxu0 0.0
        %5761 = vmatpush2.msra.mxu0 0.0
        %5762 = vmatprep.subr.mxu0 0.0
        %5763 = vmatpush2.msra.mxu0 0.0
        %5764 = vmatprep.subr.mxu0 0.0
        %5765 = vmatpush2.msra.mxu0 0.0
        %5766 = vmatprep.subr.mxu0 0.0
        %5767 = vmatpush2.msra.mxu0 0.0
        %5768 = vmatprep.subr.mxu0 0.0
        %5769 = vmatpush2.msra.mxu0 0.0
        %5770 = vmatprep.subr.mxu0 0.0
        %5771 = vmatpush2.msra.mxu0 0.0
        %5772 = vmatprep.subr.mxu0 0.0
        %5773 = vmatpush2.msra.mxu0 0.0
        %5774 = vmatprep.subr.mxu0 0.0
        %5775 = vmatpush2.msra.mxu0 0.0
        %5776 = vmatprep.subr.mxu0 0.0
        %5777 = vmatpush2.msra.mxu0 0.0
        %5778 = vmatprep.mubr.f32.mxu0 0.0
        %5779 = vmatmul.mubr.f32.gmra.mxu0 %v5712
        %v5780 = vpop.f32.mrf.mxu0
        %v5781 = vadd.f32 %v5709, %v5780
        %v5782 = vpop.f32.mrf.mxu0
        %5783 = vdwg.mxu0
        %5785 = vrot.lane.b32.xlu0 %v5781, 96
        %v5786 = vpop.permute.xlu0 %5785
        %v5787 = vsel %vm1448, %v5781, 0
        %v5789 = vsel %vm1448, %v5786, 0
        %5791 = vmatprep.subr.mxu0 0.0
        %5792 = vmatpush1.xpose.msra.mxu0 0.0
        %5793 = vmatprep.subr.mxu0 0.0
        %5794 = vmatpush1.xpose.msra.mxu0 0.0
        %5795 = vmatprep.subr.mxu0 0.0
        %5796 = vmatpush1.xpose.msra.mxu0 0.0
        %5797 = vmatprep.subr.mxu0 0.0
        %5798 = vmatpush1.xpose.msra.mxu0 0.0
        %5799 = vmatprep.subr.mxu0 0.0
        %5800 = vmatpush1.xpose.msra.mxu0 0.0
        %5801 = vmatprep.subr.mxu0 0.0
        %5802 = vmatpush1.xpose.msra.mxu0 0.0
        %5803 = vmatprep.subr.mxu0 0.0
        %5804 = vmatpush1.xpose.msra.mxu0 0.0
        %5805 = vmatprep.subr.mxu0 0.0
        %5806 = vmatpush1.xpose.msra.mxu0 0.0
        %5807 = vmatprep.subr.mxu0 0.0
        %5808 = vmatpush1.xpose.msra.mxu0 0.0
        %5809 = vmatprep.subr.mxu0 0.0
        %5810 = vmatpush1.xpose.msra.mxu0 0.0
        %5811 = vmatprep.subr.mxu0 0.0
        %5812 = vmatpush1.xpose.msra.mxu0 0.0
        %5813 = vmatprep.subr.mxu0 0.0
        %5814 = vmatpush1.xpose.msra.mxu0 0.0
        %5815 = vmatprep.subr.mxu0 0.0
        %5816 = vmatpush1.xpose.msra.mxu0 0.0
        %5817 = vmatprep.subr.mxu0 0.0
        %5818 = vmatpush1.xpose.msra.mxu0 0.0
        %5819 = vmatprep.subr.mxu0 0.0
        %5820 = vmatpush1.xpose.msra.mxu0 0.0
        %5821 = vmatprep.subr.mxu0 0.0
        %5822 = vmatpush1.xpose.msra.mxu0 %v5789
        %5823 = vmatprep.subr.mxu0 0.0
        %5824 = vmatpush2.xpose.msra.mxu0 0.0
        %5825 = vmatprep.subr.mxu0 0.0
        %5826 = vmatpush2.xpose.msra.mxu0 0.0
        %5827 = vmatprep.subr.mxu0 0.0
        %5828 = vmatpush2.xpose.msra.mxu0 0.0
        %5829 = vmatprep.subr.mxu0 0.0
        %5830 = vmatpush2.xpose.msra.mxu0 0.0
        %5831 = vmatprep.subr.mxu0 0.0
        %5832 = vmatpush2.xpose.msra.mxu0 0.0
        %5833 = vmatprep.subr.mxu0 0.0
        %5834 = vmatpush2.xpose.msra.mxu0 0.0
        %5835 = vmatprep.subr.mxu0 0.0
        %5836 = vmatpush2.xpose.msra.mxu0 0.0
        %5837 = vmatprep.subr.mxu0 0.0
        %5838 = vmatpush2.xpose.msra.mxu0 0.0
        %5839 = vmatprep.subr.mxu0 0.0
        %5840 = vmatpush2.xpose.msra.mxu0 0.0
        %5841 = vmatprep.subr.mxu0 0.0
        %5842 = vmatpush2.xpose.msra.mxu0 0.0
        %5843 = vmatprep.subr.mxu0 0.0
        %5844 = vmatpush2.xpose.msra.mxu0 0.0
        %5845 = vmatprep.subr.mxu0 0.0
        %5846 = vmatpush2.xpose.msra.mxu0 0.0
        %5847 = vmatprep.subr.mxu0 0.0
        %5848 = vmatpush2.xpose.msra.mxu0 0.0
        %5849 = vmatprep.subr.mxu0 0.0
        %5850 = vmatpush2.xpose.msra.mxu0 0.0
        %5851 = vmatprep.subr.mxu0 0.0
        %5852 = vmatpush2.xpose.msra.mxu0 0.0
        %5853 = vmatprep.subr.mxu0 0.0
        %5854 = vmatpush2.xpose.msra.mxu0 0.0
        %5855 = vmatprep.mubr.f32.mxu0 0.0
        %5856 = vmatmul.mubr.f32.gmra.mxu0 %v5787
        %v5857 = vpop.f32.mrf.mxu0
        %v5858 = vadd.f32 0.0, %v5857
        %v5859 = vpop.f32.mrf.mxu0
        %5860 = vdwg.mxu0
        %v5861 = vmul.f32 %v5858, 0.35355338
        %v5862 = vsel %vm3583, %v5861, -1e+09
        %v5863 = vsel %vm1448, %v5862, -inf
        %5864 = vmax.xlane.f32.xlu0 %v5863
        %v5865 = vpop.xlane.xlu0 %5864
        %v5866 = vsub.f32 %v5862, %v5865
        %v5867 = vmul.f32 %v5866, 1.442695
        %v5868 = vpow.pop %v5867
        %v5869 = vsel %vm1448, %v5868, 0.0
        %5870 = vadd.xlane.f32.xlu0 %v5869
        %v5871 = vpop.xlane.xlu0 %5870
        %v5872 = vrcp.pop %v5871
        %v5873 = vmul.f32 %v5868, %v5872
        %5874 = vrot.lane.b32.xlu0 %v5781, 64
        %v5875 = vpop.permute.xlu0 %5874
        %v5878 = vsel %vm1448, %v5873, 0
        %5880 = vmatprep.subr.mxu0 0.0
        %5881 = vmatpush1.msra.mxu0 0.0
        %5882 = vmatprep.subr.mxu0 0.0
        %5883 = vmatpush1.msra.mxu0 0.0
        %5884 = vmatprep.subr.mxu0 0.0
        %5885 = vmatpush1.msra.mxu0 0.0
        %5886 = vmatprep.subr.mxu0 0.0
        %5887 = vmatpush1.msra.mxu0 0.0
        %5888 = vmatprep.subr.mxu0 0.0
        %5889 = vmatpush1.msra.mxu0 0.0
        %5890 = vmatprep.subr.mxu0 0.0
        %5891 = vmatpush1.msra.mxu0 0.0
        %5892 = vmatprep.subr.mxu0 0.0
        %5893 = vmatpush1.msra.mxu0 0.0
        %5894 = vmatprep.subr.mxu0 0.0
        %5895 = vmatpush1.msra.mxu0 0.0
        %5896 = vmatprep.subr.mxu0 0.0
        %5897 = vmatpush1.msra.mxu0 0.0
        %5898 = vmatprep.subr.mxu0 0.0
        %5899 = vmatpush1.msra.mxu0 0.0
        %5900 = vmatprep.subr.mxu0 0.0
        %5901 = vmatpush1.msra.mxu0 0.0
        %5902 = vmatprep.subr.mxu0 0.0
        %5903 = vmatpush1.msra.mxu0 0.0
        %5904 = vmatprep.subr.mxu0 0.0
        %5905 = vmatpush1.msra.mxu0 0.0
        %5906 = vmatprep.subr.mxu0 0.0
        %5907 = vmatpush1.msra.mxu0 0.0
        %5908 = vmatprep.subr.mxu0 0.0
        %5909 = vmatpush1.msra.mxu0 0.0
        %5910 = vmatprep.subr.mxu0 0.0
        %5911 = vmatpush1.msra.mxu0 %v5875
        %5912 = vmatprep.subr.mxu0 0.0
        %5913 = vmatpush2.msra.mxu0 0.0
        %5914 = vmatprep.subr.mxu0 0.0
        %5915 = vmatpush2.msra.mxu0 0.0
        %5916 = vmatprep.subr.mxu0 0.0
        %5917 = vmatpush2.msra.mxu0 0.0
        %5918 = vmatprep.subr.mxu0 0.0
        %5919 = vmatpush2.msra.mxu0 0.0
        %5920 = vmatprep.subr.mxu0 0.0
        %5921 = vmatpush2.msra.mxu0 0.0
        %5922 = vmatprep.subr.mxu0 0.0
        %5923 = vmatpush2.msra.mxu0 0.0
        %5924 = vmatprep.subr.mxu0 0.0
        %5925 = vmatpush2.msra.mxu0 0.0
        %5926 = vmatprep.subr.mxu0 0.0
        %5927 = vmatpush2.msra.mxu0 0.0
        %5928 = vmatprep.subr.mxu0 0.0
        %5929 = vmatpush2.msra.mxu0 0.0
        %5930 = vmatprep.subr.mxu0 0.0
        %5931 = vmatpush2.msra.mxu0 0.0
        %5932 = vmatprep.subr.mxu0 0.0
        %5933 = vmatpush2.msra.mxu0 0.0
        %5934 = vmatprep.subr.mxu0 0.0
        %5935 = vmatpush2.msra.mxu0 0.0
        %5936 = vmatprep.subr.mxu0 0.0
        %5937 = vmatpush2.msra.mxu0 0.0
        %5938 = vmatprep.subr.mxu0 0.0
        %5939 = vmatpush2.msra.mxu0 0.0
        %5940 = vmatprep.subr.mxu0 0.0
        %5941 = vmatpush2.msra.mxu0 0.0
        %5942 = vmatprep.subr.mxu0 0.0
        %5943 = vmatpush2.msra.mxu0 0.0
        %5944 = vmatprep.mubr.f32.mxu0 0.0
        %5945 = vmatmul.mubr.f32.gmra.mxu0 %v5878
        %v5946 = vpop.f32.mrf.mxu0
        %v5947 = vadd.f32 0.0, %v5946
        %v5948 = vpop.f32.mrf.mxu0
        %5949 = vdwg.mxu0
        %5950 = vrot.lane.b32.xlu0 %v5781, 120
        %v5951 = vpop.permute.xlu0 %5950
        %5952 = vrot.lane.b32.xlu0 %v5781, 88
        %v5953 = vpop.permute.xlu0 %5952
        %v5954 = vsel %vm1448, %v5951, 0
        %v5956 = vsel %vm1448, %v5953, 0
        %5958 = vmatprep.subr.mxu0 0.0
        %5959 = vmatpush1.xpose.msra.mxu0 0.0
        %5960 = vmatprep.subr.mxu0 0.0
        %5961 = vmatpush1.xpose.msra.mxu0 0.0
        %5962 = vmatprep.subr.mxu0 0.0
        %5963 = vmatpush1.xpose.msra.mxu0 0.0
        %5964 = vmatprep.subr.mxu0 0.0
        %5965 = vmatpush1.xpose.msra.mxu0 0.0
        %5966 = vmatprep.subr.mxu0 0.0
        %5967 = vmatpush1.xpose.msra.mxu0 0.0
        %5968 = vmatprep.subr.mxu0 0.0
        %5969 = vmatpush1.xpose.msra.mxu0 0.0
        %5970 = vmatprep.subr.mxu0 0.0
        %5971 = vmatpush1.xpose.msra.mxu0 0.0
        %5972 = vmatprep.subr.mxu0 0.0
        %5973 = vmatpush1.xpose.msra.mxu0 0.0
        %5974 = vmatprep.subr.mxu0 0.0
        %5975 = vmatpush1.xpose.msra.mxu0 0.0
        %5976 = vmatprep.subr.mxu0 0.0
        %5977 = vmatpush1.xpose.msra.mxu0 0.0
        %5978 = vmatprep.subr.mxu0 0.0
        %5979 = vmatpush1.xpose.msra.mxu0 0.0
        %5980 = vmatprep.subr.mxu0 0.0
        %5981 = vmatpush1.xpose.msra.mxu0 0.0
        %5982 = vmatprep.subr.mxu0 0.0
        %5983 = vmatpush1.xpose.msra.mxu0 0.0
        %5984 = vmatprep.subr.mxu0 0.0
        %5985 = vmatpush1.xpose.msra.mxu0 0.0
        %5986 = vmatprep.subr.mxu0 0.0
        %5987 = vmatpush1.xpose.msra.mxu0 0.0
        %5988 = vmatprep.subr.mxu0 0.0
        %5989 = vmatpush1.xpose.msra.mxu0 %v5956
        %5990 = vmatprep.subr.mxu0 0.0
        %5991 = vmatpush2.xpose.msra.mxu0 0.0
        %5992 = vmatprep.subr.mxu0 0.0
        %5993 = vmatpush2.xpose.msra.mxu0 0.0
        %5994 = vmatprep.subr.mxu0 0.0
        %5995 = vmatpush2.xpose.msra.mxu0 0.0
        %5996 = vmatprep.subr.mxu0 0.0
        %5997 = vmatpush2.xpose.msra.mxu0 0.0
        %5998 = vmatprep.subr.mxu0 0.0
        %5999 = vmatpush2.xpose.msra.mxu0 0.0
        %6000 = vmatprep.subr.mxu0 0.0
        %6001 = vmatpush2.xpose.msra.mxu0 0.0
        %6002 = vmatprep.subr.mxu0 0.0
        %6003 = vmatpush2.xpose.msra.mxu0 0.0
        %6004 = vmatprep.subr.mxu0 0.0
        %6005 = vmatpush2.xpose.msra.mxu0 0.0
        %6006 = vmatprep.subr.mxu0 0.0
        %6007 = vmatpush2.xpose.msra.mxu0 0.0
        %6008 = vmatprep.subr.mxu0 0.0
        %6009 = vmatpush2.xpose.msra.mxu0 0.0
        %6010 = vmatprep.subr.mxu0 0.0
        %6011 = vmatpush2.xpose.msra.mxu0 0.0
        %6012 = vmatprep.subr.mxu0 0.0
        %6013 = vmatpush2.xpose.msra.mxu0 0.0
        %6014 = vmatprep.subr.mxu0 0.0
        %6015 = vmatpush2.xpose.msra.mxu0 0.0
        %6016 = vmatprep.subr.mxu0 0.0
        %6017 = vmatpush2.xpose.msra.mxu0 0.0
        %6018 = vmatprep.subr.mxu0 0.0
        %6019 = vmatpush2.xpose.msra.mxu0 0.0
        %6020 = vmatprep.subr.mxu0 0.0
        %6021 = vmatpush2.xpose.msra.mxu0 0.0
        %6022 = vmatprep.mubr.f32.mxu0 0.0
        %6023 = vmatmul.mubr.f32.gmra.mxu0 %v5954
        %v6024 = vpop.f32.mrf.mxu0
        %v6025 = vadd.f32 0.0, %v6024
        %v6026 = vpop.f32.mrf.mxu0
        %6027 = vdwg.mxu0
        %v6028 = vmul.f32 %v6025, 0.35355338
        %v6029 = vsel %vm3583, %v6028, -1e+09
        %v6030 = vsel %vm1448, %v6029, -inf
        %6031 = vmax.xlane.f32.xlu0 %v6030
        %v6032 = vpop.xlane.xlu0 %6031
        %v6033 = vsub.f32 %v6029, %v6032
        %v6034 = vmul.f32 %v6033, 1.442695
        %v6035 = vpow.pop %v6034
        %v6036 = vsel %vm1448, %v6035, 0.0
        %6037 = vadd.xlane.f32.xlu0 %v6036
        %v6038 = vpop.xlane.xlu0 %6037
        %v6039 = vrcp.pop %v6038
        %v6040 = vmul.f32 %v6035, %v6039
        %6041 = vrot.lane.b32.xlu0 %v5781, 56
        %v6042 = vpop.permute.xlu0 %6041
        %v6045 = vsel %vm1448, %v6040, 0
        %6047 = vmatprep.subr.mxu0 0.0
        %6048 = vmatpush1.msra.mxu0 0.0
        %6049 = vmatprep.subr.mxu0 0.0
        %6050 = vmatpush1.msra.mxu0 0.0
        %6051 = vmatprep.subr.mxu0 0.0
        %6052 = vmatpush1.msra.mxu0 0.0
        %6053 = vmatprep.subr.mxu0 0.0
        %6054 = vmatpush1.msra.mxu0 0.0
        %6055 = vmatprep.subr.mxu0 0.0
        %6056 = vmatpush1.msra.mxu0 0.0
        %6057 = vmatprep.subr.mxu0 0.0
        %6058 = vmatpush1.msra.mxu0 0.0
        %6059 = vmatprep.subr.mxu0 0.0
        %6060 = vmatpush1.msra.mxu0 0.0
        %6061 = vmatprep.subr.mxu0 0.0
        %6062 = vmatpush1.msra.mxu0 0.0
        %6063 = vmatprep.subr.mxu0 0.0
        %6064 = vmatpush1.msra.mxu0 0.0
        %6065 = vmatprep.subr.mxu0 0.0
        %6066 = vmatpush1.msra.mxu0 0.0
        %6067 = vmatprep.subr.mxu0 0.0
        %6068 = vmatpush1.msra.mxu0 0.0
        %6069 = vmatprep.subr.mxu0 0.0
        %6070 = vmatpush1.msra.mxu0 0.0
        %6071 = vmatprep.subr.mxu0 0.0
        %6072 = vmatpush1.msra.mxu0 0.0
        %6073 = vmatprep.subr.mxu0 0.0
        %6074 = vmatpush1.msra.mxu0 0.0
        %6075 = vmatprep.subr.mxu0 0.0
        %6076 = vmatpush1.msra.mxu0 0.0
        %6077 = vmatprep.subr.mxu0 0.0
        %6078 = vmatpush1.msra.mxu0 %v6042
        %6079 = vmatprep.subr.mxu0 0.0
        %6080 = vmatpush2.msra.mxu0 0.0
        %6081 = vmatprep.subr.mxu0 0.0
        %6082 = vmatpush2.msra.mxu0 0.0
        %6083 = vmatprep.subr.mxu0 0.0
        %6084 = vmatpush2.msra.mxu0 0.0
        %6085 = vmatprep.subr.mxu0 0.0
        %6086 = vmatpush2.msra.mxu0 0.0
        %6087 = vmatprep.subr.mxu0 0.0
        %6088 = vmatpush2.msra.mxu0 0.0
        %6089 = vmatprep.subr.mxu0 0.0
        %6090 = vmatpush2.msra.mxu0 0.0
        %6091 = vmatprep.subr.mxu0 0.0
        %6092 = vmatpush2.msra.mxu0 0.0
        %6093 = vmatprep.subr.mxu0 0.0
        %6094 = vmatpush2.msra.mxu0 0.0
        %6095 = vmatprep.subr.mxu0 0.0
        %6096 = vmatpush2.msra.mxu0 0.0
        %6097 = vmatprep.subr.mxu0 0.0
        %6098 = vmatpush2.msra.mxu0 0.0
        %6099 = vmatprep.subr.mxu0 0.0
        %6100 = vmatpush2.msra.mxu0 0.0
        %6101 = vmatprep.subr.mxu0 0.0
        %6102 = vmatpush2.msra.mxu0 0.0
        %6103 = vmatprep.subr.mxu0 0.0
        %6104 = vmatpush2.msra.mxu0 0.0
        %6105 = vmatprep.subr.mxu0 0.0
        %6106 = vmatpush2.msra.mxu0 0.0
        %6107 = vmatprep.subr.mxu0 0.0
        %6108 = vmatpush2.msra.mxu0 0.0
        %6109 = vmatprep.subr.mxu0 0.0
        %6110 = vmatpush2.msra.mxu0 0.0
        %6111 = vmatprep.mubr.f32.mxu0 0.0
        %6112 = vmatmul.mubr.f32.gmra.mxu0 %v6045
        %v6113 = vpop.f32.mrf.mxu0
        %v6114 = vadd.f32 0.0, %v6113
        %v6115 = vpop.f32.mrf.mxu0
        %6116 = vdwg.mxu0
        %6117 = vrot.lane.b32.xlu0 %v5781, 112
        %v6118 = vpop.permute.xlu0 %6117
        %6119 = vrot.lane.b32.xlu0 %v5781, 80
        %v6120 = vpop.permute.xlu0 %6119
        %v6121 = vsel %vm1448, %v6118, 0
        %v6123 = vsel %vm1448, %v6120, 0
        %6125 = vmatprep.subr.mxu0 0.0
        %6126 = vmatpush1.xpose.msra.mxu0 0.0
        %6127 = vmatprep.subr.mxu0 0.0
        %6128 = vmatpush1.xpose.msra.mxu0 0.0
        %6129 = vmatprep.subr.mxu0 0.0
        %6130 = vmatpush1.xpose.msra.mxu0 0.0
        %6131 = vmatprep.subr.mxu0 0.0
        %6132 = vmatpush1.xpose.msra.mxu0 0.0
        %6133 = vmatprep.subr.mxu0 0.0
        %6134 = vmatpush1.xpose.msra.mxu0 0.0
        %6135 = vmatprep.subr.mxu0 0.0
        %6136 = vmatpush1.xpose.msra.mxu0 0.0
        %6137 = vmatprep.subr.mxu0 0.0
        %6138 = vmatpush1.xpose.msra.mxu0 0.0
        %6139 = vmatprep.subr.mxu0 0.0
        %6140 = vmatpush1.xpose.msra.mxu0 0.0
        %6141 = vmatprep.subr.mxu0 0.0
        %6142 = vmatpush1.xpose.msra.mxu0 0.0
        %6143 = vmatprep.subr.mxu0 0.0
        %6144 = vmatpush1.xpose.msra.mxu0 0.0
        %6145 = vmatprep.subr.mxu0 0.0
        %6146 = vmatpush1.xpose.msra.mxu0 0.0
        %6147 = vmatprep.subr.mxu0 0.0
        %6148 = vmatpush1.xpose.msra.mxu0 0.0
        %6149 = vmatprep.subr.mxu0 0.0
        %6150 = vmatpush1.xpose.msra.mxu0 0.0
        %6151 = vmatprep.subr.mxu0 0.0
        %6152 = vmatpush1.xpose.msra.mxu0 0.0
        %6153 = vmatprep.subr.mxu0 0.0
        %6154 = vmatpush1.xpose.msra.mxu0 0.0
        %6155 = vmatprep.subr.mxu0 0.0
        %6156 = vmatpush1.xpose.msra.mxu0 %v6123
        %6157 = vmatprep.subr.mxu0 0.0
        %6158 = vmatpush2.xpose.msra.mxu0 0.0
        %6159 = vmatprep.subr.mxu0 0.0
        %6160 = vmatpush2.xpose.msra.mxu0 0.0
        %6161 = vmatprep.subr.mxu0 0.0
        %6162 = vmatpush2.xpose.msra.mxu0 0.0
        %6163 = vmatprep.subr.mxu0 0.0
        %6164 = vmatpush2.xpose.msra.mxu0 0.0
        %6165 = vmatprep.subr.mxu0 0.0
        %6166 = vmatpush2.xpose.msra.mxu0 0.0
        %6167 = vmatprep.subr.mxu0 0.0
        %6168 = vmatpush2.xpose.msra.mxu0 0.0
        %6169 = vmatprep.subr.mxu0 0.0
        %6170 = vmatpush2.xpose.msra.mxu0 0.0
        %6171 = vmatprep.subr.mxu0 0.0
        %6172 = vmatpush2.xpose.msra.mxu0 0.0
        %6173 = vmatprep.subr.mxu0 0.0
        %6174 = vmatpush2.xpose.msra.mxu0 0.0
        %6175 = vmatprep.subr.mxu0 0.0
        %6176 = vmatpush2.xpose.msra.mxu0 0.0
        %6177 = vmatprep.subr.mxu0 0.0
        %6178 = vmatpush2.xpose.msra.mxu0 0.0
        %6179 = vmatprep.subr.mxu0 0.0
        %6180 = vmatpush2.xpose.msra.mxu0 0.0
        %6181 = vmatprep.subr.mxu0 0.0
        %6182 = vmatpush2.xpose.msra.mxu0 0.0
        %6183 = vmatprep.subr.mxu0 0.0
        %6184 = vmatpush2.xpose.msra.mxu0 0.0
        %6185 = vmatprep.subr.mxu0 0.0
        %6186 = vmatpush2.xpose.msra.mxu0 0.0
        %6187 = vmatprep.subr.mxu0 0.0
        %6188 = vmatpush2.xpose.msra.mxu0 0.0
        %6189 = vmatprep.mubr.f32.mxu0 0.0
        %6190 = vmatmul.mubr.f32.gmra.mxu0 %v6121
        %v6191 = vpop.f32.mrf.mxu0
        %v6192 = vadd.f32 0.0, %v6191
        %v6193 = vpop.f32.mrf.mxu0
        %6194 = vdwg.mxu0
        %v6195 = vmul.f32 %v6192, 0.35355338
        %v6196 = vsel %vm3583, %v6195, -1e+09
        %v6197 = vsel %vm1448, %v6196, -inf
        %6198 = vmax.xlane.f32.xlu0 %v6197
        %v6199 = vpop.xlane.xlu0 %6198
        %v6200 = vsub.f32 %v6196, %v6199
        %v6201 = vmul.f32 %v6200, 1.442695
        %v6202 = vpow.pop %v6201
        %v6203 = vsel %vm1448, %v6202, 0.0
        %6204 = vadd.xlane.f32.xlu0 %v6203
        %v6205 = vpop.xlane.xlu0 %6204
        %v6206 = vrcp.pop %v6205
        %v6207 = vmul.f32 %v6202, %v6206
        %6208 = vrot.lane.b32.xlu0 %v5781, 48
        %v6209 = vpop.permute.xlu0 %6208
        %v6212 = vsel %vm1448, %v6207, 0
        %6214 = vmatprep.subr.mxu0 0.0
        %6215 = vmatpush1.msra.mxu0 0.0
        %6216 = vmatprep.subr.mxu0 0.0
        %6217 = vmatpush1.msra.mxu0 0.0
        %6218 = vmatprep.subr.mxu0 0.0
        %6219 = vmatpush1.msra.mxu0 0.0
        %6220 = vmatprep.subr.mxu0 0.0
        %6221 = vmatpush1.msra.mxu0 0.0
        %6222 = vmatprep.subr.mxu0 0.0
        %6223 = vmatpush1.msra.mxu0 0.0
        %6224 = vmatprep.subr.mxu0 0.0
        %6225 = vmatpush1.msra.mxu0 0.0
        %6226 = vmatprep.subr.mxu0 0.0
        %6227 = vmatpush1.msra.mxu0 0.0
        %6228 = vmatprep.subr.mxu0 0.0
        %6229 = vmatpush1.msra.mxu0 0.0
        %6230 = vmatprep.subr.mxu0 0.0
        %6231 = vmatpush1.msra.mxu0 0.0
        %6232 = vmatprep.subr.mxu0 0.0
        %6233 = vmatpush1.msra.mxu0 0.0
        %6234 = vmatprep.subr.mxu0 0.0
        %6235 = vmatpush1.msra.mxu0 0.0
        %6236 = vmatprep.subr.mxu0 0.0
        %6237 = vmatpush1.msra.mxu0 0.0
        %6238 = vmatprep.subr.mxu0 0.0
        %6239 = vmatpush1.msra.mxu0 0.0
        %6240 = vmatprep.subr.mxu0 0.0
        %6241 = vmatpush1.msra.mxu0 0.0
        %6242 = vmatprep.subr.mxu0 0.0
        %6243 = vmatpush1.msra.mxu0 0.0
        %6244 = vmatprep.subr.mxu0 0.0
        %6245 = vmatpush1.msra.mxu0 %v6209
        %6246 = vmatprep.subr.mxu0 0.0
        %6247 = vmatpush2.msra.mxu0 0.0
        %6248 = vmatprep.subr.mxu0 0.0
        %6249 = vmatpush2.msra.mxu0 0.0
        %6250 = vmatprep.subr.mxu0 0.0
        %6251 = vmatpush2.msra.mxu0 0.0
        %6252 = vmatprep.subr.mxu0 0.0
        %6253 = vmatpush2.msra.mxu0 0.0
        %6254 = vmatprep.subr.mxu0 0.0
        %6255 = vmatpush2.msra.mxu0 0.0
        %6256 = vmatprep.subr.mxu0 0.0
        %6257 = vmatpush2.msra.mxu0 0.0
        %6258 = vmatprep.subr.mxu0 0.0
        %6259 = vmatpush2.msra.mxu0 0.0
        %6260 = vmatprep.subr.mxu0 0.0
        %6261 = vmatpush2.msra.mxu0 0.0
        %6262 = vmatprep.subr.mxu0 0.0
        %6263 = vmatpush2.msra.mxu0 0.0
        %6264 = vmatprep.subr.mxu0 0.0
        %6265 = vmatpush2.msra.mxu0 0.0
        %6266 = vmatprep.subr.mxu0 0.0
        %6267 = vmatpush2.msra.mxu0 0.0
        %6268 = vmatprep.subr.mxu0 0.0
        %6269 = vmatpush2.msra.mxu0 0.0
        %6270 = vmatprep.subr.mxu0 0.0
        %6271 = vmatpush2.msra.mxu0 0.0
        %6272 = vmatprep.subr.mxu0 0.0
        %6273 = vmatpush2.msra.mxu0 0.0
        %6274 = vmatprep.subr.mxu0 0.0
        %6275 = vmatpush2.msra.mxu0 0.0
        %6276 = vmatprep.subr.mxu0 0.0
        %6277 = vmatpush2.msra.mxu0 0.0
        %6278 = vmatprep.mubr.f32.mxu0 0.0
        %6279 = vmatmul.mubr.f32.gmra.mxu0 %v6212
        %v6280 = vpop.f32.mrf.mxu0
        %v6281 = vadd.f32 0.0, %v6280
        %v6282 = vpop.f32.mrf.mxu0
        %6283 = vdwg.mxu0
        %6284 = vrot.lane.b32.xlu0 %v5781, 104
        %v6285 = vpop.permute.xlu0 %6284
        %6286 = vrot.lane.b32.xlu0 %v5781, 72
        %v6287 = vpop.permute.xlu0 %6286
        %v6288 = vsel %vm1448, %v6285, 0
        %v6290 = vsel %vm1448, %v6287, 0
        %6292 = vmatprep.subr.mxu0 0.0
        %6293 = vmatpush1.xpose.msra.mxu0 0.0
        %6294 = vmatprep.subr.mxu0 0.0
        %6295 = vmatpush1.xpose.msra.mxu0 0.0
        %6296 = vmatprep.subr.mxu0 0.0
        %6297 = vmatpush1.xpose.msra.mxu0 0.0
        %6298 = vmatprep.subr.mxu0 0.0
        %6299 = vmatpush1.xpose.msra.mxu0 0.0
        %6300 = vmatprep.subr.mxu0 0.0
        %6301 = vmatpush1.xpose.msra.mxu0 0.0
        %6302 = vmatprep.subr.mxu0 0.0
        %6303 = vmatpush1.xpose.msra.mxu0 0.0
        %6304 = vmatprep.subr.mxu0 0.0
        %6305 = vmatpush1.xpose.msra.mxu0 0.0
        %6306 = vmatprep.subr.mxu0 0.0
        %6307 = vmatpush1.xpose.msra.mxu0 0.0
        %6308 = vmatprep.subr.mxu0 0.0
        %6309 = vmatpush1.xpose.msra.mxu0 0.0
        %6310 = vmatprep.subr.mxu0 0.0
        %6311 = vmatpush1.xpose.msra.mxu0 0.0
        %6312 = vmatprep.subr.mxu0 0.0
        %6313 = vmatpush1.xpose.msra.mxu0 0.0
        %6314 = vmatprep.subr.mxu0 0.0
        %6315 = vmatpush1.xpose.msra.mxu0 0.0
        %6316 = vmatprep.subr.mxu0 0.0
        %6317 = vmatpush1.xpose.msra.mxu0 0.0
        %6318 = vmatprep.subr.mxu0 0.0
        %6319 = vmatpush1.xpose.msra.mxu0 0.0
        %6320 = vmatprep.subr.mxu0 0.0
        %6321 = vmatpush1.xpose.msra.mxu0 0.0
        %6322 = vmatprep.subr.mxu0 0.0
        %6323 = vmatpush1.xpose.msra.mxu0 %v6290
        %6324 = vmatprep.subr.mxu0 0.0
        %6325 = vmatpush2.xpose.msra.mxu0 0.0
        %6326 = vmatprep.subr.mxu0 0.0
        %6327 = vmatpush2.xpose.msra.mxu0 0.0
        %6328 = vmatprep.subr.mxu0 0.0
        %6329 = vmatpush2.xpose.msra.mxu0 0.0
        %6330 = vmatprep.subr.mxu0 0.0
        %6331 = vmatpush2.xpose.msra.mxu0 0.0
        %6332 = vmatprep.subr.mxu0 0.0
        %6333 = vmatpush2.xpose.msra.mxu0 0.0
        %6334 = vmatprep.subr.mxu0 0.0
        %6335 = vmatpush2.xpose.msra.mxu0 0.0
        %6336 = vmatprep.subr.mxu0 0.0
        %6337 = vmatpush2.xpose.msra.mxu0 0.0
        %6338 = vmatprep.subr.mxu0 0.0
        %6339 = vmatpush2.xpose.msra.mxu0 0.0
        %6340 = vmatprep.subr.mxu0 0.0
        %6341 = vmatpush2.xpose.msra.mxu0 0.0
        %6342 = vmatprep.subr.mxu0 0.0
        %6343 = vmatpush2.xpose.msra.mxu0 0.0
        %6344 = vmatprep.subr.mxu0 0.0
        %6345 = vmatpush2.xpose.msra.mxu0 0.0
        %6346 = vmatprep.subr.mxu0 0.0
        %6347 = vmatpush2.xpose.msra.mxu0 0.0
        %6348 = vmatprep.subr.mxu0 0.0
        %6349 = vmatpush2.xpose.msra.mxu0 0.0
        %6350 = vmatprep.subr.mxu0 0.0
        %6351 = vmatpush2.xpose.msra.mxu0 0.0
        %6352 = vmatprep.subr.mxu0 0.0
        %6353 = vmatpush2.xpose.msra.mxu0 0.0
        %6354 = vmatprep.subr.mxu0 0.0
        %6355 = vmatpush2.xpose.msra.mxu0 0.0
        %6356 = vmatprep.mubr.f32.mxu0 0.0
        %6357 = vmatmul.mubr.f32.gmra.mxu0 %v6288
        %v6358 = vpop.f32.mrf.mxu0
        %v6359 = vadd.f32 0.0, %v6358
        %v6360 = vpop.f32.mrf.mxu0
        %6361 = vdwg.mxu0
        %v6362 = vmul.f32 %v6359, 0.35355338
        %v6363 = vsel %vm3583, %v6362, -1e+09
        %v6364 = vsel %vm1448, %v6363, -inf
        %6365 = vmax.xlane.f32.xlu0 %v6364
        %v6366 = vpop.xlane.xlu0 %6365
        %v6367 = vsub.f32 %v6363, %v6366
        %v6368 = vmul.f32 %v6367, 1.442695
        %v6369 = vpow.pop %v6368
        %v6370 = vsel %vm1448, %v6369, 0.0
        %6371 = vadd.xlane.f32.xlu0 %v6370
        %v6372 = vpop.xlane.xlu0 %6371
        %v6373 = vrcp.pop %v6372
        %v6374 = vmul.f32 %v6369, %v6373
        %6375 = vrot.lane.b32.xlu0 %v5781, 40
        %v6376 = vpop.permute.xlu0 %6375
        %v6379 = vsel %vm1448, %v6374, 0
        %6381 = vmatprep.subr.mxu0 0.0
        %6382 = vmatpush1.msra.mxu0 0.0
        %6383 = vmatprep.subr.mxu0 0.0
        %6384 = vmatpush1.msra.mxu0 0.0
        %6385 = vmatprep.subr.mxu0 0.0
        %6386 = vmatpush1.msra.mxu0 0.0
        %6387 = vmatprep.subr.mxu0 0.0
        %6388 = vmatpush1.msra.mxu0 0.0
        %6389 = vmatprep.subr.mxu0 0.0
        %6390 = vmatpush1.msra.mxu0 0.0
        %6391 = vmatprep.subr.mxu0 0.0
        %6392 = vmatpush1.msra.mxu0 0.0
        %6393 = vmatprep.subr.mxu0 0.0
        %6394 = vmatpush1.msra.mxu0 0.0
        %6395 = vmatprep.subr.mxu0 0.0
        %6396 = vmatpush1.msra.mxu0 0.0
        %6397 = vmatprep.subr.mxu0 0.0
        %6398 = vmatpush1.msra.mxu0 0.0
        %6399 = vmatprep.subr.mxu0 0.0
        %6400 = vmatpush1.msra.mxu0 0.0
        %6401 = vmatprep.subr.mxu0 0.0
        %6402 = vmatpush1.msra.mxu0 0.0
        %6403 = vmatprep.subr.mxu0 0.0
        %6404 = vmatpush1.msra.mxu0 0.0
        %6405 = vmatprep.subr.mxu0 0.0
        %6406 = vmatpush1.msra.mxu0 0.0
        %6407 = vmatprep.subr.mxu0 0.0
        %6408 = vmatpush1.msra.mxu0 0.0
        %6409 = vmatprep.subr.mxu0 0.0
        %6410 = vmatpush1.msra.mxu0 0.0
        %6411 = vmatprep.subr.mxu0 0.0
        %6412 = vmatpush1.msra.mxu0 %v6376
        %6413 = vmatprep.subr.mxu0 0.0
        %6414 = vmatpush2.msra.mxu0 0.0
        %6415 = vmatprep.subr.mxu0 0.0
        %6416 = vmatpush2.msra.mxu0 0.0
        %6417 = vmatprep.subr.mxu0 0.0
        %6418 = vmatpush2.msra.mxu0 0.0
        %6419 = vmatprep.subr.mxu0 0.0
        %6420 = vmatpush2.msra.mxu0 0.0
        %6421 = vmatprep.subr.mxu0 0.0
        %6422 = vmatpush2.msra.mxu0 0.0
        %6423 = vmatprep.subr.mxu0 0.0
        %6424 = vmatpush2.msra.mxu0 0.0
        %6425 = vmatprep.subr.mxu0 0.0
        %6426 = vmatpush2.msra.mxu0 0.0
        %6427 = vmatprep.subr.mxu0 0.0
        %6428 = vmatpush2.msra.mxu0 0.0
        %6429 = vmatprep.subr.mxu0 0.0
        %6430 = vmatpush2.msra.mxu0 0.0
        %6431 = vmatprep.subr.mxu0 0.0
        %6432 = vmatpush2.msra.mxu0 0.0
        %6433 = vmatprep.subr.mxu0 0.0
        %6434 = vmatpush2.msra.mxu0 0.0
        %6435 = vmatprep.subr.mxu0 0.0
        %6436 = vmatpush2.msra.mxu0 0.0
        %6437 = vmatprep.subr.mxu0 0.0
        %6438 = vmatpush2.msra.mxu0 0.0
        %6439 = vmatprep.subr.mxu0 0.0
        %6440 = vmatpush2.msra.mxu0 0.0
        %6441 = vmatprep.subr.mxu0 0.0
        %6442 = vmatpush2.msra.mxu0 0.0
        %6443 = vmatprep.subr.mxu0 0.0
        %6444 = vmatpush2.msra.mxu0 0.0
        %6445 = vmatprep.mubr.f32.mxu0 0.0
        %6446 = vmatmul.mubr.f32.gmra.mxu0 %v6379
        %v6447 = vpop.f32.mrf.mxu0
        %v6448 = vadd.f32 0.0, %v6447
        %v6449 = vpop.f32.mrf.mxu0
        %6450 = vdwg.mxu0
        %6452 = vrot.lane.b32.xlu0 %v6114, 8
        %v6453 = vpop.permute.xlu0 %6452
        %6456 = vrot.lane.b32.xlu0 %v6281, 16
        %v6457 = vpop.permute.xlu0 %6456
        %6460 = vrot.lane.b32.xlu0 %v6448, 24
        %v6461 = vpop.permute.xlu0 %6460
        %v6463 = vsel %vm1448, %v5947, %v6453
        %v6464 = vsel %vm2132, %v6463, %v6457
        %v6465 = vsel %vm2134, %v6464, %v6461
        %v6467 = vlaneseq
        %v6468 = vshrl.u32 %v6467, 7
        %v6469 = vsub.s32 0, %v6468
        %v6470 = vrot.slane %v5704, %v6469
        %v6473 = vsel %vm1319, %v6465, 0
        %6475 = vmatprep.subr.mxu0 0.0
        %6476 = vmatpush1.msra.mxu0 0.0
        %6477 = vmatprep.subr.mxu0 0.0
        %6478 = vmatpush1.msra.mxu0 0.0
        %6479 = vmatprep.subr.mxu0 0.0
        %6480 = vmatpush1.msra.mxu0 0.0
        %6481 = vmatprep.subr.mxu0 0.0
        %6482 = vmatpush1.msra.mxu0 0.0
        %6483 = vmatprep.subr.mxu0 0.0
        %6484 = vmatpush1.msra.mxu0 0.0
        %6485 = vmatprep.subr.mxu0 0.0
        %6486 = vmatpush1.msra.mxu0 0.0
        %6487 = vmatprep.subr.mxu0 0.0
        %6488 = vmatpush1.msra.mxu0 0.0
        %6489 = vmatprep.subr.mxu0 0.0
        %6490 = vmatpush1.msra.mxu0 0.0
        %6491 = vmatprep.subr.mxu0 0.0
        %6492 = vmatpush1.msra.mxu0 0.0
        %6493 = vmatprep.subr.mxu0 0.0
        %6494 = vmatpush1.msra.mxu0 0.0
        %6495 = vmatprep.subr.mxu0 0.0
        %6496 = vmatpush1.msra.mxu0 0.0
        %6497 = vmatprep.subr.mxu0 0.0
        %6498 = vmatpush1.msra.mxu0 0.0
        %6499 = vmatprep.subr.mxu0 0.0
        %6500 = vmatpush1.msra.mxu0 %v5702
        %6501 = vmatprep.subr.mxu0 0.0
        %6502 = vmatpush1.msra.mxu0 %v5701
        %6503 = vmatprep.subr.mxu0 0.0
        %6504 = vmatpush1.msra.mxu0 %v5700
        %6505 = vmatprep.subr.mxu0 0.0
        %6506 = vmatpush1.msra.mxu0 %v5699
        %6507 = vmatprep.subr.mxu0 0.0
        %6508 = vmatpush2.msra.mxu0 0.0
        %6509 = vmatprep.subr.mxu0 0.0
        %6510 = vmatpush2.msra.mxu0 0.0
        %6511 = vmatprep.subr.mxu0 0.0
        %6512 = vmatpush2.msra.mxu0 0.0
        %6513 = vmatprep.subr.mxu0 0.0
        %6514 = vmatpush2.msra.mxu0 0.0
        %6515 = vmatprep.subr.mxu0 0.0
        %6516 = vmatpush2.msra.mxu0 0.0
        %6517 = vmatprep.subr.mxu0 0.0
        %6518 = vmatpush2.msra.mxu0 0.0
        %6519 = vmatprep.subr.mxu0 0.0
        %6520 = vmatpush2.msra.mxu0 0.0
        %6521 = vmatprep.subr.mxu0 0.0
        %6522 = vmatpush2.msra.mxu0 0.0
        %6523 = vmatprep.subr.mxu0 0.0
        %6524 = vmatpush2.msra.mxu0 0.0
        %6525 = vmatprep.subr.mxu0 0.0
        %6526 = vmatpush2.msra.mxu0 0.0
        %6527 = vmatprep.subr.mxu0 0.0
        %6528 = vmatpush2.msra.mxu0 0.0
        %6529 = vmatprep.subr.mxu0 0.0
        %6530 = vmatpush2.msra.mxu0 0.0
        %6531 = vmatprep.subr.mxu0 0.0
        %6532 = vmatpush2.msra.mxu0 0.0
        %6533 = vmatprep.subr.mxu0 0.0
        %6534 = vmatpush2.msra.mxu0 0.0
        %6535 = vmatprep.subr.mxu0 0.0
        %6536 = vmatpush2.msra.mxu0 0.0
        %6537 = vmatprep.subr.mxu0 0.0
        %6538 = vmatpush2.msra.mxu0 0.0
        %6539 = vmatprep.mubr.f32.mxu0 0.0
        %6540 = vmatmul.mubr.f32.gmra.mxu0 %v6473
        %v6541 = vpop.f32.mrf.mxu0
        %v6542 = vadd.f32 %v6470, %v6541
        %v6543 = vpop.f32.mrf.mxu0
        %6544 = vdwg.mxu0
        %v6545 = vadd.f32 %v5652, %v6542
        %s6546 = scalar_lea.vmem %s39, 1
        %v6547 = vld [vmem:[%s6546] sm:$0x1]
        %s6548 = scalar_lea.vmem %s37, 1
        %v6549 = vld [vmem:[%s6548] sm:$0x1]
        %v6550 = vsel %vm1319, %v6545, 0.0
        %6551 = vadd.xlane.f32.xlu0 %v6550
        %v6552 = vpop.xlane.xlu0 %6551
        %v6553 = vmul.f32 %v6552, %v1323
        %v6554 = vsub.f32 %v6545, %v6553
        %v6555 = vmul.f32 %v6554, %v6554
        %v6556 = vsel %vm1319, %v6555, 0.0
        %6557 = vadd.xlane.f32.xlu0 %v6556
        %v6558 = vpop.xlane.xlu0 %6557
        %v6559 = vmul.f32 %v6558, %v1330
        %v6561 = vlaneseq
        %v6562 = vshrl.u32 %v6561, 7
        %v6563 = vsub.s32 0, %v6562
        %v6564 = vrot.slane %v6547, %v6563
        %v6566 = vmul.f32 %v6564, %v6554
        %v6567 = vrsqrt.pop %v6559
        %v6568 = vmul.f32 %v6559, %v6567
        %vm6569 = vcmp.eq.f32.partialorder %v6559, inf
        %v6570 = vsel %vm6569, %v6559, %v6568
        %vm6571 = vcmp.eq.f32.partialorder %v6559, 0.0
        %v6572 = vand.u32 %v6559, 2147483648
        %v6573 = vsel %vm6571, %v6572, %v6570
        %v6574 = vadd.f32 %v6573, 1e-06
        %v6575 = vrcp.pop %v6574
        %v6576 = vmul.f32 %v6566, %v6575
        %v6578 = vlaneseq
        %v6579 = vshrl.u32 %v6578, 7
        %v6580 = vsub.s32 0, %v6579
        %v6581 = vrot.slane %v6549, %v6580
        %v6583 = vadd.f32 %v6576, %v6581
        %s6584 = scalar_lea.vmem %s23, 32
        %v6585 = vld [vmem:[%s6584] sm:$0xff]
        %v6586 = vld [vmem:[%s6584 + $0x8] sm:$0xff]
        %v6587 = vld [vmem:[%s6584 + $0x10] sm:$0xff]
        %v6588 = vld [vmem:[%s6584 + $0x18] sm:$0xff]
        %s6589 = scalar_lea.vmem %s21, 1
        %v6590 = vld [vmem:[%s6589] sm:$0x1]
        %s6591 = scalar_lea.vmem %s15, 32
        %v6592 = vld [vmem:[%s6591] sm:$0xff]
        %v6593 = vld [vmem:[%s6591 + $0x8] sm:$0xff]
        %v6594 = vld [vmem:[%s6591 + $0x10] sm:$0xff]
        %v6595 = vld [vmem:[%s6591 + $0x18] sm:$0xff]
        %s6596 = scalar_lea.vmem %s13, 1
        %v6597 = vld [vmem:[%s6596] sm:$0x1]
        %s6598 = scalar_lea.vmem %s19, 32
        %v6599 = vld [vmem:[%s6598] sm:$0xff]
        %v6600 = vld [vmem:[%s6598 + $0x8] sm:$0xff]
        %v6601 = vld [vmem:[%s6598 + $0x10] sm:$0xff]
        %v6602 = vld [vmem:[%s6598 + $0x18] sm:$0xff]
        %s6603 = scalar_lea.vmem %s17, 1
        %v6604 = vld [vmem:[%s6603] sm:$0x1]
        %v6606 = vlaneseq
        %v6607 = vshrl.u32 %v6606, 7
        %v6608 = vsub.s32 0, %v6607
        %v6609 = vrot.slane %v6590, %v6608
        %v6612 = vsel %vm1319, %v6583, 0
        %6614 = vmatprep.subr.mxu0 0.0
        %6615 = vmatpush1.msra.mxu0 0.0
        %6616 = vmatprep.subr.mxu0 0.0
        %6617 = vmatpush1.msra.mxu0 0.0
        %6618 = vmatprep.subr.mxu0 0.0
        %6619 = vmatpush1.msra.mxu0 0.0
        %6620 = vmatprep.subr.mxu0 0.0
        %6621 = vmatpush1.msra.mxu0 0.0
        %6622 = vmatprep.subr.mxu0 0.0
        %6623 = vmatpush1.msra.mxu0 0.0
        %6624 = vmatprep.subr.mxu0 0.0
        %6625 = vmatpush1.msra.mxu0 0.0
        %6626 = vmatprep.subr.mxu0 0.0
        %6627 = vmatpush1.msra.mxu0 0.0
        %6628 = vmatprep.subr.mxu0 0.0
        %6629 = vmatpush1.msra.mxu0 0.0
        %6630 = vmatprep.subr.mxu0 0.0
        %6631 = vmatpush1.msra.mxu0 0.0
        %6632 = vmatprep.subr.mxu0 0.0
        %6633 = vmatpush1.msra.mxu0 0.0
        %6634 = vmatprep.subr.mxu0 0.0
        %6635 = vmatpush1.msra.mxu0 0.0
        %6636 = vmatprep.subr.mxu0 0.0
        %6637 = vmatpush1.msra.mxu0 0.0
        %6638 = vmatprep.subr.mxu0 0.0
        %6639 = vmatpush1.msra.mxu0 %v6588
        %6640 = vmatprep.subr.mxu0 0.0
        %6641 = vmatpush1.msra.mxu0 %v6587
        %6642 = vmatprep.subr.mxu0 0.0
        %6643 = vmatpush1.msra.mxu0 %v6586
        %6644 = vmatprep.subr.mxu0 0.0
        %6645 = vmatpush1.msra.mxu0 %v6585
        %6646 = vmatprep.subr.mxu0 0.0
        %6647 = vmatpush2.msra.mxu0 0.0
        %6648 = vmatprep.subr.mxu0 0.0
        %6649 = vmatpush2.msra.mxu0 0.0
        %6650 = vmatprep.subr.mxu0 0.0
        %6651 = vmatpush2.msra.mxu0 0.0
        %6652 = vmatprep.subr.mxu0 0.0
        %6653 = vmatpush2.msra.mxu0 0.0
        %6654 = vmatprep.subr.mxu0 0.0
        %6655 = vmatpush2.msra.mxu0 0.0
        %6656 = vmatprep.subr.mxu0 0.0
        %6657 = vmatpush2.msra.mxu0 0.0
        %6658 = vmatprep.subr.mxu0 0.0
        %6659 = vmatpush2.msra.mxu0 0.0
        %6660 = vmatprep.subr.mxu0 0.0
        %6661 = vmatpush2.msra.mxu0 0.0
        %6662 = vmatprep.subr.mxu0 0.0
        %6663 = vmatpush2.msra.mxu0 0.0
        %6664 = vmatprep.subr.mxu0 0.0
        %6665 = vmatpush2.msra.mxu0 0.0
        %6666 = vmatprep.subr.mxu0 0.0
        %6667 = vmatpush2.msra.mxu0 0.0
        %6668 = vmatprep.subr.mxu0 0.0
        %6669 = vmatpush2.msra.mxu0 0.0
        %6670 = vmatprep.subr.mxu0 0.0
        %6671 = vmatpush2.msra.mxu0 0.0
        %6672 = vmatprep.subr.mxu0 0.0
        %6673 = vmatpush2.msra.mxu0 0.0
        %6674 = vmatprep.subr.mxu0 0.0
        %6675 = vmatpush2.msra.mxu0 0.0
        %6676 = vmatprep.subr.mxu0 0.0
        %6677 = vmatpush2.msra.mxu0 0.0
        %6678 = vmatprep.mubr.f32.mxu0 0.0
        %6679 = vmatmul.mubr.f32.gmra.mxu0 %v6612
        %v6680 = vpop.f32.mrf.mxu0
        %v6681 = vadd.f32 %v6609, %v6680
        %v6682 = vpop.f32.mrf.mxu0
        %6683 = vdwg.mxu0
        %v6685 = vlaneseq
        %v6686 = vshrl.u32 %v6685, 7
        %v6687 = vsub.s32 0, %v6686
        %v6688 = vrot.slane %v6597, %v6687
        %6690 = vmatprep.subr.mxu0 0.0
        %6691 = vmatpush1.msra.mxu0 0.0
        %6692 = vmatprep.subr.mxu0 0.0
        %6693 = vmatpush1.msra.mxu0 0.0
        %6694 = vmatprep.subr.mxu0 0.0
        %6695 = vmatpush1.msra.mxu0 0.0
        %6696 = vmatprep.subr.mxu0 0.0
        %6697 = vmatpush1.msra.mxu0 0.0
        %6698 = vmatprep.subr.mxu0 0.0
        %6699 = vmatpush1.msra.mxu0 0.0
        %6700 = vmatprep.subr.mxu0 0.0
        %6701 = vmatpush1.msra.mxu0 0.0
        %6702 = vmatprep.subr.mxu0 0.0
        %6703 = vmatpush1.msra.mxu0 0.0
        %6704 = vmatprep.subr.mxu0 0.0
        %6705 = vmatpush1.msra.mxu0 0.0
        %6706 = vmatprep.subr.mxu0 0.0
        %6707 = vmatpush1.msra.mxu0 0.0
        %6708 = vmatprep.subr.mxu0 0.0
        %6709 = vmatpush1.msra.mxu0 0.0
        %6710 = vmatprep.subr.mxu0 0.0
        %6711 = vmatpush1.msra.mxu0 0.0
        %6712 = vmatprep.subr.mxu0 0.0
        %6713 = vmatpush1.msra.mxu0 0.0
        %6714 = vmatprep.subr.mxu0 0.0
        %6715 = vmatpush1.msra.mxu0 %v6595
        %6716 = vmatprep.subr.mxu0 0.0
        %6717 = vmatpush1.msra.mxu0 %v6594
        %6718 = vmatprep.subr.mxu0 0.0
        %6719 = vmatpush1.msra.mxu0 %v6593
        %6720 = vmatprep.subr.mxu0 0.0
        %6721 = vmatpush1.msra.mxu0 %v6592
        %6722 = vmatprep.subr.mxu0 0.0
        %6723 = vmatpush2.msra.mxu0 0.0
        %6724 = vmatprep.subr.mxu0 0.0
        %6725 = vmatpush2.msra.mxu0 0.0
        %6726 = vmatprep.subr.mxu0 0.0
        %6727 = vmatpush2.msra.mxu0 0.0
        %6728 = vmatprep.subr.mxu0 0.0
        %6729 = vmatpush2.msra.mxu0 0.0
        %6730 = vmatprep.subr.mxu0 0.0
        %6731 = vmatpush2.msra.mxu0 0.0
        %6732 = vmatprep.subr.mxu0 0.0
        %6733 = vmatpush2.msra.mxu0 0.0
        %6734 = vmatprep.subr.mxu0 0.0
        %6735 = vmatpush2.msra.mxu0 0.0
        %6736 = vmatprep.subr.mxu0 0.0
        %6737 = vmatpush2.msra.mxu0 0.0
        %6738 = vmatprep.subr.mxu0 0.0
        %6739 = vmatpush2.msra.mxu0 0.0
        %6740 = vmatprep.subr.mxu0 0.0
        %6741 = vmatpush2.msra.mxu0 0.0
        %6742 = vmatprep.subr.mxu0 0.0
        %6743 = vmatpush2.msra.mxu0 0.0
        %6744 = vmatprep.subr.mxu0 0.0
        %6745 = vmatpush2.msra.mxu0 0.0
        %6746 = vmatprep.subr.mxu0 0.0
        %6747 = vmatpush2.msra.mxu0 0.0
        %6748 = vmatprep.subr.mxu0 0.0
        %6749 = vmatpush2.msra.mxu0 0.0
        %6750 = vmatprep.subr.mxu0 0.0
        %6751 = vmatpush2.msra.mxu0 0.0
        %6752 = vmatprep.subr.mxu0 0.0
        %6753 = vmatpush2.msra.mxu0 0.0
        %6754 = vmatprep.mubr.f32.mxu0 0.0
        %6755 = vmatmul.mubr.f32.gmra.mxu0 %v4610
        %v6756 = vpop.f32.mrf.mxu0
        %v6757 = vadd.f32 %v6688, %v6756
        %v6758 = vpop.f32.mrf.mxu0
        %6759 = vdwg.mxu0
        %v6761 = vsel %vm1448, %v6681, 0
        %v6764 = vsel %vm1448, %v6757, 0
        %6766 = vmatprep.subr.mxu0 0.0
        %6767 = vmatpush1.xpose.msra.mxu0 0.0
        %6768 = vmatprep.subr.mxu0 0.0
        %6769 = vmatpush1.xpose.msra.mxu0 0.0
        %6770 = vmatprep.subr.mxu0 0.0
        %6771 = vmatpush1.xpose.msra.mxu0 0.0
        %6772 = vmatprep.subr.mxu0 0.0
        %6773 = vmatpush1.xpose.msra.mxu0 0.0
        %6774 = vmatprep.subr.mxu0 0.0
        %6775 = vmatpush1.xpose.msra.mxu0 0.0
        %6776 = vmatprep.subr.mxu0 0.0
        %6777 = vmatpush1.xpose.msra.mxu0 0.0
        %6778 = vmatprep.subr.mxu0 0.0
        %6779 = vmatpush1.xpose.msra.mxu0 0.0
        %6780 = vmatprep.subr.mxu0 0.0
        %6781 = vmatpush1.xpose.msra.mxu0 0.0
        %6782 = vmatprep.subr.mxu0 0.0
        %6783 = vmatpush1.xpose.msra.mxu0 0.0
        %6784 = vmatprep.subr.mxu0 0.0
        %6785 = vmatpush1.xpose.msra.mxu0 0.0
        %6786 = vmatprep.subr.mxu0 0.0
        %6787 = vmatpush1.xpose.msra.mxu0 0.0
        %6788 = vmatprep.subr.mxu0 0.0
        %6789 = vmatpush1.xpose.msra.mxu0 0.0
        %6790 = vmatprep.subr.mxu0 0.0
        %6791 = vmatpush1.xpose.msra.mxu0 0.0
        %6792 = vmatprep.subr.mxu0 0.0
        %6793 = vmatpush1.xpose.msra.mxu0 0.0
        %6794 = vmatprep.subr.mxu0 0.0
        %6795 = vmatpush1.xpose.msra.mxu0 0.0
        %6796 = vmatprep.subr.mxu0 0.0
        %6797 = vmatpush1.xpose.msra.mxu0 %v6764
        %6798 = vmatprep.subr.mxu0 0.0
        %6799 = vmatpush2.xpose.msra.mxu0 0.0
        %6800 = vmatprep.subr.mxu0 0.0
        %6801 = vmatpush2.xpose.msra.mxu0 0.0
        %6802 = vmatprep.subr.mxu0 0.0
        %6803 = vmatpush2.xpose.msra.mxu0 0.0
        %6804 = vmatprep.subr.mxu0 0.0
        %6805 = vmatpush2.xpose.msra.mxu0 0.0
        %6806 = vmatprep.subr.mxu0 0.0
        %6807 = vmatpush2.xpose.msra.mxu0 0.0
        %6808 = vmatprep.subr.mxu0 0.0
        %6809 = vmatpush2.xpose.msra.mxu0 0.0
        %6810 = vmatprep.subr.mxu0 0.0
        %6811 = vmatpush2.xpose.msra.mxu0 0.0
        %6812 = vmatprep.subr.mxu0 0.0
        %6813 = vmatpush2.xpose.msra.mxu0 0.0
        %6814 = vmatprep.subr.mxu0 0.0
        %6815 = vmatpush2.xpose.msra.mxu0 0.0
        %6816 = vmatprep.subr.mxu0 0.0
        %6817 = vmatpush2.xpose.msra.mxu0 0.0
        %6818 = vmatprep.subr.mxu0 0.0
        %6819 = vmatpush2.xpose.msra.mxu0 0.0
        %6820 = vmatprep.subr.mxu0 0.0
        %6821 = vmatpush2.xpose.msra.mxu0 0.0
        %6822 = vmatprep.subr.mxu0 0.0
        %6823 = vmatpush2.xpose.msra.mxu0 0.0
        %6824 = vmatprep.subr.mxu0 0.0
        %6825 = vmatpush2.xpose.msra.mxu0 0.0
        %6826 = vmatprep.subr.mxu0 0.0
        %6827 = vmatpush2.xpose.msra.mxu0 0.0
        %6828 = vmatprep.subr.mxu0 0.0
        %6829 = vmatpush2.xpose.msra.mxu0 0.0
        %6830 = vmatprep.mubr.f32.mxu0 0.0
        %6831 = vmatmul.mubr.f32.gmra.mxu0 %v6761
        %v6832 = vpop.f32.mrf.mxu0
        %v6833 = vadd.f32 0.0, %v6832
        %v6834 = vpop.f32.mrf.mxu0
        %6835 = vdwg.mxu0
        %v6836 = vmul.f32 %v6833, 0.35355338
        %v6837 = vsel %vm1529, %v6836, -1e+09
        %v6838 = vsel %vm1448, %v6837, -inf
        %6839 = vmax.xlane.f32.xlu0 %v6838
        %v6840 = vpop.xlane.xlu0 %6839
        %v6841 = vsub.f32 %v6837, %v6840
        %v6842 = vmul.f32 %v6841, 1.442695
        %v6843 = vpow.pop %v6842
        %v6844 = vsel %vm1448, %v6843, 0.0
        %6845 = vadd.xlane.f32.xlu0 %v6844
        %v6846 = vpop.xlane.xlu0 %6845
        %v6847 = vrcp.pop %v6846
        %v6848 = vmul.f32 %v6843, %v6847
        %6849 = vrot.lane.b32.xlu0 %v6757, 96
        %v6850 = vpop.permute.xlu0 %6849
        %v6853 = vsel %vm1448, %v6848, 0
        %6855 = vmatprep.subr.mxu0 0.0
        %6856 = vmatpush1.msra.mxu0 0.0
        %6857 = vmatprep.subr.mxu0 0.0
        %6858 = vmatpush1.msra.mxu0 0.0
        %6859 = vmatprep.subr.mxu0 0.0
        %6860 = vmatpush1.msra.mxu0 0.0
        %6861 = vmatprep.subr.mxu0 0.0
        %6862 = vmatpush1.msra.mxu0 0.0
        %6863 = vmatprep.subr.mxu0 0.0
        %6864 = vmatpush1.msra.mxu0 0.0
        %6865 = vmatprep.subr.mxu0 0.0
        %6866 = vmatpush1.msra.mxu0 0.0
        %6867 = vmatprep.subr.mxu0 0.0
        %6868 = vmatpush1.msra.mxu0 0.0
        %6869 = vmatprep.subr.mxu0 0.0
        %6870 = vmatpush1.msra.mxu0 0.0
        %6871 = vmatprep.subr.mxu0 0.0
        %6872 = vmatpush1.msra.mxu0 0.0
        %6873 = vmatprep.subr.mxu0 0.0
        %6874 = vmatpush1.msra.mxu0 0.0
        %6875 = vmatprep.subr.mxu0 0.0
        %6876 = vmatpush1.msra.mxu0 0.0
        %6877 = vmatprep.subr.mxu0 0.0
        %6878 = vmatpush1.msra.mxu0 0.0
        %6879 = vmatprep.subr.mxu0 0.0
        %6880 = vmatpush1.msra.mxu0 0.0
        %6881 = vmatprep.subr.mxu0 0.0
        %6882 = vmatpush1.msra.mxu0 0.0
        %6883 = vmatprep.subr.mxu0 0.0
        %6884 = vmatpush1.msra.mxu0 0.0
        %6885 = vmatprep.subr.mxu0 0.0
        %6886 = vmatpush1.msra.mxu0 %v6850
        %6887 = vmatprep.subr.mxu0 0.0
        %6888 = vmatpush2.msra.mxu0 0.0
        %6889 = vmatprep.subr.mxu0 0.0
        %6890 = vmatpush2.msra.mxu0 0.0
        %6891 = vmatprep.subr.mxu0 0.0
        %6892 = vmatpush2.msra.mxu0 0.0
        %6893 = vmatprep.subr.mxu0 0.0
        %6894 = vmatpush2.msra.mxu0 0.0
        %6895 = vmatprep.subr.mxu0 0.0
        %6896 = vmatpush2.msra.mxu0 0.0
        %6897 = vmatprep.subr.mxu0 0.0
        %6898 = vmatpush2.msra.mxu0 0.0
        %6899 = vmatprep.subr.mxu0 0.0
        %6900 = vmatpush2.msra.mxu0 0.0
        %6901 = vmatprep.subr.mxu0 0.0
        %6902 = vmatpush2.msra.mxu0 0.0
        %6903 = vmatprep.subr.mxu0 0.0
        %6904 = vmatpush2.msra.mxu0 0.0
        %6905 = vmatprep.subr.mxu0 0.0
        %6906 = vmatpush2.msra.mxu0 0.0
        %6907 = vmatprep.subr.mxu0 0.0
        %6908 = vmatpush2.msra.mxu0 0.0
        %6909 = vmatprep.subr.mxu0 0.0
        %6910 = vmatpush2.msra.mxu0 0.0
        %6911 = vmatprep.subr.mxu0 0.0
        %6912 = vmatpush2.msra.mxu0 0.0
        %6913 = vmatprep.subr.mxu0 0.0
        %6914 = vmatpush2.msra.mxu0 0.0
        %6915 = vmatprep.subr.mxu0 0.0
        %6916 = vmatpush2.msra.mxu0 0.0
        %6917 = vmatprep.subr.mxu0 0.0
        %6918 = vmatpush2.msra.mxu0 0.0
        %6919 = vmatprep.mubr.f32.mxu0 0.0
        %6920 = vmatmul.mubr.f32.gmra.mxu0 %v6853
        %v6921 = vpop.f32.mrf.mxu0
        %v6922 = vadd.f32 0.0, %v6921
        %v6923 = vpop.f32.mrf.mxu0
        %6924 = vdwg.mxu0
        %6925 = vrot.lane.b32.xlu0 %v6681, 120
        %v6926 = vpop.permute.xlu0 %6925
        %6927 = vrot.lane.b32.xlu0 %v6757, 120
        %v6928 = vpop.permute.xlu0 %6927
        %v6929 = vsel %vm1448, %v6926, 0
        %v6931 = vsel %vm1448, %v6928, 0
        %6933 = vmatprep.subr.mxu0 0.0
        %6934 = vmatpush1.xpose.msra.mxu0 0.0
        %6935 = vmatprep.subr.mxu0 0.0
        %6936 = vmatpush1.xpose.msra.mxu0 0.0
        %6937 = vmatprep.subr.mxu0 0.0
        %6938 = vmatpush1.xpose.msra.mxu0 0.0
        %6939 = vmatprep.subr.mxu0 0.0
        %6940 = vmatpush1.xpose.msra.mxu0 0.0
        %6941 = vmatprep.subr.mxu0 0.0
        %6942 = vmatpush1.xpose.msra.mxu0 0.0
        %6943 = vmatprep.subr.mxu0 0.0
        %6944 = vmatpush1.xpose.msra.mxu0 0.0
        %6945 = vmatprep.subr.mxu0 0.0
        %6946 = vmatpush1.xpose.msra.mxu0 0.0
        %6947 = vmatprep.subr.mxu0 0.0
        %6948 = vmatpush1.xpose.msra.mxu0 0.0
        %6949 = vmatprep.subr.mxu0 0.0
        %6950 = vmatpush1.xpose.msra.mxu0 0.0
        %6951 = vmatprep.subr.mxu0 0.0
        %6952 = vmatpush1.xpose.msra.mxu0 0.0
        %6953 = vmatprep.subr.mxu0 0.0
        %6954 = vmatpush1.xpose.msra.mxu0 0.0
        %6955 = vmatprep.subr.mxu0 0.0
        %6956 = vmatpush1.xpose.msra.mxu0 0.0
        %6957 = vmatprep.subr.mxu0 0.0
        %6958 = vmatpush1.xpose.msra.mxu0 0.0
        %6959 = vmatprep.subr.mxu0 0.0
        %6960 = vmatpush1.xpose.msra.mxu0 0.0
        %6961 = vmatprep.subr.mxu0 0.0
        %6962 = vmatpush1.xpose.msra.mxu0 0.0
        %6963 = vmatprep.subr.mxu0 0.0
        %6964 = vmatpush1.xpose.msra.mxu0 %v6931
        %6965 = vmatprep.subr.mxu0 0.0
        %6966 = vmatpush2.xpose.msra.mxu0 0.0
        %6967 = vmatprep.subr.mxu0 0.0
        %6968 = vmatpush2.xpose.msra.mxu0 0.0
        %6969 = vmatprep.subr.mxu0 0.0
        %6970 = vmatpush2.xpose.msra.mxu0 0.0
        %6971 = vmatprep.subr.mxu0 0.0
        %6972 = vmatpush2.xpose.msra.mxu0 0.0
        %6973 = vmatprep.subr.mxu0 0.0
        %6974 = vmatpush2.xpose.msra.mxu0 0.0
        %6975 = vmatprep.subr.mxu0 0.0
        %6976 = vmatpush2.xpose.msra.mxu0 0.0
        %6977 = vmatprep.subr.mxu0 0.0
        %6978 = vmatpush2.xpose.msra.mxu0 0.0
        %6979 = vmatprep.subr.mxu0 0.0
        %6980 = vmatpush2.xpose.msra.mxu0 0.0
        %6981 = vmatprep.subr.mxu0 0.0
        %6982 = vmatpush2.xpose.msra.mxu0 0.0
        %6983 = vmatprep.subr.mxu0 0.0
        %6984 = vmatpush2.xpose.msra.mxu0 0.0
        %6985 = vmatprep.subr.mxu0 0.0
        %6986 = vmatpush2.xpose.msra.mxu0 0.0
        %6987 = vmatprep.subr.mxu0 0.0
        %6988 = vmatpush2.xpose.msra.mxu0 0.0
        %6989 = vmatprep.subr.mxu0 0.0
        %6990 = vmatpush2.xpose.msra.mxu0 0.0
        %6991 = vmatprep.subr.mxu0 0.0
        %6992 = vmatpush2.xpose.msra.mxu0 0.0
        %6993 = vmatprep.subr.mxu0 0.0
        %6994 = vmatpush2.xpose.msra.mxu0 0.0
        %6995 = vmatprep.subr.mxu0 0.0
        %6996 = vmatpush2.xpose.msra.mxu0 0.0
        %6997 = vmatprep.mubr.f32.mxu0 0.0
        %6998 = vmatmul.mubr.f32.gmra.mxu0 %v6929
        %v6999 = vpop.f32.mrf.mxu0
        %v7000 = vadd.f32 0.0, %v6999
        %v7001 = vpop.f32.mrf.mxu0
        %7002 = vdwg.mxu0
        %v7003 = vmul.f32 %v7000, 0.35355338
        %v7004 = vsel %vm1529, %v7003, -1e+09
        %v7005 = vsel %vm1448, %v7004, -inf
        %7006 = vmax.xlane.f32.xlu0 %v7005
        %v7007 = vpop.xlane.xlu0 %7006
        %v7008 = vsub.f32 %v7004, %v7007
        %v7009 = vmul.f32 %v7008, 1.442695
        %v7010 = vpow.pop %v7009
        %v7011 = vsel %vm1448, %v7010, 0.0
        %7012 = vadd.xlane.f32.xlu0 %v7011
        %v7013 = vpop.xlane.xlu0 %7012
        %v7014 = vrcp.pop %v7013
        %v7015 = vmul.f32 %v7010, %v7014
        %7016 = vrot.lane.b32.xlu0 %v6757, 88
        %v7017 = vpop.permute.xlu0 %7016
        %v7020 = vsel %vm1448, %v7015, 0
        %7022 = vmatprep.subr.mxu0 0.0
        %7023 = vmatpush1.msra.mxu0 0.0
        %7024 = vmatprep.subr.mxu0 0.0
        %7025 = vmatpush1.msra.mxu0 0.0
        %7026 = vmatprep.subr.mxu0 0.0
        %7027 = vmatpush1.msra.mxu0 0.0
        %7028 = vmatprep.subr.mxu0 0.0
        %7029 = vmatpush1.msra.mxu0 0.0
        %7030 = vmatprep.subr.mxu0 0.0
        %7031 = vmatpush1.msra.mxu0 0.0
        %7032 = vmatprep.subr.mxu0 0.0
        %7033 = vmatpush1.msra.mxu0 0.0
        %7034 = vmatprep.subr.mxu0 0.0
        %7035 = vmatpush1.msra.mxu0 0.0
        %7036 = vmatprep.subr.mxu0 0.0
        %7037 = vmatpush1.msra.mxu0 0.0
        %7038 = vmatprep.subr.mxu0 0.0
        %7039 = vmatpush1.msra.mxu0 0.0
        %7040 = vmatprep.subr.mxu0 0.0
        %7041 = vmatpush1.msra.mxu0 0.0
        %7042 = vmatprep.subr.mxu0 0.0
        %7043 = vmatpush1.msra.mxu0 0.0
        %7044 = vmatprep.subr.mxu0 0.0
        %7045 = vmatpush1.msra.mxu0 0.0
        %7046 = vmatprep.subr.mxu0 0.0
        %7047 = vmatpush1.msra.mxu0 0.0
        %7048 = vmatprep.subr.mxu0 0.0
        %7049 = vmatpush1.msra.mxu0 0.0
        %7050 = vmatprep.subr.mxu0 0.0
        %7051 = vmatpush1.msra.mxu0 0.0
        %7052 = vmatprep.subr.mxu0 0.0
        %7053 = vmatpush1.msra.mxu0 %v7017
        %7054 = vmatprep.subr.mxu0 0.0
        %7055 = vmatpush2.msra.mxu0 0.0
        %7056 = vmatprep.subr.mxu0 0.0
        %7057 = vmatpush2.msra.mxu0 0.0
        %7058 = vmatprep.subr.mxu0 0.0
        %7059 = vmatpush2.msra.mxu0 0.0
        %7060 = vmatprep.subr.mxu0 0.0
        %7061 = vmatpush2.msra.mxu0 0.0
        %7062 = vmatprep.subr.mxu0 0.0
        %7063 = vmatpush2.msra.mxu0 0.0
        %7064 = vmatprep.subr.mxu0 0.0
        %7065 = vmatpush2.msra.mxu0 0.0
        %7066 = vmatprep.subr.mxu0 0.0
        %7067 = vmatpush2.msra.mxu0 0.0
        %7068 = vmatprep.subr.mxu0 0.0
        %7069 = vmatpush2.msra.mxu0 0.0
        %7070 = vmatprep.subr.mxu0 0.0
        %7071 = vmatpush2.msra.mxu0 0.0
        %7072 = vmatprep.subr.mxu0 0.0
        %7073 = vmatpush2.msra.mxu0 0.0
        %7074 = vmatprep.subr.mxu0 0.0
        %7075 = vmatpush2.msra.mxu0 0.0
        %7076 = vmatprep.subr.mxu0 0.0
        %7077 = vmatpush2.msra.mxu0 0.0
        %7078 = vmatprep.subr.mxu0 0.0
        %7079 = vmatpush2.msra.mxu0 0.0
        %7080 = vmatprep.subr.mxu0 0.0
        %7081 = vmatpush2.msra.mxu0 0.0
        %7082 = vmatprep.subr.mxu0 0.0
        %7083 = vmatpush2.msra.mxu0 0.0
        %7084 = vmatprep.subr.mxu0 0.0
        %7085 = vmatpush2.msra.mxu0 0.0
        %7086 = vmatprep.mubr.f32.mxu0 0.0
        %7087 = vmatmul.mubr.f32.gmra.mxu0 %v7020
        %v7088 = vpop.f32.mrf.mxu0
        %v7089 = vadd.f32 0.0, %v7088
        %v7090 = vpop.f32.mrf.mxu0
        %7091 = vdwg.mxu0
        %7092 = vrot.lane.b32.xlu0 %v6681, 112
        %v7093 = vpop.permute.xlu0 %7092
        %7094 = vrot.lane.b32.xlu0 %v6757, 112
        %v7095 = vpop.permute.xlu0 %7094
        %v7096 = vsel %vm1448, %v7093, 0
        %v7098 = vsel %vm1448, %v7095, 0
        %7100 = vmatprep.subr.mxu0 0.0
        %7101 = vmatpush1.xpose.msra.mxu0 0.0
        %7102 = vmatprep.subr.mxu0 0.0
        %7103 = vmatpush1.xpose.msra.mxu0 0.0
        %7104 = vmatprep.subr.mxu0 0.0
        %7105 = vmatpush1.xpose.msra.mxu0 0.0
        %7106 = vmatprep.subr.mxu0 0.0
        %7107 = vmatpush1.xpose.msra.mxu0 0.0
        %7108 = vmatprep.subr.mxu0 0.0
        %7109 = vmatpush1.xpose.msra.mxu0 0.0
        %7110 = vmatprep.subr.mxu0 0.0
        %7111 = vmatpush1.xpose.msra.mxu0 0.0
        %7112 = vmatprep.subr.mxu0 0.0
        %7113 = vmatpush1.xpose.msra.mxu0 0.0
        %7114 = vmatprep.subr.mxu0 0.0
        %7115 = vmatpush1.xpose.msra.mxu0 0.0
        %7116 = vmatprep.subr.mxu0 0.0
        %7117 = vmatpush1.xpose.msra.mxu0 0.0
        %7118 = vmatprep.subr.mxu0 0.0
        %7119 = vmatpush1.xpose.msra.mxu0 0.0
        %7120 = vmatprep.subr.mxu0 0.0
        %7121 = vmatpush1.xpose.msra.mxu0 0.0
        %7122 = vmatprep.subr.mxu0 0.0
        %7123 = vmatpush1.xpose.msra.mxu0 0.0
        %7124 = vmatprep.subr.mxu0 0.0
        %7125 = vmatpush1.xpose.msra.mxu0 0.0
        %7126 = vmatprep.subr.mxu0 0.0
        %7127 = vmatpush1.xpose.msra.mxu0 0.0
        %7128 = vmatprep.subr.mxu0 0.0
        %7129 = vmatpush1.xpose.msra.mxu0 0.0
        %7130 = vmatprep.subr.mxu0 0.0
        %7131 = vmatpush1.xpose.msra.mxu0 %v7098
        %7132 = vmatprep.subr.mxu0 0.0
        %7133 = vmatpush2.xpose.msra.mxu0 0.0
        %7134 = vmatprep.subr.mxu0 0.0
        %7135 = vmatpush2.xpose.msra.mxu0 0.0
        %7136 = vmatprep.subr.mxu0 0.0
        %7137 = vmatpush2.xpose.msra.mxu0 0.0
        %7138 = vmatprep.subr.mxu0 0.0
        %7139 = vmatpush2.xpose.msra.mxu0 0.0
        %7140 = vmatprep.subr.mxu0 0.0
        %7141 = vmatpush2.xpose.msra.mxu0 0.0
        %7142 = vmatprep.subr.mxu0 0.0
        %7143 = vmatpush2.xpose.msra.mxu0 0.0
        %7144 = vmatprep.subr.mxu0 0.0
        %7145 = vmatpush2.xpose.msra.mxu0 0.0
        %7146 = vmatprep.subr.mxu0 0.0
        %7147 = vmatpush2.xpose.msra.mxu0 0.0
        %7148 = vmatprep.subr.mxu0 0.0
        %7149 = vmatpush2.xpose.msra.mxu0 0.0
        %7150 = vmatprep.subr.mxu0 0.0
        %7151 = vmatpush2.xpose.msra.mxu0 0.0
        %7152 = vmatprep.subr.mxu0 0.0
        %7153 = vmatpush2.xpose.msra.mxu0 0.0
        %7154 = vmatprep.subr.mxu0 0.0
        %7155 = vmatpush2.xpose.msra.mxu0 0.0
        %7156 = vmatprep.subr.mxu0 0.0
        %7157 = vmatpush2.xpose.msra.mxu0 0.0
        %7158 = vmatprep.subr.mxu0 0.0
        %7159 = vmatpush2.xpose.msra.mxu0 0.0
        %7160 = vmatprep.subr.mxu0 0.0
        %7161 = vmatpush2.xpose.msra.mxu0 0.0
        %7162 = vmatprep.subr.mxu0 0.0
        %7163 = vmatpush2.xpose.msra.mxu0 0.0
        %7164 = vmatprep.mubr.f32.mxu0 0.0
        %7165 = vmatmul.mubr.f32.gmra.mxu0 %v7096
        %v7166 = vpop.f32.mrf.mxu0
        %v7167 = vadd.f32 0.0, %v7166
        %v7168 = vpop.f32.mrf.mxu0
        %7169 = vdwg.mxu0
        %v7170 = vmul.f32 %v7167, 0.35355338
        %v7171 = vsel %vm1529, %v7170, -1e+09
        %v7172 = vsel %vm1448, %v7171, -inf
        %7173 = vmax.xlane.f32.xlu0 %v7172
        %v7174 = vpop.xlane.xlu0 %7173
        %v7175 = vsub.f32 %v7171, %v7174
        %v7176 = vmul.f32 %v7175, 1.442695
        %v7177 = vpow.pop %v7176
        %v7178 = vsel %vm1448, %v7177, 0.0
        %7179 = vadd.xlane.f32.xlu0 %v7178
        %v7180 = vpop.xlane.xlu0 %7179
        %v7181 = vrcp.pop %v7180
        %v7182 = vmul.f32 %v7177, %v7181
        %7183 = vrot.lane.b32.xlu0 %v6757, 80
        %v7184 = vpop.permute.xlu0 %7183
        %v7187 = vsel %vm1448, %v7182, 0
        %7189 = vmatprep.subr.mxu0 0.0
        %7190 = vmatpush1.msra.mxu0 0.0
        %7191 = vmatprep.subr.mxu0 0.0
        %7192 = vmatpush1.msra.mxu0 0.0
        %7193 = vmatprep.subr.mxu0 0.0
        %7194 = vmatpush1.msra.mxu0 0.0
        %7195 = vmatprep.subr.mxu0 0.0
        %7196 = vmatpush1.msra.mxu0 0.0
        %7197 = vmatprep.subr.mxu0 0.0
        %7198 = vmatpush1.msra.mxu0 0.0
        %7199 = vmatprep.subr.mxu0 0.0
        %7200 = vmatpush1.msra.mxu0 0.0
        %7201 = vmatprep.subr.mxu0 0.0
        %7202 = vmatpush1.msra.mxu0 0.0
        %7203 = vmatprep.subr.mxu0 0.0
        %7204 = vmatpush1.msra.mxu0 0.0
        %7205 = vmatprep.subr.mxu0 0.0
        %7206 = vmatpush1.msra.mxu0 0.0
        %7207 = vmatprep.subr.mxu0 0.0
        %7208 = vmatpush1.msra.mxu0 0.0
        %7209 = vmatprep.subr.mxu0 0.0
        %7210 = vmatpush1.msra.mxu0 0.0
        %7211 = vmatprep.subr.mxu0 0.0
        %7212 = vmatpush1.msra.mxu0 0.0
        %7213 = vmatprep.subr.mxu0 0.0
        %7214 = vmatpush1.msra.mxu0 0.0
        %7215 = vmatprep.subr.mxu0 0.0
        %7216 = vmatpush1.msra.mxu0 0.0
        %7217 = vmatprep.subr.mxu0 0.0
        %7218 = vmatpush1.msra.mxu0 0.0
        %7219 = vmatprep.subr.mxu0 0.0
        %7220 = vmatpush1.msra.mxu0 %v7184
        %7221 = vmatprep.subr.mxu0 0.0
        %7222 = vmatpush2.msra.mxu0 0.0
        %7223 = vmatprep.subr.mxu0 0.0
        %7224 = vmatpush2.msra.mxu0 0.0
        %7225 = vmatprep.subr.mxu0 0.0
        %7226 = vmatpush2.msra.mxu0 0.0
        %7227 = vmatprep.subr.mxu0 0.0
        %7228 = vmatpush2.msra.mxu0 0.0
        %7229 = vmatprep.subr.mxu0 0.0
        %7230 = vmatpush2.msra.mxu0 0.0
        %7231 = vmatprep.subr.mxu0 0.0
        %7232 = vmatpush2.msra.mxu0 0.0
        %7233 = vmatprep.subr.mxu0 0.0
        %7234 = vmatpush2.msra.mxu0 0.0
        %7235 = vmatprep.subr.mxu0 0.0
        %7236 = vmatpush2.msra.mxu0 0.0
        %7237 = vmatprep.subr.mxu0 0.0
        %7238 = vmatpush2.msra.mxu0 0.0
        %7239 = vmatprep.subr.mxu0 0.0
        %7240 = vmatpush2.msra.mxu0 0.0
        %7241 = vmatprep.subr.mxu0 0.0
        %7242 = vmatpush2.msra.mxu0 0.0
        %7243 = vmatprep.subr.mxu0 0.0
        %7244 = vmatpush2.msra.mxu0 0.0
        %7245 = vmatprep.subr.mxu0 0.0
        %7246 = vmatpush2.msra.mxu0 0.0
        %7247 = vmatprep.subr.mxu0 0.0
        %7248 = vmatpush2.msra.mxu0 0.0
        %7249 = vmatprep.subr.mxu0 0.0
        %7250 = vmatpush2.msra.mxu0 0.0
        %7251 = vmatprep.subr.mxu0 0.0
        %7252 = vmatpush2.msra.mxu0 0.0
        %7253 = vmatprep.mubr.f32.mxu0 0.0
        %7254 = vmatmul.mubr.f32.gmra.mxu0 %v7187
        %v7255 = vpop.f32.mrf.mxu0
        %v7256 = vadd.f32 0.0, %v7255
        %v7257 = vpop.f32.mrf.mxu0
        %7258 = vdwg.mxu0
        %7259 = vrot.lane.b32.xlu0 %v6681, 104
        %v7260 = vpop.permute.xlu0 %7259
        %7261 = vrot.lane.b32.xlu0 %v6757, 104
        %v7262 = vpop.permute.xlu0 %7261
        %v7263 = vsel %vm1448, %v7260, 0
        %v7265 = vsel %vm1448, %v7262, 0
        %7267 = vmatprep.subr.mxu0 0.0
        %7268 = vmatpush1.xpose.msra.mxu0 0.0
        %7269 = vmatprep.subr.mxu0 0.0
        %7270 = vmatpush1.xpose.msra.mxu0 0.0
        %7271 = vmatprep.subr.mxu0 0.0
        %7272 = vmatpush1.xpose.msra.mxu0 0.0
        %7273 = vmatprep.subr.mxu0 0.0
        %7274 = vmatpush1.xpose.msra.mxu0 0.0
        %7275 = vmatprep.subr.mxu0 0.0
        %7276 = vmatpush1.xpose.msra.mxu0 0.0
        %7277 = vmatprep.subr.mxu0 0.0
        %7278 = vmatpush1.xpose.msra.mxu0 0.0
        %7279 = vmatprep.subr.mxu0 0.0
        %7280 = vmatpush1.xpose.msra.mxu0 0.0
        %7281 = vmatprep.subr.mxu0 0.0
        %7282 = vmatpush1.xpose.msra.mxu0 0.0
        %7283 = vmatprep.subr.mxu0 0.0
        %7284 = vmatpush1.xpose.msra.mxu0 0.0
        %7285 = vmatprep.subr.mxu0 0.0
        %7286 = vmatpush1.xpose.msra.mxu0 0.0
        %7287 = vmatprep.subr.mxu0 0.0
        %7288 = vmatpush1.xpose.msra.mxu0 0.0
        %7289 = vmatprep.subr.mxu0 0.0
        %7290 = vmatpush1.xpose.msra.mxu0 0.0
        %7291 = vmatprep.subr.mxu0 0.0
        %7292 = vmatpush1.xpose.msra.mxu0 0.0
        %7293 = vmatprep.subr.mxu0 0.0
        %7294 = vmatpush1.xpose.msra.mxu0 0.0
        %7295 = vmatprep.subr.mxu0 0.0
        %7296 = vmatpush1.xpose.msra.mxu0 0.0
        %7297 = vmatprep.subr.mxu0 0.0
        %7298 = vmatpush1.xpose.msra.mxu0 %v7265
        %7299 = vmatprep.subr.mxu0 0.0
        %7300 = vmatpush2.xpose.msra.mxu0 0.0
        %7301 = vmatprep.subr.mxu0 0.0
        %7302 = vmatpush2.xpose.msra.mxu0 0.0
        %7303 = vmatprep.subr.mxu0 0.0
        %7304 = vmatpush2.xpose.msra.mxu0 0.0
        %7305 = vmatprep.subr.mxu0 0.0
        %7306 = vmatpush2.xpose.msra.mxu0 0.0
        %7307 = vmatprep.subr.mxu0 0.0
        %7308 = vmatpush2.xpose.msra.mxu0 0.0
        %7309 = vmatprep.subr.mxu0 0.0
        %7310 = vmatpush2.xpose.msra.mxu0 0.0
        %7311 = vmatprep.subr.mxu0 0.0
        %7312 = vmatpush2.xpose.msra.mxu0 0.0
        %7313 = vmatprep.subr.mxu0 0.0
        %7314 = vmatpush2.xpose.msra.mxu0 0.0
        %7315 = vmatprep.subr.mxu0 0.0
        %7316 = vmatpush2.xpose.msra.mxu0 0.0
        %7317 = vmatprep.subr.mxu0 0.0
        %7318 = vmatpush2.xpose.msra.mxu0 0.0
        %7319 = vmatprep.subr.mxu0 0.0
        %7320 = vmatpush2.xpose.msra.mxu0 0.0
        %7321 = vmatprep.subr.mxu0 0.0
        %7322 = vmatpush2.xpose.msra.mxu0 0.0
        %7323 = vmatprep.subr.mxu0 0.0
        %7324 = vmatpush2.xpose.msra.mxu0 0.0
        %7325 = vmatprep.subr.mxu0 0.0
        %7326 = vmatpush2.xpose.msra.mxu0 0.0
        %7327 = vmatprep.subr.mxu0 0.0
        %7328 = vmatpush2.xpose.msra.mxu0 0.0
        %7329 = vmatprep.subr.mxu0 0.0
        %7330 = vmatpush2.xpose.msra.mxu0 0.0
        %7331 = vmatprep.mubr.f32.mxu0 0.0
        %7332 = vmatmul.mubr.f32.gmra.mxu0 %v7263
        %v7333 = vpop.f32.mrf.mxu0
        %v7334 = vadd.f32 0.0, %v7333
        %v7335 = vpop.f32.mrf.mxu0
        %7336 = vdwg.mxu0
        %v7337 = vmul.f32 %v7334, 0.35355338
        %v7338 = vsel %vm1529, %v7337, -1e+09
        %v7339 = vsel %vm1448, %v7338, -inf
        %7340 = vmax.xlane.f32.xlu0 %v7339
        %v7341 = vpop.xlane.xlu0 %7340
        %v7342 = vsub.f32 %v7338, %v7341
        %v7343 = vmul.f32 %v7342, 1.442695
        %v7344 = vpow.pop %v7343
        %v7345 = vsel %vm1448, %v7344, 0.0
        %7346 = vadd.xlane.f32.xlu0 %v7345
        %v7347 = vpop.xlane.xlu0 %7346
        %v7348 = vrcp.pop %v7347
        %v7349 = vmul.f32 %v7344, %v7348
        %7350 = vrot.lane.b32.xlu0 %v6757, 72
        %v7351 = vpop.permute.xlu0 %7350
        %v7354 = vsel %vm1448, %v7349, 0
        %7356 = vmatprep.subr.mxu0 0.0
        %7357 = vmatpush1.msra.mxu0 0.0
        %7358 = vmatprep.subr.mxu0 0.0
        %7359 = vmatpush1.msra.mxu0 0.0
        %7360 = vmatprep.subr.mxu0 0.0
        %7361 = vmatpush1.msra.mxu0 0.0
        %7362 = vmatprep.subr.mxu0 0.0
        %7363 = vmatpush1.msra.mxu0 0.0
        %7364 = vmatprep.subr.mxu0 0.0
        %7365 = vmatpush1.msra.mxu0 0.0
        %7366 = vmatprep.subr.mxu0 0.0
        %7367 = vmatpush1.msra.mxu0 0.0
        %7368 = vmatprep.subr.mxu0 0.0
        %7369 = vmatpush1.msra.mxu0 0.0
        %7370 = vmatprep.subr.mxu0 0.0
        %7371 = vmatpush1.msra.mxu0 0.0
        %7372 = vmatprep.subr.mxu0 0.0
        %7373 = vmatpush1.msra.mxu0 0.0
        %7374 = vmatprep.subr.mxu0 0.0
        %7375 = vmatpush1.msra.mxu0 0.0
        %7376 = vmatprep.subr.mxu0 0.0
        %7377 = vmatpush1.msra.mxu0 0.0
        %7378 = vmatprep.subr.mxu0 0.0
        %7379 = vmatpush1.msra.mxu0 0.0
        %7380 = vmatprep.subr.mxu0 0.0
        %7381 = vmatpush1.msra.mxu0 0.0
        %7382 = vmatprep.subr.mxu0 0.0
        %7383 = vmatpush1.msra.mxu0 0.0
        %7384 = vmatprep.subr.mxu0 0.0
        %7385 = vmatpush1.msra.mxu0 0.0
        %7386 = vmatprep.subr.mxu0 0.0
        %7387 = vmatpush1.msra.mxu0 %v7351
        %7388 = vmatprep.subr.mxu0 0.0
        %7389 = vmatpush2.msra.mxu0 0.0
        %7390 = vmatprep.subr.mxu0 0.0
        %7391 = vmatpush2.msra.mxu0 0.0
        %7392 = vmatprep.subr.mxu0 0.0
        %7393 = vmatpush2.msra.mxu0 0.0
        %7394 = vmatprep.subr.mxu0 0.0
        %7395 = vmatpush2.msra.mxu0 0.0
        %7396 = vmatprep.subr.mxu0 0.0
        %7397 = vmatpush2.msra.mxu0 0.0
        %7398 = vmatprep.subr.mxu0 0.0
        %7399 = vmatpush2.msra.mxu0 0.0
        %7400 = vmatprep.subr.mxu0 0.0
        %7401 = vmatpush2.msra.mxu0 0.0
        %7402 = vmatprep.subr.mxu0 0.0
        %7403 = vmatpush2.msra.mxu0 0.0
        %7404 = vmatprep.subr.mxu0 0.0
        %7405 = vmatpush2.msra.mxu0 0.0
        %7406 = vmatprep.subr.mxu0 0.0
        %7407 = vmatpush2.msra.mxu0 0.0
        %7408 = vmatprep.subr.mxu0 0.0
        %7409 = vmatpush2.msra.mxu0 0.0
        %7410 = vmatprep.subr.mxu0 0.0
        %7411 = vmatpush2.msra.mxu0 0.0
        %7412 = vmatprep.subr.mxu0 0.0
        %7413 = vmatpush2.msra.mxu0 0.0
        %7414 = vmatprep.subr.mxu0 0.0
        %7415 = vmatpush2.msra.mxu0 0.0
        %7416 = vmatprep.subr.mxu0 0.0
        %7417 = vmatpush2.msra.mxu0 0.0
        %7418 = vmatprep.subr.mxu0 0.0
        %7419 = vmatpush2.msra.mxu0 0.0
        %7420 = vmatprep.mubr.f32.mxu0 0.0
        %7421 = vmatmul.mubr.f32.gmra.mxu0 %v7354
        %v7422 = vpop.f32.mrf.mxu0
        %v7423 = vadd.f32 0.0, %v7422
        %v7424 = vpop.f32.mrf.mxu0
        %7425 = vdwg.mxu0
        %7427 = vrot.lane.b32.xlu0 %v7089, 8
        %v7428 = vpop.permute.xlu0 %7427
        %7431 = vrot.lane.b32.xlu0 %v7256, 16
        %v7432 = vpop.permute.xlu0 %7431
        %7435 = vrot.lane.b32.xlu0 %v7423, 24
        %v7436 = vpop.permute.xlu0 %7435
        %v7438 = vsel %vm1448, %v6922, %v7428
        %v7439 = vsel %vm2132, %v7438, %v7432
        %v7440 = vsel %vm2134, %v7439, %v7436
        %v7442 = vlaneseq
        %v7443 = vshrl.u32 %v7442, 7
        %v7444 = vsub.s32 0, %v7443
        %v7445 = vrot.slane %v6604, %v7444
        %v7448 = vsel %vm1319, %v7440, 0
        %7450 = vmatprep.subr.mxu0 0.0
        %7451 = vmatpush1.msra.mxu0 0.0
        %7452 = vmatprep.subr.mxu0 0.0
        %7453 = vmatpush1.msra.mxu0 0.0
        %7454 = vmatprep.subr.mxu0 0.0
        %7455 = vmatpush1.msra.mxu0 0.0
        %7456 = vmatprep.subr.mxu0 0.0
        %7457 = vmatpush1.msra.mxu0 0.0
        %7458 = vmatprep.subr.mxu0 0.0
        %7459 = vmatpush1.msra.mxu0 0.0
        %7460 = vmatprep.subr.mxu0 0.0
        %7461 = vmatpush1.msra.mxu0 0.0
        %7462 = vmatprep.subr.mxu0 0.0
        %7463 = vmatpush1.msra.mxu0 0.0
        %7464 = vmatprep.subr.mxu0 0.0
        %7465 = vmatpush1.msra.mxu0 0.0
        %7466 = vmatprep.subr.mxu0 0.0
        %7467 = vmatpush1.msra.mxu0 0.0
        %7468 = vmatprep.subr.mxu0 0.0
        %7469 = vmatpush1.msra.mxu0 0.0
        %7470 = vmatprep.subr.mxu0 0.0
        %7471 = vmatpush1.msra.mxu0 0.0
        %7472 = vmatprep.subr.mxu0 0.0
        %7473 = vmatpush1.msra.mxu0 0.0
        %7474 = vmatprep.subr.mxu0 0.0
        %7475 = vmatpush1.msra.mxu0 %v6602
        %7476 = vmatprep.subr.mxu0 0.0
        %7477 = vmatpush1.msra.mxu0 %v6601
        %7478 = vmatprep.subr.mxu0 0.0
        %7479 = vmatpush1.msra.mxu0 %v6600
        %7480 = vmatprep.subr.mxu0 0.0
        %7481 = vmatpush1.msra.mxu0 %v6599
        %7482 = vmatprep.subr.mxu0 0.0
        %7483 = vmatpush2.msra.mxu0 0.0
        %7484 = vmatprep.subr.mxu0 0.0
        %7485 = vmatpush2.msra.mxu0 0.0
        %7486 = vmatprep.subr.mxu0 0.0
        %7487 = vmatpush2.msra.mxu0 0.0
        %7488 = vmatprep.subr.mxu0 0.0
        %7489 = vmatpush2.msra.mxu0 0.0
        %7490 = vmatprep.subr.mxu0 0.0
        %7491 = vmatpush2.msra.mxu0 0.0
        %7492 = vmatprep.subr.mxu0 0.0
        %7493 = vmatpush2.msra.mxu0 0.0
        %7494 = vmatprep.subr.mxu0 0.0
        %7495 = vmatpush2.msra.mxu0 0.0
        %7496 = vmatprep.subr.mxu0 0.0
        %7497 = vmatpush2.msra.mxu0 0.0
        %7498 = vmatprep.subr.mxu0 0.0
        %7499 = vmatpush2.msra.mxu0 0.0
        %7500 = vmatprep.subr.mxu0 0.0
        %7501 = vmatpush2.msra.mxu0 0.0
        %7502 = vmatprep.subr.mxu0 0.0
        %7503 = vmatpush2.msra.mxu0 0.0
        %7504 = vmatprep.subr.mxu0 0.0
        %7505 = vmatpush2.msra.mxu0 0.0
        %7506 = vmatprep.subr.mxu0 0.0
        %7507 = vmatpush2.msra.mxu0 0.0
        %7508 = vmatprep.subr.mxu0 0.0
        %7509 = vmatpush2.msra.mxu0 0.0
        %7510 = vmatprep.subr.mxu0 0.0
        %7511 = vmatpush2.msra.mxu0 0.0
        %7512 = vmatprep.subr.mxu0 0.0
        %7513 = vmatpush2.msra.mxu0 0.0
        %7514 = vmatprep.mubr.f32.mxu0 0.0
        %7515 = vmatmul.mubr.f32.gmra.mxu0 %v7448
        %v7516 = vpop.f32.mrf.mxu0
        %v7517 = vadd.f32 %v7445, %v7516
        %v7518 = vpop.f32.mrf.mxu0
        %7519 = vdwg.mxu0
        %v7520 = vadd.f32 %v6545, %v7517
        %s7521 = scalar_lea.vmem %s43, 1
        %v7522 = vld [vmem:[%s7521] sm:$0x1]
        %s7523 = scalar_lea.vmem %s41, 1
        %v7524 = vld [vmem:[%s7523] sm:$0x1]
        %v7525 = vsel %vm1319, %v7520, 0.0
        %7526 = vadd.xlane.f32.xlu0 %v7525
        %v7527 = vpop.xlane.xlu0 %7526
        %v7528 = vmul.f32 %v7527, %v1323
        %v7529 = vsub.f32 %v7520, %v7528
        %v7530 = vmul.f32 %v7529, %v7529
        %v7531 = vsel %vm1319, %v7530, 0.0
        %7532 = vadd.xlane.f32.xlu0 %v7531
        %v7533 = vpop.xlane.xlu0 %7532
        %v7534 = vmul.f32 %v7533, %v1330
        %v7536 = vlaneseq
        %v7537 = vshrl.u32 %v7536, 7
        %v7538 = vsub.s32 0, %v7537
        %v7539 = vrot.slane %v7522, %v7538
        %v7541 = vmul.f32 %v7539, %v7529
        %v7542 = vrsqrt.pop %v7534
        %v7543 = vmul.f32 %v7534, %v7542
        %vm7544 = vcmp.eq.f32.partialorder %v7534, inf
        %v7545 = vsel %vm7544, %v7534, %v7543
        %vm7546 = vcmp.eq.f32.partialorder %v7534, 0.0
        %v7547 = vand.u32 %v7534, 2147483648
        %v7548 = vsel %vm7546, %v7547, %v7545
        %v7549 = vadd.f32 %v7548, 1e-06
        %v7550 = vrcp.pop %v7549
        %v7551 = vmul.f32 %v7541, %v7550
        %v7553 = vlaneseq
        %v7554 = vshrl.u32 %v7553, 7
        %v7555 = vsub.s32 0, %v7554
        %v7556 = vrot.slane %v7524, %v7555
        %v7558 = vadd.f32 %v7551, %v7556
        %s7559 = scalar_lea.vmem %s29, 32
        %v7560 = vld [vmem:[%s7559] sm:$0xff]
        %v7561 = vld [vmem:[%s7559 + $0x8] sm:$0xff]
        %v7562 = vld [vmem:[%s7559 + $0x10] sm:$0xff]
        %v7563 = vld [vmem:[%s7559 + $0x18] sm:$0xff]
        %s7564 = scalar_lea.vmem %s25, 1
        %v7565 = vld [vmem:[%s7564] sm:$0x1]
        %s7566 = scalar_lea.vmem %s31, 64
        %v7567 = vld [vmem:[%s7566] sm:$0xff]
        %v7568 = vld [vmem:[%s7566 + $0x8] sm:$0xff]
        %v7569 = vld [vmem:[%s7566 + $0x10] sm:$0xff]
        %v7570 = vld [vmem:[%s7566 + $0x18] sm:$0xff]
        %v7571 = vld [vmem:[%s7566 + $0x20] sm:$0xff]
        %v7572 = vld [vmem:[%s7566 + $0x28] sm:$0xff]
        %v7573 = vld [vmem:[%s7566 + $0x30] sm:$0xff]
        %v7574 = vld [vmem:[%s7566 + $0x38] sm:$0xff]
        %s7575 = scalar_lea.vmem %s27, 1
        %v7576 = vld [vmem:[%s7575] sm:$0x1]
        %v7578 = vlaneseq
        %v7579 = vshrl.u32 %v7578, 7
        %v7580 = vsub.s32 0, %v7579
        %v7581 = vrot.slane %v7565, %v7580
        %v7584 = vsel %vm1319, %v7558, 0
        %7586 = vmatprep.subr.mxu0 0.0
        %7587 = vmatpush1.msra.mxu0 0.0
        %7588 = vmatprep.subr.mxu0 0.0
        %7589 = vmatpush1.msra.mxu0 0.0
        %7590 = vmatprep.subr.mxu0 0.0
        %7591 = vmatpush1.msra.mxu0 0.0
        %7592 = vmatprep.subr.mxu0 0.0
        %7593 = vmatpush1.msra.mxu0 0.0
        %7594 = vmatprep.subr.mxu0 0.0
        %7595 = vmatpush1.msra.mxu0 0.0
        %7596 = vmatprep.subr.mxu0 0.0
        %7597 = vmatpush1.msra.mxu0 0.0
        %7598 = vmatprep.subr.mxu0 0.0
        %7599 = vmatpush1.msra.mxu0 0.0
        %7600 = vmatprep.subr.mxu0 0.0
        %7601 = vmatpush1.msra.mxu0 0.0
        %7602 = vmatprep.subr.mxu0 0.0
        %7603 = vmatpush1.msra.mxu0 0.0
        %7604 = vmatprep.subr.mxu0 0.0
        %7605 = vmatpush1.msra.mxu0 0.0
        %7606 = vmatprep.subr.mxu0 0.0
        %7607 = vmatpush1.msra.mxu0 0.0
        %7608 = vmatprep.subr.mxu0 0.0
        %7609 = vmatpush1.msra.mxu0 0.0
        %7610 = vmatprep.subr.mxu0 0.0
        %7611 = vmatpush1.msra.mxu0 %v7563
        %7612 = vmatprep.subr.mxu0 0.0
        %7613 = vmatpush1.msra.mxu0 %v7562
        %7614 = vmatprep.subr.mxu0 0.0
        %7615 = vmatpush1.msra.mxu0 %v7561
        %7616 = vmatprep.subr.mxu0 0.0
        %7617 = vmatpush1.msra.mxu0 %v7560
        %7618 = vmatprep.subr.mxu0 0.0
        %7619 = vmatpush2.msra.mxu0 0.0
        %7620 = vmatprep.subr.mxu0 0.0
        %7621 = vmatpush2.msra.mxu0 0.0
        %7622 = vmatprep.subr.mxu0 0.0
        %7623 = vmatpush2.msra.mxu0 0.0
        %7624 = vmatprep.subr.mxu0 0.0
        %7625 = vmatpush2.msra.mxu0 0.0
        %7626 = vmatprep.subr.mxu0 0.0
        %7627 = vmatpush2.msra.mxu0 0.0
        %7628 = vmatprep.subr.mxu0 0.0
        %7629 = vmatpush2.msra.mxu0 0.0
        %7630 = vmatprep.subr.mxu0 0.0
        %7631 = vmatpush2.msra.mxu0 0.0
        %7632 = vmatprep.subr.mxu0 0.0
        %7633 = vmatpush2.msra.mxu0 0.0
        %7634 = vmatprep.subr.mxu0 0.0
        %7635 = vmatpush2.msra.mxu0 0.0
        %7636 = vmatprep.subr.mxu0 0.0
        %7637 = vmatpush2.msra.mxu0 0.0
        %7638 = vmatprep.subr.mxu0 0.0
        %7639 = vmatpush2.msra.mxu0 0.0
        %7640 = vmatprep.subr.mxu0 0.0
        %7641 = vmatpush2.msra.mxu0 0.0
        %7642 = vmatprep.subr.mxu0 0.0
        %7643 = vmatpush2.msra.mxu0 0.0
        %7644 = vmatprep.subr.mxu0 0.0
        %7645 = vmatpush2.msra.mxu0 0.0
        %7646 = vmatprep.subr.mxu0 0.0
        %7647 = vmatpush2.msra.mxu0 0.0
        %7648 = vmatprep.subr.mxu0 0.0
        %7649 = vmatpush2.msra.mxu0 0.0
        %7650 = vmatprep.mubr.f32.mxu0 0.0
        %7651 = vmatmul.mubr.f32.gmra.mxu0 %v7584
        %v7652 = vpop.f32.mrf.mxu0
        %v7653 = vadd.f32 %v7581, %v7652
        %v7654 = vpop.f32.mrf.mxu0
        %7655 = vdwg.mxu0
        %v7656 = vmax.f32 %v7653, 0.0
        %v7658 = vlaneseq
        %v7659 = vshrl.u32 %v7658, 7
        %v7660 = vsub.s32 0, %v7659
        %v7661 = vrot.slane %v7576, %v7660
        %v7664 = vsel %vm2352, %v7656, 0
        %7666 = vmatprep.subr.mxu0 0.0
        %7667 = vmatpush1.msra.mxu0 0.0
        %7668 = vmatprep.subr.mxu0 0.0
        %7669 = vmatpush1.msra.mxu0 0.0
        %7670 = vmatprep.subr.mxu0 0.0
        %7671 = vmatpush1.msra.mxu0 0.0
        %7672 = vmatprep.subr.mxu0 0.0
        %7673 = vmatpush1.msra.mxu0 0.0
        %7674 = vmatprep.subr.mxu0 0.0
        %7675 = vmatpush1.msra.mxu0 0.0
        %7676 = vmatprep.subr.mxu0 0.0
        %7677 = vmatpush1.msra.mxu0 0.0
        %7678 = vmatprep.subr.mxu0 0.0
        %7679 = vmatpush1.msra.mxu0 0.0
        %7680 = vmatprep.subr.mxu0 0.0
        %7681 = vmatpush1.msra.mxu0 0.0
        %7682 = vmatprep.subr.mxu0 0.0
        %7683 = vmatpush1.msra.mxu0 %v7574
        %7684 = vmatprep.subr.mxu0 0.0
        %7685 = vmatpush1.msra.mxu0 %v7573
        %7686 = vmatprep.subr.mxu0 0.0
        %7687 = vmatpush1.msra.mxu0 %v7572
        %7688 = vmatprep.subr.mxu0 0.0
        %7689 = vmatpush1.msra.mxu0 %v7571
        %7690 = vmatprep.subr.mxu0 0.0
        %7691 = vmatpush1.msra.mxu0 %v7570
        %7692 = vmatprep.subr.mxu0 0.0
        %7693 = vmatpush1.msra.mxu0 %v7569
        %7694 = vmatprep.subr.mxu0 0.0
        %7695 = vmatpush1.msra.mxu0 %v7568
        %7696 = vmatprep.subr.mxu0 0.0
        %7697 = vmatpush1.msra.mxu0 %v7567
        %7698 = vmatprep.subr.mxu0 0.0
        %7699 = vmatpush2.msra.mxu0 0.0
        %7700 = vmatprep.subr.mxu0 0.0
        %7701 = vmatpush2.msra.mxu0 0.0
        %7702 = vmatprep.subr.mxu0 0.0
        %7703 = vmatpush2.msra.mxu0 0.0
        %7704 = vmatprep.subr.mxu0 0.0
        %7705 = vmatpush2.msra.mxu0 0.0
        %7706 = vmatprep.subr.mxu0 0.0
        %7707 = vmatpush2.msra.mxu0 0.0
        %7708 = vmatprep.subr.mxu0 0.0
        %7709 = vmatpush2.msra.mxu0 0.0
        %7710 = vmatprep.subr.mxu0 0.0
        %7711 = vmatpush2.msra.mxu0 0.0
        %7712 = vmatprep.subr.mxu0 0.0
        %7713 = vmatpush2.msra.mxu0 0.0
        %7714 = vmatprep.subr.mxu0 0.0
        %7715 = vmatpush2.msra.mxu0 0.0
        %7716 = vmatprep.subr.mxu0 0.0
        %7717 = vmatpush2.msra.mxu0 0.0
        %7718 = vmatprep.subr.mxu0 0.0
        %7719 = vmatpush2.msra.mxu0 0.0
        %7720 = vmatprep.subr.mxu0 0.0
        %7721 = vmatpush2.msra.mxu0 0.0
        %7722 = vmatprep.subr.mxu0 0.0
        %7723 = vmatpush2.msra.mxu0 0.0
        %7724 = vmatprep.subr.mxu0 0.0
        %7725 = vmatpush2.msra.mxu0 0.0
        %7726 = vmatprep.subr.mxu0 0.0
        %7727 = vmatpush2.msra.mxu0 0.0
        %7728 = vmatprep.subr.mxu0 0.0
        %7729 = vmatpush2.msra.mxu0 0.0
        %7730 = vmatprep.mubr.f32.mxu0 0.0
        %7731 = vmatmul.mubr.f32.gmra.mxu0 %v7664
        %v7732 = vpop.f32.mrf.mxu0
        %v7733 = vadd.f32 %v7661, %v7732
        %v7734 = vpop.f32.mrf.mxu0
        %7735 = vdwg.mxu0
        %v7736 = vadd.f32 %v7520, %v7733
        %v7737 = vld [vmem:[%s47] sm:$0x1]
        %v7738 = vld [vmem:[%s45] sm:$0x1]
        %v7739 = vsel %vm1319, %v7736, 0.0
        %7740 = vadd.xlane.f32.xlu0 %v7739
        %v7741 = vpop.xlane.xlu0 %7740
        %v7742 = vmul.f32 %v7741, %v1323
        %v7743 = vsub.f32 %v7736, %v7742
        %v7744 = vmul.f32 %v7743, %v7743
        %v7745 = vsel %vm1319, %v7744, 0.0
        %7746 = vadd.xlane.f32.xlu0 %v7745
        %v7747 = vpop.xlane.xlu0 %7746
        %v7748 = vmul.f32 %v7747, %v1330
        %v7750 = vlaneseq
        %v7751 = vshrl.u32 %v7750, 7
        %v7752 = vsub.s32 0, %v7751
        %v7753 = vrot.slane %v7737, %v7752
        %v7755 = vmul.f32 %v7753, %v7743
        %v7756 = vrsqrt.pop %v7748
        %v7757 = vmul.f32 %v7748, %v7756
        %vm7758 = vcmp.eq.f32.partialorder %v7748, inf
        %v7759 = vsel %vm7758, %v7748, %v7757
        %vm7760 = vcmp.eq.f32.partialorder %v7748, 0.0
        %v7761 = vand.u32 %v7748, 2147483648
        %v7762 = vsel %vm7760, %v7761, %v7759
        %v7763 = vadd.f32 %v7762, 1e-06
        %v7764 = vrcp.pop %v7763
        %v7765 = vmul.f32 %v7755, %v7764
        %v7767 = vlaneseq
        %v7768 = vshrl.u32 %v7767, 7
        %v7769 = vsub.s32 0, %v7768
        %v7770 = vrot.slane %v7738, %v7769
        %v7772 = vadd.f32 %v7765, %v7770
        %7773 = vst.msk [vmem:[%s1292] sm:$0xff] %vm1319, %v7772
        %s7774 = sand.u32 %s1009, 1
        %s7775 = scalar_lea.sflag [#allocation3], %s7774
        %s7776 = sand.u32 %s1009, 1
        %s7777 = smul.addr %s7776, 8
        %s7778 = scalar_lea.vmem [#allocation2], %s7777
        // Predicated region
        $region189: #{encoder_decoder_pallas.1} parent=187 // pred_check
          %p7779 = pneg %p1019
        $region190: #{encoder_decoder_pallas.1} parent=187 // pred_check_branch
          %7781 = sbr.rel (%p7779) target = $region192
        $region191: #{encoder_decoder_pallas.1} parent=187 // pred_region
          %s7783 = ssub.s32 128, 128
          %7784 = vsyncadd %s7775, %s7783
          %s7785 = smul.addr %s99, 128
          %s7786 = scalar_lea.hbm %s85, %s7785
          %s7788 = sshll.u32 %s7778, 4
          %s7789 = int_to_ptr.vmem [resolvable:$true] %s7788
          %7791 = dma.vmem_to_hbm [thread:$0]  %s7789, 128, %s7786, %s7775
        $region192: #{encoder_decoder_pallas.1} parent=187 // pred_fallthru
          _
      $region188: #{encoder_decoder_pallas.1} parent=5 // pred_fallthru
        _
      %p7792 = scmp.le.s32.totalorder 2, %s94
      // Predicated region
      $region193: #{encoder_decoder_pallas.1} parent=5 // pred_check
        %p7793 = pneg %p7792
      $region194: #{encoder_decoder_pallas.1} parent=5 // pred_check_branch
        %7795 = sbr.rel (%p7793) target = $region196
      $region195: #{encoder_decoder_pallas.1} parent=5 // pred_region
        %s7796 = ssub.s32 %s94, 2
        // Predicated region
        $region197: #{encoder_decoder_pallas.1} parent=195 // pred_check
          %p7797 = pneg %p1025
        $region198: #{encoder_decoder_pallas.1} parent=195 // pred_check_branch
          %7799 = sbr.rel (%p7797) target = $region200
        $region199: #{encoder_decoder_pallas.1} parent=195 // pred_region
          %s7800 = sand.u32 %s1010, 1
          %s7801 = scalar_lea.sflag [#allocation3], %s7800
          %s7802 = sand.u32 %s1010, 1
          %s7803 = smul.addr %s7802, 8
          %s7804 = scalar_lea.vmem [#allocation2], %s7803
          %7805 = dma.done %s7801, 128
        $region200: #{encoder_decoder_pallas.1} parent=195 // pred_fallthru
          _
      $region196: #{encoder_decoder_pallas.1} parent=5 // pred_fallthru
        _
    $region6: #{encoder_decoder_pallas.1} parent=1 // loop_footer
      %s98 = sadd.s32 1, %s94
    $region7: #{encoder_decoder_pallas.1} parent=1 // loop_footer_branch
      %93 = sbr.rel target = $region3
    $region8: #{encoder_decoder_pallas.1} parent=1 // loop_exit
      _
    %7806 = vsyncpa [#allocation3], 1
    %s7807 = scalar_lea.sflag [#allocation3], 1
    %7808 = vsyncpa %s7807, 1

</llo_original>
